<compile_context>
chip_gen: v7x
topology: tpu7x:2x2x1
jax: 0.10.0
libtpu: 0.0.40
codegen_flags: <defaults>
</compile_context>

<pallas_src>
import functools
import math

import jax
import jax.numpy as jnp
from jax.experimental import pallas as pl
from jax.experimental.pallas import tpu as pltpu


LN_EPS = 1e-5                 # PyTorch LayerNorm default eps
_VPU_SCORE_HD_MAX = 16        # below this head_dim, q.k^T runs on the VPU instead of the MXU


def _cdiv(a, b):
    return -(-a // b)


# ---------------------------------------------------------------------------
# in-kernel helpers
# ---------------------------------------------------------------------------

def _mm(a, b, mxu_dtype):
    """MXU matmul with f32 accumulation; operands cast to the requested MXU input dtype."""
    return jnp.dot(a.astype(mxu_dtype), b.astype(mxu_dtype),
                   preferred_element_type=jnp.float32)


def _layernorm(x, g, b, eps):
    mean = jnp.mean(x, axis=-1, keepdims=True)
    var = jnp.mean(jnp.square(x - mean), axis=-1, keepdims=True)
    return (x - mean) * jax.lax.rsqrt(var + eps) * g + b


# ---------------------------------------------------------------------------
# kernels (lane-dense (rows, features) tiles; rows are s-major with
# `group` = B consecutive rows per sequence position)
# ---------------------------------------------------------------------------

def _embed_pe_kernel(x_ref, w_ref, b_ref, pe_ref, o_ref, *, group, mxu_dtype):
    y = _mm(x_ref[...], w_ref[...], mxu_dtype) + b_ref[...].astype(jnp.float32)   # (tm, E)
    tm, E = y.shape
    G = tm // group
    # positional encoding arrives un-broadcast as (G, 1, E); broadcast over the batch group here
    y = y.reshape(G, group, E) + pe_ref[...].astype(jnp.float32)
    o_ref[...] = y.reshape(tm, E).astype(o_ref.dtype)


def _attn_ln_kernel(h_ref, w_in_ref, b_in_ref, w_out_ref, b_out_ref,
                    g1_ref, be1_ref, o_ref, *,
                    nhead, group, eps, mxu_dtype, exact_softmax):
    """Fused: QKV proj -> grouped multi-head attention -> out-proj -> residual -> LayerNorm1.

    Attention only mixes the `group` rows sharing a sequence position, so scores are batched
    (G, group, group) dots -- no (tm, tm) score matrix, no mask.  Per-head PV results are
    folded directly into W_out (no head concatenate, bounded live ranges).
    """
    h = h_ref[...]                                      # (tm, E) storage dtype
    tm, E = h.shape
    hd = E // nhead
    G = tm // group
    scale = 1.0 / math.sqrt(hd)

    qkv = _mm(h, w_in_ref[...], mxu_dtype) + b_in_ref[...].astype(jnp.float32)   # (tm, 3E) f32
    w_out = w_out_ref[...]

    acc = jnp.zeros((tm, E), jnp.float32)
    for hh in range(nhead):
        lo = hh * hd
        q = qkv[:, lo:lo + hd].reshape(G, group, hd)
        k = qkv[:, E + lo:E + lo + hd].reshape(G, group, hd)
        v = qkv[:, 2 * E + lo:2 * E + lo + hd].reshape(G, group, hd)

        if hd <= _VPU_SCORE_HD_MAX:
            # tiny contraction: broadcast-mul + reduce on the VPU (an MXU pass would be idle)
            s = jnp.sum(q[:, :, None, :] * k[:, None, :, :], axis=-1) * scale
        else:
            s = jax.lax.dot_general(
                q.astype(mxu_dtype), k.astype(mxu_dtype),
                (((2,), (2,)), ((0,), (0,))),
                preferred_element_type=jnp.float32) * scale            # (G, group, group)

        s = s - jnp.max(s, axis=-1, keepdims=True)
        p = jnp.exp(s)
        denom = jnp.sum(p, axis=-1, keepdims=True)
        if exact_softmax:
            p = p / denom                                               # exact (validation path)
        else:
            p = p * pl.reciprocal(denom, approx=True)                   # EUP slot (production)

        pv = jax.lax.dot_general(
            p.astype(mxu_dtype), v.astype(mxu_dtype),
            (((2,), (1,)), ((0,), (0,))),
            preferred_element_type=jnp.float32)                         # (G, group, hd)

        # head merge folded into the output projection (no concatenate)
        acc = acc + _mm(pv.reshape(tm, hd), w_out[lo:lo + hd, :], mxu_dtype)

    attn = acc + b_out_ref[...].astype(jnp.float32)
    o_ref[...] = _layernorm(h.astype(jnp.float32) + attn,
                            g1_ref[...].astype(jnp.float32),
                            be1_ref[...].astype(jnp.float32), eps).astype(o_ref.dtype)


def _ffn_ln_kernel(h_ref, w1_ref, b1_ref, w2_ref, b2_ref, g2_ref, be2_ref,
                   o_ref, *, eps, mxu_dtype):
    """Fused: FFN (w1 + ReLU + w2) -> residual -> LayerNorm2."""
    h = h_ref[...]
    ff = jnp.maximum(_mm(h, w1_ref[...], mxu_dtype) + b1_ref[...].astype(jnp.float32), 0.0)
    ff = _mm(ff, w2_ref[...], mxu_dtype) + b2_ref[...].astype(jnp.float32)
    o_ref[...] = _layernorm(h.astype(jnp.float32) + ff,
                            g2_ref[...].astype(jnp.float32),
                            be2_ref[...].astype(jnp.float32), eps).astype(o_ref.dtype)


def _ffn_ln_cls_kernel(h_ref, w1_ref, b1_ref, w2_ref, b2_ref, g2_ref, be2_ref,
                       wc_ref, bc_ref, o_ref, *, eps, mxu_dtype):
    """Last layer: FFN -> residual -> LayerNorm2 -> classifier (lane-dense padded output)."""
    h = h_ref[...]
    ff = jnp.maximum(_mm(h, w1_ref[...], mxu_dtype) + b1_ref[...].astype(jnp.float32), 0.0)
    ff = _mm(ff, w2_ref[...], mxu_dtype) + b2_ref[...].astype(jnp.float32)
    hn = _layernorm(h.astype(jnp.float32) + ff,
                    g2_ref[...].astype(jnp.float32),
                    be2_ref[...].astype(jnp.float32), eps)
    logits = _mm(hn, wc_ref[...], mxu_dtype) + bc_ref[...].astype(jnp.float32)
    o_ref[...] = logits.astype(o_ref.dtype)


# ---------------------------------------------------------------------------
# BlockSpec helpers, generation-dependent sizing
# ---------------------------------------------------------------------------

def _rows(tm, width):
    return pl.BlockSpec((tm, width), lambda i: (i, 0))


def _whole(shape):
    n = len(shape)
    return pl.BlockSpec(shape, lambda i, n=n: (0,) * n)


def _gen_config():
    kind = ""
    try:
        kind = jax.devices()[0].device_kind.lower()
    except Exception:
        pass
    if "v7" in kind or "tpu7" in kind:       # v7x: 64 MiB VMEM/TC, 2 TensorCores/chip
        return {"row_cap": 256, "vmem_ceiling": 40 << 20, "multi_tile": True}
    if "v6" in kind:                         # v6e: 128 MiB VMEM, 1 TC
        return {"row_cap": 1024, "vmem_ceiling": 64 << 20, "multi_tile": False}
    if "v5 lite" in kind or "v5e" in kind or "v5lite" in kind:   # v5e: 128 MiB VMEM, low HBM BW
        return {"row_cap": 1024, "vmem_ceiling": 64 << 20, "multi_tile": False}
    return {"row_cap": 512, "vmem_ceiling": None, "multi_tile": False}


def _cparams(cfg, tm, weight_elems, act_width_elems):
    """Explicit vmem_limit_bytes sized from the actual buffers (clamped to a per-gen ceiling)."""
    vmem = cfg["vmem_ceiling"]
    if vmem is not None:
        est = (2 * 4 * weight_elems            # whole-block weights (double-buffered), f32 bound
               + 6 * 4 * tm * act_width_elems  # row tiles in/out (double-buffered) + body temps
               + (8 << 20))                    # compiler scratch headroom
        vmem = int(min(vmem, max(est, 32 << 20)))
    return pltpu.CompilerParams(dimension_semantics=("parallel",),
                                vmem_limit_bytes=vmem)


def _row_tiling(M, group, cap, want_multi_tile):
    """Pick row-tile size tm and padded row count M_pad.

    Tiles contain whole attention groups (`group` = B rows sharing a sequence position) and
    are a multiple of 8 (sublane), so every BlockSpec satisfies the (8, 128) constraint.
    On 2-TensorCore chips we keep >= 2 tiles so the ("parallel",) grid spans both cores.
    Rows are padded by whole groups when M does not divide (no monolithic fallback)."""
    granule = group * 8 // math.gcd(group, 8)          # lcm(group, 8)
    cap_g = max(granule, (cap // granule) * granule)
    n_granules = _cdiv(M, granule)
    if want_multi_tile and n_granules >= 2:
        tm = min(cap_g, _cdiv(n_granules, 2) * granule)
    else:
        tm = min(cap_g, n_granules * granule)
    M_pad = _cdiv(M, tm) * tm
    return tm, M_pad


# ---------------------------------------------------------------------------
# pallas_call wrappers
# ---------------------------------------------------------------------------

def embed_with_pe(x_rows, w, b, pe_s, *, group, tm, mxu_dtype, out_dtype, cparams):
    M, Din = x_rows.shape
    E = w.shape[1]
    G = tm // group
    return pl.pallas_call(
        functools.partial(_embed_pe_kernel, group=group, mxu_dtype=mxu_dtype),
        out_shape=jax.ShapeDtypeStruct((M, E), out_dtype),
        grid=(M // tm,),
        in_specs=[_rows(tm, Din),
                  _whole((Din, E)),
                  _whole((1, E)),
                  pl.BlockSpec((G, 1, E), lambda i: (i, 0, 0))],
        out_specs=_rows(tm, E),
        compiler_params=cparams,
    )(x_rows, w, b.reshape(1, E), pe_s)


def attention_block(h, lp, *, nhead, group, tm, mxu_dtype, out_dtype, exact_softmax, cparams):
    M, E = h.shape
    return pl.pallas_call(
        functools.partial(_attn_ln_kernel, nhead=nhead, group=group, eps=LN_EPS,
                          mxu_dtype=mxu_dtype, exact_softmax=exact_softmax),
        out_shape=jax.ShapeDtypeStruct((M, E), out_dtype),
        grid=(M // tm,),
        in_specs=[_rows(tm, E),
                  _whole((E, 3 * E)), _whole((1, 3 * E)),
                  _whole((E, E)), _whole((1, E)),
                  _whole((1, E)), _whole((1, E))],
        out_specs=_rows(tm, E),
        compiler_params=cparams,
    )(h, lp["w_in"], lp["b_in"].reshape(1, 3 * E),
      lp["w_out"], lp["b_out"].reshape(1, E),
      lp["g1"].reshape(1, E), lp["be1"].reshape(1, E))


def ffn_block(h, lp, *, tm, mxu_dtype, out_dtype, cparams):
    M, E = h.shape
    F = lp["w1"].shape[1]
    return pl.pallas_call(
        functools.partial(_ffn_ln_kernel, eps=LN_EPS, mxu_dtype=mxu_dtype),
        out_shape=jax.ShapeDtypeStruct((M, E), out_dtype),
        grid=(M // tm,),
        in_specs=[_rows(tm, E),
                  _whole((E, F)), _whole((1, F)),
                  _whole((F, E)), _whole((1, E)),
                  _whole((1, E)), _whole((1, E))],
        out_specs=_rows(tm, E),
        compiler_params=cparams,
    )(h, lp["w1"], lp["b1"].reshape(1, F), lp["w2"], lp["b2"].reshape(1, E),
      lp["g2"].reshape(1, E), lp["be2"].reshape(1, E))


def ffn_block_with_classifier(h, lp, w_cls_pad, b_cls_pad, *, tm, mxu_dtype, cparams):
    M, E = h.shape
    F = lp["w1"].shape[1]
    Cpad = w_cls_pad.shape[1]
    return pl.pallas_call(
        functools.partial(_ffn_ln_cls_kernel, eps=LN_EPS, mxu_dtype=mxu_dtype),
        out_shape=jax.ShapeDtypeStruct((M, Cpad), jnp.float32),
        grid=(M // tm,),
        in_specs=[_rows(tm, E),
                  _whole((E, F)), _whole((1, F)),
                  _whole((F, E)), _whole((1, E)),
                  _whole((1, E)), _whole((1, E)),
                  _whole((E, Cpad)), _whole((1, Cpad))],
        out_specs=_rows(tm, Cpad),                    # lane-dense padded logits block
        compiler_params=cparams,
    )(h, lp["w1"], lp["b1"].reshape(1, F), lp["w2"], lp["b2"].reshape(1, E),
      lp["g2"].reshape(1, E), lp["be2"].reshape(1, E),
      w_cls_pad, b_cls_pad.reshape(1, Cpad))


# ---------------------------------------------------------------------------
# model glue
# ---------------------------------------------------------------------------

def positional_encoding(max_len, d_model):
    position = jnp.arange(max_len, dtype=jnp.float32)[:, None]
    div_term = jnp.exp(jnp.arange(0, d_model, 2, dtype=jnp.float32)
                       * (-math.log(10000.0) / d_model))
    pe = jnp.zeros((max_len, d_model), jnp.float32)
    pe = pe.at[:, 0::2].set(jnp.sin(position * div_term))
    pe = pe.at[:, 1::2].set(jnp.cos(position * div_term))
    return pe


def init_params(key, input_dim, embedding_dim, num_classes, num_layers,
                dim_feedforward, max_seq_len):
    E = embedding_dim
    cnt = [0]

    def nrm(shape, scale):
        cnt[0] += 1
        return scale * jax.random.normal(jax.random.fold_in(key, cnt[0]), shape, jnp.float32)

    params = {
        "w_emb": nrm((input_dim, E), 0.02),
        "b_emb": nrm((E,), 0.01),
        "w_cls": nrm((E, num_classes), 0.02),
        "b_cls": nrm((num_classes,), 0.01),
        "pe": positional_encoding(max_seq_len, E),
        "layers": [],
    }
    for _ in range(num_layers):
        params["layers"].append({
            "w_in": nrm((E, 3 * E), 0.02),          # packed [Wq | Wk | Wv]
            "b_in": nrm((3 * E,), 0.01),
            "w_out": nrm((E, E), 0.02),
            "b_out": nrm((E,), 0.01),
            "w1": nrm((E, dim_feedforward), 0.02),
            "b1": nrm((dim_feedforward,), 0.01),
            "w2": nrm((dim_feedforward, E), 0.02),
            "b2": nrm((E,), 0.01),
            "g1": 1.0 + nrm((E,), 0.05),
            "be1": nrm((E,), 0.01),
            "g2": 1.0 + nrm((E,), 0.05),
            "be2": nrm((E,), 0.01),
        })
    return params


def cast_matmul_weights(params, dtype):
    """Cast the large matmul weights to `dtype` (e.g. bf16) for HBM storage.  Biases, LayerNorm
    params and the positional encoding stay f32 (applied to f32 accumulators in-kernel)."""
    out = dict(params)
    out["w_emb"] = params["w_emb"].astype(dtype)
    out["w_cls"] = params["w_cls"].astype(dtype)
    out["layers"] = [
        {**lp, **{k: lp[k].astype(dtype) for k in ("w_in", "w_out", "w1", "w2")}}
        for lp in params["layers"]
    ]
    return out


def transformer_forward(x, params, nhead, attention_mask=None, *,
                        use_bf16=False, row_cap=None):
    """Forward pass of TransformerModel: x (B, S, input_dim) -> logits (B, S, num_classes)."""
    # TODO(synk): src_key_padding_mask path not implemented -- in the original code the (B, S)
    # mask shape is inconsistent with its own permute + batch_first combination unless B == S,
    # so only attention_mask=None is supported.
    assert attention_mask is None

    B, S, Din = x.shape
    E = params["w_emb"].shape[1]
    C = params["w_cls"].shape[1]
    F = params["layers"][0]["w1"].shape[1]
    assert E % nhead == 0
    M = S * B

    cfg = _gen_config()
    cap = cfg["row_cap"] if row_cap is None else row_cap
    tm, M_pad = _row_tiling(M, B, cap, cfg["multi_tile"])
    S_pad = M_pad // B

    mxu_dtype = jnp.bfloat16 if use_bf16 else jnp.float32
    act_dtype = jnp.bfloat16 if use_bf16 else jnp.float32
    Cpad = max(128, _cdiv(C, 128) * 128)          # lane-dense classifier output width

    # s-major rows: row r <-> (s = r // B, b = r % B)   (matches the PyTorch permute(1, 0, 2))
    x_rows = x.transpose(1, 0, 2).reshape(M, Din)
    if M_pad != M:
        x_rows = jnp.pad(x_rows, ((0, M_pad - M), (0, 0)))
    x_rows = x_rows.astype(act_dtype)

    # positional encoding, un-broadcast: (S_pad, 1, E); broadcast over the batch group in-kernel
    pe = params["pe"][:S]
    if S_pad > S:
        pe = jnp.pad(pe, ((0, S_pad - S), (0, 0)))
    pe = pe.reshape(S_pad, 1, E)

    # classifier weights zero-padded to Cpad lanes (unmasked vst stores)
    w_cls = jnp.zeros((E, Cpad), params["w_cls"].dtype).at[:, :C].set(params["w_cls"])
    b_cls = jnp.zeros((Cpad,), jnp.float32).at[:C].set(params["b_cls"].astype(jnp.float32))

    cp_embed = _cparams(cfg, tm, Din * E + E, Din + 3 * E)
    cp_attn = _cparams(cfg, tm, 3 * E * E + E * E + 6 * E, 10 * E)
    cp_ffn = _cparams(cfg, tm, 2 * E * F + F + 3 * E, 2 * F + 4 * E)
    cp_cls = _cparams(cfg, tm, 2 * E * F + E * Cpad + F + 3 * E + Cpad, 2 * F + 4 * E + 2 * Cpad)

    # embedding + positional encoding (fused); dropout -> identity (inference)
    h = embed_with_pe(x_rows, params["w_emb"], params["b_emb"], pe,
                      group=B, tm=tm, mxu_dtype=mxu_dtype, out_dtype=act_dtype,
                      cparams=cp_embed)

    logits = None
    n_layers = len(params["layers"])
    for li, lp in enumerate(params["layers"]):
        h = attention_block(h, lp, nhead=nhead, group=B, tm=tm, mxu_dtype=mxu_dtype,
                            out_dtype=act_dtype, exact_softmax=not use_bf16, cparams=cp_attn)
        if li == n_layers - 1:
            # final dropout -> identity; classifier fused into the last FFN kernel
            logits = ffn_block_with_classifier(h, lp, w_cls, b_cls, tm=tm,
                                               mxu_dtype=mxu_dtype, cparams=cp_cls)
        else:
            h = ffn_block(h, lp, tm=tm, mxu_dtype=mxu_dtype, out_dtype=act_dtype,
                          cparams=cp_ffn)

    return logits[:M, :C].reshape(S, B, C).transpose(1, 0, 2)       # (B, S, num_classes)


# ---------------------------------------------------------------------------
# pure-JAX reference (post-norm TransformerEncoderLayer semantics) for validation
# ---------------------------------------------------------------------------

def reference_forward(x, params, nhead):
    HI = jax.lax.Precision.HIGHEST
    E = params["w_emb"].shape[1]
    hd = E // nhead
    B, S, _ = x.shape
    h = jnp.einsum("bsi,ie->bse", x, params["w_emb"], precision=HI) + params["b_emb"]
    h = h + params["pe"][:S][None, :, :]
    h = jnp.transpose(h, (1, 0, 2))                    # (S, B, E): attention mixes over B per s
    for lp in params["layers"]:
        qkv = jnp.einsum("sbe,ef->sbf", h, lp["w_in"], precision=HI) + lp["b_in"]
        q, k, v = jnp.split(qkv, 3, axis=-1)

        def heads(t):
            return t.reshape(S, B, nhead, hd).transpose(0, 2, 1, 3)   # (S, H, B, hd)

        qh, kh, vh = heads(q), heads(k), heads(v)
        s = jnp.einsum("shqd,shkd->shqk", qh, kh, precision=HI) / math.sqrt(hd)
        p = jax.nn.softmax(s, axis=-1)
        o = jnp.einsum("shqk,shkd->shqd", p, vh, precision=HI)
        o = o.transpose(0, 2, 1, 3).reshape(S, B, E)
        attn = jnp.einsum("sbe,ef->sbf", o, lp["w_out"], precision=HI) + lp["b_out"]
        h = _layernorm(h + attn, lp["g1"], lp["be1"], LN_EPS)
        ff = jax.nn.relu(jnp.einsum("sbe,ef->sbf", h, lp["w1"], precision=HI) + lp["b1"])
        ff = jnp.einsum("sbf,fe->sbe", ff, lp["w2"], precision=HI) + lp["b2"]
        h = _layernorm(h + ff, lp["g2"], lp["be2"], LN_EPS)
    h = jnp.transpose(h, (1, 0, 2))
    return jnp.einsum("bse,ec->bsc", h, params["w_cls"], precision=HI) + params["b_cls"]


# ---------------------------------------------------------------------------
# example run
# ---------------------------------------------------------------------------

if __name__ == "__main__":
    B, S = 2, 8
    INPUT_DIM, EMBED_DIM, NUM_CLASSES = 16, 32, 4
    NHEAD, NUM_LAYERS, DFF, MAX_SEQ_LEN = 8, 2, 64, 512

    key = jax.random.PRNGKey(0)
    kx, kp = jax.random.split(key)
    x = jax.random.normal(kx, (B, S, INPUT_DIM), jnp.float32)
    params = init_params(kp, INPUT_DIM, EMBED_DIM, NUM_CLASSES, NUM_LAYERS, DFF, MAX_SEQ_LEN)

    # 1) f32 validation path (exact softmax divide) checked against a pure-JAX reference.
    fwd_f32 = jax.jit(functools.partial(transformer_forward, nhead=NHEAD, use_bf16=False))
    logits = jax.block_until_ready(fwd_f32(x, params))
    assert logits.shape == (B, S, NUM_CLASSES)
    ref = reference_forward(x, params, NHEAD)
    err = float(jnp.max(jnp.abs(logits - ref)))
    # loose tolerance: in-kernel MXU f32 matmuls may run at default (reduced) precision passes
    assert err < 5e-2, f"kernel/reference mismatch: max abs err = {err}"

    # 2) production path: bf16 weights/activations in HBM, bf16 MXU inputs (f32 accumulation),
    #    approx-reciprocal softmax (v6e/v7x throughput, v5e HBM bandwidth, v7x VMEM residency).
    params_bf16 = cast_matmul_weights(params, jnp.bfloat16)
    fwd_bf16 = jax.jit(functools.partial(transformer_forward, nhead=NHEAD, use_bf16=True))
    logits_bf16 = jax.block_until_ready(fwd_bf16(x, params_bf16))
    assert logits_bf16.shape == (B, S, NUM_CLASSES)
    assert bool(jnp.all(jnp.isfinite(logits_bf16)))

    print("KERNEL_OK")
</pallas_src>

<mosaic_0001>
module attributes {stable_mosaic.version = 11 : i64} {
  func.func @_embed_pe_kernel(%arg0: i32, %arg1: memref<16x16xf32, #tpu.memory_space<vmem>>, %arg2: memref<16x32xf32, #tpu.memory_space<vmem>>, %arg3: memref<1x32xf32, #tpu.memory_space<vmem>>, %arg4: memref<8x1x32xf32, #tpu.memory_space<vmem>>, %arg5: memref<16x32xf32, #tpu.memory_space<vmem>>) attributes {dimension_semantics = [#tpu.dimension_semantics<parallel>], iteration_bounds = array<i64: 1>, scalar_prefetch = 0 : i64, scratch_operands = 0 : i64, tpu.core_type = #tpu.core_type<tc>, window_params = [{transform_indices = @transform_0, window_bounds = array<i64: 16, 16>}, {pipeline_mode = #tpu.pipeline_mode<synchronous>, transform_indices = @transform_1, window_bounds = array<i64: 16, 32>}, {pipeline_mode = #tpu.pipeline_mode<synchronous>, transform_indices = @transform_2, window_bounds = array<i64: 1, 32>}, {transform_indices = @transform_3, window_bounds = array<i64: 8, 1, 32>}, {transform_indices = @transform_4, window_bounds = array<i64: 16, 32>}]} {
    %c0 = arith.constant 0 : index
    %c0_0 = arith.constant 0 : index
    %0 = vector.load %arg1[%c0, %c0_0] : memref<16x16xf32, #tpu.memory_space<vmem>>, vector<16x16xf32>
    %c0_1 = arith.constant 0 : index
    %c0_2 = arith.constant 0 : index
    %1 = vector.load %arg2[%c0_1, %c0_2] : memref<16x32xf32, #tpu.memory_space<vmem>>, vector<16x32xf32>
    %cst = arith.constant dense<0.000000e+00> : vector<16x32xf32>
    %2 = tpu.matmul %0, %1, %cst {dimension_numbers = #tpu.dot_dimension_numbers<[1], [0], [0], [1], [0, 0, 1, 1], [], []>} : vector<16x16xf32>, vector<16x32xf32>, vector<16x32xf32> -> vector<16x32xf32>
    %c0_3 = arith.constant 0 : index
    %c0_4 = arith.constant 0 : index
    %3 = vector.load %arg3[%c0_3, %c0_4] : memref<1x32xf32, #tpu.memory_space<vmem>>, vector<1x32xf32>
    %4 = vector.broadcast %3 : vector<1x32xf32> to vector<16x32xf32>
    %5 = arith.addf %2, %4 : vector<16x32xf32>
    %6 = vector.shape_cast %5 : vector<16x32xf32> to vector<8x2x32xf32>
    %c0_5 = arith.constant 0 : index
    %c0_6 = arith.constant 0 : index
    %c0_7 = arith.constant 0 : index
    %7 = vector.load %arg4[%c0_5, %c0_6, %c0_7] : memref<8x1x32xf32, #tpu.memory_space<vmem>>, vector<8x1x32xf32>
    %8 = vector.broadcast %7 : vector<8x1x32xf32> to vector<8x2x32xf32>
    %9 = arith.addf %6, %8 : vector<8x2x32xf32>
    %10 = vector.shape_cast %9 : vector<8x2x32xf32> to vector<16x32xf32>
    %c0_8 = arith.constant 0 : index
    %c0_9 = arith.constant 0 : index
    %11 = vector.load %arg5[%c0_8, %c0_9] : memref<16x32xf32, #tpu.memory_space<vmem>>, vector<16x32xf32>
    tpu.vector_store %arg5[%c0_8, %c0_9], %10 {strides = array<i32>} : memref<16x32xf32, #tpu.memory_space<vmem>>, vector<16x32xf32>,
    return
  }
  func.func @transform_0(%arg0: i32) -> (i32, i32) {
    %c0_i32 = arith.constant 0 : i32
    %c0_i32_0 = arith.constant 0 : i32
    return %arg0, %c0_i32 : i32, i32
  }
  func.func @transform_1(%arg0: i32) -> (i32, i32) {
    %c0_i32 = arith.constant 0 : i32
    %c0_i32_0 = arith.constant 0 : i32
    %c0_i32_1 = arith.constant 0 : i32
    return %c0_i32, %c0_i32_0 : i32, i32
  }
  func.func @transform_2(%arg0: i32) -> (i32, i32) {
    %c0_i32 = arith.constant 0 : i32
    %c0_i32_0 = arith.constant 0 : i32
    %c0_i32_1 = arith.constant 0 : i32
    return %c0_i32, %c0_i32_0 : i32, i32
  }
  func.func @transform_3(%arg0: i32) -> (i32, i32, i32) {
    %c0_i32 = arith.constant 0 : i32
    %c0_i32_0 = arith.constant 0 : i32
    %c0_i32_1 = arith.constant 0 : i32
    return %arg0, %c0_i32, %c0_i32_0 : i32, i32, i32
  }
  func.func @transform_4(%arg0: i32) -> (i32, i32) {
    %c0_i32 = arith.constant 0 : i32
    %c0_i32_0 = arith.constant 0 : i32
    return %arg0, %c0_i32 : i32, i32
  }
}

module attributes {stable_mosaic.version = 11 : i64} {
  func.func @_attn_ln_kernel(%arg0: i32, %arg1: memref<16x32xf32, #tpu.memory_space<vmem>>, %arg2: memref<32x96xf32, #tpu.memory_space<vmem>>, %arg3: memref<1x96xf32, #tpu.memory_space<vmem>>, %arg4: memref<32x32xf32, #tpu.memory_space<vmem>>, %arg5: memref<1x32xf32, #tpu.memory_space<vmem>>, %arg6: memref<1x32xf32, #tpu.memory_space<vmem>>, %arg7: memref<1x32xf32, #tpu.memory_space<vmem>>, %arg8: memref<16x32xf32, #tpu.memory_space<vmem>>) attributes {dimension_semantics = [#tpu.dimension_semantics<parallel>], iteration_bounds = array<i64: 1>, scalar_prefetch = 0 : i64, scratch_operands = 0 : i64, tpu.core_type = #tpu.core_type<tc>, window_params = [{transform_indices = @transform_0, window_bounds = array<i64: 16, 32>}, {pipeline_mode = #tpu.pipeline_mode<synchronous>, transform_indices = @transform_1, window_bounds = array<i64: 32, 96>}, {pipeline_mode = #tpu.pipeline_mode<synchronous>, transform_indices = @transform_2, window_bounds = array<i64: 1, 96>}, {pipeline_mode = #tpu.pipeline_mode<synchronous>, transform_indices = @transform_3, window_bounds = array<i64: 32, 32>}, {pipeline_mode = #tpu.pipeline_mode<synchronous>, transform_indices = @transform_4, window_bounds = array<i64: 1, 32>}, {pipeline_mode = #tpu.pipeline_mode<synchronous>, transform_indices = @transform_5, window_bounds = array<i64: 1, 32>}, {pipeline_mode = #tpu.pipeline_mode<synchronous>, transform_indices = @transform_6, window_bounds = array<i64: 1, 32>}, {transform_indices = @transform_7, window_bounds = array<i64: 16, 32>}]} {
    %c0 = arith.constant 0 : index
    %c0_0 = arith.constant 0 : index
    %0 = vector.load %arg1[%c0, %c0_0] : memref<16x32xf32, #tpu.memory_space<vmem>>, vector<16x32xf32>
    %c0_1 = arith.constant 0 : index
    %c0_2 = arith.constant 0 : index
    %1 = vector.load %arg2[%c0_1, %c0_2] : memref<32x96xf32, #tpu.memory_space<vmem>>, vector<32x96xf32>
    %cst = arith.constant dense<0.000000e+00> : vector<16x96xf32>
    %2 = tpu.matmul %0, %1, %cst {dimension_numbers = #tpu.dot_dimension_numbers<[1], [0], [0], [1], [0, 0, 1, 1], [], []>} : vector<16x32xf32>, vector<32x96xf32>, vector<16x96xf32> -> vector<16x96xf32>
    %c0_3 = arith.constant 0 : index
    %c0_4 = arith.constant 0 : index
    %3 = vector.load %arg3[%c0_3, %c0_4] : memref<1x96xf32, #tpu.memory_space<vmem>>, vector<1x96xf32>
    %4 = vector.broadcast %3 : vector<1x96xf32> to vector<16x96xf32>
    %5 = arith.addf %2, %4 : vector<16x96xf32>
    %c0_5 = arith.constant 0 : index
    %c0_6 = arith.constant 0 : index
    %6 = vector.load %arg4[%c0_5, %c0_6] : memref<32x32xf32, #tpu.memory_space<vmem>>, vector<32x32xf32>
    %cst_7 = arith.constant 0.000000e+00 : f32
    %7 = vector.broadcast %cst_7 : f32 to vector<16x32xf32>
    %8 = vector.extract_strided_slice %5 {offsets = [0, 0], sizes = [16, 4], strides = [1, 1]} : vector<16x96xf32> to vector<16x4xf32>
    %9 = vector.shape_cast %8 : vector<16x4xf32> to vector<8x2x4xf32>
    %10 = vector.extract_strided_slice %5 {offsets = [0, 32], sizes = [16, 4], strides = [1, 1]} : vector<16x96xf32> to vector<16x4xf32>
    %11 = vector.shape_cast %10 : vector<16x4xf32> to vector<8x2x4xf32>
    %12 = vector.extract_strided_slice %5 {offsets = [0, 64], sizes = [16, 4], strides = [1, 1]} : vector<16x96xf32> to vector<16x4xf32>
    %13 = vector.shape_cast %12 : vector<16x4xf32> to vector<8x2x4xf32>
    %14 = vector.shape_cast %9 : vector<8x2x4xf32> to vector<8x2x1x4xf32>
    %15 = vector.shape_cast %11 : vector<8x2x4xf32> to vector<8x1x2x4xf32>
    %16 = vector.broadcast %14 : vector<8x2x1x4xf32> to vector<8x2x2x4xf32>
    %17 = vector.broadcast %15 : vector<8x1x2x4xf32> to vector<8x2x2x4xf32>
    %18 = arith.mulf %16, %17 : vector<8x2x2x4xf32>
    %cst_8 = arith.constant dense<0.000000e+00> : vector<8x2x2xf32>
    %19 = vector.multi_reduction <add>, %18, %cst_8 [3] : vector<8x2x2x4xf32> to vector<8x2x2xf32>
    %cst_9 = arith.constant 5.000000e-01 : f32
    %20 = vector.broadcast %cst_9 : f32 to vector<8x2x2xf32>
    %21 = arith.mulf %19, %20 : vector<8x2x2xf32>
    %cst_10 = arith.constant dense<0xFF800000> : vector<8x2xf32>
    %22 = vector.multi_reduction <maximumf>, %21, %cst_10 [2] : vector<8x2x2xf32> to vector<8x2xf32>
    %23 = vector.shape_cast %22 : vector<8x2xf32> to vector<8x2x1xf32>
    %24 = vector.broadcast %23 : vector<8x2x1xf32> to vector<8x2x2xf32>
    %25 = arith.subf %21, %24 : vector<8x2x2xf32>
    %26 = math.exp %25 : vector<8x2x2xf32>
    %cst_11 = arith.constant dense<0.000000e+00> : vector<8x2xf32>
    %27 = vector.multi_reduction <add>, %26, %cst_11 [2] : vector<8x2x2xf32> to vector<8x2xf32>
    %28 = vector.shape_cast %27 : vector<8x2xf32> to vector<8x2x1xf32>
    %29 = vector.broadcast %28 : vector<8x2x1xf32> to vector<8x2x2xf32>
    %30 = arith.divf %26, %29 : vector<8x2x2xf32>
    %cst_12 = arith.constant dense<0.000000e+00> : vector<8x2x4xf32>
    %31 = tpu.matmul %30, %13, %cst_12 {dimension_numbers = #tpu.dot_dimension_numbers<[2], [1], [1], [2], [0, 0, 0, 1, 1, 2], [0], [0]>} : vector<8x2x2xf32>, vector<8x2x4xf32>, vector<8x2x4xf32> -> vector<8x2x4xf32>
    %32 = vector.shape_cast %31 : vector<8x2x4xf32> to vector<16x4xf32>
    %33 = vector.extract_strided_slice %6 {offsets = [0, 0], sizes = [4, 32], strides = [1, 1]} : vector<32x32xf32> to vector<4x32xf32>
    %cst_13 = arith.constant dense<0.000000e+00> : vector<16x32xf32>
    %34 = tpu.matmul %32, %33, %cst_13 {dimension_numbers = #tpu.dot_dimension_numbers<[1], [0], [0], [1], [0, 0, 1, 1], [], []>} : vector<16x4xf32>, vector<4x32xf32>, vector<16x32xf32> -> vector<16x32xf32>
    %35 = arith.addf %7, %34 : vector<16x32xf32>
    %36 = vector.extract_strided_slice %5 {offsets = [0, 4], sizes = [16, 4], strides = [1, 1]} : vector<16x96xf32> to vector<16x4xf32>
    %37 = vector.shape_cast %36 : vector<16x4xf32> to vector<8x2x4xf32>
    %38 = vector.extract_strided_slice %5 {offsets = [0, 36], sizes = [16, 4], strides = [1, 1]} : vector<16x96xf32> to vector<16x4xf32>
    %39 = vector.shape_cast %38 : vector<16x4xf32> to vector<8x2x4xf32>
    %40 = vector.extract_strided_slice %5 {offsets = [0, 68], sizes = [16, 4], strides = [1, 1]} : vector<16x96xf32> to vector<16x4xf32>
    %41 = vector.shape_cast %40 : vector<16x4xf32> to vector<8x2x4xf32>
    %42 = vector.shape_cast %37 : vector<8x2x4xf32> to vector<8x2x1x4xf32>
    %43 = vector.shape_cast %39 : vector<8x2x4xf32> to vector<8x1x2x4xf32>
    %44 = vector.broadcast %42 : vector<8x2x1x4xf32> to vector<8x2x2x4xf32>
    %45 = vector.broadcast %43 : vector<8x1x2x4xf32> to vector<8x2x2x4xf32>
    %46 = arith.mulf %44, %45 : vector<8x2x2x4xf32>
    %cst_14 = arith.constant dense<0.000000e+00> : vector<8x2x2xf32>
    %47 = vector.multi_reduction <add>, %46, %cst_14 [3] : vector<8x2x2x4xf32> to vector<8x2x2xf32>
    %cst_15 = arith.constant 5.000000e-01 : f32
    %48 = vector.broadcast %cst_15 : f32 to vector<8x2x2xf32>
    %49 = arith.mulf %47, %48 : vector<8x2x2xf32>
    %cst_16 = arith.constant dense<0xFF800000> : vector<8x2xf32>
    %50 = vector.multi_reduction <maximumf>, %49, %cst_16 [2] : vector<8x2x2xf32> to vector<8x2xf32>
    %51 = vector.shape_cast %50 : vector<8x2xf32> to vector<8x2x1xf32>
    %52 = vector.broadcast %51 : vector<8x2x1xf32> to vector<8x2x2xf32>
    %53 = arith.subf %49, %52 : vector<8x2x2xf32>
    %54 = math.exp %53 : vector<8x2x2xf32>
    %cst_17 = arith.constant dense<0.000000e+00> : vector<8x2xf32>
    %55 = vector.multi_reduction <add>, %54, %cst_17 [2] : vector<8x2x2xf32> to vector<8x2xf32>
    %56 = vector.shape_cast %55 : vector<8x2xf32> to vector<8x2x1xf32>
    %57 = vector.broadcast %56 : vector<8x2x1xf32> to vector<8x2x2xf32>
    %58 = arith.divf %54, %57 : vector<8x2x2xf32>
    %cst_18 = arith.constant dense<0.000000e+00> : vector<8x2x4xf32>
    %59 = tpu.matmul %58, %41, %cst_18 {dimension_numbers = #tpu.dot_dimension_numbers<[2], [1], [1], [2], [0, 0, 0, 1, 1, 2], [0], [0]>} : vector<8x2x2xf32>, vector<8x2x4xf32>, vector<8x2x4xf32> -> vector<8x2x4xf32>
    %60 = vector.shape_cast %59 : vector<8x2x4xf32> to vector<16x4xf32>
    %61 = vector.extract_strided_slice %6 {offsets = [4, 0], sizes = [4, 32], strides = [1, 1]} : vector<32x32xf32> to vector<4x32xf32>
    %cst_19 = arith.constant dense<0.000000e+00> : vector<16x32xf32>
    %62 = tpu.matmul %60, %61, %cst_19 {dimension_numbers = #tpu.dot_dimension_numbers<[1], [0], [0], [1], [0, 0, 1, 1], [], []>} : vector<16x4xf32>, vector<4x32xf32>, vector<16x32xf32> -> vector<16x32xf32>
    %63 = arith.addf %35, %62 : vector<16x32xf32>
    %64 = vector.extract_strided_slice %5 {offsets = [0, 8], sizes = [16, 4], strides = [1, 1]} : vector<16x96xf32> to vector<16x4xf32>
    %65 = vector.shape_cast %64 : vector<16x4xf32> to vector<8x2x4xf32>
    %66 = vector.extract_strided_slice %5 {offsets = [0, 40], sizes = [16, 4], strides = [1, 1]} : vector<16x96xf32> to vector<16x4xf32>
    %67 = vector.shape_cast %66 : vector<16x4xf32> to vector<8x2x4xf32>
    %68 = vector.extract_strided_slice %5 {offsets = [0, 72], sizes = [16, 4], strides = [1, 1]} : vector<16x96xf32> to vector<16x4xf32>
    %69 = vector.shape_cast %68 : vector<16x4xf32> to vector<8x2x4xf32>
    %70 = vector.shape_cast %65 : vector<8x2x4xf32> to vector<8x2x1x4xf32>
    %71 = vector.shape_cast %67 : vector<8x2x4xf32> to vector<8x1x2x4xf32>
    %72 = vector.broadcast %70 : vector<8x2x1x4xf32> to vector<8x2x2x4xf32>
    %73 = vector.broadcast %71 : vector<8x1x2x4xf32> to vector<8x2x2x4xf32>
    %74 = arith.mulf %72, %73 : vector<8x2x2x4xf32>
    %cst_20 = arith.constant dense<0.000000e+00> : vector<8x2x2xf32>
    %75 = vector.multi_reduction <add>, %74, %cst_20 [3] : vector<8x2x2x4xf32> to vector<8x2x2xf32>
    %cst_21 = arith.constant 5.000000e-01 : f32
    %76 = vector.broadcast %cst_21 : f32 to vector<8x2x2xf32>
    %77 = arith.mulf %75, %76 : vector<8x2x2xf32>
    %cst_22 = arith.constant dense<0xFF800000> : vector<8x2xf32>
    %78 = vector.multi_reduction <maximumf>, %77, %cst_22 [2] : vector<8x2x2xf32> to vector<8x2xf32>
    %79 = vector.shape_cast %78 : vector<8x2xf32> to vector<8x2x1xf32>
    %80 = vector.broadcast %79 : vector<8x2x1xf32> to vector<8x2x2xf32>
    %81 = arith.subf %77, %80 : vector<8x2x2xf32>
    %82 = math.exp %81 : vector<8x2x2xf32>
    %cst_23 = arith.constant dense<0.000000e+00> : vector<8x2xf32>
    %83 = vector.multi_reduction <add>, %82, %cst_23 [2] : vector<8x2x2xf32> to vector<8x2xf32>
    %84 = vector.shape_cast %83 : vector<8x2xf32> to vector<8x2x1xf32>
    %85 = vector.broadcast %84 : vector<8x2x1xf32> to vector<8x2x2xf32>
    %86 = arith.divf %82, %85 : vector<8x2x2xf32>
    %cst_24 = arith.constant dense<0.000000e+00> : vector<8x2x4xf32>
    %87 = tpu.matmul %86, %69, %cst_24 {dimension_numbers = #tpu.dot_dimension_numbers<[2], [1], [1], [2], [0, 0, 0, 1, 1, 2], [0], [0]>} : vector<8x2x2xf32>, vector<8x2x4xf32>, vector<8x2x4xf32> -> vector<8x2x4xf32>
    %88 = vector.shape_cast %87 : vector<8x2x4xf32> to vector<16x4xf32>
    %89 = vector.extract_strided_slice %6 {offsets = [8, 0], sizes = [4, 32], strides = [1, 1]} : vector<32x32xf32> to vector<4x32xf32>
    %cst_25 = arith.constant dense<0.000000e+00> : vector<16x32xf32>
    %90 = tpu.matmul %88, %89, %cst_25 {dimension_numbers = #tpu.dot_dimension_numbers<[1], [0], [0], [1], [0, 0, 1, 1], [], []>} : vector<16x4xf32>, vector<4x32xf32>, vector<16x32xf32> -> vector<16x32xf32>
    %91 = arith.addf %63, %90 : vector<16x32xf32>
    %92 = vector.extract_strided_slice %5 {offsets = [0, 12], sizes = [16, 4], strides = [1, 1]} : vector<16x96xf32> to vector<16x4xf32>
    %93 = vector.shape_cast %92 : vector<16x4xf32> to vector<8x2x4xf32>
    %94 = vector.extract_strided_slice %5 {offsets = [0, 44], sizes = [16, 4], strides = [1, 1]} : vector<16x96xf32> to vector<16x4xf32>
    %95 = vector.shape_cast %94 : vector<16x4xf32> to vector<8x2x4xf32>
    %96 = vector.extract_strided_slice %5 {offsets = [0, 76], sizes = [16, 4], strides = [1, 1]} : vector<16x96xf32> to vector<16x4xf32>
    %97 = vector.shape_cast %96 : vector<16x4xf32> to vector<8x2x4xf32>
    %98 = vector.shape_cast %93 : vector<8x2x4xf32> to vector<8x2x1x4xf32>
    %99 = vector.shape_cast %95 : vector<8x2x4xf32> to vector<8x1x2x4xf32>
    %100 = vector.broadcast %98 : vector<8x2x1x4xf32> to vector<8x2x2x4xf32>
    %101 = vector.broadcast %99 : vector<8x1x2x4xf32> to vector<8x2x2x4xf32>
    %102 = arith.mulf %100, %101 : vector<8x2x2x4xf32>
    %cst_26 = arith.constant dense<0.000000e+00> : vector<8x2x2xf32>
    %103 = vector.multi_reduction <add>, %102, %cst_26 [3] : vector<8x2x2x4xf32> to vector<8x2x2xf32>
    %cst_27 = arith.constant 5.000000e-01 : f32
    %104 = vector.broadcast %cst_27 : f32 to vector<8x2x2xf32>
    %105 = arith.mulf %103, %104 : vector<8x2x2xf32>
    %cst_28 = arith.constant dense<0xFF800000> : vector<8x2xf32>
    %106 = vector.multi_reduction <maximumf>, %105, %cst_28 [2] : vector<8x2x2xf32> to vector<8x2xf32>
    %107 = vector.shape_cast %106 : vector<8x2xf32> to vector<8x2x1xf32>
    %108 = vector.broadcast %107 : vector<8x2x1xf32> to vector<8x2x2xf32>
    %109 = arith.subf %105, %108 : vector<8x2x2xf32>
    %110 = math.exp %109 : vector<8x2x2xf32>
    %cst_29 = arith.constant dense<0.000000e+00> : vector<8x2xf32>
    %111 = vector.multi_reduction <add>, %110, %cst_29 [2] : vector<8x2x2xf32> to vector<8x2xf32>
    %112 = vector.shape_cast %111 : vector<8x2xf32> to vector<8x2x1xf32>
    %113 = vector.broadcast %112 : vector<8x2x1xf32> to vector<8x2x2xf32>
    %114 = arith.divf %110, %113 : vector<8x2x2xf32>
    %cst_30 = arith.constant dense<0.000000e+00> : vector<8x2x4xf32>
    %115 = tpu.matmul %114, %97, %cst_30 {dimension_numbers = #tpu.dot_dimension_numbers<[2], [1], [1], [2], [0, 0, 0, 1, 1, 2], [0], [0]>} : vector<8x2x2xf32>, vector<8x2x4xf32>, vector<8x2x4xf32> -> vector<8x2x4xf32>
    %116 = vector.shape_cast %115 : vector<8x2x4xf32> to vector<16x4xf32>
    %117 = vector.extract_strided_slice %6 {offsets = [12, 0], sizes = [4, 32], strides = [1, 1]} : vector<32x32xf32> to vector<4x32xf32>
    %cst_31 = arith.constant dense<0.000000e+00> : vector<16x32xf32>
    %118 = tpu.matmul %116, %117, %cst_31 {dimension_numbers = #tpu.dot_dimension_numbers<[1], [0], [0], [1], [0, 0, 1, 1], [], []>} : vector<16x4xf32>, vector<4x32xf32>, vector<16x32xf32> -> vector<16x32xf32>
    %119 = arith.addf %91, %118 : vector<16x32xf32>
    %120 = vector.extract_strided_slice %5 {offsets = [0, 16], sizes = [16, 4], strides = [1, 1]} : vector<16x96xf32> to vector<16x4xf32>
    %121 = vector.shape_cast %120 : vector<16x4xf32> to vector<8x2x4xf32>
    %122 = vector.extract_strided_slice %5 {offsets = [0, 48], sizes = [16, 4], strides = [1, 1]} : vector<16x96xf32> to vector<16x4xf32>
    %123 = vector.shape_cast %122 : vector<16x4xf32> to vector<8x2x4xf32>
    %124 = vector.extract_strided_slice %5 {offsets = [0, 80], sizes = [16, 4], strides = [1, 1]} : vector<16x96xf32> to vector<16x4xf32>
    %125 = vector.shape_cast %124 : vector<16x4xf32> to vector<8x2x4xf32>
    %126 = vector.shape_cast %121 : vector<8x2x4xf32> to vector<8x2x1x4xf32>
    %127 = vector.shape_cast %123 : vector<8x2x4xf32> to vector<8x1x2x4xf32>
    %128 = vector.broadcast %126 : vector<8x2x1x4xf32> to vector<8x2x2x4xf32>
    %129 = vector.broadcast %127 : vector<8x1x2x4xf32> to vector<8x2x2x4xf32>
    %130 = arith.mulf %128, %129 : vector<8x2x2x4xf32>
    %cst_32 = arith.constant dense<0.000000e+00> : vector<8x2x2xf32>
    %131 = vector.multi_reduction <add>, %130, %cst_32 [3] : vector<8x2x2x4xf32> to vector<8x2x2xf32>
    %cst_33 = arith.constant 5.000000e-01 : f32
    %132 = vector.broadcast %cst_33 : f32 to vector<8x2x2xf32>
    %133 = arith.mulf %131, %132 : vector<8x2x2xf32>
    %cst_34 = arith.constant dense<0xFF800000> : vector<8x2xf32>
    %134 = vector.multi_reduction <maximumf>, %133, %cst_34 [2] : vector<8x2x2xf32> to vector<8x2xf32>
    %135 = vector.shape_cast %134 : vector<8x2xf32> to vector<8x2x1xf32>
    %136 = vector.broadcast %135 : vector<8x2x1xf32> to vector<8x2x2xf32>
    %137 = arith.subf %133, %136 : vector<8x2x2xf32>
    %138 = math.exp %137 : vector<8x2x2xf32>
    %cst_35 = arith.constant dense<0.000000e+00> : vector<8x2xf32>
    %139 = vector.multi_reduction <add>, %138, %cst_35 [2] : vector<8x2x2xf32> to vector<8x2xf32>
    %140 = vector.shape_cast %139 : vector<8x2xf32> to vector<8x2x1xf32>
    %141 = vector.broadcast %140 : vector<8x2x1xf32> to vector<8x2x2xf32>
    %142 = arith.divf %138, %141 : vector<8x2x2xf32>
    %cst_36 = arith.constant dense<0.000000e+00> : vector<8x2x4xf32>
    %143 = tpu.matmul %142, %125, %cst_36 {dimension_numbers = #tpu.dot_dimension_numbers<[2], [1], [1], [2], [0, 0, 0, 1, 1, 2], [0], [0]>} : vector<8x2x2xf32>, vector<8x2x4xf32>, vector<8x2x4xf32> -> vector<8x2x4xf32>
    %144 = vector.shape_cast %143 : vector<8x2x4xf32> to vector<16x4xf32>
    %145 = vector.extract_strided_slice %6 {offsets = [16, 0], sizes = [4, 32], strides = [1, 1]} : vector<32x32xf32> to vector<4x32xf32>
    %cst_37 = arith.constant dense<0.000000e+00> : vector<16x32xf32>
    %146 = tpu.matmul %144, %145, %cst_37 {dimension_numbers = #tpu.dot_dimension_numbers<[1], [0], [0], [1], [0, 0, 1, 1], [], []>} : vector<16x4xf32>, vector<4x32xf32>, vector<16x32xf32> -> vector<16x32xf32>
    %147 = arith.addf %119, %146 : vector<16x32xf32>
    %148 = vector.extract_strided_slice %5 {offsets = [0, 20], sizes = [16, 4], strides = [1, 1]} : vector<16x96xf32> to vector<16x4xf32>
    %149 = vector.shape_cast %148 : vector<16x4xf32> to vector<8x2x4xf32>
    %150 = vector.extract_strided_slice %5 {offsets = [0, 52], sizes = [16, 4], strides = [1, 1]} : vector<16x96xf32> to vector<16x4xf32>
    %151 = vector.shape_cast %150 : vector<16x4xf32> to vector<8x2x4xf32>
    %152 = vector.extract_strided_slice %5 {offsets = [0, 84], sizes = [16, 4], strides = [1, 1]} : vector<16x96xf32> to vector<16x4xf32>
    %153 = vector.shape_cast %152 : vector<16x4xf32> to vector<8x2x4xf32>
    %154 = vector.shape_cast %149 : vector<8x2x4xf32> to vector<8x2x1x4xf32>
    %155 = vector.shape_cast %151 : vector<8x2x4xf32> to vector<8x1x2x4xf32>
    %156 = vector.broadcast %154 : vector<8x2x1x4xf32> to vector<8x2x2x4xf32>
    %157 = vector.broadcast %155 : vector<8x1x2x4xf32> to vector<8x2x2x4xf32>
    %158 = arith.mulf %156, %157 : vector<8x2x2x4xf32>
    %cst_38 = arith.constant dense<0.000000e+00> : vector<8x2x2xf32>
    %159 = vector.multi_reduction <add>, %158, %cst_38 [3] : vector<8x2x2x4xf32> to vector<8x2x2xf32>
    %cst_39 = arith.constant 5.000000e-01 : f32
    %160 = vector.broadcast %cst_39 : f32 to vector<8x2x2xf32>
    %161 = arith.mulf %159, %160 : vector<8x2x2xf32>
    %cst_40 = arith.constant dense<0xFF800000> : vector<8x2xf32>
    %162 = vector.multi_reduction <maximumf>, %161, %cst_40 [2] : vector<8x2x2xf32> to vector<8x2xf32>
    %163 = vector.shape_cast %162 : vector<8x2xf32> to vector<8x2x1xf32>
    %164 = vector.broadcast %163 : vector<8x2x1xf32> to vector<8x2x2xf32>
    %165 = arith.subf %161, %164 : vector<8x2x2xf32>
    %166 = math.exp %165 : vector<8x2x2xf32>
    %cst_41 = arith.constant dense<0.000000e+00> : vector<8x2xf32>
    %167 = vector.multi_reduction <add>, %166, %cst_41 [2] : vector<8x2x2xf32> to vector<8x2xf32>
    %168 = vector.shape_cast %167 : vector<8x2xf32> to vector<8x2x1xf32>
    %169 = vector.broadcast %168 : vector<8x2x1xf32> to vector<8x2x2xf32>
    %170 = arith.divf %166, %169 : vector<8x2x2xf32>
    %cst_42 = arith.constant dense<0.000000e+00> : vector<8x2x4xf32>
    %171 = tpu.matmul %170, %153, %cst_42 {dimension_numbers = #tpu.dot_dimension_numbers<[2], [1], [1], [2], [0, 0, 0, 1, 1, 2], [0], [0]>} : vector<8x2x2xf32>, vector<8x2x4xf32>, vector<8x2x4xf32> -> vector<8x2x4xf32>
    %172 = vector.shape_cast %171 : vector<8x2x4xf32> to vector<16x4xf32>
    %173 = vector.extract_strided_slice %6 {offsets = [20, 0], sizes = [4, 32], strides = [1, 1]} : vector<32x32xf32> to vector<4x32xf32>
    %cst_43 = arith.constant dense<0.000000e+00> : vector<16x32xf32>
    %174 = tpu.matmul %172, %173, %cst_43 {dimension_numbers = #tpu.dot_dimension_numbers<[1], [0], [0], [1], [0, 0, 1, 1], [], []>} : vector<16x4xf32>, vector<4x32xf32>, vector<16x32xf32> -> vector<16x32xf32>
    %175 = arith.addf %147, %174 : vector<16x32xf32>
    %176 = vector.extract_strided_slice %5 {offsets = [0, 24], sizes = [16, 4], strides = [1, 1]} : vector<16x96xf32> to vector<16x4xf32>
    %177 = vector.shape_cast %176 : vector<16x4xf32> to vector<8x2x4xf32>
    %178 = vector.extract_strided_slice %5 {offsets = [0, 56], sizes = [16, 4], strides = [1, 1]} : vector<16x96xf32> to vector<16x4xf32>
    %179 = vector.shape_cast %178 : vector<16x4xf32> to vector<8x2x4xf32>
    %180 = vector.extract_strided_slice %5 {offsets = [0, 88], sizes = [16, 4], strides = [1, 1]} : vector<16x96xf32> to vector<16x4xf32>
    %181 = vector.shape_cast %180 : vector<16x4xf32> to vector<8x2x4xf32>
    %182 = vector.shape_cast %177 : vector<8x2x4xf32> to vector<8x2x1x4xf32>
    %183 = vector.shape_cast %179 : vector<8x2x4xf32> to vector<8x1x2x4xf32>
    %184 = vector.broadcast %182 : vector<8x2x1x4xf32> to vector<8x2x2x4xf32>
    %185 = vector.broadcast %183 : vector<8x1x2x4xf32> to vector<8x2x2x4xf32>
    %186 = arith.mulf %184, %185 : vector<8x2x2x4xf32>
    %cst_44 = arith.constant dense<0.000000e+00> : vector<8x2x2xf32>
    %187 = vector.multi_reduction <add>, %186, %cst_44 [3] : vector<8x2x2x4xf32> to vector<8x2x2xf32>
    %cst_45 = arith.constant 5.000000e-01 : f32
    %188 = vector.broadcast %cst_45 : f32 to vector<8x2x2xf32>
    %189 = arith.mulf %187, %188 : vector<8x2x2xf32>
    %cst_46 = arith.constant dense<0xFF800000> : vector<8x2xf32>
    %190 = vector.multi_reduction <maximumf>, %189, %cst_46 [2] : vector<8x2x2xf32> to vector<8x2xf32>
    %191 = vector.shape_cast %190 : vector<8x2xf32> to vector<8x2x1xf32>
    %192 = vector.broadcast %191 : vector<8x2x1xf32> to vector<8x2x2xf32>
    %193 = arith.subf %189, %192 : vector<8x2x2xf32>
    %194 = math.exp %193 : vector<8x2x2xf32>
    %cst_47 = arith.constant dense<0.000000e+00> : vector<8x2xf32>
    %195 = vector.multi_reduction <add>, %194, %cst_47 [2] : vector<8x2x2xf32> to vector<8x2xf32>
    %196 = vector.shape_cast %195 : vector<8x2xf32> to vector<8x2x1xf32>
    %197 = vector.broadcast %196 : vector<8x2x1xf32> to vector<8x2x2xf32>
    %198 = arith.divf %194, %197 : vector<8x2x2xf32>
    %cst_48 = arith.constant dense<0.000000e+00> : vector<8x2x4xf32>
    %199 = tpu.matmul %198, %181, %cst_48 {dimension_numbers = #tpu.dot_dimension_numbers<[2], [1], [1], [2], [0, 0, 0, 1, 1, 2], [0], [0]>} : vector<8x2x2xf32>, vector<8x2x4xf32>, vector<8x2x4xf32> -> vector<8x2x4xf32>
    %200 = vector.shape_cast %199 : vector<8x2x4xf32> to vector<16x4xf32>
    %201 = vector.extract_strided_slice %6 {offsets = [24, 0], sizes = [4, 32], strides = [1, 1]} : vector<32x32xf32> to vector<4x32xf32>
    %cst_49 = arith.constant dense<0.000000e+00> : vector<16x32xf32>
    %202 = tpu.matmul %200, %201, %cst_49 {dimension_numbers = #tpu.dot_dimension_numbers<[1], [0], [0], [1], [0, 0, 1, 1], [], []>} : vector<16x4xf32>, vector<4x32xf32>, vector<16x32xf32> -> vector<16x32xf32>
    %203 = arith.addf %175, %202 : vector<16x32xf32>
    %204 = vector.extract_strided_slice %5 {offsets = [0, 28], sizes = [16, 4], strides = [1, 1]} : vector<16x96xf32> to vector<16x4xf32>
    %205 = vector.shape_cast %204 : vector<16x4xf32> to vector<8x2x4xf32>
    %206 = vector.extract_strided_slice %5 {offsets = [0, 60], sizes = [16, 4], strides = [1, 1]} : vector<16x96xf32> to vector<16x4xf32>
    %207 = vector.shape_cast %206 : vector<16x4xf32> to vector<8x2x4xf32>
    %208 = vector.extract_strided_slice %5 {offsets = [0, 92], sizes = [16, 4], strides = [1, 1]} : vector<16x96xf32> to vector<16x4xf32>
    %209 = vector.shape_cast %208 : vector<16x4xf32> to vector<8x2x4xf32>
    %210 = vector.shape_cast %205 : vector<8x2x4xf32> to vector<8x2x1x4xf32>
    %211 = vector.shape_cast %207 : vector<8x2x4xf32> to vector<8x1x2x4xf32>
    %212 = vector.broadcast %210 : vector<8x2x1x4xf32> to vector<8x2x2x4xf32>
    %213 = vector.broadcast %211 : vector<8x1x2x4xf32> to vector<8x2x2x4xf32>
    %214 = arith.mulf %212, %213 : vector<8x2x2x4xf32>
    %cst_50 = arith.constant dense<0.000000e+00> : vector<8x2x2xf32>
    %215 = vector.multi_reduction <add>, %214, %cst_50 [3] : vector<8x2x2x4xf32> to vector<8x2x2xf32>
    %cst_51 = arith.constant 5.000000e-01 : f32
    %216 = vector.broadcast %cst_51 : f32 to vector<8x2x2xf32>
    %217 = arith.mulf %215, %216 : vector<8x2x2xf32>
    %cst_52 = arith.constant dense<0xFF800000> : vector<8x2xf32>
    %218 = vector.multi_reduction <maximumf>, %217, %cst_52 [2] : vector<8x2x2xf32> to vector<8x2xf32>
    %219 = vector.shape_cast %218 : vector<8x2xf32> to vector<8x2x1xf32>
    %220 = vector.broadcast %219 : vector<8x2x1xf32> to vector<8x2x2xf32>
    %221 = arith.subf %217, %220 : vector<8x2x2xf32>
    %222 = math.exp %221 : vector<8x2x2xf32>
    %cst_53 = arith.constant dense<0.000000e+00> : vector<8x2xf32>
    %223 = vector.multi_reduction <add>, %222, %cst_53 [2] : vector<8x2x2xf32> to vector<8x2xf32>
    %224 = vector.shape_cast %223 : vector<8x2xf32> to vector<8x2x1xf32>
    %225 = vector.broadcast %224 : vector<8x2x1xf32> to vector<8x2x2xf32>
    %226 = arith.divf %222, %225 : vector<8x2x2xf32>
    %cst_54 = arith.constant dense<0.000000e+00> : vector<8x2x4xf32>
    %227 = tpu.matmul %226, %209, %cst_54 {dimension_numbers = #tpu.dot_dimension_numbers<[2], [1], [1], [2], [0, 0, 0, 1, 1, 2], [0], [0]>} : vector<8x2x2xf32>, vector<8x2x4xf32>, vector<8x2x4xf32> -> vector<8x2x4xf32>
    %228 = vector.shape_cast %227 : vector<8x2x4xf32> to vector<16x4xf32>
    %229 = vector.extract_strided_slice %6 {offsets = [28, 0], sizes = [4, 32], strides = [1, 1]} : vector<32x32xf32> to vector<4x32xf32>
    %cst_55 = arith.constant dense<0.000000e+00> : vector<16x32xf32>
    %230 = tpu.matmul %228, %229, %cst_55 {dimension_numbers = #tpu.dot_dimension_numbers<[1], [0], [0], [1], [0, 0, 1, 1], [], []>} : vector<16x4xf32>, vector<4x32xf32>, vector<16x32xf32> -> vector<16x32xf32>
    %231 = arith.addf %203, %230 : vector<16x32xf32>
    %c0_56 = arith.constant 0 : index
    %c0_57 = arith.constant 0 : index
    %232 = vector.load %arg5[%c0_56, %c0_57] : memref<1x32xf32, #tpu.memory_space<vmem>>, vector<1x32xf32>
    %233 = vector.broadcast %232 : vector<1x32xf32> to vector<16x32xf32>
    %234 = arith.addf %231, %233 : vector<16x32xf32>
    %235 = arith.addf %0, %234 : vector<16x32xf32>
    %c0_58 = arith.constant 0 : index
    %c0_59 = arith.constant 0 : index
    %236 = vector.load %arg6[%c0_58, %c0_59] : memref<1x32xf32, #tpu.memory_space<vmem>>, vector<1x32xf32>
    %c0_60 = arith.constant 0 : index
    %c0_61 = arith.constant 0 : index
    %237 = vector.load %arg7[%c0_60, %c0_61] : memref<1x32xf32, #tpu.memory_space<vmem>>, vector<1x32xf32>
    %cst_62 = arith.constant dense<0.000000e+00> : vector<16xf32>
    %238 = vector.multi_reduction <add>, %235, %cst_62 [1] : vector<16x32xf32> to vector<16xf32>
    %239 = vector.shape_cast %238 : vector<16xf32> to vector<16x1xf32>
    %cst_63 = arith.constant 3.200000e+01 : f32
    %240 = vector.broadcast %cst_63 : f32 to vector<16x1xf32>
    %241 = arith.divf %239, %240 : vector<16x1xf32>
    %242 = vector.broadcast %241 : vector<16x1xf32> to vector<16x32xf32>
    %243 = arith.subf %235, %242 : vector<16x32xf32>
    %244 = arith.mulf %243, %243 : vector<16x32xf32>
    %cst_64 = arith.constant dense<0.000000e+00> : vector<16xf32>
    %245 = vector.multi_reduction <add>, %244, %cst_64 [1] : vector<16x32xf32> to vector<16xf32>
    %246 = vector.shape_cast %245 : vector<16xf32> to vector<16x1xf32>
    %cst_65 = arith.constant 3.200000e+01 : f32
    %247 = vector.broadcast %cst_65 : f32 to vector<16x1xf32>
    %248 = arith.divf %246, %247 : vector<16x1xf32>
    %249 = vector.broadcast %241 : vector<16x1xf32> to vector<16x32xf32>
    %250 = arith.subf %235, %249 : vector<16x32xf32>
    %cst_66 = arith.constant 9.99999974E-6 : f32
    %251 = vector.broadcast %cst_66 : f32 to vector<16x1xf32>
    %252 = arith.addf %248, %251 : vector<16x1xf32>
    %253 = math.rsqrt %252 : vector<16x1xf32>
    %254 = vector.broadcast %253 : vector<16x1xf32> to vector<16x32xf32>
    %255 = arith.mulf %250, %254 : vector<16x32xf32>
    %256 = vector.broadcast %236 : vector<1x32xf32> to vector<16x32xf32>
    %257 = arith.mulf %255, %256 : vector<16x32xf32>
    %258 = vector.broadcast %237 : vector<1x32xf32> to vector<16x32xf32>
    %259 = arith.addf %257, %258 : vector<16x32xf32>
    %c0_67 = arith.constant 0 : index
    %c0_68 = arith.constant 0 : index
    %260 = vector.load %arg8[%c0_67, %c0_68] : memref<16x32xf32, #tpu.memory_space<vmem>>, vector<16x32xf32>
    tpu.vector_store %arg8[%c0_67, %c0_68], %259 {strides = array<i32>} : memref<16x32xf32, #tpu.memory_space<vmem>>, vector<16x32xf32>,
    return
  }
  func.func @transform_0(%arg0: i32) -> (i32, i32) {
    %c0_i32 = arith.constant 0 : i32
    %c0_i32_0 = arith.constant 0 : i32
    return %arg0, %c0_i32 : i32, i32
  }
  func.func @transform_1(%arg0: i32) -> (i32, i32) {
    %c0_i32 = arith.constant 0 : i32
    %c0_i32_0 = arith.constant 0 : i32
    %c0_i32_1 = arith.constant 0 : i32
    return %c0_i32, %c0_i32_0 : i32, i32
  }
  func.func @transform_2(%arg0: i32) -> (i32, i32) {
    %c0_i32 = arith.constant 0 : i32
    %c0_i32_0 = arith.constant 0 : i32
    %c0_i32_1 = arith.constant 0 : i32
    return %c0_i32, %c0_i32_0 : i32, i32
  }
  func.func @transform_3(%arg0: i32) -> (i32, i32) {
    %c0_i32 = arith.constant 0 : i32
    %c0_i32_0 = arith.constant 0 : i32
    %c0_i32_1 = arith.constant 0 : i32
    return %c0_i32, %c0_i32_0 : i32, i32
  }
  func.func @transform_4(%arg0: i32) -> (i32, i32) {
    %c0_i32 = arith.constant 0 : i32
    %c0_i32_0 = arith.constant 0 : i32
    %c0_i32_1 = arith.constant 0 : i32
    return %c0_i32, %c0_i32_0 : i32, i32
  }
  func.func @transform_5(%arg0: i32) -> (i32, i32) {
    %c0_i32 = arith.constant 0 : i32
    %c0_i32_0 = arith.constant 0 : i32
    %c0_i32_1 = arith.constant 0 : i32
    return %c0_i32, %c0_i32_0 : i32, i32
  }
  func.func @transform_6(%arg0: i32) -> (i32, i32) {
    %c0_i32 = arith.constant 0 : i32
    %c0_i32_0 = arith.constant 0 : i32
    %c0_i32_1 = arith.constant 0 : i32
    return %c0_i32, %c0_i32_0 : i32, i32
  }
  func.func @transform_7(%arg0: i32) -> (i32, i32) {
    %c0_i32 = arith.constant 0 : i32
    %c0_i32_0 = arith.constant 0 : i32
    return %arg0, %c0_i32 : i32, i32
  }
}

module attributes {stable_mosaic.version = 11 : i64} {
  func.func @_ffn_ln_cls_kernel(%arg0: i32, %arg1: memref<16x32xf32, #tpu.memory_space<vmem>>, %arg2: memref<32x64xf32, #tpu.memory_space<vmem>>, %arg3: memref<1x64xf32, #tpu.memory_space<vmem>>, %arg4: memref<64x32xf32, #tpu.memory_space<vmem>>, %arg5: memref<1x32xf32, #tpu.memory_space<vmem>>, %arg6: memref<1x32xf32, #tpu.memory_space<vmem>>, %arg7: memref<1x32xf32, #tpu.memory_space<vmem>>, %arg8: memref<32x128xf32, #tpu.memory_space<vmem>>, %arg9: memref<1x128xf32, #tpu.memory_space<vmem>>, %arg10: memref<16x128xf32, #tpu.memory_space<vmem>>) attributes {dimension_semantics = [#tpu.dimension_semantics<parallel>], iteration_bounds = array<i64: 1>, scalar_prefetch = 0 : i64, scratch_operands = 0 : i64, tpu.core_type = #tpu.core_type<tc>, window_params = [{transform_indices = @transform_0, window_bounds = array<i64: 16, 32>}, {pipeline_mode = #tpu.pipeline_mode<synchronous>, transform_indices = @transform_1, window_bounds = array<i64: 32, 64>}, {pipeline_mode = #tpu.pipeline_mode<synchronous>, transform_indices = @transform_2, window_bounds = array<i64: 1, 64>}, {pipeline_mode = #tpu.pipeline_mode<synchronous>, transform_indices = @transform_3, window_bounds = array<i64: 64, 32>}, {pipeline_mode = #tpu.pipeline_mode<synchronous>, transform_indices = @transform_4, window_bounds = array<i64: 1, 32>}, {pipeline_mode = #tpu.pipeline_mode<synchronous>, transform_indices = @transform_5, window_bounds = array<i64: 1, 32>}, {pipeline_mode = #tpu.pipeline_mode<synchronous>, transform_indices = @transform_6, window_bounds = array<i64: 1, 32>}, {pipeline_mode = #tpu.pipeline_mode<synchronous>, transform_indices = @transform_7, window_bounds = array<i64: 32, 128>}, {pipeline_mode = #tpu.pipeline_mode<synchronous>, transform_indices = @transform_8, window_bounds = array<i64: 1, 128>}, {transform_indices = @transform_9, window_bounds = array<i64: 16, 128>}]} {
    %c0 = arith.constant 0 : index
    %c0_0 = arith.constant 0 : index
    %0 = vector.load %arg1[%c0, %c0_0] : memref<16x32xf32, #tpu.memory_space<vmem>>, vector<16x32xf32>
    %c0_1 = arith.constant 0 : index
    %c0_2 = arith.constant 0 : index
    %1 = vector.load %arg2[%c0_1, %c0_2] : memref<32x64xf32, #tpu.memory_space<vmem>>, vector<32x64xf32>
    %cst = arith.constant dense<0.000000e+00> : vector<16x64xf32>
    %2 = tpu.matmul %0, %1, %cst {dimension_numbers = #tpu.dot_dimension_numbers<[1], [0], [0], [1], [0, 0, 1, 1], [], []>} : vector<16x32xf32>, vector<32x64xf32>, vector<16x64xf32> -> vector<16x64xf32>
    %c0_3 = arith.constant 0 : index
    %c0_4 = arith.constant 0 : index
    %3 = vector.load %arg3[%c0_3, %c0_4] : memref<1x64xf32, #tpu.memory_space<vmem>>, vector<1x64xf32>
    %4 = vector.broadcast %3 : vector<1x64xf32> to vector<16x64xf32>
    %5 = arith.addf %2, %4 : vector<16x64xf32>
    %cst_5 = arith.constant 0.000000e+00 : f32
    %6 = vector.broadcast %cst_5 : f32 to vector<16x64xf32>
    %7 = arith.maximumf %5, %6 : vector<16x64xf32>
    %c0_6 = arith.constant 0 : index
    %c0_7 = arith.constant 0 : index
    %8 = vector.load %arg4[%c0_6, %c0_7] : memref<64x32xf32, #tpu.memory_space<vmem>>, vector<64x32xf32>
    %cst_8 = arith.constant dense<0.000000e+00> : vector<16x32xf32>
    %9 = tpu.matmul %7, %8, %cst_8 {dimension_numbers = #tpu.dot_dimension_numbers<[1], [0], [0], [1], [0, 0, 1, 1], [], []>} : vector<16x64xf32>, vector<64x32xf32>, vector<16x32xf32> -> vector<16x32xf32>
    %c0_9 = arith.constant 0 : index
    %c0_10 = arith.constant 0 : index
    %10 = vector.load %arg5[%c0_9, %c0_10] : memref<1x32xf32, #tpu.memory_space<vmem>>, vector<1x32xf32>
    %11 = vector.broadcast %10 : vector<1x32xf32> to vector<16x32xf32>
    %12 = arith.addf %9, %11 : vector<16x32xf32>
    %13 = arith.addf %0, %12 : vector<16x32xf32>
    %c0_11 = arith.constant 0 : index
    %c0_12 = arith.constant 0 : index
    %14 = vector.load %arg6[%c0_11, %c0_12] : memref<1x32xf32, #tpu.memory_space<vmem>>, vector<1x32xf32>
    %c0_13 = arith.constant 0 : index
    %c0_14 = arith.constant 0 : index
    %15 = vector.load %arg7[%c0_13, %c0_14] : memref<1x32xf32, #tpu.memory_space<vmem>>, vector<1x32xf32>
    %cst_15 = arith.constant dense<0.000000e+00> : vector<16xf32>
    %16 = vector.multi_reduction <add>, %13, %cst_15 [1] : vector<16x32xf32> to vector<16xf32>
    %17 = vector.shape_cast %16 : vector<16xf32> to vector<16x1xf32>
    %cst_16 = arith.constant 3.200000e+01 : f32
    %18 = vector.broadcast %cst_16 : f32 to vector<16x1xf32>
    %19 = arith.divf %17, %18 : vector<16x1xf32>
    %20 = vector.broadcast %19 : vector<16x1xf32> to vector<16x32xf32>
    %21 = arith.subf %13, %20 : vector<16x32xf32>
    %22 = arith.mulf %21, %21 : vector<16x32xf32>
    %cst_17 = arith.constant dense<0.000000e+00> : vector<16xf32>
    %23 = vector.multi_reduction <add>, %22, %cst_17 [1] : vector<16x32xf32> to vector<16xf32>
    %24 = vector.shape_cast %23 : vector<16xf32> to vector<16x1xf32>
    %cst_18 = arith.constant 3.200000e+01 : f32
    %25 = vector.broadcast %cst_18 : f32 to vector<16x1xf32>
    %26 = arith.divf %24, %25 : vector<16x1xf32>
    %27 = vector.broadcast %19 : vector<16x1xf32> to vector<16x32xf32>
    %28 = arith.subf %13, %27 : vector<16x32xf32>
    %cst_19 = arith.constant 9.99999974E-6 : f32
    %29 = vector.broadcast %cst_19 : f32 to vector<16x1xf32>
    %30 = arith.addf %26, %29 : vector<16x1xf32>
    %31 = math.rsqrt %30 : vector<16x1xf32>
    %32 = vector.broadcast %31 : vector<16x1xf32> to vector<16x32xf32>
    %33 = arith.mulf %28, %32 : vector<16x32xf32>
    %34 = vector.broadcast %14 : vector<1x32xf32> to vector<16x32xf32>
    %35 = arith.mulf %33, %34 : vector<16x32xf32>
    %36 = vector.broadcast %15 : vector<1x32xf32> to vector<16x32xf32>
    %37 = arith.addf %35, %36 : vector<16x32xf32>
    %c0_20 = arith.constant 0 : index
    %c0_21 = arith.constant 0 : index
    %38 = vector.load %arg8[%c0_20, %c0_21] : memref<32x128xf32, #tpu.memory_space<vmem>>, vector<32x128xf32>
    %cst_22 = arith.constant dense<0.000000e+00> : vector<16x128xf32>
    %39 = tpu.matmul %37, %38, %cst_22 {dimension_numbers = #tpu.dot_dimension_numbers<[1], [0], [0], [1], [0, 0, 1, 1], [], []>} : vector<16x32xf32>, vector<32x128xf32>, vector<16x128xf32> -> vector<16x128xf32>
    %c0_23 = arith.constant 0 : index
    %c0_24 = arith.constant 0 : index
    %40 = vector.load %arg9[%c0_23, %c0_24] : memref<1x128xf32, #tpu.memory_space<vmem>>, vector<1x128xf32>
    %41 = vector.broadcast %40 : vector<1x128xf32> to vector<16x128xf32>
    %42 = arith.addf %39, %41 : vector<16x128xf32>
    %c0_25 = arith.constant 0 : index
    %c0_26 = arith.constant 0 : index
    %43 = vector.load %arg10[%c0_25, %c0_26] : memref<16x128xf32, #tpu.memory_space<vmem>>, vector<16x128xf32>
    tpu.vector_store %arg10[%c0_25, %c0_26], %42 {strides = array<i32>} : memref<16x128xf32, #tpu.memory_space<vmem>>, vector<16x128xf32>,
    return
  }
  func.func @transform_0(%arg0: i32) -> (i32, i32) {
    %c0_i32 = arith.constant 0 : i32
    %c0_i32_0 = arith.constant 0 : i32
    return %arg0, %c0_i32 : i32, i32
  }
  func.func @transform_1(%arg0: i32) -> (i32, i32) {
    %c0_i32 = arith.constant 0 : i32
    %c0_i32_0 = arith.constant 0 : i32
    %c0_i32_1 = arith.constant 0 : i32
    return %c0_i32, %c0_i32_0 : i32, i32
  }
  func.func @transform_2(%arg0: i32) -> (i32, i32) {
    %c0_i32 = arith.constant 0 : i32
    %c0_i32_0 = arith.constant 0 : i32
    %c0_i32_1 = arith.constant 0 : i32
    return %c0_i32, %c0_i32_0 : i32, i32
  }
  func.func @transform_3(%arg0: i32) -> (i32, i32) {
    %c0_i32 = arith.constant 0 : i32
    %c0_i32_0 = arith.constant 0 : i32
    %c0_i32_1 = arith.constant 0 : i32
    return %c0_i32, %c0_i32_0 : i32, i32
  }
  func.func @transform_4(%arg0: i32) -> (i32, i32) {
    %c0_i32 = arith.constant 0 : i32
    %c0_i32_0 = arith.constant 0 : i32
    %c0_i32_1 = arith.constant 0 : i32
    return %c0_i32, %c0_i32_0 : i32, i32
  }
  func.func @transform_5(%arg0: i32) -> (i32, i32) {
    %c0_i32 = arith.constant 0 : i32
    %c0_i32_0 = arith.constant 0 : i32
    %c0_i32_1 = arith.constant 0 : i32
    return %c0_i32, %c0_i32_0 : i32, i32
  }
  func.func @transform_6(%arg0: i32) -> (i32, i32) {
    %c0_i32 = arith.constant 0 : i32
    %c0_i32_0 = arith.constant 0 : i32
    %c0_i32_1 = arith.constant 0 : i32
    return %c0_i32, %c0_i32_0 : i32, i32
  }
  func.func @transform_7(%arg0: i32) -> (i32, i32) {
    %c0_i32 = arith.constant 0 : i32
    %c0_i32_0 = arith.constant 0 : i32
    %c0_i32_1 = arith.constant 0 : i32
    return %c0_i32, %c0_i32_0 : i32, i32
  }
  func.func @transform_8(%arg0: i32) -> (i32, i32) {
    %c0_i32 = arith.constant 0 : i32
    %c0_i32_0 = arith.constant 0 : i32
    %c0_i32_1 = arith.constant 0 : i32
    return %c0_i32, %c0_i32_0 : i32, i32
  }
  func.func @transform_9(%arg0: i32) -> (i32, i32) {
    %c0_i32 = arith.constant 0 : i32
    %c0_i32_0 = arith.constant 0 : i32
    return %arg0, %c0_i32 : i32, i32
  }
}

module attributes {stable_mosaic.version = 11 : i64} {
  func.func @_ffn_ln_kernel(%arg0: i32, %arg1: memref<16x32xf32, #tpu.memory_space<vmem>>, %arg2: memref<32x64xf32, #tpu.memory_space<vmem>>, %arg3: memref<1x64xf32, #tpu.memory_space<vmem>>, %arg4: memref<64x32xf32, #tpu.memory_space<vmem>>, %arg5: memref<1x32xf32, #tpu.memory_space<vmem>>, %arg6: memref<1x32xf32, #tpu.memory_space<vmem>>, %arg7: memref<1x32xf32, #tpu.memory_space<vmem>>, %arg8: memref<16x32xf32, #tpu.memory_space<vmem>>) attributes {dimension_semantics = [#tpu.dimension_semantics<parallel>], iteration_bounds = array<i64: 1>, scalar_prefetch = 0 : i64, scratch_operands = 0 : i64, tpu.core_type = #tpu.core_type<tc>, window_params = [{transform_indices = @transform_0, window_bounds = array<i64: 16, 32>}, {pipeline_mode = #tpu.pipeline_mode<synchronous>, transform_indices = @transform_1, window_bounds = array<i64: 32, 64>}, {pipeline_mode = #tpu.pipeline_mode<synchronous>, transform_indices = @transform_2, window_bounds = array<i64: 1, 64>}, {pipeline_mode = #tpu.pipeline_mode<synchronous>, transform_indices = @transform_3, window_bounds = array<i64: 64, 32>}, {pipeline_mode = #tpu.pipeline_mode<synchronous>, transform_indices = @transform_4, window_bounds = array<i64: 1, 32>}, {pipeline_mode = #tpu.pipeline_mode<synchronous>, transform_indices = @transform_5, window_bounds = array<i64: 1, 32>}, {pipeline_mode = #tpu.pipeline_mode<synchronous>, transform_indices = @transform_6, window_bounds = array<i64: 1, 32>}, {transform_indices = @transform_7, window_bounds = array<i64: 16, 32>}]} {
    %c0 = arith.constant 0 : index
    %c0_0 = arith.constant 0 : index
    %0 = vector.load %arg1[%c0, %c0_0] : memref<16x32xf32, #tpu.memory_space<vmem>>, vector<16x32xf32>
    %c0_1 = arith.constant 0 : index
    %c0_2 = arith.constant 0 : index
    %1 = vector.load %arg2[%c0_1, %c0_2] : memref<32x64xf32, #tpu.memory_space<vmem>>, vector<32x64xf32>
    %cst = arith.constant dense<0.000000e+00> : vector<16x64xf32>
    %2 = tpu.matmul %0, %1, %cst {dimension_numbers = #tpu.dot_dimension_numbers<[1], [0], [0], [1], [0, 0, 1, 1], [], []>} : vector<16x32xf32>, vector<32x64xf32>, vector<16x64xf32> -> vector<16x64xf32>
    %c0_3 = arith.constant 0 : index
    %c0_4 = arith.constant 0 : index
    %3 = vector.load %arg3[%c0_3, %c0_4] : memref<1x64xf32, #tpu.memory_space<vmem>>, vector<1x64xf32>
    %4 = vector.broadcast %3 : vector<1x64xf32> to vector<16x64xf32>
    %5 = arith.addf %2, %4 : vector<16x64xf32>
    %cst_5 = arith.constant 0.000000e+00 : f32
    %6 = vector.broadcast %cst_5 : f32 to vector<16x64xf32>
    %7 = arith.maximumf %5, %6 : vector<16x64xf32>
    %c0_6 = arith.constant 0 : index
    %c0_7 = arith.constant 0 : index
    %8 = vector.load %arg4[%c0_6, %c0_7] : memref<64x32xf32, #tpu.memory_space<vmem>>, vector<64x32xf32>
    %cst_8 = arith.constant dense<0.000000e+00> : vector<16x32xf32>
    %9 = tpu.matmul %7, %8, %cst_8 {dimension_numbers = #tpu.dot_dimension_numbers<[1], [0], [0], [1], [0, 0, 1, 1], [], []>} : vector<16x64xf32>, vector<64x32xf32>, vector<16x32xf32> -> vector<16x32xf32>
    %c0_9 = arith.constant 0 : index
    %c0_10 = arith.constant 0 : index
    %10 = vector.load %arg5[%c0_9, %c0_10] : memref<1x32xf32, #tpu.memory_space<vmem>>, vector<1x32xf32>
    %11 = vector.broadcast %10 : vector<1x32xf32> to vector<16x32xf32>
    %12 = arith.addf %9, %11 : vector<16x32xf32>
    %13 = arith.addf %0, %12 : vector<16x32xf32>
    %c0_11 = arith.constant 0 : index
    %c0_12 = arith.constant 0 : index
    %14 = vector.load %arg6[%c0_11, %c0_12] : memref<1x32xf32, #tpu.memory_space<vmem>>, vector<1x32xf32>
    %c0_13 = arith.constant 0 : index
    %c0_14 = arith.constant 0 : index
    %15 = vector.load %arg7[%c0_13, %c0_14] : memref<1x32xf32, #tpu.memory_space<vmem>>, vector<1x32xf32>
    %cst_15 = arith.constant dense<0.000000e+00> : vector<16xf32>
    %16 = vector.multi_reduction <add>, %13, %cst_15 [1] : vector<16x32xf32> to vector<16xf32>
    %17 = vector.shape_cast %16 : vector<16xf32> to vector<16x1xf32>
    %cst_16 = arith.constant 3.200000e+01 : f32
    %18 = vector.broadcast %cst_16 : f32 to vector<16x1xf32>
    %19 = arith.divf %17, %18 : vector<16x1xf32>
    %20 = vector.broadcast %19 : vector<16x1xf32> to vector<16x32xf32>
    %21 = arith.subf %13, %20 : vector<16x32xf32>
    %22 = arith.mulf %21, %21 : vector<16x32xf32>
    %cst_17 = arith.constant dense<0.000000e+00> : vector<16xf32>
    %23 = vector.multi_reduction <add>, %22, %cst_17 [1] : vector<16x32xf32> to vector<16xf32>
    %24 = vector.shape_cast %23 : vector<16xf32> to vector<16x1xf32>
    %cst_18 = arith.constant 3.200000e+01 : f32
    %25 = vector.broadcast %cst_18 : f32 to vector<16x1xf32>
    %26 = arith.divf %24, %25 : vector<16x1xf32>
    %27 = vector.broadcast %19 : vector<16x1xf32> to vector<16x32xf32>
    %28 = arith.subf %13, %27 : vector<16x32xf32>
    %cst_19 = arith.constant 9.99999974E-6 : f32
    %29 = vector.broadcast %cst_19 : f32 to vector<16x1xf32>
    %30 = arith.addf %26, %29 : vector<16x1xf32>
    %31 = math.rsqrt %30 : vector<16x1xf32>
    %32 = vector.broadcast %31 : vector<16x1xf32> to vector<16x32xf32>
    %33 = arith.mulf %28, %32 : vector<16x32xf32>
    %34 = vector.broadcast %14 : vector<1x32xf32> to vector<16x32xf32>
    %35 = arith.mulf %33, %34 : vector<16x32xf32>
    %36 = vector.broadcast %15 : vector<1x32xf32> to vector<16x32xf32>
    %37 = arith.addf %35, %36 : vector<16x32xf32>
    %c0_20 = arith.constant 0 : index
    %c0_21 = arith.constant 0 : index
    %38 = vector.load %arg8[%c0_20, %c0_21] : memref<16x32xf32, #tpu.memory_space<vmem>>, vector<16x32xf32>
    tpu.vector_store %arg8[%c0_20, %c0_21], %37 {strides = array<i32>} : memref<16x32xf32, #tpu.memory_space<vmem>>, vector<16x32xf32>,
    return
  }
  func.func @transform_0(%arg0: i32) -> (i32, i32) {
    %c0_i32 = arith.constant 0 : i32
    %c0_i32_0 = arith.constant 0 : i32
    return %arg0, %c0_i32 : i32, i32
  }
  func.func @transform_1(%arg0: i32) -> (i32, i32) {
    %c0_i32 = arith.constant 0 : i32
    %c0_i32_0 = arith.constant 0 : i32
    %c0_i32_1 = arith.constant 0 : i32
    return %c0_i32, %c0_i32_0 : i32, i32
  }
  func.func @transform_2(%arg0: i32) -> (i32, i32) {
    %c0_i32 = arith.constant 0 : i32
    %c0_i32_0 = arith.constant 0 : i32
    %c0_i32_1 = arith.constant 0 : i32
    return %c0_i32, %c0_i32_0 : i32, i32
  }
  func.func @transform_3(%arg0: i32) -> (i32, i32) {
    %c0_i32 = arith.constant 0 : i32
    %c0_i32_0 = arith.constant 0 : i32
    %c0_i32_1 = arith.constant 0 : i32
    return %c0_i32, %c0_i32_0 : i32, i32
  }
  func.func @transform_4(%arg0: i32) -> (i32, i32) {
    %c0_i32 = arith.constant 0 : i32
    %c0_i32_0 = arith.constant 0 : i32
    %c0_i32_1 = arith.constant 0 : i32
    return %c0_i32, %c0_i32_0 : i32, i32
  }
  func.func @transform_5(%arg0: i32) -> (i32, i32) {
    %c0_i32 = arith.constant 0 : i32
    %c0_i32_0 = arith.constant 0 : i32
    %c0_i32_1 = arith.constant 0 : i32
    return %c0_i32, %c0_i32_0 : i32, i32
  }
  func.func @transform_6(%arg0: i32) -> (i32, i32) {
    %c0_i32 = arith.constant 0 : i32
    %c0_i32_0 = arith.constant 0 : i32
    %c0_i32_1 = arith.constant 0 : i32
    return %c0_i32, %c0_i32_0 : i32, i32
  }
  func.func @transform_7(%arg0: i32) -> (i32, i32) {
    %c0_i32 = arith.constant 0 : i32
    %c0_i32_0 = arith.constant 0 : i32
    return %arg0, %c0_i32 : i32, i32
  }
}

</mosaic_0001>

<llo_original>
// kernel: transformer_forward.5
$region0: #{transformer_forward.5}
  #allocation0 [shape = 'u32[]', space=smem, size = 0x4, offset = 0x4, fixed_abs, tag = 'smem constant byte address 0x4 - core index']
  #allocation1 [shape = 'u32[144,128]{1,0:T(1,128)}', space=vmem, size = 0x12000, scoped, tag = 'internal scratch']
  %s0 = inlined_call_operand.vmem [shape: f32[16,16], index: 0, kind: input, shape index: {}]
  %s1 = inlined_call_operand.vmem [shape: f32[16,32], index: 1, kind: input, shape index: {}]
  %s2 = inlined_call_operand.vmem [shape: f32[1,32], index: 2, kind: input, shape index: {}]
  %s3 = inlined_call_operand.vmem [shape: f32[8,1,32], index: 3, kind: input, shape index: {}]
  %s4 = inlined_call_operand.vmem [shape: f32[16,32], index: 4, kind: output, shape index: {}]
  %s5 = sld [smem:[#allocation0]]
  $region26: #{transformer_forward.5} parent=0
    _
  %s7 = ssub.s32 1, %s5
  %s8 = scalar_select 0, %s7, %s5
  // Predicated region
  $region2: #{transformer_forward.5} parent=0 // pred_check
    _
  $region3: #{transformer_forward.5} parent=0 // pred_check_branch
    %10 = sbr.rel (0) target = $region5
  $region4: #{transformer_forward.5} parent=0 // pred_region
    _
  $region5: #{transformer_forward.5} parent=0 // pred_fallthru
    _
  // Predicated region
  $region6: #{transformer_forward.5} parent=0 // pred_check
    _
  $region7: #{transformer_forward.5} parent=0 // pred_check_branch
    %12 = sbr.rel (0) target = $region9
  $region8: #{transformer_forward.5} parent=0 // pred_region
    _
  $region9: #{transformer_forward.5} parent=0 // pred_fallthru
    _
  // Predicated region
  $region10: #{transformer_forward.5} parent=0 // pred_check
    _
  $region11: #{transformer_forward.5} parent=0 // pred_check_branch
    %14 = sbr.rel (0) target = $region13
  $region12: #{transformer_forward.5} parent=0 // pred_region
    _
  $region13: #{transformer_forward.5} parent=0 // pred_fallthru
    _
  // Predicated region
  $region14: #{transformer_forward.5} parent=0 // pred_check
    _
  $region15: #{transformer_forward.5} parent=0 // pred_check_branch
    %16 = sbr.rel (0) target = $region17
  $region16: #{transformer_forward.5} parent=0 // pred_region
    _
  $region17: #{transformer_forward.5} parent=0 // pred_fallthru
    _
  %v17 = vld [vmem:[%s0] sm:$0xff]
  %v18 = vld [vmem:[%s0 + $0x8] sm:$0xff]
  %v19 = vld [vmem:[%s1] sm:$0xff]
  %v20 = vld [vmem:[%s1 + $0x8] sm:$0xff]
  %v21 = vld [vmem:[%s2] sm:$0x1]
  %v23 = vlaneseq
  %v24 = vshrl.u32 %v23, 7
  %v25 = vsub.s32 0, %v24
  %v26 = vrot.slane %v21, %v25
  %vm28 = vcmask 130048
  %v30 = vsel %vm28, %v17, 0
  %v33 = vsel %vm28, %v18, 0
  %35 = vmatprep.subr.mxu0 0.0
  %36 = vmatpush1.msra.mxu0 %v19
  %37 = vmatprep.subr.mxu0 0.0
  %38 = vmatpush1.msra.mxu0 %v20
  %39 = vmatprep.subr.mxu0 0.0
  %40 = vmatpush1.msra.mxu0 0.0
  %41 = vmatprep.subr.mxu0 0.0
  %42 = vmatpush1.msra.mxu0 0.0
  %43 = vmatprep.subr.mxu0 0.0
  %44 = vmatpush1.msra.mxu0 0.0
  %45 = vmatprep.subr.mxu0 0.0
  %46 = vmatpush1.msra.mxu0 0.0
  %47 = vmatprep.subr.mxu0 0.0
  %48 = vmatpush1.msra.mxu0 0.0
  %49 = vmatprep.subr.mxu0 0.0
  %50 = vmatpush1.msra.mxu0 0.0
  %51 = vmatprep.subr.mxu0 0.0
  %52 = vmatpush1.msra.mxu0 0.0
  %53 = vmatprep.subr.mxu0 0.0
  %54 = vmatpush1.msra.mxu0 0.0
  %55 = vmatprep.subr.mxu0 0.0
  %56 = vmatpush1.msra.mxu0 0.0
  %57 = vmatprep.subr.mxu0 0.0
  %58 = vmatpush1.msra.mxu0 0.0
  %59 = vmatprep.subr.mxu0 0.0
  %60 = vmatpush1.msra.mxu0 0.0
  %61 = vmatprep.subr.mxu0 0.0
  %62 = vmatpush1.msra.mxu0 0.0
  %63 = vmatprep.subr.mxu0 0.0
  %64 = vmatpush1.msra.mxu0 0.0
  %65 = vmatprep.subr.mxu0 0.0
  %66 = vmatpush1.msra.mxu0 0.0
  %67 = vmatprep.subr.mxu0 0.0
  %68 = vmatpush1.msra.mxu0 0.0
  %69 = vmatprep.subr.mxu0 0.0
  %70 = vmatpush1.msra.mxu0 0.0
  %71 = vmatprep.subr.mxu0 0.0
  %72 = vmatpush1.msra.mxu0 0.0
  %73 = vmatprep.subr.mxu0 0.0
  %74 = vmatpush1.msra.mxu0 0.0
  %75 = vmatprep.subr.mxu0 0.0
  %76 = vmatpush1.msra.mxu0 0.0
  %77 = vmatprep.subr.mxu0 0.0
  %78 = vmatpush1.msra.mxu0 0.0
  %79 = vmatprep.subr.mxu0 0.0
  %80 = vmatpush1.msra.mxu0 0.0
  %81 = vmatprep.subr.mxu0 0.0
  %82 = vmatpush1.msra.mxu0 0.0
  %83 = vmatprep.subr.mxu0 0.0
  %84 = vmatpush1.msra.mxu0 0.0
  %85 = vmatprep.subr.mxu0 0.0
  %86 = vmatpush1.msra.mxu0 0.0
  %87 = vmatprep.subr.mxu0 0.0
  %88 = vmatpush1.msra.mxu0 0.0
  %89 = vmatprep.subr.mxu0 0.0
  %90 = vmatpush1.msra.mxu0 0.0
  %91 = vmatprep.subr.mxu0 0.0
  %92 = vmatpush1.msra.mxu0 0.0
  %93 = vmatprep.subr.mxu0 0.0
  %94 = vmatpush1.msra.mxu0 0.0
  %95 = vmatprep.subr.mxu0 0.0
  %96 = vmatpush1.msra.mxu0 0.0
  %97 = vmatprep.subr.mxu0 0.0
  %98 = vmatpush1.msra.mxu0 0.0
  %99 = vmatprep.mubr.f32.mxu0 0.0
  %100 = vmatmul.mubr.f32.gmra.mrb[0].mxu0 %v30
  %v101 = vpop.f32.mrb[0].mxu0
  %v102 = vadd.f32 %v26, %v101
  %v103 = vpop.f32.mrb[0].mxu0
  %104 = vmatprep.mubr.f32.mxu0 0.0
  %105 = vmatmul.mubr.f32.gmra.mrb[0].mxu0 %v33
  %v106 = vpop.f32.mrb[0].mxu0
  %v107 = vadd.f32 %v26, %v106
  %v108 = vpop.f32.mrb[0].mxu0
  %109 = vdwg.mxu0
  %v112 = vcombine.high %v102, %v102
  %v114 = vunpack.c.l.s4 1983009808
  %v115 = vunpack.c.0.s8 %v114
  %v116 = vlaneseq
  %v117 = vshrl.u32 %v116, 7
  %v118 = vsub.s32 %v115, %v117
  %v119 = vrot.slane %v102, %v118
  %v121 = vunpack.c.l.s4 1983009808
  %v122 = vunpack.c.0.s8 %v121
  %v123 = vlaneseq
  %v124 = vshrl.u32 %v123, 7
  %v125 = vsub.s32 %v122, %v124
  %v126 = vrot.slane %v112, %v125
  %v127 = vcombine.high %v119, %v119
  %v128 = vcombine.high %v126, %v126
  %v129 = vcombine.high %v107, %v107
  %v131 = vunpack.c.l.s4 1983009808
  %v132 = vunpack.c.0.s8 %v131
  %v133 = vlaneseq
  %v134 = vshrl.u32 %v133, 7
  %v135 = vsub.s32 %v132, %v134
  %v136 = vrot.slane %v107, %v135
  %v138 = vunpack.c.l.s4 1983009808
  %v139 = vunpack.c.0.s8 %v138
  %v140 = vlaneseq
  %v141 = vshrl.u32 %v140, 7
  %v142 = vsub.s32 %v139, %v141
  %v143 = vrot.slane %v129, %v142
  %v144 = vcombine.high %v136, %v136
  %v145 = vcombine.high %v143, %v143
  %v154 = vld [vmem:[%s3] sm:$0x1]
  %v155 = vld [vmem:[%s3 + $0x1] sm:$0x1]
  %v156 = vld [vmem:[%s3 + $0x2] sm:$0x1]
  %v157 = vld [vmem:[%s3 + $0x3] sm:$0x1]
  %v158 = vld [vmem:[%s3 + $0x4] sm:$0x1]
  %v159 = vld [vmem:[%s3 + $0x5] sm:$0x1]
  %v160 = vld [vmem:[%s3 + $0x6] sm:$0x1]
  %v161 = vld [vmem:[%s3 + $0x7] sm:$0x1]
  %v170 = vlaneseq
  %v171 = vshrl.u32 %v170, 7
  %v172 = vsub.s32 0, %v171
  %v173 = vrot.slane %v154, %v172
  %v174 = vlaneseq
  %v175 = vshrl.u32 %v174, 7
  %v176 = vsub.s32 0, %v175
  %v177 = vrot.slane %v155, %v176
  %v178 = vlaneseq
  %v179 = vshrl.u32 %v178, 7
  %v180 = vsub.s32 0, %v179
  %v181 = vrot.slane %v156, %v180
  %v182 = vlaneseq
  %v183 = vshrl.u32 %v182, 7
  %v184 = vsub.s32 0, %v183
  %v185 = vrot.slane %v157, %v184
  %v186 = vlaneseq
  %v187 = vshrl.u32 %v186, 7
  %v188 = vsub.s32 0, %v187
  %v189 = vrot.slane %v158, %v188
  %v190 = vlaneseq
  %v191 = vshrl.u32 %v190, 7
  %v192 = vsub.s32 0, %v191
  %v193 = vrot.slane %v159, %v192
  %v194 = vlaneseq
  %v195 = vshrl.u32 %v194, 7
  %v196 = vsub.s32 0, %v195
  %v197 = vrot.slane %v160, %v196
  %v198 = vlaneseq
  %v199 = vshrl.u32 %v198, 7
  %v200 = vsub.s32 0, %v199
  %v201 = vrot.slane %v161, %v200
  %v210 = vadd.f32 %v119, %v173
  %v211 = vadd.f32 %v127, %v177
  %v212 = vadd.f32 %v126, %v181
  %v213 = vadd.f32 %v128, %v185
  %v214 = vadd.f32 %v136, %v189
  %v215 = vadd.f32 %v144, %v193
  %v216 = vadd.f32 %v143, %v197
  %v217 = vadd.f32 %v145, %v201
  %v226 = vcombine.low %v210, %v211
  %v227 = vcombine.low %v212, %v213
  %v229 = vunpack.c.l.s4 1983009808
  %v230 = vunpack.c.0.s8 %v229
  %v231 = vlaneseq
  %v232 = vshrl.u32 %v231, 7
  %v233 = vsub.s32 %v230, %v232
  %v234 = vrot.slane %v226, %v233
  %v236 = vunpack.c.l.s4 1983009808
  %v237 = vunpack.c.0.s8 %v236
  %v238 = vlaneseq
  %v239 = vshrl.u32 %v238, 7
  %v240 = vsub.s32 %v237, %v239
  %v241 = vrot.slane %v227, %v240
  %v242 = vcombine.low %v234, %v241
  %v243 = vcombine.low %v214, %v215
  %v244 = vcombine.low %v216, %v217
  %v246 = vunpack.c.l.s4 1983009808
  %v247 = vunpack.c.0.s8 %v246
  %v248 = vlaneseq
  %v249 = vshrl.u32 %v248, 7
  %v250 = vsub.s32 %v247, %v249
  %v251 = vrot.slane %v243, %v250
  %v253 = vunpack.c.l.s4 1983009808
  %v254 = vunpack.c.0.s8 %v253
  %v255 = vlaneseq
  %v256 = vshrl.u32 %v255, 7
  %v257 = vsub.s32 %v254, %v256
  %v258 = vrot.slane %v244, %v257
  %v259 = vcombine.low %v251, %v258
  %vm262 = vcmask 261120
  %263 = vst.msk [vmem:[%s4] sm:$0xff] %vm262, %v242
  %264 = vst.msk [vmem:[%s4 + $0x8] sm:$0xff] %vm262, %v259
  // Predicated region
  $region18: #{transformer_forward.5} parent=0 // pred_check
    _
  $region19: #{transformer_forward.5} parent=0 // pred_check_branch
    %266 = sbr.rel (0) target = $region21
  $region20: #{transformer_forward.5} parent=0 // pred_region
    _
  $region21: #{transformer_forward.5} parent=0 // pred_fallthru
    _
  // Predicated region
  $region22: #{transformer_forward.5} parent=0 // pred_check
    _
  $region23: #{transformer_forward.5} parent=0 // pred_check_branch
    %268 = sbr.rel (0) target = $region25
  $region24: #{transformer_forward.5} parent=0 // pred_region
    _
  $region25: #{transformer_forward.5} parent=0 // pred_fallthru
    _

// kernel: transformer_forward.9
$region0: #{transformer_forward.9}
  #allocation0 [shape = 'u32[]', space=smem, size = 0x4, offset = 0x4, fixed_abs, tag = 'smem constant byte address 0x4 - core index']
  #allocation1 [shape = 'u32[144,128]{1,0:T(1,128)}', space=vmem, size = 0x12000, scoped, tag = 'internal scratch']
  %s0 = inlined_call_operand.vmem [shape: f32[16,32], index: 0, kind: input, shape index: {}]
  %s1 = inlined_call_operand.vmem [shape: f32[32,64], index: 1, kind: input, shape index: {}]
  %s2 = inlined_call_operand.vmem [shape: f32[1,64], index: 2, kind: input, shape index: {}]
  %s3 = inlined_call_operand.vmem [shape: f32[64,32], index: 3, kind: input, shape index: {}]
  %s4 = inlined_call_operand.vmem [shape: f32[1,32], index: 4, kind: input, shape index: {}]
  %s5 = inlined_call_operand.vmem [shape: f32[1,32], index: 5, kind: input, shape index: {}]
  %s6 = inlined_call_operand.vmem [shape: f32[1,32], index: 6, kind: input, shape index: {}]
  %s7 = inlined_call_operand.vmem [shape: f32[32,128], index: 7, kind: input, shape index: {}]
  %s8 = inlined_call_operand.vmem [shape: f32[1,128], index: 8, kind: input, shape index: {}]
  %s9 = inlined_call_operand.vmem [shape: f32[16,128], index: 9, kind: output, shape index: {}]
  %s10 = sld [smem:[#allocation0]]
  $region46: #{transformer_forward.9} parent=0
    _
  %s12 = ssub.s32 1, %s10
  %s13 = scalar_select 0, %s12, %s10
  // Predicated region
  $region2: #{transformer_forward.9} parent=0 // pred_check
    _
  $region3: #{transformer_forward.9} parent=0 // pred_check_branch
    %15 = sbr.rel (0) target = $region5
  $region4: #{transformer_forward.9} parent=0 // pred_region
    _
  $region5: #{transformer_forward.9} parent=0 // pred_fallthru
    _
  // Predicated region
  $region6: #{transformer_forward.9} parent=0 // pred_check
    _
  $region7: #{transformer_forward.9} parent=0 // pred_check_branch
    %17 = sbr.rel (0) target = $region9
  $region8: #{transformer_forward.9} parent=0 // pred_region
    _
  $region9: #{transformer_forward.9} parent=0 // pred_fallthru
    _
  // Predicated region
  $region10: #{transformer_forward.9} parent=0 // pred_check
    _
  $region11: #{transformer_forward.9} parent=0 // pred_check_branch
    %19 = sbr.rel (0) target = $region13
  $region12: #{transformer_forward.9} parent=0 // pred_region
    _
  $region13: #{transformer_forward.9} parent=0 // pred_fallthru
    _
  // Predicated region
  $region14: #{transformer_forward.9} parent=0 // pred_check
    _
  $region15: #{transformer_forward.9} parent=0 // pred_check_branch
    %21 = sbr.rel (0) target = $region17
  $region16: #{transformer_forward.9} parent=0 // pred_region
    _
  $region17: #{transformer_forward.9} parent=0 // pred_fallthru
    _
  // Predicated region
  $region18: #{transformer_forward.9} parent=0 // pred_check
    _
  $region19: #{transformer_forward.9} parent=0 // pred_check_branch
    %23 = sbr.rel (0) target = $region21
  $region20: #{transformer_forward.9} parent=0 // pred_region
    _
  $region21: #{transformer_forward.9} parent=0 // pred_fallthru
    _
  // Predicated region
  $region22: #{transformer_forward.9} parent=0 // pred_check
    _
  $region23: #{transformer_forward.9} parent=0 // pred_check_branch
    %25 = sbr.rel (0) target = $region25
  $region24: #{transformer_forward.9} parent=0 // pred_region
    _
  $region25: #{transformer_forward.9} parent=0 // pred_fallthru
    _
  // Predicated region
  $region26: #{transformer_forward.9} parent=0 // pred_check
    _
  $region27: #{transformer_forward.9} parent=0 // pred_check_branch
    %27 = sbr.rel (0) target = $region29
  $region28: #{transformer_forward.9} parent=0 // pred_region
    _
  $region29: #{transformer_forward.9} parent=0 // pred_fallthru
    _
  // Predicated region
  $region30: #{transformer_forward.9} parent=0 // pred_check
    _
  $region31: #{transformer_forward.9} parent=0 // pred_check_branch
    %29 = sbr.rel (0) target = $region33
  $region32: #{transformer_forward.9} parent=0 // pred_region
    _
  $region33: #{transformer_forward.9} parent=0 // pred_fallthru
    _
  // Predicated region
  $region34: #{transformer_forward.9} parent=0 // pred_check
    _
  $region35: #{transformer_forward.9} parent=0 // pred_check_branch
    %31 = sbr.rel (0) target = $region37
  $region36: #{transformer_forward.9} parent=0 // pred_region
    _
  $region37: #{transformer_forward.9} parent=0 // pred_fallthru
    _
  %v32 = vld [vmem:[%s0] sm:$0xff]
  %v33 = vld [vmem:[%s0 + $0x8] sm:$0xff]
  %v34 = vld [vmem:[%s1] sm:$0xff]
  %v35 = vld [vmem:[%s1 + $0x8] sm:$0xff]
  %v36 = vld [vmem:[%s1 + $0x10] sm:$0xff]
  %v37 = vld [vmem:[%s1 + $0x18] sm:$0xff]
  %v38 = vld [vmem:[%s2] sm:$0x1]
  %v40 = vlaneseq
  %v41 = vshrl.u32 %v40, 7
  %v42 = vsub.s32 0, %v41
  %v43 = vrot.slane %v38, %v42
  %vm45 = vcmask 261120
  %v47 = vsel %vm45, %v32, 0
  %v50 = vsel %vm45, %v33, 0
  %52 = vmatprep.subr.mxu0 0.0
  %53 = vmatpush1.msra.mxu0 %v34
  %54 = vmatprep.subr.mxu0 0.0
  %55 = vmatpush1.msra.mxu0 %v35
  %56 = vmatprep.subr.mxu0 0.0
  %57 = vmatpush1.msra.mxu0 %v36
  %58 = vmatprep.subr.mxu0 0.0
  %59 = vmatpush1.msra.mxu0 %v37
  %60 = vmatprep.subr.mxu0 0.0
  %61 = vmatpush1.msra.mxu0 0.0
  %62 = vmatprep.subr.mxu0 0.0
  %63 = vmatpush1.msra.mxu0 0.0
  %64 = vmatprep.subr.mxu0 0.0
  %65 = vmatpush1.msra.mxu0 0.0
  %66 = vmatprep.subr.mxu0 0.0
  %67 = vmatpush1.msra.mxu0 0.0
  %68 = vmatprep.subr.mxu0 0.0
  %69 = vmatpush1.msra.mxu0 0.0
  %70 = vmatprep.subr.mxu0 0.0
  %71 = vmatpush1.msra.mxu0 0.0
  %72 = vmatprep.subr.mxu0 0.0
  %73 = vmatpush1.msra.mxu0 0.0
  %74 = vmatprep.subr.mxu0 0.0
  %75 = vmatpush1.msra.mxu0 0.0
  %76 = vmatprep.subr.mxu0 0.0
  %77 = vmatpush1.msra.mxu0 0.0
  %78 = vmatprep.subr.mxu0 0.0
  %79 = vmatpush1.msra.mxu0 0.0
  %80 = vmatprep.subr.mxu0 0.0
  %81 = vmatpush1.msra.mxu0 0.0
  %82 = vmatprep.subr.mxu0 0.0
  %83 = vmatpush1.msra.mxu0 0.0
  %84 = vmatprep.subr.mxu0 0.0
  %85 = vmatpush1.msra.mxu0 0.0
  %86 = vmatprep.subr.mxu0 0.0
  %87 = vmatpush1.msra.mxu0 0.0
  %88 = vmatprep.subr.mxu0 0.0
  %89 = vmatpush1.msra.mxu0 0.0
  %90 = vmatprep.subr.mxu0 0.0
  %91 = vmatpush1.msra.mxu0 0.0
  %92 = vmatprep.subr.mxu0 0.0
  %93 = vmatpush1.msra.mxu0 0.0
  %94 = vmatprep.subr.mxu0 0.0
  %95 = vmatpush1.msra.mxu0 0.0
  %96 = vmatprep.subr.mxu0 0.0
  %97 = vmatpush1.msra.mxu0 0.0
  %98 = vmatprep.subr.mxu0 0.0
  %99 = vmatpush1.msra.mxu0 0.0
  %100 = vmatprep.subr.mxu0 0.0
  %101 = vmatpush1.msra.mxu0 0.0
  %102 = vmatprep.subr.mxu0 0.0
  %103 = vmatpush1.msra.mxu0 0.0
  %104 = vmatprep.subr.mxu0 0.0
  %105 = vmatpush1.msra.mxu0 0.0
  %106 = vmatprep.subr.mxu0 0.0
  %107 = vmatpush1.msra.mxu0 0.0
  %108 = vmatprep.subr.mxu0 0.0
  %109 = vmatpush1.msra.mxu0 0.0
  %110 = vmatprep.subr.mxu0 0.0
  %111 = vmatpush1.msra.mxu0 0.0
  %112 = vmatprep.subr.mxu0 0.0
  %113 = vmatpush1.msra.mxu0 0.0
  %114 = vmatprep.subr.mxu0 0.0
  %115 = vmatpush1.msra.mxu0 0.0
  %116 = vmatprep.mubr.f32.mxu0 0.0
  %117 = vmatmul.mubr.f32.gmra.mrb[0].mxu0 %v47
  %v118 = vpop.f32.mrb[0].mxu0
  %v119 = vadd.f32 %v43, %v118
  %v120 = vpop.f32.mrb[0].mxu0
  %121 = vmatprep.mubr.f32.mxu0 0.0
  %122 = vmatmul.mubr.f32.gmra.mrb[0].mxu0 %v50
  %v123 = vpop.f32.mrb[0].mxu0
  %v124 = vadd.f32 %v43, %v123
  %v125 = vpop.f32.mrb[0].mxu0
  %126 = vdwg.mxu0
  %v127 = vmax.f32 %v119, 0.0
  %v128 = vmax.f32 %v124, 0.0
  %v129 = vld [vmem:[%s3] sm:$0xff]
  %v130 = vld [vmem:[%s3 + $0x8] sm:$0xff]
  %v131 = vld [vmem:[%s3 + $0x10] sm:$0xff]
  %v132 = vld [vmem:[%s3 + $0x18] sm:$0xff]
  %v133 = vld [vmem:[%s3 + $0x20] sm:$0xff]
  %v134 = vld [vmem:[%s3 + $0x28] sm:$0xff]
  %v135 = vld [vmem:[%s3 + $0x30] sm:$0xff]
  %v136 = vld [vmem:[%s3 + $0x38] sm:$0xff]
  %v137 = vld [vmem:[%s4] sm:$0x1]
  %v139 = vlaneseq
  %v140 = vshrl.u32 %v139, 7
  %v141 = vsub.s32 0, %v140
  %v142 = vrot.slane %v137, %v141
  %vm144 = vcmask 523264
  %v146 = vsel %vm144, %v127, 0
  %v149 = vsel %vm144, %v128, 0
  %151 = vmatprep.subr.mxu0 0.0
  %152 = vmatpush1.msra.mxu0 %v129
  %153 = vmatprep.subr.mxu0 0.0
  %154 = vmatpush1.msra.mxu0 %v130
  %155 = vmatprep.subr.mxu0 0.0
  %156 = vmatpush1.msra.mxu0 %v131
  %157 = vmatprep.subr.mxu0 0.0
  %158 = vmatpush1.msra.mxu0 %v132
  %159 = vmatprep.subr.mxu0 0.0
  %160 = vmatpush1.msra.mxu0 %v133
  %161 = vmatprep.subr.mxu0 0.0
  %162 = vmatpush1.msra.mxu0 %v134
  %163 = vmatprep.subr.mxu0 0.0
  %164 = vmatpush1.msra.mxu0 %v135
  %165 = vmatprep.subr.mxu0 0.0
  %166 = vmatpush1.msra.mxu0 %v136
  %167 = vmatprep.subr.mxu0 0.0
  %168 = vmatpush1.msra.mxu0 0.0
  %169 = vmatprep.subr.mxu0 0.0
  %170 = vmatpush1.msra.mxu0 0.0
  %171 = vmatprep.subr.mxu0 0.0
  %172 = vmatpush1.msra.mxu0 0.0
  %173 = vmatprep.subr.mxu0 0.0
  %174 = vmatpush1.msra.mxu0 0.0
  %175 = vmatprep.subr.mxu0 0.0
  %176 = vmatpush1.msra.mxu0 0.0
  %177 = vmatprep.subr.mxu0 0.0
  %178 = vmatpush1.msra.mxu0 0.0
  %179 = vmatprep.subr.mxu0 0.0
  %180 = vmatpush1.msra.mxu0 0.0
  %181 = vmatprep.subr.mxu0 0.0
  %182 = vmatpush1.msra.mxu0 0.0
  %183 = vmatprep.subr.mxu0 0.0
  %184 = vmatpush1.msra.mxu0 0.0
  %185 = vmatprep.subr.mxu0 0.0
  %186 = vmatpush1.msra.mxu0 0.0
  %187 = vmatprep.subr.mxu0 0.0
  %188 = vmatpush1.msra.mxu0 0.0
  %189 = vmatprep.subr.mxu0 0.0
  %190 = vmatpush1.msra.mxu0 0.0
  %191 = vmatprep.subr.mxu0 0.0
  %192 = vmatpush1.msra.mxu0 0.0
  %193 = vmatprep.subr.mxu0 0.0
  %194 = vmatpush1.msra.mxu0 0.0
  %195 = vmatprep.subr.mxu0 0.0
  %196 = vmatpush1.msra.mxu0 0.0
  %197 = vmatprep.subr.mxu0 0.0
  %198 = vmatpush1.msra.mxu0 0.0
  %199 = vmatprep.subr.mxu0 0.0
  %200 = vmatpush1.msra.mxu0 0.0
  %201 = vmatprep.subr.mxu0 0.0
  %202 = vmatpush1.msra.mxu0 0.0
  %203 = vmatprep.subr.mxu0 0.0
  %204 = vmatpush1.msra.mxu0 0.0
  %205 = vmatprep.subr.mxu0 0.0
  %206 = vmatpush1.msra.mxu0 0.0
  %207 = vmatprep.subr.mxu0 0.0
  %208 = vmatpush1.msra.mxu0 0.0
  %209 = vmatprep.subr.mxu0 0.0
  %210 = vmatpush1.msra.mxu0 0.0
  %211 = vmatprep.subr.mxu0 0.0
  %212 = vmatpush1.msra.mxu0 0.0
  %213 = vmatprep.subr.mxu0 0.0
  %214 = vmatpush1.msra.mxu0 0.0
  %215 = vmatprep.mubr.f32.mxu0 0.0
  %216 = vmatmul.mubr.f32.gmra.mrb[0].mxu0 %v146
  %v217 = vpop.f32.mrb[0].mxu0
  %v218 = vadd.f32 %v142, %v217
  %v219 = vpop.f32.mrb[0].mxu0
  %220 = vmatprep.mubr.f32.mxu0 0.0
  %221 = vmatmul.mubr.f32.gmra.mrb[0].mxu0 %v149
  %v222 = vpop.f32.mrb[0].mxu0
  %v223 = vadd.f32 %v142, %v222
  %v224 = vpop.f32.mrb[0].mxu0
  %225 = vdwg.mxu0
  %v226 = vadd.f32 %v32, %v218
  %v227 = vadd.f32 %v33, %v223
  %v228 = vld [vmem:[%s5] sm:$0x1]
  %v229 = vld [vmem:[%s6] sm:$0x1]
  %v230 = vsel %vm45, %v226, 0.0
  %231 = vadd.xlane.f32.xlu0 %v230
  %v232 = vpop.xlane.xlu0 %231
  %v233 = vsel %vm45, %v227, 0.0
  %234 = vadd.xlane.f32.xlu0 %v233
  %v235 = vpop.xlane.xlu0 %234
  %v236 = vrcp.pop 32.0
  %v237 = vmul.f32 %v232, %v236
  %v238 = vmul.f32 %v235, %v236
  %v239 = vsub.f32 %v226, %v237
  %v240 = vsub.f32 %v227, %v238
  %v241 = vmul.f32 %v239, %v239
  %v242 = vmul.f32 %v240, %v240
  %v243 = vsel %vm45, %v241, 0.0
  %244 = vadd.xlane.f32.xlu0 %v243
  %v245 = vpop.xlane.xlu0 %244
  %v246 = vsel %vm45, %v242, 0.0
  %247 = vadd.xlane.f32.xlu0 %v246
  %v248 = vpop.xlane.xlu0 %247
  %v249 = vmul.f32 %v245, %v236
  %v250 = vmul.f32 %v248, %v236
  %v251 = vadd.f32 %v249, 1e-05
  %v252 = vadd.f32 %v250, 1e-05
  %v253 = vrsqrt.pop %v251
  %v254 = vrsqrt.pop %v252
  %v255 = vmul.f32 %v239, %v253
  %v256 = vmul.f32 %v240, %v254
  %v258 = vlaneseq
  %v259 = vshrl.u32 %v258, 7
  %v260 = vsub.s32 0, %v259
  %v261 = vrot.slane %v228, %v260
  %v263 = vmul.f32 %v255, %v261
  %v264 = vmul.f32 %v256, %v261
  %v266 = vlaneseq
  %v267 = vshrl.u32 %v266, 7
  %v268 = vsub.s32 0, %v267
  %v269 = vrot.slane %v229, %v268
  %v271 = vadd.f32 %v263, %v269
  %v272 = vadd.f32 %v264, %v269
  %v273 = vld [vmem:[%s7] sm:$0xff]
  %v274 = vld [vmem:[%s7 + $0x8] sm:$0xff]
  %v275 = vld [vmem:[%s7 + $0x10] sm:$0xff]
  %v276 = vld [vmem:[%s7 + $0x18] sm:$0xff]
  %v277 = vld [vmem:[%s8] sm:$0x1]
  %v279 = vlaneseq
  %v280 = vshrl.u32 %v279, 7
  %v281 = vsub.s32 0, %v280
  %v282 = vrot.slane %v277, %v281
  %v285 = vsel %vm45, %v271, 0
  %v288 = vsel %vm45, %v272, 0
  %290 = vmatprep.subr.mxu0 0.0
  %291 = vmatpush1.msra.mxu0 %v273
  %292 = vmatprep.subr.mxu0 0.0
  %293 = vmatpush1.msra.mxu0 %v274
  %294 = vmatprep.subr.mxu0 0.0
  %295 = vmatpush1.msra.mxu0 %v275
  %296 = vmatprep.subr.mxu0 0.0
  %297 = vmatpush1.msra.mxu0 %v276
  %298 = vmatprep.subr.mxu0 0.0
  %299 = vmatpush1.msra.mxu0 0.0
  %300 = vmatprep.subr.mxu0 0.0
  %301 = vmatpush1.msra.mxu0 0.0
  %302 = vmatprep.subr.mxu0 0.0
  %303 = vmatpush1.msra.mxu0 0.0
  %304 = vmatprep.subr.mxu0 0.0
  %305 = vmatpush1.msra.mxu0 0.0
  %306 = vmatprep.subr.mxu0 0.0
  %307 = vmatpush1.msra.mxu0 0.0
  %308 = vmatprep.subr.mxu0 0.0
  %309 = vmatpush1.msra.mxu0 0.0
  %310 = vmatprep.subr.mxu0 0.0
  %311 = vmatpush1.msra.mxu0 0.0
  %312 = vmatprep.subr.mxu0 0.0
  %313 = vmatpush1.msra.mxu0 0.0
  %314 = vmatprep.subr.mxu0 0.0
  %315 = vmatpush1.msra.mxu0 0.0
  %316 = vmatprep.subr.mxu0 0.0
  %317 = vmatpush1.msra.mxu0 0.0
  %318 = vmatprep.subr.mxu0 0.0
  %319 = vmatpush1.msra.mxu0 0.0
  %320 = vmatprep.subr.mxu0 0.0
  %321 = vmatpush1.msra.mxu0 0.0
  %322 = vmatprep.subr.mxu0 0.0
  %323 = vmatpush1.msra.mxu0 0.0
  %324 = vmatprep.subr.mxu0 0.0
  %325 = vmatpush1.msra.mxu0 0.0
  %326 = vmatprep.subr.mxu0 0.0
  %327 = vmatpush1.msra.mxu0 0.0
  %328 = vmatprep.subr.mxu0 0.0
  %329 = vmatpush1.msra.mxu0 0.0
  %330 = vmatprep.subr.mxu0 0.0
  %331 = vmatpush1.msra.mxu0 0.0
  %332 = vmatprep.subr.mxu0 0.0
  %333 = vmatpush1.msra.mxu0 0.0
  %334 = vmatprep.subr.mxu0 0.0
  %335 = vmatpush1.msra.mxu0 0.0
  %336 = vmatprep.subr.mxu0 0.0
  %337 = vmatpush1.msra.mxu0 0.0
  %338 = vmatprep.subr.mxu0 0.0
  %339 = vmatpush1.msra.mxu0 0.0
  %340 = vmatprep.subr.mxu0 0.0
  %341 = vmatpush1.msra.mxu0 0.0
  %342 = vmatprep.subr.mxu0 0.0
  %343 = vmatpush1.msra.mxu0 0.0
  %344 = vmatprep.subr.mxu0 0.0
  %345 = vmatpush1.msra.mxu0 0.0
  %346 = vmatprep.subr.mxu0 0.0
  %347 = vmatpush1.msra.mxu0 0.0
  %348 = vmatprep.subr.mxu0 0.0
  %349 = vmatpush1.msra.mxu0 0.0
  %350 = vmatprep.subr.mxu0 0.0
  %351 = vmatpush1.msra.mxu0 0.0
  %352 = vmatprep.subr.mxu0 0.0
  %353 = vmatpush1.msra.mxu0 0.0
  %354 = vmatprep.mubr.f32.mxu0 0.0
  %355 = vmatmul.mubr.f32.gmra.mrb[0].mxu0 %v285
  %v356 = vpop.f32.mrb[0].mxu0
  %v357 = vadd.f32 %v282, %v356
  %v358 = vpop.f32.mrb[0].mxu0
  %359 = vmatprep.mubr.f32.mxu0 0.0
  %360 = vmatmul.mubr.f32.gmra.mrb[0].mxu0 %v288
  %v361 = vpop.f32.mrb[0].mxu0
  %v362 = vadd.f32 %v282, %v361
  %v363 = vpop.f32.mrb[0].mxu0
  %364 = vdwg.mxu0
  %365 = vst [vmem:[%s9] sm:$0xff] %v357
  %366 = vst [vmem:[%s9 + $0x8] sm:$0xff] %v362
  // Predicated region
  $region38: #{transformer_forward.9} parent=0 // pred_check
    _
  $region39: #{transformer_forward.9} parent=0 // pred_check_branch
    %368 = sbr.rel (0) target = $region41
  $region40: #{transformer_forward.9} parent=0 // pred_region
    _
  $region41: #{transformer_forward.9} parent=0 // pred_fallthru
    _
  // Predicated region
  $region42: #{transformer_forward.9} parent=0 // pred_check
    _
  $region43: #{transformer_forward.9} parent=0 // pred_check_branch
    %370 = sbr.rel (0) target = $region45
  $region44: #{transformer_forward.9} parent=0 // pred_region
    _
  $region45: #{transformer_forward.9} parent=0 // pred_fallthru
    _

// kernel: transformer_forward.7
$region0: #{transformer_forward.7}
  #allocation0 [shape = 'u32[]', space=smem, size = 0x4, offset = 0x4, fixed_abs, tag = 'smem constant byte address 0x4 - core index']
  #allocation1 [shape = 'u32[144,128]{1,0:T(1,128)}', space=vmem, size = 0x12000, scoped, tag = 'internal scratch']
  %s0 = inlined_call_operand.vmem [shape: f32[16,32], index: 0, kind: input, shape index: {}]
  %s1 = inlined_call_operand.vmem [shape: f32[32,64], index: 1, kind: input, shape index: {}]
  %s2 = inlined_call_operand.vmem [shape: f32[1,64], index: 2, kind: input, shape index: {}]
  %s3 = inlined_call_operand.vmem [shape: f32[64,32], index: 3, kind: input, shape index: {}]
  %s4 = inlined_call_operand.vmem [shape: f32[1,32], index: 4, kind: input, shape index: {}]
  %s5 = inlined_call_operand.vmem [shape: f32[1,32], index: 5, kind: input, shape index: {}]
  %s6 = inlined_call_operand.vmem [shape: f32[1,32], index: 6, kind: input, shape index: {}]
  %s7 = inlined_call_operand.vmem [shape: f32[16,32], index: 7, kind: output, shape index: {}]
  %s8 = sld [smem:[#allocation0]]
  $region38: #{transformer_forward.7} parent=0
    _
  %s10 = ssub.s32 1, %s8
  %s11 = scalar_select 0, %s10, %s8
  // Predicated region
  $region2: #{transformer_forward.7} parent=0 // pred_check
    _
  $region3: #{transformer_forward.7} parent=0 // pred_check_branch
    %13 = sbr.rel (0) target = $region5
  $region4: #{transformer_forward.7} parent=0 // pred_region
    _
  $region5: #{transformer_forward.7} parent=0 // pred_fallthru
    _
  // Predicated region
  $region6: #{transformer_forward.7} parent=0 // pred_check
    _
  $region7: #{transformer_forward.7} parent=0 // pred_check_branch
    %15 = sbr.rel (0) target = $region9
  $region8: #{transformer_forward.7} parent=0 // pred_region
    _
  $region9: #{transformer_forward.7} parent=0 // pred_fallthru
    _
  // Predicated region
  $region10: #{transformer_forward.7} parent=0 // pred_check
    _
  $region11: #{transformer_forward.7} parent=0 // pred_check_branch
    %17 = sbr.rel (0) target = $region13
  $region12: #{transformer_forward.7} parent=0 // pred_region
    _
  $region13: #{transformer_forward.7} parent=0 // pred_fallthru
    _
  // Predicated region
  $region14: #{transformer_forward.7} parent=0 // pred_check
    _
  $region15: #{transformer_forward.7} parent=0 // pred_check_branch
    %19 = sbr.rel (0) target = $region17
  $region16: #{transformer_forward.7} parent=0 // pred_region
    _
  $region17: #{transformer_forward.7} parent=0 // pred_fallthru
    _
  // Predicated region
  $region18: #{transformer_forward.7} parent=0 // pred_check
    _
  $region19: #{transformer_forward.7} parent=0 // pred_check_branch
    %21 = sbr.rel (0) target = $region21
  $region20: #{transformer_forward.7} parent=0 // pred_region
    _
  $region21: #{transformer_forward.7} parent=0 // pred_fallthru
    _
  // Predicated region
  $region22: #{transformer_forward.7} parent=0 // pred_check
    _
  $region23: #{transformer_forward.7} parent=0 // pred_check_branch
    %23 = sbr.rel (0) target = $region25
  $region24: #{transformer_forward.7} parent=0 // pred_region
    _
  $region25: #{transformer_forward.7} parent=0 // pred_fallthru
    _
  // Predicated region
  $region26: #{transformer_forward.7} parent=0 // pred_check
    _
  $region27: #{transformer_forward.7} parent=0 // pred_check_branch
    %25 = sbr.rel (0) target = $region29
  $region28: #{transformer_forward.7} parent=0 // pred_region
    _
  $region29: #{transformer_forward.7} parent=0 // pred_fallthru
    _
  %v26 = vld [vmem:[%s0] sm:$0xff]
  %v27 = vld [vmem:[%s0 + $0x8] sm:$0xff]
  %v28 = vld [vmem:[%s1] sm:$0xff]
  %v29 = vld [vmem:[%s1 + $0x8] sm:$0xff]
  %v30 = vld [vmem:[%s1 + $0x10] sm:$0xff]
  %v31 = vld [vmem:[%s1 + $0x18] sm:$0xff]
  %v32 = vld [vmem:[%s2] sm:$0x1]
  %v34 = vlaneseq
  %v35 = vshrl.u32 %v34, 7
  %v36 = vsub.s32 0, %v35
  %v37 = vrot.slane %v32, %v36
  %vm39 = vcmask 261120
  %v41 = vsel %vm39, %v26, 0
  %v44 = vsel %vm39, %v27, 0
  %46 = vmatprep.subr.mxu0 0.0
  %47 = vmatpush1.msra.mxu0 %v28
  %48 = vmatprep.subr.mxu0 0.0
  %49 = vmatpush1.msra.mxu0 %v29
  %50 = vmatprep.subr.mxu0 0.0
  %51 = vmatpush1.msra.mxu0 %v30
  %52 = vmatprep.subr.mxu0 0.0
  %53 = vmatpush1.msra.mxu0 %v31
  %54 = vmatprep.subr.mxu0 0.0
  %55 = vmatpush1.msra.mxu0 0.0
  %56 = vmatprep.subr.mxu0 0.0
  %57 = vmatpush1.msra.mxu0 0.0
  %58 = vmatprep.subr.mxu0 0.0
  %59 = vmatpush1.msra.mxu0 0.0
  %60 = vmatprep.subr.mxu0 0.0
  %61 = vmatpush1.msra.mxu0 0.0
  %62 = vmatprep.subr.mxu0 0.0
  %63 = vmatpush1.msra.mxu0 0.0
  %64 = vmatprep.subr.mxu0 0.0
  %65 = vmatpush1.msra.mxu0 0.0
  %66 = vmatprep.subr.mxu0 0.0
  %67 = vmatpush1.msra.mxu0 0.0
  %68 = vmatprep.subr.mxu0 0.0
  %69 = vmatpush1.msra.mxu0 0.0
  %70 = vmatprep.subr.mxu0 0.0
  %71 = vmatpush1.msra.mxu0 0.0
  %72 = vmatprep.subr.mxu0 0.0
  %73 = vmatpush1.msra.mxu0 0.0
  %74 = vmatprep.subr.mxu0 0.0
  %75 = vmatpush1.msra.mxu0 0.0
  %76 = vmatprep.subr.mxu0 0.0
  %77 = vmatpush1.msra.mxu0 0.0
  %78 = vmatprep.subr.mxu0 0.0
  %79 = vmatpush1.msra.mxu0 0.0
  %80 = vmatprep.subr.mxu0 0.0
  %81 = vmatpush1.msra.mxu0 0.0
  %82 = vmatprep.subr.mxu0 0.0
  %83 = vmatpush1.msra.mxu0 0.0
  %84 = vmatprep.subr.mxu0 0.0
  %85 = vmatpush1.msra.mxu0 0.0
  %86 = vmatprep.subr.mxu0 0.0
  %87 = vmatpush1.msra.mxu0 0.0
  %88 = vmatprep.subr.mxu0 0.0
  %89 = vmatpush1.msra.mxu0 0.0
  %90 = vmatprep.subr.mxu0 0.0
  %91 = vmatpush1.msra.mxu0 0.0
  %92 = vmatprep.subr.mxu0 0.0
  %93 = vmatpush1.msra.mxu0 0.0
  %94 = vmatprep.subr.mxu0 0.0
  %95 = vmatpush1.msra.mxu0 0.0
  %96 = vmatprep.subr.mxu0 0.0
  %97 = vmatpush1.msra.mxu0 0.0
  %98 = vmatprep.subr.mxu0 0.0
  %99 = vmatpush1.msra.mxu0 0.0
  %100 = vmatprep.subr.mxu0 0.0
  %101 = vmatpush1.msra.mxu0 0.0
  %102 = vmatprep.subr.mxu0 0.0
  %103 = vmatpush1.msra.mxu0 0.0
  %104 = vmatprep.subr.mxu0 0.0
  %105 = vmatpush1.msra.mxu0 0.0
  %106 = vmatprep.subr.mxu0 0.0
  %107 = vmatpush1.msra.mxu0 0.0
  %108 = vmatprep.subr.mxu0 0.0
  %109 = vmatpush1.msra.mxu0 0.0
  %110 = vmatprep.mubr.f32.mxu0 0.0
  %111 = vmatmul.mubr.f32.gmra.mrb[0].mxu0 %v41
  %v112 = vpop.f32.mrb[0].mxu0
  %v113 = vadd.f32 %v37, %v112
  %v114 = vpop.f32.mrb[0].mxu0
  %115 = vmatprep.mubr.f32.mxu0 0.0
  %116 = vmatmul.mubr.f32.gmra.mrb[0].mxu0 %v44
  %v117 = vpop.f32.mrb[0].mxu0
  %v118 = vadd.f32 %v37, %v117
  %v119 = vpop.f32.mrb[0].mxu0
  %120 = vdwg.mxu0
  %v121 = vmax.f32 %v113, 0.0
  %v122 = vmax.f32 %v118, 0.0
  %v123 = vld [vmem:[%s3] sm:$0xff]
  %v124 = vld [vmem:[%s3 + $0x8] sm:$0xff]
  %v125 = vld [vmem:[%s3 + $0x10] sm:$0xff]
  %v126 = vld [vmem:[%s3 + $0x18] sm:$0xff]
  %v127 = vld [vmem:[%s3 + $0x20] sm:$0xff]
  %v128 = vld [vmem:[%s3 + $0x28] sm:$0xff]
  %v129 = vld [vmem:[%s3 + $0x30] sm:$0xff]
  %v130 = vld [vmem:[%s3 + $0x38] sm:$0xff]
  %v131 = vld [vmem:[%s4] sm:$0x1]
  %v133 = vlaneseq
  %v134 = vshrl.u32 %v133, 7
  %v135 = vsub.s32 0, %v134
  %v136 = vrot.slane %v131, %v135
  %vm138 = vcmask 523264
  %v140 = vsel %vm138, %v121, 0
  %v143 = vsel %vm138, %v122, 0
  %145 = vmatprep.subr.mxu0 0.0
  %146 = vmatpush1.msra.mxu0 %v123
  %147 = vmatprep.subr.mxu0 0.0
  %148 = vmatpush1.msra.mxu0 %v124
  %149 = vmatprep.subr.mxu0 0.0
  %150 = vmatpush1.msra.mxu0 %v125
  %151 = vmatprep.subr.mxu0 0.0
  %152 = vmatpush1.msra.mxu0 %v126
  %153 = vmatprep.subr.mxu0 0.0
  %154 = vmatpush1.msra.mxu0 %v127
  %155 = vmatprep.subr.mxu0 0.0
  %156 = vmatpush1.msra.mxu0 %v128
  %157 = vmatprep.subr.mxu0 0.0
  %158 = vmatpush1.msra.mxu0 %v129
  %159 = vmatprep.subr.mxu0 0.0
  %160 = vmatpush1.msra.mxu0 %v130
  %161 = vmatprep.subr.mxu0 0.0
  %162 = vmatpush1.msra.mxu0 0.0
  %163 = vmatprep.subr.mxu0 0.0
  %164 = vmatpush1.msra.mxu0 0.0
  %165 = vmatprep.subr.mxu0 0.0
  %166 = vmatpush1.msra.mxu0 0.0
  %167 = vmatprep.subr.mxu0 0.0
  %168 = vmatpush1.msra.mxu0 0.0
  %169 = vmatprep.subr.mxu0 0.0
  %170 = vmatpush1.msra.mxu0 0.0
  %171 = vmatprep.subr.mxu0 0.0
  %172 = vmatpush1.msra.mxu0 0.0
  %173 = vmatprep.subr.mxu0 0.0
  %174 = vmatpush1.msra.mxu0 0.0
  %175 = vmatprep.subr.mxu0 0.0
  %176 = vmatpush1.msra.mxu0 0.0
  %177 = vmatprep.subr.mxu0 0.0
  %178 = vmatpush1.msra.mxu0 0.0
  %179 = vmatprep.subr.mxu0 0.0
  %180 = vmatpush1.msra.mxu0 0.0
  %181 = vmatprep.subr.mxu0 0.0
  %182 = vmatpush1.msra.mxu0 0.0
  %183 = vmatprep.subr.mxu0 0.0
  %184 = vmatpush1.msra.mxu0 0.0
  %185 = vmatprep.subr.mxu0 0.0
  %186 = vmatpush1.msra.mxu0 0.0
  %187 = vmatprep.subr.mxu0 0.0
  %188 = vmatpush1.msra.mxu0 0.0
  %189 = vmatprep.subr.mxu0 0.0
  %190 = vmatpush1.msra.mxu0 0.0
  %191 = vmatprep.subr.mxu0 0.0
  %192 = vmatpush1.msra.mxu0 0.0
  %193 = vmatprep.subr.mxu0 0.0
  %194 = vmatpush1.msra.mxu0 0.0
  %195 = vmatprep.subr.mxu0 0.0
  %196 = vmatpush1.msra.mxu0 0.0
  %197 = vmatprep.subr.mxu0 0.0
  %198 = vmatpush1.msra.mxu0 0.0
  %199 = vmatprep.subr.mxu0 0.0
  %200 = vmatpush1.msra.mxu0 0.0
  %201 = vmatprep.subr.mxu0 0.0
  %202 = vmatpush1.msra.mxu0 0.0
  %203 = vmatprep.subr.mxu0 0.0
  %204 = vmatpush1.msra.mxu0 0.0
  %205 = vmatprep.subr.mxu0 0.0
  %206 = vmatpush1.msra.mxu0 0.0
  %207 = vmatprep.subr.mxu0 0.0
  %208 = vmatpush1.msra.mxu0 0.0
  %209 = vmatprep.mubr.f32.mxu0 0.0
  %210 = vmatmul.mubr.f32.gmra.mrb[0].mxu0 %v140
  %v211 = vpop.f32.mrb[0].mxu0
  %v212 = vadd.f32 %v136, %v211
  %v213 = vpop.f32.mrb[0].mxu0
  %214 = vmatprep.mubr.f32.mxu0 0.0
  %215 = vmatmul.mubr.f32.gmra.mrb[0].mxu0 %v143
  %v216 = vpop.f32.mrb[0].mxu0
  %v217 = vadd.f32 %v136, %v216
  %v218 = vpop.f32.mrb[0].mxu0
  %219 = vdwg.mxu0
  %v220 = vadd.f32 %v26, %v212
  %v221 = vadd.f32 %v27, %v217
  %v222 = vld [vmem:[%s5] sm:$0x1]
  %v223 = vld [vmem:[%s6] sm:$0x1]
  %v224 = vsel %vm39, %v220, 0.0
  %225 = vadd.xlane.f32.xlu0 %v224
  %v226 = vpop.xlane.xlu0 %225
  %v227 = vsel %vm39, %v221, 0.0
  %228 = vadd.xlane.f32.xlu0 %v227
  %v229 = vpop.xlane.xlu0 %228
  %v230 = vrcp.pop 32.0
  %v231 = vmul.f32 %v226, %v230
  %v232 = vmul.f32 %v229, %v230
  %v233 = vsub.f32 %v220, %v231
  %v234 = vsub.f32 %v221, %v232
  %v235 = vmul.f32 %v233, %v233
  %v236 = vmul.f32 %v234, %v234
  %v237 = vsel %vm39, %v235, 0.0
  %238 = vadd.xlane.f32.xlu0 %v237
  %v239 = vpop.xlane.xlu0 %238
  %v240 = vsel %vm39, %v236, 0.0
  %241 = vadd.xlane.f32.xlu0 %v240
  %v242 = vpop.xlane.xlu0 %241
  %v243 = vmul.f32 %v239, %v230
  %v244 = vmul.f32 %v242, %v230
  %v245 = vadd.f32 %v243, 1e-05
  %v246 = vadd.f32 %v244, 1e-05
  %v247 = vrsqrt.pop %v245
  %v248 = vrsqrt.pop %v246
  %v249 = vmul.f32 %v233, %v247
  %v250 = vmul.f32 %v234, %v248
  %v252 = vlaneseq
  %v253 = vshrl.u32 %v252, 7
  %v254 = vsub.s32 0, %v253
  %v255 = vrot.slane %v222, %v254
  %v257 = vmul.f32 %v249, %v255
  %v258 = vmul.f32 %v250, %v255
  %v260 = vlaneseq
  %v261 = vshrl.u32 %v260, 7
  %v262 = vsub.s32 0, %v261
  %v263 = vrot.slane %v223, %v262
  %v265 = vadd.f32 %v257, %v263
  %v266 = vadd.f32 %v258, %v263
  %267 = vst.msk [vmem:[%s7] sm:$0xff] %vm39, %v265
  %268 = vst.msk [vmem:[%s7 + $0x8] sm:$0xff] %vm39, %v266
  // Predicated region
  $region30: #{transformer_forward.7} parent=0 // pred_check
    _
  $region31: #{transformer_forward.7} parent=0 // pred_check_branch
    %270 = sbr.rel (0) target = $region33
  $region32: #{transformer_forward.7} parent=0 // pred_region
    _
  $region33: #{transformer_forward.7} parent=0 // pred_fallthru
    _
  // Predicated region
  $region34: #{transformer_forward.7} parent=0 // pred_check
    _
  $region35: #{transformer_forward.7} parent=0 // pred_check_branch
    %272 = sbr.rel (0) target = $region37
  $region36: #{transformer_forward.7} parent=0 // pred_region
    _
  $region37: #{transformer_forward.7} parent=0 // pred_fallthru
    _

// kernel: transformer_forward.6
$region0: #{transformer_forward.6}
  #allocation0 [shape = 'u32[]', space=smem, size = 0x4, offset = 0x4, fixed_abs, tag = 'smem constant byte address 0x4 - core index']
  #allocation1 [shape = 'u32[144,128]{1,0:T(1,128)}', space=vmem, size = 0x12000, scoped, tag = 'internal scratch']
  %s0 = inlined_call_operand.vmem [shape: f32[16,32], index: 0, kind: input, shape index: {}]
  %s1 = inlined_call_operand.vmem [shape: f32[32,96], index: 1, kind: input, shape index: {}]
  %s2 = inlined_call_operand.vmem [shape: f32[1,96], index: 2, kind: input, shape index: {}]
  %s3 = inlined_call_operand.vmem [shape: f32[32,32], index: 3, kind: input, shape index: {}]
  %s4 = inlined_call_operand.vmem [shape: f32[1,32], index: 4, kind: input, shape index: {}]
  %s5 = inlined_call_operand.vmem [shape: f32[1,32], index: 5, kind: input, shape index: {}]
  %s6 = inlined_call_operand.vmem [shape: f32[1,32], index: 6, kind: input, shape index: {}]
  %s7 = inlined_call_operand.vmem [shape: f32[16,32], index: 7, kind: output, shape index: {}]
  %s8 = sld [smem:[#allocation0]]
  $region38: #{transformer_forward.6} parent=0
    _
  %s10 = ssub.s32 1, %s8
  %s11 = scalar_select 0, %s10, %s8
  // Predicated region
  $region2: #{transformer_forward.6} parent=0 // pred_check
    _
  $region3: #{transformer_forward.6} parent=0 // pred_check_branch
    %13 = sbr.rel (0) target = $region5
  $region4: #{transformer_forward.6} parent=0 // pred_region
    _
  $region5: #{transformer_forward.6} parent=0 // pred_fallthru
    _
  // Predicated region
  $region6: #{transformer_forward.6} parent=0 // pred_check
    _
  $region7: #{transformer_forward.6} parent=0 // pred_check_branch
    %15 = sbr.rel (0) target = $region9
  $region8: #{transformer_forward.6} parent=0 // pred_region
    _
  $region9: #{transformer_forward.6} parent=0 // pred_fallthru
    _
  // Predicated region
  $region10: #{transformer_forward.6} parent=0 // pred_check
    _
  $region11: #{transformer_forward.6} parent=0 // pred_check_branch
    %17 = sbr.rel (0) target = $region13
  $region12: #{transformer_forward.6} parent=0 // pred_region
    _
  $region13: #{transformer_forward.6} parent=0 // pred_fallthru
    _
  // Predicated region
  $region14: #{transformer_forward.6} parent=0 // pred_check
    _
  $region15: #{transformer_forward.6} parent=0 // pred_check_branch
    %19 = sbr.rel (0) target = $region17
  $region16: #{transformer_forward.6} parent=0 // pred_region
    _
  $region17: #{transformer_forward.6} parent=0 // pred_fallthru
    _
  // Predicated region
  $region18: #{transformer_forward.6} parent=0 // pred_check
    _
  $region19: #{transformer_forward.6} parent=0 // pred_check_branch
    %21 = sbr.rel (0) target = $region21
  $region20: #{transformer_forward.6} parent=0 // pred_region
    _
  $region21: #{transformer_forward.6} parent=0 // pred_fallthru
    _
  // Predicated region
  $region22: #{transformer_forward.6} parent=0 // pred_check
    _
  $region23: #{transformer_forward.6} parent=0 // pred_check_branch
    %23 = sbr.rel (0) target = $region25
  $region24: #{transformer_forward.6} parent=0 // pred_region
    _
  $region25: #{transformer_forward.6} parent=0 // pred_fallthru
    _
  // Predicated region
  $region26: #{transformer_forward.6} parent=0 // pred_check
    _
  $region27: #{transformer_forward.6} parent=0 // pred_check_branch
    %25 = sbr.rel (0) target = $region29
  $region28: #{transformer_forward.6} parent=0 // pred_region
    _
  $region29: #{transformer_forward.6} parent=0 // pred_fallthru
    _
  %v26 = vld [vmem:[%s0] sm:$0xff]
  %v27 = vld [vmem:[%s0 + $0x8] sm:$0xff]
  %v28 = vld [vmem:[%s1] sm:$0xff]
  %v29 = vld [vmem:[%s1 + $0x8] sm:$0xff]
  %v30 = vld [vmem:[%s1 + $0x10] sm:$0xff]
  %v31 = vld [vmem:[%s1 + $0x18] sm:$0xff]
  %v32 = vld [vmem:[%s2] sm:$0x1]
  %v34 = vlaneseq
  %v35 = vshrl.u32 %v34, 7
  %v36 = vsub.s32 0, %v35
  %v37 = vrot.slane %v32, %v36
  %vm39 = vcmask 261120
  %v41 = vsel %vm39, %v26, 0
  %v44 = vsel %vm39, %v27, 0
  %46 = vmatprep.subr.mxu0 0.0
  %47 = vmatpush1.msra.mxu0 %v28
  %48 = vmatprep.subr.mxu0 0.0
  %49 = vmatpush1.msra.mxu0 %v29
  %50 = vmatprep.subr.mxu0 0.0
  %51 = vmatpush1.msra.mxu0 %v30
  %52 = vmatprep.subr.mxu0 0.0
  %53 = vmatpush1.msra.mxu0 %v31
  %54 = vmatprep.subr.mxu0 0.0
  %55 = vmatpush1.msra.mxu0 0.0
  %56 = vmatprep.subr.mxu0 0.0
  %57 = vmatpush1.msra.mxu0 0.0
  %58 = vmatprep.subr.mxu0 0.0
  %59 = vmatpush1.msra.mxu0 0.0
  %60 = vmatprep.subr.mxu0 0.0
  %61 = vmatpush1.msra.mxu0 0.0
  %62 = vmatprep.subr.mxu0 0.0
  %63 = vmatpush1.msra.mxu0 0.0
  %64 = vmatprep.subr.mxu0 0.0
  %65 = vmatpush1.msra.mxu0 0.0
  %66 = vmatprep.subr.mxu0 0.0
  %67 = vmatpush1.msra.mxu0 0.0
  %68 = vmatprep.subr.mxu0 0.0
  %69 = vmatpush1.msra.mxu0 0.0
  %70 = vmatprep.subr.mxu0 0.0
  %71 = vmatpush1.msra.mxu0 0.0
  %72 = vmatprep.subr.mxu0 0.0
  %73 = vmatpush1.msra.mxu0 0.0
  %74 = vmatprep.subr.mxu0 0.0
  %75 = vmatpush1.msra.mxu0 0.0
  %76 = vmatprep.subr.mxu0 0.0
  %77 = vmatpush1.msra.mxu0 0.0
  %78 = vmatprep.subr.mxu0 0.0
  %79 = vmatpush1.msra.mxu0 0.0
  %80 = vmatprep.subr.mxu0 0.0
  %81 = vmatpush1.msra.mxu0 0.0
  %82 = vmatprep.subr.mxu0 0.0
  %83 = vmatpush1.msra.mxu0 0.0
  %84 = vmatprep.subr.mxu0 0.0
  %85 = vmatpush1.msra.mxu0 0.0
  %86 = vmatprep.subr.mxu0 0.0
  %87 = vmatpush1.msra.mxu0 0.0
  %88 = vmatprep.subr.mxu0 0.0
  %89 = vmatpush1.msra.mxu0 0.0
  %90 = vmatprep.subr.mxu0 0.0
  %91 = vmatpush1.msra.mxu0 0.0
  %92 = vmatprep.subr.mxu0 0.0
  %93 = vmatpush1.msra.mxu0 0.0
  %94 = vmatprep.subr.mxu0 0.0
  %95 = vmatpush1.msra.mxu0 0.0
  %96 = vmatprep.subr.mxu0 0.0
  %97 = vmatpush1.msra.mxu0 0.0
  %98 = vmatprep.subr.mxu0 0.0
  %99 = vmatpush1.msra.mxu0 0.0
  %100 = vmatprep.subr.mxu0 0.0
  %101 = vmatpush1.msra.mxu0 0.0
  %102 = vmatprep.subr.mxu0 0.0
  %103 = vmatpush1.msra.mxu0 0.0
  %104 = vmatprep.subr.mxu0 0.0
  %105 = vmatpush1.msra.mxu0 0.0
  %106 = vmatprep.subr.mxu0 0.0
  %107 = vmatpush1.msra.mxu0 0.0
  %108 = vmatprep.subr.mxu0 0.0
  %109 = vmatpush1.msra.mxu0 0.0
  %110 = vmatprep.mubr.f32.mxu0 0.0
  %111 = vmatmul.mubr.f32.gmra.mrb[0].mxu0 %v41
  %v112 = vpop.f32.mrb[0].mxu0
  %v113 = vadd.f32 %v37, %v112
  %v114 = vpop.f32.mrb[0].mxu0
  %115 = vmatprep.mubr.f32.mxu0 0.0
  %116 = vmatmul.mubr.f32.gmra.mrb[0].mxu0 %v44
  %v117 = vpop.f32.mrb[0].mxu0
  %v118 = vadd.f32 %v37, %v117
  %v119 = vpop.f32.mrb[0].mxu0
  %120 = vdwg.mxu0
  %v121 = vld [vmem:[%s3] sm:$0xff]
  %v122 = vld [vmem:[%s3 + $0x8] sm:$0xff]
  %v123 = vld [vmem:[%s3 + $0x10] sm:$0xff]
  %v124 = vld [vmem:[%s3 + $0x18] sm:$0xff]
  %v127 = vcombine.high %v113, %v113
  %v129 = vunpack.c.l.s4 1983009808
  %v130 = vunpack.c.0.s8 %v129
  %v131 = vlaneseq
  %v132 = vshrl.u32 %v131, 7
  %v133 = vsub.s32 %v130, %v132
  %v134 = vrot.slane %v113, %v133
  %v136 = vunpack.c.l.s4 1983009808
  %v137 = vunpack.c.0.s8 %v136
  %v138 = vlaneseq
  %v139 = vshrl.u32 %v138, 7
  %v140 = vsub.s32 %v137, %v139
  %v141 = vrot.slane %v127, %v140
  %v142 = vcombine.high %v134, %v134
  %v143 = vcombine.high %v141, %v141
  %v144 = vcombine.high %v118, %v118
  %v146 = vunpack.c.l.s4 1983009808
  %v147 = vunpack.c.0.s8 %v146
  %v148 = vlaneseq
  %v149 = vshrl.u32 %v148, 7
  %v150 = vsub.s32 %v147, %v149
  %v151 = vrot.slane %v118, %v150
  %v153 = vunpack.c.l.s4 1983009808
  %v154 = vunpack.c.0.s8 %v153
  %v155 = vlaneseq
  %v156 = vshrl.u32 %v155, 7
  %v157 = vsub.s32 %v154, %v156
  %v158 = vrot.slane %v144, %v157
  %v159 = vcombine.high %v151, %v151
  %v160 = vcombine.high %v158, %v158
  %v162 = vunpack.c.l.s4 1966171168
  %v163 = vunpack.c.0.s8 %v162
  %v164 = vlaneseq
  %v165 = vshrl.u32 %v164, 7
  %v166 = vsub.s32 %v163, %v165
  %v167 = vrot.slane %v113, %v166
  %v169 = vunpack.c.l.s4 1966171168
  %v170 = vunpack.c.0.s8 %v169
  %v171 = vlaneseq
  %v172 = vshrl.u32 %v171, 7
  %v173 = vsub.s32 %v170, %v172
  %v174 = vrot.slane %v127, %v173
  %v175 = vcombine.high %v167, %v167
  %v176 = vcombine.high %v174, %v174
  %v178 = vunpack.c.l.s4 1966171168
  %v179 = vunpack.c.0.s8 %v178
  %v180 = vlaneseq
  %v181 = vshrl.u32 %v180, 7
  %v182 = vsub.s32 %v179, %v181
  %v183 = vrot.slane %v167, %v182
  %v185 = vunpack.c.l.s4 1966171168
  %v186 = vunpack.c.0.s8 %v185
  %v187 = vlaneseq
  %v188 = vshrl.u32 %v187, 7
  %v189 = vsub.s32 %v186, %v188
  %v190 = vrot.slane %v174, %v189
  %v192 = vunpack.c.l.s4 1966171168
  %v193 = vunpack.c.0.s8 %v192
  %v194 = vlaneseq
  %v195 = vshrl.u32 %v194, 7
  %v196 = vsub.s32 %v193, %v195
  %v197 = vrot.slane %v175, %v196
  %v199 = vunpack.c.l.s4 1966171168
  %v200 = vunpack.c.0.s8 %v199
  %v201 = vlaneseq
  %v202 = vshrl.u32 %v201, 7
  %v203 = vsub.s32 %v200, %v202
  %v204 = vrot.slane %v176, %v203
  %v205 = vcombine.high %v183, %v183
  %v206 = vcombine.high %v190, %v190
  %v207 = vcombine.high %v197, %v197
  %v208 = vcombine.high %v204, %v204
  %v210 = vunpack.c.l.s4 1966171168
  %v211 = vunpack.c.0.s8 %v210
  %v212 = vlaneseq
  %v213 = vshrl.u32 %v212, 7
  %v214 = vsub.s32 %v211, %v213
  %v215 = vrot.slane %v118, %v214
  %v217 = vunpack.c.l.s4 1966171168
  %v218 = vunpack.c.0.s8 %v217
  %v219 = vlaneseq
  %v220 = vshrl.u32 %v219, 7
  %v221 = vsub.s32 %v218, %v220
  %v222 = vrot.slane %v144, %v221
  %v223 = vcombine.high %v215, %v215
  %v224 = vcombine.high %v222, %v222
  %v226 = vunpack.c.l.s4 1966171168
  %v227 = vunpack.c.0.s8 %v226
  %v228 = vlaneseq
  %v229 = vshrl.u32 %v228, 7
  %v230 = vsub.s32 %v227, %v229
  %v231 = vrot.slane %v215, %v230
  %v233 = vunpack.c.l.s4 1966171168
  %v234 = vunpack.c.0.s8 %v233
  %v235 = vlaneseq
  %v236 = vshrl.u32 %v235, 7
  %v237 = vsub.s32 %v234, %v236
  %v238 = vrot.slane %v222, %v237
  %v240 = vunpack.c.l.s4 1966171168
  %v241 = vunpack.c.0.s8 %v240
  %v242 = vlaneseq
  %v243 = vshrl.u32 %v242, 7
  %v244 = vsub.s32 %v241, %v243
  %v245 = vrot.slane %v223, %v244
  %v247 = vunpack.c.l.s4 1966171168
  %v248 = vunpack.c.0.s8 %v247
  %v249 = vlaneseq
  %v250 = vshrl.u32 %v249, 7
  %v251 = vsub.s32 %v248, %v250
  %v252 = vrot.slane %v224, %v251
  %v253 = vcombine.high %v231, %v231
  %v254 = vcombine.high %v238, %v238
  %v255 = vcombine.high %v245, %v245
  %v256 = vcombine.high %v252, %v252
  %v257 = vlaneseq
  %v258 = vshrl.u32 %v257, 7
  %v259 = vsub.s32 0, %v258
  %v260 = vrot.slane %v183, %v259
  %v261 = vlaneseq
  %v262 = vshrl.u32 %v261, 7
  %v263 = vsub.s32 0, %v262
  %v264 = vrot.slane %v197, %v263
  %v265 = vlaneseq
  %v266 = vshrl.u32 %v265, 7
  %v267 = vsub.s32 0, %v266
  %v268 = vrot.slane %v205, %v267
  %v269 = vlaneseq
  %v270 = vshrl.u32 %v269, 7
  %v271 = vsub.s32 0, %v270
  %v272 = vrot.slane %v207, %v271
  %v273 = vlaneseq
  %v274 = vshrl.u32 %v273, 7
  %v275 = vsub.s32 0, %v274
  %v276 = vrot.slane %v190, %v275
  %v277 = vlaneseq
  %v278 = vshrl.u32 %v277, 7
  %v279 = vsub.s32 0, %v278
  %v280 = vrot.slane %v204, %v279
  %v281 = vlaneseq
  %v282 = vshrl.u32 %v281, 7
  %v283 = vsub.s32 0, %v282
  %v284 = vrot.slane %v206, %v283
  %v285 = vlaneseq
  %v286 = vshrl.u32 %v285, 7
  %v287 = vsub.s32 0, %v286
  %v288 = vrot.slane %v208, %v287
  %v289 = vlaneseq
  %v290 = vshrl.u32 %v289, 7
  %v291 = vsub.s32 0, %v290
  %v292 = vrot.slane %v231, %v291
  %v293 = vlaneseq
  %v294 = vshrl.u32 %v293, 7
  %v295 = vsub.s32 0, %v294
  %v296 = vrot.slane %v245, %v295
  %v297 = vlaneseq
  %v298 = vshrl.u32 %v297, 7
  %v299 = vsub.s32 0, %v298
  %v300 = vrot.slane %v253, %v299
  %v301 = vlaneseq
  %v302 = vshrl.u32 %v301, 7
  %v303 = vsub.s32 0, %v302
  %v304 = vrot.slane %v255, %v303
  %v305 = vlaneseq
  %v306 = vshrl.u32 %v305, 7
  %v307 = vsub.s32 0, %v306
  %v308 = vrot.slane %v238, %v307
  %v309 = vlaneseq
  %v310 = vshrl.u32 %v309, 7
  %v311 = vsub.s32 0, %v310
  %v312 = vrot.slane %v252, %v311
  %v313 = vlaneseq
  %v314 = vshrl.u32 %v313, 7
  %v315 = vsub.s32 0, %v314
  %v316 = vrot.slane %v254, %v315
  %v317 = vlaneseq
  %v318 = vshrl.u32 %v317, 7
  %v319 = vsub.s32 0, %v318
  %v320 = vrot.slane %v256, %v319
  %v338 = vunpack.c.l.s4 1983009808
  %v339 = vunpack.c.0.s8 %v338
  %v340 = vlaneseq
  %v341 = vshrl.u32 %v340, 7
  %v342 = vsub.s32 %v339, %v341
  %v343 = vrot.slane %v134, %v342
  %v345 = vunpack.c.l.s4 1983009808
  %v346 = vunpack.c.0.s8 %v345
  %v347 = vlaneseq
  %v348 = vshrl.u32 %v347, 7
  %v349 = vsub.s32 %v346, %v348
  %v350 = vrot.slane %v142, %v349
  %v352 = vunpack.c.l.s4 1983009808
  %v353 = vunpack.c.0.s8 %v352
  %v354 = vlaneseq
  %v355 = vshrl.u32 %v354, 7
  %v356 = vsub.s32 %v353, %v355
  %v357 = vrot.slane %v141, %v356
  %v359 = vunpack.c.l.s4 1983009808
  %v360 = vunpack.c.0.s8 %v359
  %v361 = vlaneseq
  %v362 = vshrl.u32 %v361, 7
  %v363 = vsub.s32 %v360, %v362
  %v364 = vrot.slane %v143, %v363
  %v366 = vunpack.c.l.s4 1983009808
  %v367 = vunpack.c.0.s8 %v366
  %v368 = vlaneseq
  %v369 = vshrl.u32 %v368, 7
  %v370 = vsub.s32 %v367, %v369
  %v371 = vrot.slane %v151, %v370
  %v373 = vunpack.c.l.s4 1983009808
  %v374 = vunpack.c.0.s8 %v373
  %v375 = vlaneseq
  %v376 = vshrl.u32 %v375, 7
  %v377 = vsub.s32 %v374, %v376
  %v378 = vrot.slane %v159, %v377
  %v380 = vunpack.c.l.s4 1983009808
  %v381 = vunpack.c.0.s8 %v380
  %v382 = vlaneseq
  %v383 = vshrl.u32 %v382, 7
  %v384 = vsub.s32 %v381, %v383
  %v385 = vrot.slane %v158, %v384
  %v387 = vunpack.c.l.s4 1983009808
  %v388 = vunpack.c.0.s8 %v387
  %v389 = vlaneseq
  %v390 = vshrl.u32 %v389, 7
  %v391 = vsub.s32 %v388, %v390
  %v392 = vrot.slane %v160, %v391
  %393 = vrot.lane.b32.xlu0 %v343, 96
  %v394 = vpop.permute.xlu0 %393
  %395 = vrot.lane.b32.xlu0 %v350, 96
  %v396 = vpop.permute.xlu0 %395
  %397 = vrot.lane.b32.xlu0 %v357, 96
  %v398 = vpop.permute.xlu0 %397
  %399 = vrot.lane.b32.xlu0 %v364, 96
  %v400 = vpop.permute.xlu0 %399
  %401 = vrot.lane.b32.xlu0 %v371, 96
  %v402 = vpop.permute.xlu0 %401
  %403 = vrot.lane.b32.xlu0 %v378, 96
  %v404 = vpop.permute.xlu0 %403
  %405 = vrot.lane.b32.xlu0 %v385, 96
  %v406 = vpop.permute.xlu0 %405
  %407 = vrot.lane.b32.xlu0 %v392, 96
  %v408 = vpop.permute.xlu0 %407
  %v417 = vmul.f32 %v260, %v394
  %v418 = vmul.f32 %v264, %v394
  %v419 = vmul.f32 %v268, %v396
  %v420 = vmul.f32 %v272, %v396
  %v421 = vmul.f32 %v276, %v398
  %v422 = vmul.f32 %v280, %v398
  %v423 = vmul.f32 %v284, %v400
  %v424 = vmul.f32 %v288, %v400
  %v425 = vmul.f32 %v292, %v402
  %v426 = vmul.f32 %v296, %v402
  %v427 = vmul.f32 %v300, %v404
  %v428 = vmul.f32 %v304, %v404
  %v429 = vmul.f32 %v308, %v406
  %v430 = vmul.f32 %v312, %v406
  %v431 = vmul.f32 %v316, %v408
  %v432 = vmul.f32 %v320, %v408
  %vm433 = vcmask 25600
  %v434 = vsel %vm433, %v417, 0.0
  %435 = vadd.xlane.f32.xlu0 %v434
  %v436 = vpop.xlane.xlu0 %435
  %v437 = vsel %vm433, %v418, 0.0
  %438 = vadd.xlane.f32.xlu0 %v437
  %v439 = vpop.xlane.xlu0 %438
  %v440 = vsel %vm433, %v419, 0.0
  %441 = vadd.xlane.f32.xlu0 %v440
  %v442 = vpop.xlane.xlu0 %441
  %v443 = vsel %vm433, %v420, 0.0
  %444 = vadd.xlane.f32.xlu0 %v443
  %v445 = vpop.xlane.xlu0 %444
  %v446 = vsel %vm433, %v421, 0.0
  %447 = vadd.xlane.f32.xlu0 %v446
  %v448 = vpop.xlane.xlu0 %447
  %v449 = vsel %vm433, %v422, 0.0
  %450 = vadd.xlane.f32.xlu0 %v449
  %v451 = vpop.xlane.xlu0 %450
  %v452 = vsel %vm433, %v423, 0.0
  %453 = vadd.xlane.f32.xlu0 %v452
  %v454 = vpop.xlane.xlu0 %453
  %v455 = vsel %vm433, %v424, 0.0
  %456 = vadd.xlane.f32.xlu0 %v455
  %v457 = vpop.xlane.xlu0 %456
  %v458 = vsel %vm433, %v425, 0.0
  %459 = vadd.xlane.f32.xlu0 %v458
  %v460 = vpop.xlane.xlu0 %459
  %v461 = vsel %vm433, %v426, 0.0
  %462 = vadd.xlane.f32.xlu0 %v461
  %v463 = vpop.xlane.xlu0 %462
  %v464 = vsel %vm433, %v427, 0.0
  %465 = vadd.xlane.f32.xlu0 %v464
  %v466 = vpop.xlane.xlu0 %465
  %v467 = vsel %vm433, %v428, 0.0
  %468 = vadd.xlane.f32.xlu0 %v467
  %v469 = vpop.xlane.xlu0 %468
  %v470 = vsel %vm433, %v429, 0.0
  %471 = vadd.xlane.f32.xlu0 %v470
  %v472 = vpop.xlane.xlu0 %471
  %v473 = vsel %vm433, %v430, 0.0
  %474 = vadd.xlane.f32.xlu0 %v473
  %v475 = vpop.xlane.xlu0 %474
  %v476 = vsel %vm433, %v431, 0.0
  %477 = vadd.xlane.f32.xlu0 %v476
  %v478 = vpop.xlane.xlu0 %477
  %v479 = vsel %vm433, %v432, 0.0
  %480 = vadd.xlane.f32.xlu0 %v479
  %v481 = vpop.xlane.xlu0 %480
  %v482 = vmul.f32 %v436, 0.5
  %v483 = vmul.f32 %v439, 0.5
  %v484 = vmul.f32 %v442, 0.5
  %v485 = vmul.f32 %v445, 0.5
  %v486 = vmul.f32 %v448, 0.5
  %v487 = vmul.f32 %v451, 0.5
  %v488 = vmul.f32 %v454, 0.5
  %v489 = vmul.f32 %v457, 0.5
  %v490 = vmul.f32 %v460, 0.5
  %v491 = vmul.f32 %v463, 0.5
  %v492 = vmul.f32 %v466, 0.5
  %v493 = vmul.f32 %v469, 0.5
  %v494 = vmul.f32 %v472, 0.5
  %v495 = vmul.f32 %v475, 0.5
  %v496 = vmul.f32 %v478, 0.5
  %v497 = vmul.f32 %v481, 0.5
  %v514 = vlaneseq
  %v515 = vand.u32 %v514, 127
  %v516 = vlaneseq
  %v517 = vshrl.u32 %v516, 7
  %v518 = vsub.s32 %v515, %v517
  %v519 = vrot.slane %v482, %v518
  %v520 = vlaneseq
  %v521 = vshrl.u32 %v520, 7
  %v522 = vsub.s32 %v515, %v521
  %v523 = vrot.slane %v483, %v522
  %v524 = vlaneseq
  %v525 = vshrl.u32 %v524, 7
  %v526 = vsub.s32 %v515, %v525
  %v527 = vrot.slane %v484, %v526
  %v528 = vlaneseq
  %v529 = vshrl.u32 %v528, 7
  %v530 = vsub.s32 %v515, %v529
  %v531 = vrot.slane %v485, %v530
  %v532 = vlaneseq
  %v533 = vshrl.u32 %v532, 7
  %v534 = vsub.s32 %v515, %v533
  %v535 = vrot.slane %v486, %v534
  %v536 = vlaneseq
  %v537 = vshrl.u32 %v536, 7
  %v538 = vsub.s32 %v515, %v537
  %v539 = vrot.slane %v487, %v538
  %v540 = vlaneseq
  %v541 = vshrl.u32 %v540, 7
  %v542 = vsub.s32 %v515, %v541
  %v543 = vrot.slane %v488, %v542
  %v544 = vlaneseq
  %v545 = vshrl.u32 %v544, 7
  %v546 = vsub.s32 %v515, %v545
  %v547 = vrot.slane %v489, %v546
  %v548 = vlaneseq
  %v549 = vshrl.u32 %v548, 7
  %v550 = vsub.s32 %v515, %v549
  %v551 = vrot.slane %v490, %v550
  %v552 = vlaneseq
  %v553 = vshrl.u32 %v552, 7
  %v554 = vsub.s32 %v515, %v553
  %v555 = vrot.slane %v491, %v554
  %v556 = vlaneseq
  %v557 = vshrl.u32 %v556, 7
  %v558 = vsub.s32 %v515, %v557
  %v559 = vrot.slane %v492, %v558
  %v560 = vlaneseq
  %v561 = vshrl.u32 %v560, 7
  %v562 = vsub.s32 %v515, %v561
  %v563 = vrot.slane %v493, %v562
  %v564 = vlaneseq
  %v565 = vshrl.u32 %v564, 7
  %v566 = vsub.s32 %v515, %v565
  %v567 = vrot.slane %v494, %v566
  %v568 = vlaneseq
  %v569 = vshrl.u32 %v568, 7
  %v570 = vsub.s32 %v515, %v569
  %v571 = vrot.slane %v495, %v570
  %v572 = vlaneseq
  %v573 = vshrl.u32 %v572, 7
  %v574 = vsub.s32 %v515, %v573
  %v575 = vrot.slane %v496, %v574
  %v576 = vlaneseq
  %v577 = vshrl.u32 %v576, 7
  %v578 = vsub.s32 %v515, %v577
  %v579 = vrot.slane %v497, %v578
  %vm580 = vcmask 1041409
  %v581 = vsel %vm580, %v523, %v519
  %v582 = vsel %vm580, %v531, %v527
  %v583 = vsel %vm580, %v539, %v535
  %v584 = vsel %vm580, %v547, %v543
  %v585 = vsel %vm580, %v555, %v551
  %v586 = vsel %vm580, %v563, %v559
  %v587 = vsel %vm580, %v571, %v567
  %v588 = vsel %vm580, %v579, %v575
  %vm597 = vcmask 9216
  %v598 = vsel %vm597, %v581, -inf
  %599 = vmax.xlane.f32.xlu0 %v598
  %v600 = vpop.xlane.xlu0 %599
  %v601 = vsel %vm597, %v582, -inf
  %602 = vmax.xlane.f32.xlu0 %v601
  %v603 = vpop.xlane.xlu0 %602
  %v604 = vsel %vm597, %v583, -inf
  %605 = vmax.xlane.f32.xlu0 %v604
  %v606 = vpop.xlane.xlu0 %605
  %v607 = vsel %vm597, %v584, -inf
  %608 = vmax.xlane.f32.xlu0 %v607
  %v609 = vpop.xlane.xlu0 %608
  %v610 = vsel %vm597, %v585, -inf
  %611 = vmax.xlane.f32.xlu0 %v610
  %v612 = vpop.xlane.xlu0 %611
  %v613 = vsel %vm597, %v586, -inf
  %614 = vmax.xlane.f32.xlu0 %v613
  %v615 = vpop.xlane.xlu0 %614
  %v616 = vsel %vm597, %v587, -inf
  %617 = vmax.xlane.f32.xlu0 %v616
  %v618 = vpop.xlane.xlu0 %617
  %v619 = vsel %vm597, %v588, -inf
  %620 = vmax.xlane.f32.xlu0 %v619
  %v621 = vpop.xlane.xlu0 %620
  %v630 = vlaneseq
  %v631 = vshrl.u32 %v630, 7
  %v632 = vsub.s32 0, %v631
  %v633 = vrot.slane %v600, %v632
  %v634 = vlaneseq
  %v635 = vshrl.u32 %v634, 7
  %v636 = vsub.s32 1, %v635
  %v637 = vrot.slane %v600, %v636
  %v638 = vlaneseq
  %v639 = vshrl.u32 %v638, 7
  %v640 = vsub.s32 0, %v639
  %v641 = vrot.slane %v603, %v640
  %v642 = vlaneseq
  %v643 = vshrl.u32 %v642, 7
  %v644 = vsub.s32 1, %v643
  %v645 = vrot.slane %v603, %v644
  %v646 = vlaneseq
  %v647 = vshrl.u32 %v646, 7
  %v648 = vsub.s32 0, %v647
  %v649 = vrot.slane %v606, %v648
  %v650 = vlaneseq
  %v651 = vshrl.u32 %v650, 7
  %v652 = vsub.s32 1, %v651
  %v653 = vrot.slane %v606, %v652
  %v654 = vlaneseq
  %v655 = vshrl.u32 %v654, 7
  %v656 = vsub.s32 0, %v655
  %v657 = vrot.slane %v609, %v656
  %v658 = vlaneseq
  %v659 = vshrl.u32 %v658, 7
  %v660 = vsub.s32 1, %v659
  %v661 = vrot.slane %v609, %v660
  %v662 = vlaneseq
  %v663 = vshrl.u32 %v662, 7
  %v664 = vsub.s32 0, %v663
  %v665 = vrot.slane %v612, %v664
  %v666 = vlaneseq
  %v667 = vshrl.u32 %v666, 7
  %v668 = vsub.s32 1, %v667
  %v669 = vrot.slane %v612, %v668
  %v670 = vlaneseq
  %v671 = vshrl.u32 %v670, 7
  %v672 = vsub.s32 0, %v671
  %v673 = vrot.slane %v615, %v672
  %v674 = vlaneseq
  %v675 = vshrl.u32 %v674, 7
  %v676 = vsub.s32 1, %v675
  %v677 = vrot.slane %v615, %v676
  %v678 = vlaneseq
  %v679 = vshrl.u32 %v678, 7
  %v680 = vsub.s32 0, %v679
  %v681 = vrot.slane %v618, %v680
  %v682 = vlaneseq
  %v683 = vshrl.u32 %v682, 7
  %v684 = vsub.s32 1, %v683
  %v685 = vrot.slane %v618, %v684
  %v686 = vlaneseq
  %v687 = vshrl.u32 %v686, 7
  %v688 = vsub.s32 0, %v687
  %v689 = vrot.slane %v621, %v688
  %v690 = vlaneseq
  %v691 = vshrl.u32 %v690, 7
  %v692 = vsub.s32 1, %v691
  %v693 = vrot.slane %v621, %v692
  %v710 = vsub.f32 %v482, %v633
  %v711 = vsub.f32 %v483, %v637
  %v712 = vsub.f32 %v484, %v641
  %v713 = vsub.f32 %v485, %v645
  %v714 = vsub.f32 %v486, %v649
  %v715 = vsub.f32 %v487, %v653
  %v716 = vsub.f32 %v488, %v657
  %v717 = vsub.f32 %v489, %v661
  %v718 = vsub.f32 %v490, %v665
  %v719 = vsub.f32 %v491, %v669
  %v720 = vsub.f32 %v492, %v673
  %v721 = vsub.f32 %v493, %v677
  %v722 = vsub.f32 %v494, %v681
  %v723 = vsub.f32 %v495, %v685
  %v724 = vsub.f32 %v496, %v689
  %v725 = vsub.f32 %v497, %v693
  %v726 = vmul.f32 %v710, 1.442695
  %v727 = vpow.pop %v726
  %v728 = vmul.f32 %v711, 1.442695
  %v729 = vpow.pop %v728
  %v730 = vmul.f32 %v712, 1.442695
  %v731 = vpow.pop %v730
  %v732 = vmul.f32 %v713, 1.442695
  %v733 = vpow.pop %v732
  %v734 = vmul.f32 %v714, 1.442695
  %v735 = vpow.pop %v734
  %v736 = vmul.f32 %v715, 1.442695
  %v737 = vpow.pop %v736
  %v738 = vmul.f32 %v716, 1.442695
  %v739 = vpow.pop %v738
  %v740 = vmul.f32 %v717, 1.442695
  %v741 = vpow.pop %v740
  %v742 = vmul.f32 %v718, 1.442695
  %v743 = vpow.pop %v742
  %v744 = vmul.f32 %v719, 1.442695
  %v745 = vpow.pop %v744
  %v746 = vmul.f32 %v720, 1.442695
  %v747 = vpow.pop %v746
  %v748 = vmul.f32 %v721, 1.442695
  %v749 = vpow.pop %v748
  %v750 = vmul.f32 %v722, 1.442695
  %v751 = vpow.pop %v750
  %v752 = vmul.f32 %v723, 1.442695
  %v753 = vpow.pop %v752
  %v754 = vmul.f32 %v724, 1.442695
  %v755 = vpow.pop %v754
  %v756 = vmul.f32 %v725, 1.442695
  %v757 = vpow.pop %v756
  %774 = vset.pattern.permute.xlu0 0
  %775 = vperm.xlu0 %774, %v727
  %v776 = vpop.permute.xlu0 %775
  %777 = vset.pattern.permute.xlu0 0
  %778 = vperm.xlu0 %777, %v729
  %v779 = vpop.permute.xlu0 %778
  %780 = vset.pattern.permute.xlu0 0
  %781 = vperm.xlu0 %780, %v731
  %v782 = vpop.permute.xlu0 %781
  %783 = vset.pattern.permute.xlu0 0
  %784 = vperm.xlu0 %783, %v733
  %v785 = vpop.permute.xlu0 %784
  %786 = vset.pattern.permute.xlu0 0
  %787 = vperm.xlu0 %786, %v735
  %v788 = vpop.permute.xlu0 %787
  %789 = vset.pattern.permute.xlu0 0
  %790 = vperm.xlu0 %789, %v737
  %v791 = vpop.permute.xlu0 %790
  %792 = vset.pattern.permute.xlu0 0
  %793 = vperm.xlu0 %792, %v739
  %v794 = vpop.permute.xlu0 %793
  %795 = vset.pattern.permute.xlu0 0
  %796 = vperm.xlu0 %795, %v741
  %v797 = vpop.permute.xlu0 %796
  %798 = vset.pattern.permute.xlu0 0
  %799 = vperm.xlu0 %798, %v743
  %v800 = vpop.permute.xlu0 %799
  %801 = vset.pattern.permute.xlu0 0
  %802 = vperm.xlu0 %801, %v745
  %v803 = vpop.permute.xlu0 %802
  %804 = vset.pattern.permute.xlu0 0
  %805 = vperm.xlu0 %804, %v747
  %v806 = vpop.permute.xlu0 %805
  %807 = vset.pattern.permute.xlu0 0
  %808 = vperm.xlu0 %807, %v749
  %v809 = vpop.permute.xlu0 %808
  %810 = vset.pattern.permute.xlu0 0
  %811 = vperm.xlu0 %810, %v751
  %v812 = vpop.permute.xlu0 %811
  %813 = vset.pattern.permute.xlu0 0
  %814 = vperm.xlu0 %813, %v753
  %v815 = vpop.permute.xlu0 %814
  %816 = vset.pattern.permute.xlu0 0
  %817 = vperm.xlu0 %816, %v755
  %v818 = vpop.permute.xlu0 %817
  %819 = vset.pattern.permute.xlu0 0
  %820 = vperm.xlu0 %819, %v757
  %v821 = vpop.permute.xlu0 %820
  %v822 = vlaneseq
  %v823 = vshrl.u32 %v822, 7
  %v824 = vsub.s32 %v515, %v823
  %v825 = vrot.slane %v776, %v824
  %v826 = vlaneseq
  %v827 = vshrl.u32 %v826, 7
  %v828 = vsub.s32 %v515, %v827
  %v829 = vrot.slane %v779, %v828
  %v830 = vlaneseq
  %v831 = vshrl.u32 %v830, 7
  %v832 = vsub.s32 %v515, %v831
  %v833 = vrot.slane %v782, %v832
  %v834 = vlaneseq
  %v835 = vshrl.u32 %v834, 7
  %v836 = vsub.s32 %v515, %v835
  %v837 = vrot.slane %v785, %v836
  %v838 = vlaneseq
  %v839 = vshrl.u32 %v838, 7
  %v840 = vsub.s32 %v515, %v839
  %v841 = vrot.slane %v788, %v840
  %v842 = vlaneseq
  %v843 = vshrl.u32 %v842, 7
  %v844 = vsub.s32 %v515, %v843
  %v845 = vrot.slane %v791, %v844
  %v846 = vlaneseq
  %v847 = vshrl.u32 %v846, 7
  %v848 = vsub.s32 %v515, %v847
  %v849 = vrot.slane %v794, %v848
  %v850 = vlaneseq
  %v851 = vshrl.u32 %v850, 7
  %v852 = vsub.s32 %v515, %v851
  %v853 = vrot.slane %v797, %v852
  %v854 = vlaneseq
  %v855 = vshrl.u32 %v854, 7
  %v856 = vsub.s32 %v515, %v855
  %v857 = vrot.slane %v800, %v856
  %v858 = vlaneseq
  %v859 = vshrl.u32 %v858, 7
  %v860 = vsub.s32 %v515, %v859
  %v861 = vrot.slane %v803, %v860
  %v862 = vlaneseq
  %v863 = vshrl.u32 %v862, 7
  %v864 = vsub.s32 %v515, %v863
  %v865 = vrot.slane %v806, %v864
  %v866 = vlaneseq
  %v867 = vshrl.u32 %v866, 7
  %v868 = vsub.s32 %v515, %v867
  %v869 = vrot.slane %v809, %v868
  %v870 = vlaneseq
  %v871 = vshrl.u32 %v870, 7
  %v872 = vsub.s32 %v515, %v871
  %v873 = vrot.slane %v812, %v872
  %v874 = vlaneseq
  %v875 = vshrl.u32 %v874, 7
  %v876 = vsub.s32 %v515, %v875
  %v877 = vrot.slane %v815, %v876
  %v878 = vlaneseq
  %v879 = vshrl.u32 %v878, 7
  %v880 = vsub.s32 %v515, %v879
  %v881 = vrot.slane %v818, %v880
  %v882 = vlaneseq
  %v883 = vshrl.u32 %v882, 7
  %v884 = vsub.s32 %v515, %v883
  %v885 = vrot.slane %v821, %v884
  %v886 = vsel %vm580, %v829, %v825
  %v887 = vsel %vm580, %v837, %v833
  %v888 = vsel %vm580, %v845, %v841
  %v889 = vsel %vm580, %v853, %v849
  %v890 = vsel %vm580, %v861, %v857
  %v891 = vsel %vm580, %v869, %v865
  %v892 = vsel %vm580, %v877, %v873
  %v893 = vsel %vm580, %v885, %v881
  %v902 = vsel %vm597, %v886, 0.0
  %903 = vadd.xlane.f32.xlu0 %v902
  %v904 = vpop.xlane.xlu0 %903
  %v905 = vsel %vm597, %v887, 0.0
  %906 = vadd.xlane.f32.xlu0 %v905
  %v907 = vpop.xlane.xlu0 %906
  %v908 = vsel %vm597, %v888, 0.0
  %909 = vadd.xlane.f32.xlu0 %v908
  %v910 = vpop.xlane.xlu0 %909
  %v911 = vsel %vm597, %v889, 0.0
  %912 = vadd.xlane.f32.xlu0 %v911
  %v913 = vpop.xlane.xlu0 %912
  %v914 = vsel %vm597, %v890, 0.0
  %915 = vadd.xlane.f32.xlu0 %v914
  %v916 = vpop.xlane.xlu0 %915
  %v917 = vsel %vm597, %v891, 0.0
  %918 = vadd.xlane.f32.xlu0 %v917
  %v919 = vpop.xlane.xlu0 %918
  %v920 = vsel %vm597, %v892, 0.0
  %921 = vadd.xlane.f32.xlu0 %v920
  %v922 = vpop.xlane.xlu0 %921
  %v923 = vsel %vm597, %v893, 0.0
  %924 = vadd.xlane.f32.xlu0 %v923
  %v925 = vpop.xlane.xlu0 %924
  %v934 = vlaneseq
  %v935 = vshrl.u32 %v934, 7
  %v936 = vsub.s32 0, %v935
  %v937 = vrot.slane %v904, %v936
  %v938 = vlaneseq
  %v939 = vshrl.u32 %v938, 7
  %v940 = vsub.s32 1, %v939
  %v941 = vrot.slane %v904, %v940
  %v942 = vlaneseq
  %v943 = vshrl.u32 %v942, 7
  %v944 = vsub.s32 0, %v943
  %v945 = vrot.slane %v907, %v944
  %v946 = vlaneseq
  %v947 = vshrl.u32 %v946, 7
  %v948 = vsub.s32 1, %v947
  %v949 = vrot.slane %v907, %v948
  %v950 = vlaneseq
  %v951 = vshrl.u32 %v950, 7
  %v952 = vsub.s32 0, %v951
  %v953 = vrot.slane %v910, %v952
  %v954 = vlaneseq
  %v955 = vshrl.u32 %v954, 7
  %v956 = vsub.s32 1, %v955
  %v957 = vrot.slane %v910, %v956
  %v958 = vlaneseq
  %v959 = vshrl.u32 %v958, 7
  %v960 = vsub.s32 0, %v959
  %v961 = vrot.slane %v913, %v960
  %v962 = vlaneseq
  %v963 = vshrl.u32 %v962, 7
  %v964 = vsub.s32 1, %v963
  %v965 = vrot.slane %v913, %v964
  %v966 = vlaneseq
  %v967 = vshrl.u32 %v966, 7
  %v968 = vsub.s32 0, %v967
  %v969 = vrot.slane %v916, %v968
  %v970 = vlaneseq
  %v971 = vshrl.u32 %v970, 7
  %v972 = vsub.s32 1, %v971
  %v973 = vrot.slane %v916, %v972
  %v974 = vlaneseq
  %v975 = vshrl.u32 %v974, 7
  %v976 = vsub.s32 0, %v975
  %v977 = vrot.slane %v919, %v976
  %v978 = vlaneseq
  %v979 = vshrl.u32 %v978, 7
  %v980 = vsub.s32 1, %v979
  %v981 = vrot.slane %v919, %v980
  %v982 = vlaneseq
  %v983 = vshrl.u32 %v982, 7
  %v984 = vsub.s32 0, %v983
  %v985 = vrot.slane %v922, %v984
  %v986 = vlaneseq
  %v987 = vshrl.u32 %v986, 7
  %v988 = vsub.s32 1, %v987
  %v989 = vrot.slane %v922, %v988
  %v990 = vlaneseq
  %v991 = vshrl.u32 %v990, 7
  %v992 = vsub.s32 0, %v991
  %v993 = vrot.slane %v925, %v992
  %v994 = vlaneseq
  %v995 = vshrl.u32 %v994, 7
  %v996 = vsub.s32 1, %v995
  %v997 = vrot.slane %v925, %v996
  %v1014 = vrcp.pop %v937
  %v1015 = vmul.f32 %v727, %v1014
  %v1016 = vrcp.pop %v941
  %v1017 = vmul.f32 %v729, %v1016
  %v1018 = vrcp.pop %v945
  %v1019 = vmul.f32 %v731, %v1018
  %v1020 = vrcp.pop %v949
  %v1021 = vmul.f32 %v733, %v1020
  %v1022 = vrcp.pop %v953
  %v1023 = vmul.f32 %v735, %v1022
  %v1024 = vrcp.pop %v957
  %v1025 = vmul.f32 %v737, %v1024
  %v1026 = vrcp.pop %v961
  %v1027 = vmul.f32 %v739, %v1026
  %v1028 = vrcp.pop %v965
  %v1029 = vmul.f32 %v741, %v1028
  %v1030 = vrcp.pop %v969
  %v1031 = vmul.f32 %v743, %v1030
  %v1032 = vrcp.pop %v973
  %v1033 = vmul.f32 %v745, %v1032
  %v1034 = vrcp.pop %v977
  %v1035 = vmul.f32 %v747, %v1034
  %v1036 = vrcp.pop %v981
  %v1037 = vmul.f32 %v749, %v1036
  %v1038 = vrcp.pop %v985
  %v1039 = vmul.f32 %v751, %v1038
  %v1040 = vrcp.pop %v989
  %v1041 = vmul.f32 %v753, %v1040
  %v1042 = vrcp.pop %v993
  %v1043 = vmul.f32 %v755, %v1042
  %v1044 = vrcp.pop %v997
  %v1045 = vmul.f32 %v757, %v1044
  %1048 = vset.pattern.permute.xlu0 0
  %1049 = vperm.xlu0 %1048, %v1015
  %v1050 = vpop.permute.xlu0 %1049
  %1051 = vset.pattern.permute.xlu0 0
  %1052 = vperm.xlu0 %1051, %v1017
  %v1053 = vpop.permute.xlu0 %1052
  %v1054 = vlaneseq
  %v1055 = vshrl.u32 %v1054, 7
  %v1056 = vsub.s32 %v515, %v1055
  %v1057 = vrot.slane %v1050, %v1056
  %v1058 = vlaneseq
  %v1059 = vshrl.u32 %v1058, 7
  %v1060 = vsub.s32 %v515, %v1059
  %v1061 = vrot.slane %v1053, %v1060
  %v1062 = vsel %vm580, %v1061, %v1057
  %1063 = vrot.lane.b32.xlu0 %v343, 64
  %v1064 = vpop.permute.xlu0 %1063
  %vm1065 = vcmask 15360
  %v1066 = vsel %vm1065, %v1062, 0
  %vm1068 = vcmask 1041408
  %v1069 = vsel %vm1068, %v1064, 0
  %1071 = vmatprep.subr.mxu0 0.0
  %1072 = vmatpush1.msra.mxu0 %v1069
  %1073 = vmatprep.subr.mxu0 0.0
  %1074 = vmatpush1.msra.mxu0 0.0
  %1075 = vmatprep.subr.mxu0 0.0
  %1076 = vmatpush1.msra.mxu0 0.0
  %1077 = vmatprep.subr.mxu0 0.0
  %1078 = vmatpush1.msra.mxu0 0.0
  %1079 = vmatprep.subr.mxu0 0.0
  %1080 = vmatpush1.msra.mxu0 0.0
  %1081 = vmatprep.subr.mxu0 0.0
  %1082 = vmatpush1.msra.mxu0 0.0
  %1083 = vmatprep.subr.mxu0 0.0
  %1084 = vmatpush1.msra.mxu0 0.0
  %1085 = vmatprep.subr.mxu0 0.0
  %1086 = vmatpush1.msra.mxu0 0.0
  %1087 = vmatprep.subr.mxu0 0.0
  %1088 = vmatpush1.msra.mxu0 0.0
  %1089 = vmatprep.subr.mxu0 0.0
  %1090 = vmatpush1.msra.mxu0 0.0
  %1091 = vmatprep.subr.mxu0 0.0
  %1092 = vmatpush1.msra.mxu0 0.0
  %1093 = vmatprep.subr.mxu0 0.0
  %1094 = vmatpush1.msra.mxu0 0.0
  %1095 = vmatprep.subr.mxu0 0.0
  %1096 = vmatpush1.msra.mxu0 0.0
  %1097 = vmatprep.subr.mxu0 0.0
  %1098 = vmatpush1.msra.mxu0 0.0
  %1099 = vmatprep.subr.mxu0 0.0
  %1100 = vmatpush1.msra.mxu0 0.0
  %1101 = vmatprep.subr.mxu0 0.0
  %1102 = vmatpush1.msra.mxu0 0.0
  %1103 = vmatprep.subr.mxu0 0.0
  %1104 = vmatpush1.msra.mxu0 0.0
  %1105 = vmatprep.subr.mxu0 0.0
  %1106 = vmatpush1.msra.mxu0 0.0
  %1107 = vmatprep.subr.mxu0 0.0
  %1108 = vmatpush1.msra.mxu0 0.0
  %1109 = vmatprep.subr.mxu0 0.0
  %1110 = vmatpush1.msra.mxu0 0.0
  %1111 = vmatprep.subr.mxu0 0.0
  %1112 = vmatpush1.msra.mxu0 0.0
  %1113 = vmatprep.subr.mxu0 0.0
  %1114 = vmatpush1.msra.mxu0 0.0
  %1115 = vmatprep.subr.mxu0 0.0
  %1116 = vmatpush1.msra.mxu0 0.0
  %1117 = vmatprep.subr.mxu0 0.0
  %1118 = vmatpush1.msra.mxu0 0.0
  %1119 = vmatprep.subr.mxu0 0.0
  %1120 = vmatpush1.msra.mxu0 0.0
  %1121 = vmatprep.subr.mxu0 0.0
  %1122 = vmatpush1.msra.mxu0 0.0
  %1123 = vmatprep.subr.mxu0 0.0
  %1124 = vmatpush1.msra.mxu0 0.0
  %1125 = vmatprep.subr.mxu0 0.0
  %1126 = vmatpush1.msra.mxu0 0.0
  %1127 = vmatprep.subr.mxu0 0.0
  %1128 = vmatpush1.msra.mxu0 0.0
  %1129 = vmatprep.subr.mxu0 0.0
  %1130 = vmatpush1.msra.mxu0 0.0
  %1131 = vmatprep.subr.mxu0 0.0
  %1132 = vmatpush1.msra.mxu0 0.0
  %1133 = vmatprep.subr.mxu0 0.0
  %1134 = vmatpush1.msra.mxu0 0.0
  %1135 = vmatprep.mubr.f32.mxu0 0.0
  %1136 = vmatmul.mubr.f32.gmra.mrb[0].mxu0 %v1066
  %v1137 = vpop.f32.mrb[0].mxu0
  %v1138 = vadd.f32 0.0, %v1137
  %v1139 = vpop.f32.mrb[0].mxu0
  %1140 = vdwg.mxu0
  %1143 = vset.pattern.permute.xlu0 0
  %1144 = vperm.xlu0 %1143, %v1019
  %v1145 = vpop.permute.xlu0 %1144
  %1146 = vset.pattern.permute.xlu0 0
  %1147 = vperm.xlu0 %1146, %v1021
  %v1148 = vpop.permute.xlu0 %1147
  %v1149 = vlaneseq
  %v1150 = vshrl.u32 %v1149, 7
  %v1151 = vsub.s32 %v515, %v1150
  %v1152 = vrot.slane %v1145, %v1151
  %v1153 = vlaneseq
  %v1154 = vshrl.u32 %v1153, 7
  %v1155 = vsub.s32 %v515, %v1154
  %v1156 = vrot.slane %v1148, %v1155
  %v1157 = vsel %vm580, %v1156, %v1152
  %1158 = vrot.lane.b32.xlu0 %v350, 64
  %v1159 = vpop.permute.xlu0 %1158
  %v1160 = vsel %vm1065, %v1157, 0
  %v1162 = vsel %vm1068, %v1159, 0
  %1164 = vmatprep.subr.mxu0 0.0
  %1165 = vmatpush1.msra.mxu0 %v1162
  %1166 = vmatprep.subr.mxu0 0.0
  %1167 = vmatpush1.msra.mxu0 0.0
  %1168 = vmatprep.subr.mxu0 0.0
  %1169 = vmatpush1.msra.mxu0 0.0
  %1170 = vmatprep.subr.mxu0 0.0
  %1171 = vmatpush1.msra.mxu0 0.0
  %1172 = vmatprep.subr.mxu0 0.0
  %1173 = vmatpush1.msra.mxu0 0.0
  %1174 = vmatprep.subr.mxu0 0.0
  %1175 = vmatpush1.msra.mxu0 0.0
  %1176 = vmatprep.subr.mxu0 0.0
  %1177 = vmatpush1.msra.mxu0 0.0
  %1178 = vmatprep.subr.mxu0 0.0
  %1179 = vmatpush1.msra.mxu0 0.0
  %1180 = vmatprep.subr.mxu0 0.0
  %1181 = vmatpush1.msra.mxu0 0.0
  %1182 = vmatprep.subr.mxu0 0.0
  %1183 = vmatpush1.msra.mxu0 0.0
  %1184 = vmatprep.subr.mxu0 0.0
  %1185 = vmatpush1.msra.mxu0 0.0
  %1186 = vmatprep.subr.mxu0 0.0
  %1187 = vmatpush1.msra.mxu0 0.0
  %1188 = vmatprep.subr.mxu0 0.0
  %1189 = vmatpush1.msra.mxu0 0.0
  %1190 = vmatprep.subr.mxu0 0.0
  %1191 = vmatpush1.msra.mxu0 0.0
  %1192 = vmatprep.subr.mxu0 0.0
  %1193 = vmatpush1.msra.mxu0 0.0
  %1194 = vmatprep.subr.mxu0 0.0
  %1195 = vmatpush1.msra.mxu0 0.0
  %1196 = vmatprep.subr.mxu0 0.0
  %1197 = vmatpush1.msra.mxu0 0.0
  %1198 = vmatprep.subr.mxu0 0.0
  %1199 = vmatpush1.msra.mxu0 0.0
  %1200 = vmatprep.subr.mxu0 0.0
  %1201 = vmatpush1.msra.mxu0 0.0
  %1202 = vmatprep.subr.mxu0 0.0
  %1203 = vmatpush1.msra.mxu0 0.0
  %1204 = vmatprep.subr.mxu0 0.0
  %1205 = vmatpush1.msra.mxu0 0.0
  %1206 = vmatprep.subr.mxu0 0.0
  %1207 = vmatpush1.msra.mxu0 0.0
  %1208 = vmatprep.subr.mxu0 0.0
  %1209 = vmatpush1.msra.mxu0 0.0
  %1210 = vmatprep.subr.mxu0 0.0
  %1211 = vmatpush1.msra.mxu0 0.0
  %1212 = vmatprep.subr.mxu0 0.0
  %1213 = vmatpush1.msra.mxu0 0.0
  %1214 = vmatprep.subr.mxu0 0.0
  %1215 = vmatpush1.msra.mxu0 0.0
  %1216 = vmatprep.subr.mxu0 0.0
  %1217 = vmatpush1.msra.mxu0 0.0
  %1218 = vmatprep.subr.mxu0 0.0
  %1219 = vmatpush1.msra.mxu0 0.0
  %1220 = vmatprep.subr.mxu0 0.0
  %1221 = vmatpush1.msra.mxu0 0.0
  %1222 = vmatprep.subr.mxu0 0.0
  %1223 = vmatpush1.msra.mxu0 0.0
  %1224 = vmatprep.subr.mxu0 0.0
  %1225 = vmatpush1.msra.mxu0 0.0
  %1226 = vmatprep.subr.mxu0 0.0
  %1227 = vmatpush1.msra.mxu0 0.0
  %1228 = vmatprep.mubr.f32.mxu0 0.0
  %1229 = vmatmul.mubr.f32.gmra.mrb[0].mxu0 %v1160
  %v1230 = vpop.f32.mrb[0].mxu0
  %v1231 = vadd.f32 0.0, %v1230
  %v1232 = vpop.f32.mrb[0].mxu0
  %1233 = vdwg.mxu0
  %1236 = vset.pattern.permute.xlu0 0
  %1237 = vperm.xlu0 %1236, %v1023
  %v1238 = vpop.permute.xlu0 %1237
  %1239 = vset.pattern.permute.xlu0 0
  %1240 = vperm.xlu0 %1239, %v1025
  %v1241 = vpop.permute.xlu0 %1240
  %v1242 = vlaneseq
  %v1243 = vshrl.u32 %v1242, 7
  %v1244 = vsub.s32 %v515, %v1243
  %v1245 = vrot.slane %v1238, %v1244
  %v1246 = vlaneseq
  %v1247 = vshrl.u32 %v1246, 7
  %v1248 = vsub.s32 %v515, %v1247
  %v1249 = vrot.slane %v1241, %v1248
  %v1250 = vsel %vm580, %v1249, %v1245
  %1251 = vrot.lane.b32.xlu0 %v357, 64
  %v1252 = vpop.permute.xlu0 %1251
  %v1253 = vsel %vm1065, %v1250, 0
  %v1255 = vsel %vm1068, %v1252, 0
  %1257 = vmatprep.subr.mxu0 0.0
  %1258 = vmatpush1.msra.mxu0 %v1255
  %1259 = vmatprep.subr.mxu0 0.0
  %1260 = vmatpush1.msra.mxu0 0.0
  %1261 = vmatprep.subr.mxu0 0.0
  %1262 = vmatpush1.msra.mxu0 0.0
  %1263 = vmatprep.subr.mxu0 0.0
  %1264 = vmatpush1.msra.mxu0 0.0
  %1265 = vmatprep.subr.mxu0 0.0
  %1266 = vmatpush1.msra.mxu0 0.0
  %1267 = vmatprep.subr.mxu0 0.0
  %1268 = vmatpush1.msra.mxu0 0.0
  %1269 = vmatprep.subr.mxu0 0.0
  %1270 = vmatpush1.msra.mxu0 0.0
  %1271 = vmatprep.subr.mxu0 0.0
  %1272 = vmatpush1.msra.mxu0 0.0
  %1273 = vmatprep.subr.mxu0 0.0
  %1274 = vmatpush1.msra.mxu0 0.0
  %1275 = vmatprep.subr.mxu0 0.0
  %1276 = vmatpush1.msra.mxu0 0.0
  %1277 = vmatprep.subr.mxu0 0.0
  %1278 = vmatpush1.msra.mxu0 0.0
  %1279 = vmatprep.subr.mxu0 0.0
  %1280 = vmatpush1.msra.mxu0 0.0
  %1281 = vmatprep.subr.mxu0 0.0
  %1282 = vmatpush1.msra.mxu0 0.0
  %1283 = vmatprep.subr.mxu0 0.0
  %1284 = vmatpush1.msra.mxu0 0.0
  %1285 = vmatprep.subr.mxu0 0.0
  %1286 = vmatpush1.msra.mxu0 0.0
  %1287 = vmatprep.subr.mxu0 0.0
  %1288 = vmatpush1.msra.mxu0 0.0
  %1289 = vmatprep.subr.mxu0 0.0
  %1290 = vmatpush1.msra.mxu0 0.0
  %1291 = vmatprep.subr.mxu0 0.0
  %1292 = vmatpush1.msra.mxu0 0.0
  %1293 = vmatprep.subr.mxu0 0.0
  %1294 = vmatpush1.msra.mxu0 0.0
  %1295 = vmatprep.subr.mxu0 0.0
  %1296 = vmatpush1.msra.mxu0 0.0
  %1297 = vmatprep.subr.mxu0 0.0
  %1298 = vmatpush1.msra.mxu0 0.0
  %1299 = vmatprep.subr.mxu0 0.0
  %1300 = vmatpush1.msra.mxu0 0.0
  %1301 = vmatprep.subr.mxu0 0.0
  %1302 = vmatpush1.msra.mxu0 0.0
  %1303 = vmatprep.subr.mxu0 0.0
  %1304 = vmatpush1.msra.mxu0 0.0
  %1305 = vmatprep.subr.mxu0 0.0
  %1306 = vmatpush1.msra.mxu0 0.0
  %1307 = vmatprep.subr.mxu0 0.0
  %1308 = vmatpush1.msra.mxu0 0.0
  %1309 = vmatprep.subr.mxu0 0.0
  %1310 = vmatpush1.msra.mxu0 0.0
  %1311 = vmatprep.subr.mxu0 0.0
  %1312 = vmatpush1.msra.mxu0 0.0
  %1313 = vmatprep.subr.mxu0 0.0
  %1314 = vmatpush1.msra.mxu0 0.0
  %1315 = vmatprep.subr.mxu0 0.0
  %1316 = vmatpush1.msra.mxu0 0.0
  %1317 = vmatprep.subr.mxu0 0.0
  %1318 = vmatpush1.msra.mxu0 0.0
  %1319 = vmatprep.subr.mxu0 0.0
  %1320 = vmatpush1.msra.mxu0 0.0
  %1321 = vmatprep.mubr.f32.mxu0 0.0
  %1322 = vmatmul.mubr.f32.gmra.mrb[0].mxu0 %v1253
  %v1323 = vpop.f32.mrb[0].mxu0
  %v1324 = vadd.f32 0.0, %v1323
  %v1325 = vpop.f32.mrb[0].mxu0
  %1326 = vdwg.mxu0
  %1329 = vset.pattern.permute.xlu0 0
  %1330 = vperm.xlu0 %1329, %v1027
  %v1331 = vpop.permute.xlu0 %1330
  %1332 = vset.pattern.permute.xlu0 0
  %1333 = vperm.xlu0 %1332, %v1029
  %v1334 = vpop.permute.xlu0 %1333
  %v1335 = vlaneseq
  %v1336 = vshrl.u32 %v1335, 7
  %v1337 = vsub.s32 %v515, %v1336
  %v1338 = vrot.slane %v1331, %v1337
  %v1339 = vlaneseq
  %v1340 = vshrl.u32 %v1339, 7
  %v1341 = vsub.s32 %v515, %v1340
  %v1342 = vrot.slane %v1334, %v1341
  %v1343 = vsel %vm580, %v1342, %v1338
  %1344 = vrot.lane.b32.xlu0 %v364, 64
  %v1345 = vpop.permute.xlu0 %1344
  %v1346 = vsel %vm1065, %v1343, 0
  %v1348 = vsel %vm1068, %v1345, 0
  %1350 = vmatprep.subr.mxu0 0.0
  %1351 = vmatpush1.msra.mxu0 %v1348
  %1352 = vmatprep.subr.mxu0 0.0
  %1353 = vmatpush1.msra.mxu0 0.0
  %1354 = vmatprep.subr.mxu0 0.0
  %1355 = vmatpush1.msra.mxu0 0.0
  %1356 = vmatprep.subr.mxu0 0.0
  %1357 = vmatpush1.msra.mxu0 0.0
  %1358 = vmatprep.subr.mxu0 0.0
  %1359 = vmatpush1.msra.mxu0 0.0
  %1360 = vmatprep.subr.mxu0 0.0
  %1361 = vmatpush1.msra.mxu0 0.0
  %1362 = vmatprep.subr.mxu0 0.0
  %1363 = vmatpush1.msra.mxu0 0.0
  %1364 = vmatprep.subr.mxu0 0.0
  %1365 = vmatpush1.msra.mxu0 0.0
  %1366 = vmatprep.subr.mxu0 0.0
  %1367 = vmatpush1.msra.mxu0 0.0
  %1368 = vmatprep.subr.mxu0 0.0
  %1369 = vmatpush1.msra.mxu0 0.0
  %1370 = vmatprep.subr.mxu0 0.0
  %1371 = vmatpush1.msra.mxu0 0.0
  %1372 = vmatprep.subr.mxu0 0.0
  %1373 = vmatpush1.msra.mxu0 0.0
  %1374 = vmatprep.subr.mxu0 0.0
  %1375 = vmatpush1.msra.mxu0 0.0
  %1376 = vmatprep.subr.mxu0 0.0
  %1377 = vmatpush1.msra.mxu0 0.0
  %1378 = vmatprep.subr.mxu0 0.0
  %1379 = vmatpush1.msra.mxu0 0.0
  %1380 = vmatprep.subr.mxu0 0.0
  %1381 = vmatpush1.msra.mxu0 0.0
  %1382 = vmatprep.subr.mxu0 0.0
  %1383 = vmatpush1.msra.mxu0 0.0
  %1384 = vmatprep.subr.mxu0 0.0
  %1385 = vmatpush1.msra.mxu0 0.0
  %1386 = vmatprep.subr.mxu0 0.0
  %1387 = vmatpush1.msra.mxu0 0.0
  %1388 = vmatprep.subr.mxu0 0.0
  %1389 = vmatpush1.msra.mxu0 0.0
  %1390 = vmatprep.subr.mxu0 0.0
  %1391 = vmatpush1.msra.mxu0 0.0
  %1392 = vmatprep.subr.mxu0 0.0
  %1393 = vmatpush1.msra.mxu0 0.0
  %1394 = vmatprep.subr.mxu0 0.0
  %1395 = vmatpush1.msra.mxu0 0.0
  %1396 = vmatprep.subr.mxu0 0.0
  %1397 = vmatpush1.msra.mxu0 0.0
  %1398 = vmatprep.subr.mxu0 0.0
  %1399 = vmatpush1.msra.mxu0 0.0
  %1400 = vmatprep.subr.mxu0 0.0
  %1401 = vmatpush1.msra.mxu0 0.0
  %1402 = vmatprep.subr.mxu0 0.0
  %1403 = vmatpush1.msra.mxu0 0.0
  %1404 = vmatprep.subr.mxu0 0.0
  %1405 = vmatpush1.msra.mxu0 0.0
  %1406 = vmatprep.subr.mxu0 0.0
  %1407 = vmatpush1.msra.mxu0 0.0
  %1408 = vmatprep.subr.mxu0 0.0
  %1409 = vmatpush1.msra.mxu0 0.0
  %1410 = vmatprep.subr.mxu0 0.0
  %1411 = vmatpush1.msra.mxu0 0.0
  %1412 = vmatprep.subr.mxu0 0.0
  %1413 = vmatpush1.msra.mxu0 0.0
  %1414 = vmatprep.mubr.f32.mxu0 0.0
  %1415 = vmatmul.mubr.f32.gmra.mrb[0].mxu0 %v1346
  %v1416 = vpop.f32.mrb[0].mxu0
  %v1417 = vadd.f32 0.0, %v1416
  %v1418 = vpop.f32.mrb[0].mxu0
  %1419 = vdwg.mxu0
  %1422 = vset.pattern.permute.xlu0 0
  %1423 = vperm.xlu0 %1422, %v1031
  %v1424 = vpop.permute.xlu0 %1423
  %1425 = vset.pattern.permute.xlu0 0
  %1426 = vperm.xlu0 %1425, %v1033
  %v1427 = vpop.permute.xlu0 %1426
  %v1428 = vlaneseq
  %v1429 = vshrl.u32 %v1428, 7
  %v1430 = vsub.s32 %v515, %v1429
  %v1431 = vrot.slane %v1424, %v1430
  %v1432 = vlaneseq
  %v1433 = vshrl.u32 %v1432, 7
  %v1434 = vsub.s32 %v515, %v1433
  %v1435 = vrot.slane %v1427, %v1434
  %v1436 = vsel %vm580, %v1435, %v1431
  %1437 = vrot.lane.b32.xlu0 %v371, 64
  %v1438 = vpop.permute.xlu0 %1437
  %v1439 = vsel %vm1065, %v1436, 0
  %v1441 = vsel %vm1068, %v1438, 0
  %1443 = vmatprep.subr.mxu0 0.0
  %1444 = vmatpush1.msra.mxu0 %v1441
  %1445 = vmatprep.subr.mxu0 0.0
  %1446 = vmatpush1.msra.mxu0 0.0
  %1447 = vmatprep.subr.mxu0 0.0
  %1448 = vmatpush1.msra.mxu0 0.0
  %1449 = vmatprep.subr.mxu0 0.0
  %1450 = vmatpush1.msra.mxu0 0.0
  %1451 = vmatprep.subr.mxu0 0.0
  %1452 = vmatpush1.msra.mxu0 0.0
  %1453 = vmatprep.subr.mxu0 0.0
  %1454 = vmatpush1.msra.mxu0 0.0
  %1455 = vmatprep.subr.mxu0 0.0
  %1456 = vmatpush1.msra.mxu0 0.0
  %1457 = vmatprep.subr.mxu0 0.0
  %1458 = vmatpush1.msra.mxu0 0.0
  %1459 = vmatprep.subr.mxu0 0.0
  %1460 = vmatpush1.msra.mxu0 0.0
  %1461 = vmatprep.subr.mxu0 0.0
  %1462 = vmatpush1.msra.mxu0 0.0
  %1463 = vmatprep.subr.mxu0 0.0
  %1464 = vmatpush1.msra.mxu0 0.0
  %1465 = vmatprep.subr.mxu0 0.0
  %1466 = vmatpush1.msra.mxu0 0.0
  %1467 = vmatprep.subr.mxu0 0.0
  %1468 = vmatpush1.msra.mxu0 0.0
  %1469 = vmatprep.subr.mxu0 0.0
  %1470 = vmatpush1.msra.mxu0 0.0
  %1471 = vmatprep.subr.mxu0 0.0
  %1472 = vmatpush1.msra.mxu0 0.0
  %1473 = vmatprep.subr.mxu0 0.0
  %1474 = vmatpush1.msra.mxu0 0.0
  %1475 = vmatprep.subr.mxu0 0.0
  %1476 = vmatpush1.msra.mxu0 0.0
  %1477 = vmatprep.subr.mxu0 0.0
  %1478 = vmatpush1.msra.mxu0 0.0
  %1479 = vmatprep.subr.mxu0 0.0
  %1480 = vmatpush1.msra.mxu0 0.0
  %1481 = vmatprep.subr.mxu0 0.0
  %1482 = vmatpush1.msra.mxu0 0.0
  %1483 = vmatprep.subr.mxu0 0.0
  %1484 = vmatpush1.msra.mxu0 0.0
  %1485 = vmatprep.subr.mxu0 0.0
  %1486 = vmatpush1.msra.mxu0 0.0
  %1487 = vmatprep.subr.mxu0 0.0
  %1488 = vmatpush1.msra.mxu0 0.0
  %1489 = vmatprep.subr.mxu0 0.0
  %1490 = vmatpush1.msra.mxu0 0.0
  %1491 = vmatprep.subr.mxu0 0.0
  %1492 = vmatpush1.msra.mxu0 0.0
  %1493 = vmatprep.subr.mxu0 0.0
  %1494 = vmatpush1.msra.mxu0 0.0
  %1495 = vmatprep.subr.mxu0 0.0
  %1496 = vmatpush1.msra.mxu0 0.0
  %1497 = vmatprep.subr.mxu0 0.0
  %1498 = vmatpush1.msra.mxu0 0.0
  %1499 = vmatprep.subr.mxu0 0.0
  %1500 = vmatpush1.msra.mxu0 0.0
  %1501 = vmatprep.subr.mxu0 0.0
  %1502 = vmatpush1.msra.mxu0 0.0
  %1503 = vmatprep.subr.mxu0 0.0
  %1504 = vmatpush1.msra.mxu0 0.0
  %1505 = vmatprep.subr.mxu0 0.0
  %1506 = vmatpush1.msra.mxu0 0.0
  %1507 = vmatprep.mubr.f32.mxu0 0.0
  %1508 = vmatmul.mubr.f32.gmra.mrb[0].mxu0 %v1439
  %v1509 = vpop.f32.mrb[0].mxu0
  %v1510 = vadd.f32 0.0, %v1509
  %v1511 = vpop.f32.mrb[0].mxu0
  %1512 = vdwg.mxu0
  %1515 = vset.pattern.permute.xlu0 0
  %1516 = vperm.xlu0 %1515, %v1035
  %v1517 = vpop.permute.xlu0 %1516
  %1518 = vset.pattern.permute.xlu0 0
  %1519 = vperm.xlu0 %1518, %v1037
  %v1520 = vpop.permute.xlu0 %1519
  %v1521 = vlaneseq
  %v1522 = vshrl.u32 %v1521, 7
  %v1523 = vsub.s32 %v515, %v1522
  %v1524 = vrot.slane %v1517, %v1523
  %v1525 = vlaneseq
  %v1526 = vshrl.u32 %v1525, 7
  %v1527 = vsub.s32 %v515, %v1526
  %v1528 = vrot.slane %v1520, %v1527
  %v1529 = vsel %vm580, %v1528, %v1524
  %1530 = vrot.lane.b32.xlu0 %v378, 64
  %v1531 = vpop.permute.xlu0 %1530
  %v1532 = vsel %vm1065, %v1529, 0
  %v1534 = vsel %vm1068, %v1531, 0
  %1536 = vmatprep.subr.mxu0 0.0
  %1537 = vmatpush1.msra.mxu0 %v1534
  %1538 = vmatprep.subr.mxu0 0.0
  %1539 = vmatpush1.msra.mxu0 0.0
  %1540 = vmatprep.subr.mxu0 0.0
  %1541 = vmatpush1.msra.mxu0 0.0
  %1542 = vmatprep.subr.mxu0 0.0
  %1543 = vmatpush1.msra.mxu0 0.0
  %1544 = vmatprep.subr.mxu0 0.0
  %1545 = vmatpush1.msra.mxu0 0.0
  %1546 = vmatprep.subr.mxu0 0.0
  %1547 = vmatpush1.msra.mxu0 0.0
  %1548 = vmatprep.subr.mxu0 0.0
  %1549 = vmatpush1.msra.mxu0 0.0
  %1550 = vmatprep.subr.mxu0 0.0
  %1551 = vmatpush1.msra.mxu0 0.0
  %1552 = vmatprep.subr.mxu0 0.0
  %1553 = vmatpush1.msra.mxu0 0.0
  %1554 = vmatprep.subr.mxu0 0.0
  %1555 = vmatpush1.msra.mxu0 0.0
  %1556 = vmatprep.subr.mxu0 0.0
  %1557 = vmatpush1.msra.mxu0 0.0
  %1558 = vmatprep.subr.mxu0 0.0
  %1559 = vmatpush1.msra.mxu0 0.0
  %1560 = vmatprep.subr.mxu0 0.0
  %1561 = vmatpush1.msra.mxu0 0.0
  %1562 = vmatprep.subr.mxu0 0.0
  %1563 = vmatpush1.msra.mxu0 0.0
  %1564 = vmatprep.subr.mxu0 0.0
  %1565 = vmatpush1.msra.mxu0 0.0
  %1566 = vmatprep.subr.mxu0 0.0
  %1567 = vmatpush1.msra.mxu0 0.0
  %1568 = vmatprep.subr.mxu0 0.0
  %1569 = vmatpush1.msra.mxu0 0.0
  %1570 = vmatprep.subr.mxu0 0.0
  %1571 = vmatpush1.msra.mxu0 0.0
  %1572 = vmatprep.subr.mxu0 0.0
  %1573 = vmatpush1.msra.mxu0 0.0
  %1574 = vmatprep.subr.mxu0 0.0
  %1575 = vmatpush1.msra.mxu0 0.0
  %1576 = vmatprep.subr.mxu0 0.0
  %1577 = vmatpush1.msra.mxu0 0.0
  %1578 = vmatprep.subr.mxu0 0.0
  %1579 = vmatpush1.msra.mxu0 0.0
  %1580 = vmatprep.subr.mxu0 0.0
  %1581 = vmatpush1.msra.mxu0 0.0
  %1582 = vmatprep.subr.mxu0 0.0
  %1583 = vmatpush1.msra.mxu0 0.0
  %1584 = vmatprep.subr.mxu0 0.0
  %1585 = vmatpush1.msra.mxu0 0.0
  %1586 = vmatprep.subr.mxu0 0.0
  %1587 = vmatpush1.msra.mxu0 0.0
  %1588 = vmatprep.subr.mxu0 0.0
  %1589 = vmatpush1.msra.mxu0 0.0
  %1590 = vmatprep.subr.mxu0 0.0
  %1591 = vmatpush1.msra.mxu0 0.0
  %1592 = vmatprep.subr.mxu0 0.0
  %1593 = vmatpush1.msra.mxu0 0.0
  %1594 = vmatprep.subr.mxu0 0.0
  %1595 = vmatpush1.msra.mxu0 0.0
  %1596 = vmatprep.subr.mxu0 0.0
  %1597 = vmatpush1.msra.mxu0 0.0
  %1598 = vmatprep.subr.mxu0 0.0
  %1599 = vmatpush1.msra.mxu0 0.0
  %1600 = vmatprep.mubr.f32.mxu0 0.0
  %1601 = vmatmul.mubr.f32.gmra.mrb[0].mxu0 %v1532
  %v1602 = vpop.f32.mrb[0].mxu0
  %v1603 = vadd.f32 0.0, %v1602
  %v1604 = vpop.f32.mrb[0].mxu0
  %1605 = vdwg.mxu0
  %1608 = vset.pattern.permute.xlu0 0
  %1609 = vperm.xlu0 %1608, %v1039
  %v1610 = vpop.permute.xlu0 %1609
  %1611 = vset.pattern.permute.xlu0 0
  %1612 = vperm.xlu0 %1611, %v1041
  %v1613 = vpop.permute.xlu0 %1612
  %v1614 = vlaneseq
  %v1615 = vshrl.u32 %v1614, 7
  %v1616 = vsub.s32 %v515, %v1615
  %v1617 = vrot.slane %v1610, %v1616
  %v1618 = vlaneseq
  %v1619 = vshrl.u32 %v1618, 7
  %v1620 = vsub.s32 %v515, %v1619
  %v1621 = vrot.slane %v1613, %v1620
  %v1622 = vsel %vm580, %v1621, %v1617
  %1623 = vrot.lane.b32.xlu0 %v385, 64
  %v1624 = vpop.permute.xlu0 %1623
  %v1625 = vsel %vm1065, %v1622, 0
  %v1627 = vsel %vm1068, %v1624, 0
  %1629 = vmatprep.subr.mxu0 0.0
  %1630 = vmatpush1.msra.mxu0 %v1627
  %1631 = vmatprep.subr.mxu0 0.0
  %1632 = vmatpush1.msra.mxu0 0.0
  %1633 = vmatprep.subr.mxu0 0.0
  %1634 = vmatpush1.msra.mxu0 0.0
  %1635 = vmatprep.subr.mxu0 0.0
  %1636 = vmatpush1.msra.mxu0 0.0
  %1637 = vmatprep.subr.mxu0 0.0
  %1638 = vmatpush1.msra.mxu0 0.0
  %1639 = vmatprep.subr.mxu0 0.0
  %1640 = vmatpush1.msra.mxu0 0.0
  %1641 = vmatprep.subr.mxu0 0.0
  %1642 = vmatpush1.msra.mxu0 0.0
  %1643 = vmatprep.subr.mxu0 0.0
  %1644 = vmatpush1.msra.mxu0 0.0
  %1645 = vmatprep.subr.mxu0 0.0
  %1646 = vmatpush1.msra.mxu0 0.0
  %1647 = vmatprep.subr.mxu0 0.0
  %1648 = vmatpush1.msra.mxu0 0.0
  %1649 = vmatprep.subr.mxu0 0.0
  %1650 = vmatpush1.msra.mxu0 0.0
  %1651 = vmatprep.subr.mxu0 0.0
  %1652 = vmatpush1.msra.mxu0 0.0
  %1653 = vmatprep.subr.mxu0 0.0
  %1654 = vmatpush1.msra.mxu0 0.0
  %1655 = vmatprep.subr.mxu0 0.0
  %1656 = vmatpush1.msra.mxu0 0.0
  %1657 = vmatprep.subr.mxu0 0.0
  %1658 = vmatpush1.msra.mxu0 0.0
  %1659 = vmatprep.subr.mxu0 0.0
  %1660 = vmatpush1.msra.mxu0 0.0
  %1661 = vmatprep.subr.mxu0 0.0
  %1662 = vmatpush1.msra.mxu0 0.0
  %1663 = vmatprep.subr.mxu0 0.0
  %1664 = vmatpush1.msra.mxu0 0.0
  %1665 = vmatprep.subr.mxu0 0.0
  %1666 = vmatpush1.msra.mxu0 0.0
  %1667 = vmatprep.subr.mxu0 0.0
  %1668 = vmatpush1.msra.mxu0 0.0
  %1669 = vmatprep.subr.mxu0 0.0
  %1670 = vmatpush1.msra.mxu0 0.0
  %1671 = vmatprep.subr.mxu0 0.0
  %1672 = vmatpush1.msra.mxu0 0.0
  %1673 = vmatprep.subr.mxu0 0.0
  %1674 = vmatpush1.msra.mxu0 0.0
  %1675 = vmatprep.subr.mxu0 0.0
  %1676 = vmatpush1.msra.mxu0 0.0
  %1677 = vmatprep.subr.mxu0 0.0
  %1678 = vmatpush1.msra.mxu0 0.0
  %1679 = vmatprep.subr.mxu0 0.0
  %1680 = vmatpush1.msra.mxu0 0.0
  %1681 = vmatprep.subr.mxu0 0.0
  %1682 = vmatpush1.msra.mxu0 0.0
  %1683 = vmatprep.subr.mxu0 0.0
  %1684 = vmatpush1.msra.mxu0 0.0
  %1685 = vmatprep.subr.mxu0 0.0
  %1686 = vmatpush1.msra.mxu0 0.0
  %1687 = vmatprep.subr.mxu0 0.0
  %1688 = vmatpush1.msra.mxu0 0.0
  %1689 = vmatprep.subr.mxu0 0.0
  %1690 = vmatpush1.msra.mxu0 0.0
  %1691 = vmatprep.subr.mxu0 0.0
  %1692 = vmatpush1.msra.mxu0 0.0
  %1693 = vmatprep.mubr.f32.mxu0 0.0
  %1694 = vmatmul.mubr.f32.gmra.mrb[0].mxu0 %v1625
  %v1695 = vpop.f32.mrb[0].mxu0
  %v1696 = vadd.f32 0.0, %v1695
  %v1697 = vpop.f32.mrb[0].mxu0
  %1698 = vdwg.mxu0
  %1701 = vset.pattern.permute.xlu0 0
  %1702 = vperm.xlu0 %1701, %v1043
  %v1703 = vpop.permute.xlu0 %1702
  %1704 = vset.pattern.permute.xlu0 0
  %1705 = vperm.xlu0 %1704, %v1045
  %v1706 = vpop.permute.xlu0 %1705
  %v1707 = vlaneseq
  %v1708 = vshrl.u32 %v1707, 7
  %v1709 = vsub.s32 %v515, %v1708
  %v1710 = vrot.slane %v1703, %v1709
  %v1711 = vlaneseq
  %v1712 = vshrl.u32 %v1711, 7
  %v1713 = vsub.s32 %v515, %v1712
  %v1714 = vrot.slane %v1706, %v1713
  %v1715 = vsel %vm580, %v1714, %v1710
  %1716 = vrot.lane.b32.xlu0 %v392, 64
  %v1717 = vpop.permute.xlu0 %1716
  %v1718 = vsel %vm1065, %v1715, 0
  %v1720 = vsel %vm1068, %v1717, 0
  %1722 = vmatprep.subr.mxu0 0.0
  %1723 = vmatpush1.msra.mxu0 %v1720
  %1724 = vmatprep.subr.mxu0 0.0
  %1725 = vmatpush1.msra.mxu0 0.0
  %1726 = vmatprep.subr.mxu0 0.0
  %1727 = vmatpush1.msra.mxu0 0.0
  %1728 = vmatprep.subr.mxu0 0.0
  %1729 = vmatpush1.msra.mxu0 0.0
  %1730 = vmatprep.subr.mxu0 0.0
  %1731 = vmatpush1.msra.mxu0 0.0
  %1732 = vmatprep.subr.mxu0 0.0
  %1733 = vmatpush1.msra.mxu0 0.0
  %1734 = vmatprep.subr.mxu0 0.0
  %1735 = vmatpush1.msra.mxu0 0.0
  %1736 = vmatprep.subr.mxu0 0.0
  %1737 = vmatpush1.msra.mxu0 0.0
  %1738 = vmatprep.subr.mxu0 0.0
  %1739 = vmatpush1.msra.mxu0 0.0
  %1740 = vmatprep.subr.mxu0 0.0
  %1741 = vmatpush1.msra.mxu0 0.0
  %1742 = vmatprep.subr.mxu0 0.0
  %1743 = vmatpush1.msra.mxu0 0.0
  %1744 = vmatprep.subr.mxu0 0.0
  %1745 = vmatpush1.msra.mxu0 0.0
  %1746 = vmatprep.subr.mxu0 0.0
  %1747 = vmatpush1.msra.mxu0 0.0
  %1748 = vmatprep.subr.mxu0 0.0
  %1749 = vmatpush1.msra.mxu0 0.0
  %1750 = vmatprep.subr.mxu0 0.0
  %1751 = vmatpush1.msra.mxu0 0.0
  %1752 = vmatprep.subr.mxu0 0.0
  %1753 = vmatpush1.msra.mxu0 0.0
  %1754 = vmatprep.subr.mxu0 0.0
  %1755 = vmatpush1.msra.mxu0 0.0
  %1756 = vmatprep.subr.mxu0 0.0
  %1757 = vmatpush1.msra.mxu0 0.0
  %1758 = vmatprep.subr.mxu0 0.0
  %1759 = vmatpush1.msra.mxu0 0.0
  %1760 = vmatprep.subr.mxu0 0.0
  %1761 = vmatpush1.msra.mxu0 0.0
  %1762 = vmatprep.subr.mxu0 0.0
  %1763 = vmatpush1.msra.mxu0 0.0
  %1764 = vmatprep.subr.mxu0 0.0
  %1765 = vmatpush1.msra.mxu0 0.0
  %1766 = vmatprep.subr.mxu0 0.0
  %1767 = vmatpush1.msra.mxu0 0.0
  %1768 = vmatprep.subr.mxu0 0.0
  %1769 = vmatpush1.msra.mxu0 0.0
  %1770 = vmatprep.subr.mxu0 0.0
  %1771 = vmatpush1.msra.mxu0 0.0
  %1772 = vmatprep.subr.mxu0 0.0
  %1773 = vmatpush1.msra.mxu0 0.0
  %1774 = vmatprep.subr.mxu0 0.0
  %1775 = vmatpush1.msra.mxu0 0.0
  %1776 = vmatprep.subr.mxu0 0.0
  %1777 = vmatpush1.msra.mxu0 0.0
  %1778 = vmatprep.subr.mxu0 0.0
  %1779 = vmatpush1.msra.mxu0 0.0
  %1780 = vmatprep.subr.mxu0 0.0
  %1781 = vmatpush1.msra.mxu0 0.0
  %1782 = vmatprep.subr.mxu0 0.0
  %1783 = vmatpush1.msra.mxu0 0.0
  %1784 = vmatprep.subr.mxu0 0.0
  %1785 = vmatpush1.msra.mxu0 0.0
  %1786 = vmatprep.mubr.f32.mxu0 0.0
  %1787 = vmatmul.mubr.f32.gmra.mrb[0].mxu0 %v1718
  %v1788 = vpop.f32.mrb[0].mxu0
  %v1789 = vadd.f32 0.0, %v1788
  %v1790 = vpop.f32.mrb[0].mxu0
  %1791 = vdwg.mxu0
  %1808 = vrot.lane.b32.xlu0 %v417, 124
  %v1809 = vpop.permute.xlu0 %1808
  %1810 = vrot.lane.b32.xlu0 %v418, 124
  %v1811 = vpop.permute.xlu0 %1810
  %1812 = vrot.lane.b32.xlu0 %v419, 124
  %v1813 = vpop.permute.xlu0 %1812
  %1814 = vrot.lane.b32.xlu0 %v420, 124
  %v1815 = vpop.permute.xlu0 %1814
  %1816 = vrot.lane.b32.xlu0 %v421, 124
  %v1817 = vpop.permute.xlu0 %1816
  %1818 = vrot.lane.b32.xlu0 %v422, 124
  %v1819 = vpop.permute.xlu0 %1818
  %1820 = vrot.lane.b32.xlu0 %v423, 124
  %v1821 = vpop.permute.xlu0 %1820
  %1822 = vrot.lane.b32.xlu0 %v424, 124
  %v1823 = vpop.permute.xlu0 %1822
  %1824 = vrot.lane.b32.xlu0 %v425, 124
  %v1825 = vpop.permute.xlu0 %1824
  %1826 = vrot.lane.b32.xlu0 %v426, 124
  %v1827 = vpop.permute.xlu0 %1826
  %1828 = vrot.lane.b32.xlu0 %v427, 124
  %v1829 = vpop.permute.xlu0 %1828
  %1830 = vrot.lane.b32.xlu0 %v428, 124
  %v1831 = vpop.permute.xlu0 %1830
  %1832 = vrot.lane.b32.xlu0 %v429, 124
  %v1833 = vpop.permute.xlu0 %1832
  %1834 = vrot.lane.b32.xlu0 %v430, 124
  %v1835 = vpop.permute.xlu0 %1834
  %1836 = vrot.lane.b32.xlu0 %v431, 124
  %v1837 = vpop.permute.xlu0 %1836
  %1838 = vrot.lane.b32.xlu0 %v432, 124
  %v1839 = vpop.permute.xlu0 %1838
  %v1856 = vsel %vm433, %v1809, 0.0
  %1857 = vadd.xlane.f32.xlu0 %v1856
  %v1858 = vpop.xlane.xlu0 %1857
  %v1859 = vsel %vm433, %v1811, 0.0
  %1860 = vadd.xlane.f32.xlu0 %v1859
  %v1861 = vpop.xlane.xlu0 %1860
  %v1862 = vsel %vm433, %v1813, 0.0
  %1863 = vadd.xlane.f32.xlu0 %v1862
  %v1864 = vpop.xlane.xlu0 %1863
  %v1865 = vsel %vm433, %v1815, 0.0
  %1866 = vadd.xlane.f32.xlu0 %v1865
  %v1867 = vpop.xlane.xlu0 %1866
  %v1868 = vsel %vm433, %v1817, 0.0
  %1869 = vadd.xlane.f32.xlu0 %v1868
  %v1870 = vpop.xlane.xlu0 %1869
  %v1871 = vsel %vm433, %v1819, 0.0
  %1872 = vadd.xlane.f32.xlu0 %v1871
  %v1873 = vpop.xlane.xlu0 %1872
  %v1874 = vsel %vm433, %v1821, 0.0
  %1875 = vadd.xlane.f32.xlu0 %v1874
  %v1876 = vpop.xlane.xlu0 %1875
  %v1877 = vsel %vm433, %v1823, 0.0
  %1878 = vadd.xlane.f32.xlu0 %v1877
  %v1879 = vpop.xlane.xlu0 %1878
  %v1880 = vsel %vm433, %v1825, 0.0
  %1881 = vadd.xlane.f32.xlu0 %v1880
  %v1882 = vpop.xlane.xlu0 %1881
  %v1883 = vsel %vm433, %v1827, 0.0
  %1884 = vadd.xlane.f32.xlu0 %v1883
  %v1885 = vpop.xlane.xlu0 %1884
  %v1886 = vsel %vm433, %v1829, 0.0
  %1887 = vadd.xlane.f32.xlu0 %v1886
  %v1888 = vpop.xlane.xlu0 %1887
  %v1889 = vsel %vm433, %v1831, 0.0
  %1890 = vadd.xlane.f32.xlu0 %v1889
  %v1891 = vpop.xlane.xlu0 %1890
  %v1892 = vsel %vm433, %v1833, 0.0
  %1893 = vadd.xlane.f32.xlu0 %v1892
  %v1894 = vpop.xlane.xlu0 %1893
  %v1895 = vsel %vm433, %v1835, 0.0
  %1896 = vadd.xlane.f32.xlu0 %v1895
  %v1897 = vpop.xlane.xlu0 %1896
  %v1898 = vsel %vm433, %v1837, 0.0
  %1899 = vadd.xlane.f32.xlu0 %v1898
  %v1900 = vpop.xlane.xlu0 %1899
  %v1901 = vsel %vm433, %v1839, 0.0
  %1902 = vadd.xlane.f32.xlu0 %v1901
  %v1903 = vpop.xlane.xlu0 %1902
  %v1904 = vmul.f32 %v1858, 0.5
  %v1905 = vmul.f32 %v1861, 0.5
  %v1906 = vmul.f32 %v1864, 0.5
  %v1907 = vmul.f32 %v1867, 0.5
  %v1908 = vmul.f32 %v1870, 0.5
  %v1909 = vmul.f32 %v1873, 0.5
  %v1910 = vmul.f32 %v1876, 0.5
  %v1911 = vmul.f32 %v1879, 0.5
  %v1912 = vmul.f32 %v1882, 0.5
  %v1913 = vmul.f32 %v1885, 0.5
  %v1914 = vmul.f32 %v1888, 0.5
  %v1915 = vmul.f32 %v1891, 0.5
  %v1916 = vmul.f32 %v1894, 0.5
  %v1917 = vmul.f32 %v1897, 0.5
  %v1918 = vmul.f32 %v1900, 0.5
  %v1919 = vmul.f32 %v1903, 0.5
  %v1936 = vlaneseq
  %v1937 = vshrl.u32 %v1936, 7
  %v1938 = vsub.s32 %v515, %v1937
  %v1939 = vrot.slane %v1904, %v1938
  %v1940 = vlaneseq
  %v1941 = vshrl.u32 %v1940, 7
  %v1942 = vsub.s32 %v515, %v1941
  %v1943 = vrot.slane %v1905, %v1942
  %v1944 = vlaneseq
  %v1945 = vshrl.u32 %v1944, 7
  %v1946 = vsub.s32 %v515, %v1945
  %v1947 = vrot.slane %v1906, %v1946
  %v1948 = vlaneseq
  %v1949 = vshrl.u32 %v1948, 7
  %v1950 = vsub.s32 %v515, %v1949
  %v1951 = vrot.slane %v1907, %v1950
  %v1952 = vlaneseq
  %v1953 = vshrl.u32 %v1952, 7
  %v1954 = vsub.s32 %v515, %v1953
  %v1955 = vrot.slane %v1908, %v1954
  %v1956 = vlaneseq
  %v1957 = vshrl.u32 %v1956, 7
  %v1958 = vsub.s32 %v515, %v1957
  %v1959 = vrot.slane %v1909, %v1958
  %v1960 = vlaneseq
  %v1961 = vshrl.u32 %v1960, 7
  %v1962 = vsub.s32 %v515, %v1961
  %v1963 = vrot.slane %v1910, %v1962
  %v1964 = vlaneseq
  %v1965 = vshrl.u32 %v1964, 7
  %v1966 = vsub.s32 %v515, %v1965
  %v1967 = vrot.slane %v1911, %v1966
  %v1968 = vlaneseq
  %v1969 = vshrl.u32 %v1968, 7
  %v1970 = vsub.s32 %v515, %v1969
  %v1971 = vrot.slane %v1912, %v1970
  %v1972 = vlaneseq
  %v1973 = vshrl.u32 %v1972, 7
  %v1974 = vsub.s32 %v515, %v1973
  %v1975 = vrot.slane %v1913, %v1974
  %v1976 = vlaneseq
  %v1977 = vshrl.u32 %v1976, 7
  %v1978 = vsub.s32 %v515, %v1977
  %v1979 = vrot.slane %v1914, %v1978
  %v1980 = vlaneseq
  %v1981 = vshrl.u32 %v1980, 7
  %v1982 = vsub.s32 %v515, %v1981
  %v1983 = vrot.slane %v1915, %v1982
  %v1984 = vlaneseq
  %v1985 = vshrl.u32 %v1984, 7
  %v1986 = vsub.s32 %v515, %v1985
  %v1987 = vrot.slane %v1916, %v1986
  %v1988 = vlaneseq
  %v1989 = vshrl.u32 %v1988, 7
  %v1990 = vsub.s32 %v515, %v1989
  %v1991 = vrot.slane %v1917, %v1990
  %v1992 = vlaneseq
  %v1993 = vshrl.u32 %v1992, 7
  %v1994 = vsub.s32 %v515, %v1993
  %v1995 = vrot.slane %v1918, %v1994
  %v1996 = vlaneseq
  %v1997 = vshrl.u32 %v1996, 7
  %v1998 = vsub.s32 %v515, %v1997
  %v1999 = vrot.slane %v1919, %v1998
  %v2000 = vsel %vm580, %v1943, %v1939
  %v2001 = vsel %vm580, %v1951, %v1947
  %v2002 = vsel %vm580, %v1959, %v1955
  %v2003 = vsel %vm580, %v1967, %v1963
  %v2004 = vsel %vm580, %v1975, %v1971
  %v2005 = vsel %vm580, %v1983, %v1979
  %v2006 = vsel %vm580, %v1991, %v1987
  %v2007 = vsel %vm580, %v1999, %v1995
  %v2016 = vsel %vm597, %v2000, -inf
  %2017 = vmax.xlane.f32.xlu0 %v2016
  %v2018 = vpop.xlane.xlu0 %2017
  %v2019 = vsel %vm597, %v2001, -inf
  %2020 = vmax.xlane.f32.xlu0 %v2019
  %v2021 = vpop.xlane.xlu0 %2020
  %v2022 = vsel %vm597, %v2002, -inf
  %2023 = vmax.xlane.f32.xlu0 %v2022
  %v2024 = vpop.xlane.xlu0 %2023
  %v2025 = vsel %vm597, %v2003, -inf
  %2026 = vmax.xlane.f32.xlu0 %v2025
  %v2027 = vpop.xlane.xlu0 %2026
  %v2028 = vsel %vm597, %v2004, -inf
  %2029 = vmax.xlane.f32.xlu0 %v2028
  %v2030 = vpop.xlane.xlu0 %2029
  %v2031 = vsel %vm597, %v2005, -inf
  %2032 = vmax.xlane.f32.xlu0 %v2031
  %v2033 = vpop.xlane.xlu0 %2032
  %v2034 = vsel %vm597, %v2006, -inf
  %2035 = vmax.xlane.f32.xlu0 %v2034
  %v2036 = vpop.xlane.xlu0 %2035
  %v2037 = vsel %vm597, %v2007, -inf
  %2038 = vmax.xlane.f32.xlu0 %v2037
  %v2039 = vpop.xlane.xlu0 %2038
  %v2048 = vlaneseq
  %v2049 = vshrl.u32 %v2048, 7
  %v2050 = vsub.s32 0, %v2049
  %v2051 = vrot.slane %v2018, %v2050
  %v2052 = vlaneseq
  %v2053 = vshrl.u32 %v2052, 7
  %v2054 = vsub.s32 1, %v2053
  %v2055 = vrot.slane %v2018, %v2054
  %v2056 = vlaneseq
  %v2057 = vshrl.u32 %v2056, 7
  %v2058 = vsub.s32 0, %v2057
  %v2059 = vrot.slane %v2021, %v2058
  %v2060 = vlaneseq
  %v2061 = vshrl.u32 %v2060, 7
  %v2062 = vsub.s32 1, %v2061
  %v2063 = vrot.slane %v2021, %v2062
  %v2064 = vlaneseq
  %v2065 = vshrl.u32 %v2064, 7
  %v2066 = vsub.s32 0, %v2065
  %v2067 = vrot.slane %v2024, %v2066
  %v2068 = vlaneseq
  %v2069 = vshrl.u32 %v2068, 7
  %v2070 = vsub.s32 1, %v2069
  %v2071 = vrot.slane %v2024, %v2070
  %v2072 = vlaneseq
  %v2073 = vshrl.u32 %v2072, 7
  %v2074 = vsub.s32 0, %v2073
  %v2075 = vrot.slane %v2027, %v2074
  %v2076 = vlaneseq
  %v2077 = vshrl.u32 %v2076, 7
  %v2078 = vsub.s32 1, %v2077
  %v2079 = vrot.slane %v2027, %v2078
  %v2080 = vlaneseq
  %v2081 = vshrl.u32 %v2080, 7
  %v2082 = vsub.s32 0, %v2081
  %v2083 = vrot.slane %v2030, %v2082
  %v2084 = vlaneseq
  %v2085 = vshrl.u32 %v2084, 7
  %v2086 = vsub.s32 1, %v2085
  %v2087 = vrot.slane %v2030, %v2086
  %v2088 = vlaneseq
  %v2089 = vshrl.u32 %v2088, 7
  %v2090 = vsub.s32 0, %v2089
  %v2091 = vrot.slane %v2033, %v2090
  %v2092 = vlaneseq
  %v2093 = vshrl.u32 %v2092, 7
  %v2094 = vsub.s32 1, %v2093
  %v2095 = vrot.slane %v2033, %v2094
  %v2096 = vlaneseq
  %v2097 = vshrl.u32 %v2096, 7
  %v2098 = vsub.s32 0, %v2097
  %v2099 = vrot.slane %v2036, %v2098
  %v2100 = vlaneseq
  %v2101 = vshrl.u32 %v2100, 7
  %v2102 = vsub.s32 1, %v2101
  %v2103 = vrot.slane %v2036, %v2102
  %v2104 = vlaneseq
  %v2105 = vshrl.u32 %v2104, 7
  %v2106 = vsub.s32 0, %v2105
  %v2107 = vrot.slane %v2039, %v2106
  %v2108 = vlaneseq
  %v2109 = vshrl.u32 %v2108, 7
  %v2110 = vsub.s32 1, %v2109
  %v2111 = vrot.slane %v2039, %v2110
  %v2128 = vsub.f32 %v1904, %v2051
  %v2129 = vsub.f32 %v1905, %v2055
  %v2130 = vsub.f32 %v1906, %v2059
  %v2131 = vsub.f32 %v1907, %v2063
  %v2132 = vsub.f32 %v1908, %v2067
  %v2133 = vsub.f32 %v1909, %v2071
  %v2134 = vsub.f32 %v1910, %v2075
  %v2135 = vsub.f32 %v1911, %v2079
  %v2136 = vsub.f32 %v1912, %v2083
  %v2137 = vsub.f32 %v1913, %v2087
  %v2138 = vsub.f32 %v1914, %v2091
  %v2139 = vsub.f32 %v1915, %v2095
  %v2140 = vsub.f32 %v1916, %v2099
  %v2141 = vsub.f32 %v1917, %v2103
  %v2142 = vsub.f32 %v1918, %v2107
  %v2143 = vsub.f32 %v1919, %v2111
  %v2144 = vmul.f32 %v2128, 1.442695
  %v2145 = vpow.pop %v2144
  %v2146 = vmul.f32 %v2129, 1.442695
  %v2147 = vpow.pop %v2146
  %v2148 = vmul.f32 %v2130, 1.442695
  %v2149 = vpow.pop %v2148
  %v2150 = vmul.f32 %v2131, 1.442695
  %v2151 = vpow.pop %v2150
  %v2152 = vmul.f32 %v2132, 1.442695
  %v2153 = vpow.pop %v2152
  %v2154 = vmul.f32 %v2133, 1.442695
  %v2155 = vpow.pop %v2154
  %v2156 = vmul.f32 %v2134, 1.442695
  %v2157 = vpow.pop %v2156
  %v2158 = vmul.f32 %v2135, 1.442695
  %v2159 = vpow.pop %v2158
  %v2160 = vmul.f32 %v2136, 1.442695
  %v2161 = vpow.pop %v2160
  %v2162 = vmul.f32 %v2137, 1.442695
  %v2163 = vpow.pop %v2162
  %v2164 = vmul.f32 %v2138, 1.442695
  %v2165 = vpow.pop %v2164
  %v2166 = vmul.f32 %v2139, 1.442695
  %v2167 = vpow.pop %v2166
  %v2168 = vmul.f32 %v2140, 1.442695
  %v2169 = vpow.pop %v2168
  %v2170 = vmul.f32 %v2141, 1.442695
  %v2171 = vpow.pop %v2170
  %v2172 = vmul.f32 %v2142, 1.442695
  %v2173 = vpow.pop %v2172
  %v2174 = vmul.f32 %v2143, 1.442695
  %v2175 = vpow.pop %v2174
  %2192 = vset.pattern.permute.xlu0 0
  %2193 = vperm.xlu0 %2192, %v2145
  %v2194 = vpop.permute.xlu0 %2193
  %2195 = vset.pattern.permute.xlu0 0
  %2196 = vperm.xlu0 %2195, %v2147
  %v2197 = vpop.permute.xlu0 %2196
  %2198 = vset.pattern.permute.xlu0 0
  %2199 = vperm.xlu0 %2198, %v2149
  %v2200 = vpop.permute.xlu0 %2199
  %2201 = vset.pattern.permute.xlu0 0
  %2202 = vperm.xlu0 %2201, %v2151
  %v2203 = vpop.permute.xlu0 %2202
  %2204 = vset.pattern.permute.xlu0 0
  %2205 = vperm.xlu0 %2204, %v2153
  %v2206 = vpop.permute.xlu0 %2205
  %2207 = vset.pattern.permute.xlu0 0
  %2208 = vperm.xlu0 %2207, %v2155
  %v2209 = vpop.permute.xlu0 %2208
  %2210 = vset.pattern.permute.xlu0 0
  %2211 = vperm.xlu0 %2210, %v2157
  %v2212 = vpop.permute.xlu0 %2211
  %2213 = vset.pattern.permute.xlu0 0
  %2214 = vperm.xlu0 %2213, %v2159
  %v2215 = vpop.permute.xlu0 %2214
  %2216 = vset.pattern.permute.xlu0 0
  %2217 = vperm.xlu0 %2216, %v2161
  %v2218 = vpop.permute.xlu0 %2217
  %2219 = vset.pattern.permute.xlu0 0
  %2220 = vperm.xlu0 %2219, %v2163
  %v2221 = vpop.permute.xlu0 %2220
  %2222 = vset.pattern.permute.xlu0 0
  %2223 = vperm.xlu0 %2222, %v2165
  %v2224 = vpop.permute.xlu0 %2223
  %2225 = vset.pattern.permute.xlu0 0
  %2226 = vperm.xlu0 %2225, %v2167
  %v2227 = vpop.permute.xlu0 %2226
  %2228 = vset.pattern.permute.xlu0 0
  %2229 = vperm.xlu0 %2228, %v2169
  %v2230 = vpop.permute.xlu0 %2229
  %2231 = vset.pattern.permute.xlu0 0
  %2232 = vperm.xlu0 %2231, %v2171
  %v2233 = vpop.permute.xlu0 %2232
  %2234 = vset.pattern.permute.xlu0 0
  %2235 = vperm.xlu0 %2234, %v2173
  %v2236 = vpop.permute.xlu0 %2235
  %2237 = vset.pattern.permute.xlu0 0
  %2238 = vperm.xlu0 %2237, %v2175
  %v2239 = vpop.permute.xlu0 %2238
  %v2240 = vlaneseq
  %v2241 = vshrl.u32 %v2240, 7
  %v2242 = vsub.s32 %v515, %v2241
  %v2243 = vrot.slane %v2194, %v2242
  %v2244 = vlaneseq
  %v2245 = vshrl.u32 %v2244, 7
  %v2246 = vsub.s32 %v515, %v2245
  %v2247 = vrot.slane %v2197, %v2246
  %v2248 = vlaneseq
  %v2249 = vshrl.u32 %v2248, 7
  %v2250 = vsub.s32 %v515, %v2249
  %v2251 = vrot.slane %v2200, %v2250
  %v2252 = vlaneseq
  %v2253 = vshrl.u32 %v2252, 7
  %v2254 = vsub.s32 %v515, %v2253
  %v2255 = vrot.slane %v2203, %v2254
  %v2256 = vlaneseq
  %v2257 = vshrl.u32 %v2256, 7
  %v2258 = vsub.s32 %v515, %v2257
  %v2259 = vrot.slane %v2206, %v2258
  %v2260 = vlaneseq
  %v2261 = vshrl.u32 %v2260, 7
  %v2262 = vsub.s32 %v515, %v2261
  %v2263 = vrot.slane %v2209, %v2262
  %v2264 = vlaneseq
  %v2265 = vshrl.u32 %v2264, 7
  %v2266 = vsub.s32 %v515, %v2265
  %v2267 = vrot.slane %v2212, %v2266
  %v2268 = vlaneseq
  %v2269 = vshrl.u32 %v2268, 7
  %v2270 = vsub.s32 %v515, %v2269
  %v2271 = vrot.slane %v2215, %v2270
  %v2272 = vlaneseq
  %v2273 = vshrl.u32 %v2272, 7
  %v2274 = vsub.s32 %v515, %v2273
  %v2275 = vrot.slane %v2218, %v2274
  %v2276 = vlaneseq
  %v2277 = vshrl.u32 %v2276, 7
  %v2278 = vsub.s32 %v515, %v2277
  %v2279 = vrot.slane %v2221, %v2278
  %v2280 = vlaneseq
  %v2281 = vshrl.u32 %v2280, 7
  %v2282 = vsub.s32 %v515, %v2281
  %v2283 = vrot.slane %v2224, %v2282
  %v2284 = vlaneseq
  %v2285 = vshrl.u32 %v2284, 7
  %v2286 = vsub.s32 %v515, %v2285
  %v2287 = vrot.slane %v2227, %v2286
  %v2288 = vlaneseq
  %v2289 = vshrl.u32 %v2288, 7
  %v2290 = vsub.s32 %v515, %v2289
  %v2291 = vrot.slane %v2230, %v2290
  %v2292 = vlaneseq
  %v2293 = vshrl.u32 %v2292, 7
  %v2294 = vsub.s32 %v515, %v2293
  %v2295 = vrot.slane %v2233, %v2294
  %v2296 = vlaneseq
  %v2297 = vshrl.u32 %v2296, 7
  %v2298 = vsub.s32 %v515, %v2297
  %v2299 = vrot.slane %v2236, %v2298
  %v2300 = vlaneseq
  %v2301 = vshrl.u32 %v2300, 7
  %v2302 = vsub.s32 %v515, %v2301
  %v2303 = vrot.slane %v2239, %v2302
  %v2304 = vsel %vm580, %v2247, %v2243
  %v2305 = vsel %vm580, %v2255, %v2251
  %v2306 = vsel %vm580, %v2263, %v2259
  %v2307 = vsel %vm580, %v2271, %v2267
  %v2308 = vsel %vm580, %v2279, %v2275
  %v2309 = vsel %vm580, %v2287, %v2283
  %v2310 = vsel %vm580, %v2295, %v2291
  %v2311 = vsel %vm580, %v2303, %v2299
  %v2320 = vsel %vm597, %v2304, 0.0
  %2321 = vadd.xlane.f32.xlu0 %v2320
  %v2322 = vpop.xlane.xlu0 %2321
  %v2323 = vsel %vm597, %v2305, 0.0
  %2324 = vadd.xlane.f32.xlu0 %v2323
  %v2325 = vpop.xlane.xlu0 %2324
  %v2326 = vsel %vm597, %v2306, 0.0
  %2327 = vadd.xlane.f32.xlu0 %v2326
  %v2328 = vpop.xlane.xlu0 %2327
  %v2329 = vsel %vm597, %v2307, 0.0
  %2330 = vadd.xlane.f32.xlu0 %v2329
  %v2331 = vpop.xlane.xlu0 %2330
  %v2332 = vsel %vm597, %v2308, 0.0
  %2333 = vadd.xlane.f32.xlu0 %v2332
  %v2334 = vpop.xlane.xlu0 %2333
  %v2335 = vsel %vm597, %v2309, 0.0
  %2336 = vadd.xlane.f32.xlu0 %v2335
  %v2337 = vpop.xlane.xlu0 %2336
  %v2338 = vsel %vm597, %v2310, 0.0
  %2339 = vadd.xlane.f32.xlu0 %v2338
  %v2340 = vpop.xlane.xlu0 %2339
  %v2341 = vsel %vm597, %v2311, 0.0
  %2342 = vadd.xlane.f32.xlu0 %v2341
  %v2343 = vpop.xlane.xlu0 %2342
  %v2352 = vlaneseq
  %v2353 = vshrl.u32 %v2352, 7
  %v2354 = vsub.s32 0, %v2353
  %v2355 = vrot.slane %v2322, %v2354
  %v2356 = vlaneseq
  %v2357 = vshrl.u32 %v2356, 7
  %v2358 = vsub.s32 1, %v2357
  %v2359 = vrot.slane %v2322, %v2358
  %v2360 = vlaneseq
  %v2361 = vshrl.u32 %v2360, 7
  %v2362 = vsub.s32 0, %v2361
  %v2363 = vrot.slane %v2325, %v2362
  %v2364 = vlaneseq
  %v2365 = vshrl.u32 %v2364, 7
  %v2366 = vsub.s32 1, %v2365
  %v2367 = vrot.slane %v2325, %v2366
  %v2368 = vlaneseq
  %v2369 = vshrl.u32 %v2368, 7
  %v2370 = vsub.s32 0, %v2369
  %v2371 = vrot.slane %v2328, %v2370
  %v2372 = vlaneseq
  %v2373 = vshrl.u32 %v2372, 7
  %v2374 = vsub.s32 1, %v2373
  %v2375 = vrot.slane %v2328, %v2374
  %v2376 = vlaneseq
  %v2377 = vshrl.u32 %v2376, 7
  %v2378 = vsub.s32 0, %v2377
  %v2379 = vrot.slane %v2331, %v2378
  %v2380 = vlaneseq
  %v2381 = vshrl.u32 %v2380, 7
  %v2382 = vsub.s32 1, %v2381
  %v2383 = vrot.slane %v2331, %v2382
  %v2384 = vlaneseq
  %v2385 = vshrl.u32 %v2384, 7
  %v2386 = vsub.s32 0, %v2385
  %v2387 = vrot.slane %v2334, %v2386
  %v2388 = vlaneseq
  %v2389 = vshrl.u32 %v2388, 7
  %v2390 = vsub.s32 1, %v2389
  %v2391 = vrot.slane %v2334, %v2390
  %v2392 = vlaneseq
  %v2393 = vshrl.u32 %v2392, 7
  %v2394 = vsub.s32 0, %v2393
  %v2395 = vrot.slane %v2337, %v2394
  %v2396 = vlaneseq
  %v2397 = vshrl.u32 %v2396, 7
  %v2398 = vsub.s32 1, %v2397
  %v2399 = vrot.slane %v2337, %v2398
  %v2400 = vlaneseq
  %v2401 = vshrl.u32 %v2400, 7
  %v2402 = vsub.s32 0, %v2401
  %v2403 = vrot.slane %v2340, %v2402
  %v2404 = vlaneseq
  %v2405 = vshrl.u32 %v2404, 7
  %v2406 = vsub.s32 1, %v2405
  %v2407 = vrot.slane %v2340, %v2406
  %v2408 = vlaneseq
  %v2409 = vshrl.u32 %v2408, 7
  %v2410 = vsub.s32 0, %v2409
  %v2411 = vrot.slane %v2343, %v2410
  %v2412 = vlaneseq
  %v2413 = vshrl.u32 %v2412, 7
  %v2414 = vsub.s32 1, %v2413
  %v2415 = vrot.slane %v2343, %v2414
  %v2432 = vrcp.pop %v2355
  %v2433 = vmul.f32 %v2145, %v2432
  %v2434 = vrcp.pop %v2359
  %v2435 = vmul.f32 %v2147, %v2434
  %v2436 = vrcp.pop %v2363
  %v2437 = vmul.f32 %v2149, %v2436
  %v2438 = vrcp.pop %v2367
  %v2439 = vmul.f32 %v2151, %v2438
  %v2440 = vrcp.pop %v2371
  %v2441 = vmul.f32 %v2153, %v2440
  %v2442 = vrcp.pop %v2375
  %v2443 = vmul.f32 %v2155, %v2442
  %v2444 = vrcp.pop %v2379
  %v2445 = vmul.f32 %v2157, %v2444
  %v2446 = vrcp.pop %v2383
  %v2447 = vmul.f32 %v2159, %v2446
  %v2448 = vrcp.pop %v2387
  %v2449 = vmul.f32 %v2161, %v2448
  %v2450 = vrcp.pop %v2391
  %v2451 = vmul.f32 %v2163, %v2450
  %v2452 = vrcp.pop %v2395
  %v2453 = vmul.f32 %v2165, %v2452
  %v2454 = vrcp.pop %v2399
  %v2455 = vmul.f32 %v2167, %v2454
  %v2456 = vrcp.pop %v2403
  %v2457 = vmul.f32 %v2169, %v2456
  %v2458 = vrcp.pop %v2407
  %v2459 = vmul.f32 %v2171, %v2458
  %v2460 = vrcp.pop %v2411
  %v2461 = vmul.f32 %v2173, %v2460
  %v2462 = vrcp.pop %v2415
  %v2463 = vmul.f32 %v2175, %v2462
  %2466 = vset.pattern.permute.xlu0 0
  %2467 = vperm.xlu0 %2466, %v2433
  %v2468 = vpop.permute.xlu0 %2467
  %2469 = vset.pattern.permute.xlu0 0
  %2470 = vperm.xlu0 %2469, %v2435
  %v2471 = vpop.permute.xlu0 %2470
  %v2472 = vlaneseq
  %v2473 = vshrl.u32 %v2472, 7
  %v2474 = vsub.s32 %v515, %v2473
  %v2475 = vrot.slane %v2468, %v2474
  %v2476 = vlaneseq
  %v2477 = vshrl.u32 %v2476, 7
  %v2478 = vsub.s32 %v515, %v2477
  %v2479 = vrot.slane %v2471, %v2478
  %v2480 = vsel %vm580, %v2479, %v2475
  %2481 = vrot.lane.b32.xlu0 %v343, 60
  %v2482 = vpop.permute.xlu0 %2481
  %v2483 = vsel %vm1065, %v2480, 0
  %v2485 = vsel %vm1068, %v2482, 0
  %2487 = vmatprep.subr.mxu0 0.0
  %2488 = vmatpush1.msra.mxu0 %v2485
  %2489 = vmatprep.subr.mxu0 0.0
  %2490 = vmatpush1.msra.mxu0 0.0
  %2491 = vmatprep.subr.mxu0 0.0
  %2492 = vmatpush1.msra.mxu0 0.0
  %2493 = vmatprep.subr.mxu0 0.0
  %2494 = vmatpush1.msra.mxu0 0.0
  %2495 = vmatprep.subr.mxu0 0.0
  %2496 = vmatpush1.msra.mxu0 0.0
  %2497 = vmatprep.subr.mxu0 0.0
  %2498 = vmatpush1.msra.mxu0 0.0
  %2499 = vmatprep.subr.mxu0 0.0
  %2500 = vmatpush1.msra.mxu0 0.0
  %2501 = vmatprep.subr.mxu0 0.0
  %2502 = vmatpush1.msra.mxu0 0.0
  %2503 = vmatprep.subr.mxu0 0.0
  %2504 = vmatpush1.msra.mxu0 0.0
  %2505 = vmatprep.subr.mxu0 0.0
  %2506 = vmatpush1.msra.mxu0 0.0
  %2507 = vmatprep.subr.mxu0 0.0
  %2508 = vmatpush1.msra.mxu0 0.0
  %2509 = vmatprep.subr.mxu0 0.0
  %2510 = vmatpush1.msra.mxu0 0.0
  %2511 = vmatprep.subr.mxu0 0.0
  %2512 = vmatpush1.msra.mxu0 0.0
  %2513 = vmatprep.subr.mxu0 0.0
  %2514 = vmatpush1.msra.mxu0 0.0
  %2515 = vmatprep.subr.mxu0 0.0
  %2516 = vmatpush1.msra.mxu0 0.0
  %2517 = vmatprep.subr.mxu0 0.0
  %2518 = vmatpush1.msra.mxu0 0.0
  %2519 = vmatprep.subr.mxu0 0.0
  %2520 = vmatpush1.msra.mxu0 0.0
  %2521 = vmatprep.subr.mxu0 0.0
  %2522 = vmatpush1.msra.mxu0 0.0
  %2523 = vmatprep.subr.mxu0 0.0
  %2524 = vmatpush1.msra.mxu0 0.0
  %2525 = vmatprep.subr.mxu0 0.0
  %2526 = vmatpush1.msra.mxu0 0.0
  %2527 = vmatprep.subr.mxu0 0.0
  %2528 = vmatpush1.msra.mxu0 0.0
  %2529 = vmatprep.subr.mxu0 0.0
  %2530 = vmatpush1.msra.mxu0 0.0
  %2531 = vmatprep.subr.mxu0 0.0
  %2532 = vmatpush1.msra.mxu0 0.0
  %2533 = vmatprep.subr.mxu0 0.0
  %2534 = vmatpush1.msra.mxu0 0.0
  %2535 = vmatprep.subr.mxu0 0.0
  %2536 = vmatpush1.msra.mxu0 0.0
  %2537 = vmatprep.subr.mxu0 0.0
  %2538 = vmatpush1.msra.mxu0 0.0
  %2539 = vmatprep.subr.mxu0 0.0
  %2540 = vmatpush1.msra.mxu0 0.0
  %2541 = vmatprep.subr.mxu0 0.0
  %2542 = vmatpush1.msra.mxu0 0.0
  %2543 = vmatprep.subr.mxu0 0.0
  %2544 = vmatpush1.msra.mxu0 0.0
  %2545 = vmatprep.subr.mxu0 0.0
  %2546 = vmatpush1.msra.mxu0 0.0
  %2547 = vmatprep.subr.mxu0 0.0
  %2548 = vmatpush1.msra.mxu0 0.0
  %2549 = vmatprep.subr.mxu0 0.0
  %2550 = vmatpush1.msra.mxu0 0.0
  %2551 = vmatprep.mubr.f32.mxu0 0.0
  %2552 = vmatmul.mubr.f32.gmra.mrb[0].mxu0 %v2483
  %v2553 = vpop.f32.mrb[0].mxu0
  %v2554 = vadd.f32 0.0, %v2553
  %v2555 = vpop.f32.mrb[0].mxu0
  %2556 = vdwg.mxu0
  %2559 = vset.pattern.permute.xlu0 0
  %2560 = vperm.xlu0 %2559, %v2437
  %v2561 = vpop.permute.xlu0 %2560
  %2562 = vset.pattern.permute.xlu0 0
  %2563 = vperm.xlu0 %2562, %v2439
  %v2564 = vpop.permute.xlu0 %2563
  %v2565 = vlaneseq
  %v2566 = vshrl.u32 %v2565, 7
  %v2567 = vsub.s32 %v515, %v2566
  %v2568 = vrot.slane %v2561, %v2567
  %v2569 = vlaneseq
  %v2570 = vshrl.u32 %v2569, 7
  %v2571 = vsub.s32 %v515, %v2570
  %v2572 = vrot.slane %v2564, %v2571
  %v2573 = vsel %vm580, %v2572, %v2568
  %2574 = vrot.lane.b32.xlu0 %v350, 60
  %v2575 = vpop.permute.xlu0 %2574
  %v2576 = vsel %vm1065, %v2573, 0
  %v2578 = vsel %vm1068, %v2575, 0
  %2580 = vmatprep.subr.mxu0 0.0
  %2581 = vmatpush1.msra.mxu0 %v2578
  %2582 = vmatprep.subr.mxu0 0.0
  %2583 = vmatpush1.msra.mxu0 0.0
  %2584 = vmatprep.subr.mxu0 0.0
  %2585 = vmatpush1.msra.mxu0 0.0
  %2586 = vmatprep.subr.mxu0 0.0
  %2587 = vmatpush1.msra.mxu0 0.0
  %2588 = vmatprep.subr.mxu0 0.0
  %2589 = vmatpush1.msra.mxu0 0.0
  %2590 = vmatprep.subr.mxu0 0.0
  %2591 = vmatpush1.msra.mxu0 0.0
  %2592 = vmatprep.subr.mxu0 0.0
  %2593 = vmatpush1.msra.mxu0 0.0
  %2594 = vmatprep.subr.mxu0 0.0
  %2595 = vmatpush1.msra.mxu0 0.0
  %2596 = vmatprep.subr.mxu0 0.0
  %2597 = vmatpush1.msra.mxu0 0.0
  %2598 = vmatprep.subr.mxu0 0.0
  %2599 = vmatpush1.msra.mxu0 0.0
  %2600 = vmatprep.subr.mxu0 0.0
  %2601 = vmatpush1.msra.mxu0 0.0
  %2602 = vmatprep.subr.mxu0 0.0
  %2603 = vmatpush1.msra.mxu0 0.0
  %2604 = vmatprep.subr.mxu0 0.0
  %2605 = vmatpush1.msra.mxu0 0.0
  %2606 = vmatprep.subr.mxu0 0.0
  %2607 = vmatpush1.msra.mxu0 0.0
  %2608 = vmatprep.subr.mxu0 0.0
  %2609 = vmatpush1.msra.mxu0 0.0
  %2610 = vmatprep.subr.mxu0 0.0
  %2611 = vmatpush1.msra.mxu0 0.0
  %2612 = vmatprep.subr.mxu0 0.0
  %2613 = vmatpush1.msra.mxu0 0.0
  %2614 = vmatprep.subr.mxu0 0.0
  %2615 = vmatpush1.msra.mxu0 0.0
  %2616 = vmatprep.subr.mxu0 0.0
  %2617 = vmatpush1.msra.mxu0 0.0
  %2618 = vmatprep.subr.mxu0 0.0
  %2619 = vmatpush1.msra.mxu0 0.0
  %2620 = vmatprep.subr.mxu0 0.0
  %2621 = vmatpush1.msra.mxu0 0.0
  %2622 = vmatprep.subr.mxu0 0.0
  %2623 = vmatpush1.msra.mxu0 0.0
  %2624 = vmatprep.subr.mxu0 0.0
  %2625 = vmatpush1.msra.mxu0 0.0
  %2626 = vmatprep.subr.mxu0 0.0
  %2627 = vmatpush1.msra.mxu0 0.0
  %2628 = vmatprep.subr.mxu0 0.0
  %2629 = vmatpush1.msra.mxu0 0.0
  %2630 = vmatprep.subr.mxu0 0.0
  %2631 = vmatpush1.msra.mxu0 0.0
  %2632 = vmatprep.subr.mxu0 0.0
  %2633 = vmatpush1.msra.mxu0 0.0
  %2634 = vmatprep.subr.mxu0 0.0
  %2635 = vmatpush1.msra.mxu0 0.0
  %2636 = vmatprep.subr.mxu0 0.0
  %2637 = vmatpush1.msra.mxu0 0.0
  %2638 = vmatprep.subr.mxu0 0.0
  %2639 = vmatpush1.msra.mxu0 0.0
  %2640 = vmatprep.subr.mxu0 0.0
  %2641 = vmatpush1.msra.mxu0 0.0
  %2642 = vmatprep.subr.mxu0 0.0
  %2643 = vmatpush1.msra.mxu0 0.0
  %2644 = vmatprep.mubr.f32.mxu0 0.0
  %2645 = vmatmul.mubr.f32.gmra.mrb[0].mxu0 %v2576
  %v2646 = vpop.f32.mrb[0].mxu0
  %v2647 = vadd.f32 0.0, %v2646
  %v2648 = vpop.f32.mrb[0].mxu0
  %2649 = vdwg.mxu0
  %2652 = vset.pattern.permute.xlu0 0
  %2653 = vperm.xlu0 %2652, %v2441
  %v2654 = vpop.permute.xlu0 %2653
  %2655 = vset.pattern.permute.xlu0 0
  %2656 = vperm.xlu0 %2655, %v2443
  %v2657 = vpop.permute.xlu0 %2656
  %v2658 = vlaneseq
  %v2659 = vshrl.u32 %v2658, 7
  %v2660 = vsub.s32 %v515, %v2659
  %v2661 = vrot.slane %v2654, %v2660
  %v2662 = vlaneseq
  %v2663 = vshrl.u32 %v2662, 7
  %v2664 = vsub.s32 %v515, %v2663
  %v2665 = vrot.slane %v2657, %v2664
  %v2666 = vsel %vm580, %v2665, %v2661
  %2667 = vrot.lane.b32.xlu0 %v357, 60
  %v2668 = vpop.permute.xlu0 %2667
  %v2669 = vsel %vm1065, %v2666, 0
  %v2671 = vsel %vm1068, %v2668, 0
  %2673 = vmatprep.subr.mxu0 0.0
  %2674 = vmatpush1.msra.mxu0 %v2671
  %2675 = vmatprep.subr.mxu0 0.0
  %2676 = vmatpush1.msra.mxu0 0.0
  %2677 = vmatprep.subr.mxu0 0.0
  %2678 = vmatpush1.msra.mxu0 0.0
  %2679 = vmatprep.subr.mxu0 0.0
  %2680 = vmatpush1.msra.mxu0 0.0
  %2681 = vmatprep.subr.mxu0 0.0
  %2682 = vmatpush1.msra.mxu0 0.0
  %2683 = vmatprep.subr.mxu0 0.0
  %2684 = vmatpush1.msra.mxu0 0.0
  %2685 = vmatprep.subr.mxu0 0.0
  %2686 = vmatpush1.msra.mxu0 0.0
  %2687 = vmatprep.subr.mxu0 0.0
  %2688 = vmatpush1.msra.mxu0 0.0
  %2689 = vmatprep.subr.mxu0 0.0
  %2690 = vmatpush1.msra.mxu0 0.0
  %2691 = vmatprep.subr.mxu0 0.0
  %2692 = vmatpush1.msra.mxu0 0.0
  %2693 = vmatprep.subr.mxu0 0.0
  %2694 = vmatpush1.msra.mxu0 0.0
  %2695 = vmatprep.subr.mxu0 0.0
  %2696 = vmatpush1.msra.mxu0 0.0
  %2697 = vmatprep.subr.mxu0 0.0
  %2698 = vmatpush1.msra.mxu0 0.0
  %2699 = vmatprep.subr.mxu0 0.0
  %2700 = vmatpush1.msra.mxu0 0.0
  %2701 = vmatprep.subr.mxu0 0.0
  %2702 = vmatpush1.msra.mxu0 0.0
  %2703 = vmatprep.subr.mxu0 0.0
  %2704 = vmatpush1.msra.mxu0 0.0
  %2705 = vmatprep.subr.mxu0 0.0
  %2706 = vmatpush1.msra.mxu0 0.0
  %2707 = vmatprep.subr.mxu0 0.0
  %2708 = vmatpush1.msra.mxu0 0.0
  %2709 = vmatprep.subr.mxu0 0.0
  %2710 = vmatpush1.msra.mxu0 0.0
  %2711 = vmatprep.subr.mxu0 0.0
  %2712 = vmatpush1.msra.mxu0 0.0
  %2713 = vmatprep.subr.mxu0 0.0
  %2714 = vmatpush1.msra.mxu0 0.0
  %2715 = vmatprep.subr.mxu0 0.0
  %2716 = vmatpush1.msra.mxu0 0.0
  %2717 = vmatprep.subr.mxu0 0.0
  %2718 = vmatpush1.msra.mxu0 0.0
  %2719 = vmatprep.subr.mxu0 0.0
  %2720 = vmatpush1.msra.mxu0 0.0
  %2721 = vmatprep.subr.mxu0 0.0
  %2722 = vmatpush1.msra.mxu0 0.0
  %2723 = vmatprep.subr.mxu0 0.0
  %2724 = vmatpush1.msra.mxu0 0.0
  %2725 = vmatprep.subr.mxu0 0.0
  %2726 = vmatpush1.msra.mxu0 0.0
  %2727 = vmatprep.subr.mxu0 0.0
  %2728 = vmatpush1.msra.mxu0 0.0
  %2729 = vmatprep.subr.mxu0 0.0
  %2730 = vmatpush1.msra.mxu0 0.0
  %2731 = vmatprep.subr.mxu0 0.0
  %2732 = vmatpush1.msra.mxu0 0.0
  %2733 = vmatprep.subr.mxu0 0.0
  %2734 = vmatpush1.msra.mxu0 0.0
  %2735 = vmatprep.subr.mxu0 0.0
  %2736 = vmatpush1.msra.mxu0 0.0
  %2737 = vmatprep.mubr.f32.mxu0 0.0
  %2738 = vmatmul.mubr.f32.gmra.mrb[0].mxu0 %v2669
  %v2739 = vpop.f32.mrb[0].mxu0
  %v2740 = vadd.f32 0.0, %v2739
  %v2741 = vpop.f32.mrb[0].mxu0
  %2742 = vdwg.mxu0
  %2745 = vset.pattern.permute.xlu0 0
  %2746 = vperm.xlu0 %2745, %v2445
  %v2747 = vpop.permute.xlu0 %2746
  %2748 = vset.pattern.permute.xlu0 0
  %2749 = vperm.xlu0 %2748, %v2447
  %v2750 = vpop.permute.xlu0 %2749
  %v2751 = vlaneseq
  %v2752 = vshrl.u32 %v2751, 7
  %v2753 = vsub.s32 %v515, %v2752
  %v2754 = vrot.slane %v2747, %v2753
  %v2755 = vlaneseq
  %v2756 = vshrl.u32 %v2755, 7
  %v2757 = vsub.s32 %v515, %v2756
  %v2758 = vrot.slane %v2750, %v2757
  %v2759 = vsel %vm580, %v2758, %v2754
  %2760 = vrot.lane.b32.xlu0 %v364, 60
  %v2761 = vpop.permute.xlu0 %2760
  %v2762 = vsel %vm1065, %v2759, 0
  %v2764 = vsel %vm1068, %v2761, 0
  %2766 = vmatprep.subr.mxu0 0.0
  %2767 = vmatpush1.msra.mxu0 %v2764
  %2768 = vmatprep.subr.mxu0 0.0
  %2769 = vmatpush1.msra.mxu0 0.0
  %2770 = vmatprep.subr.mxu0 0.0
  %2771 = vmatpush1.msra.mxu0 0.0
  %2772 = vmatprep.subr.mxu0 0.0
  %2773 = vmatpush1.msra.mxu0 0.0
  %2774 = vmatprep.subr.mxu0 0.0
  %2775 = vmatpush1.msra.mxu0 0.0
  %2776 = vmatprep.subr.mxu0 0.0
  %2777 = vmatpush1.msra.mxu0 0.0
  %2778 = vmatprep.subr.mxu0 0.0
  %2779 = vmatpush1.msra.mxu0 0.0
  %2780 = vmatprep.subr.mxu0 0.0
  %2781 = vmatpush1.msra.mxu0 0.0
  %2782 = vmatprep.subr.mxu0 0.0
  %2783 = vmatpush1.msra.mxu0 0.0
  %2784 = vmatprep.subr.mxu0 0.0
  %2785 = vmatpush1.msra.mxu0 0.0
  %2786 = vmatprep.subr.mxu0 0.0
  %2787 = vmatpush1.msra.mxu0 0.0
  %2788 = vmatprep.subr.mxu0 0.0
  %2789 = vmatpush1.msra.mxu0 0.0
  %2790 = vmatprep.subr.mxu0 0.0
  %2791 = vmatpush1.msra.mxu0 0.0
  %2792 = vmatprep.subr.mxu0 0.0
  %2793 = vmatpush1.msra.mxu0 0.0
  %2794 = vmatprep.subr.mxu0 0.0
  %2795 = vmatpush1.msra.mxu0 0.0
  %2796 = vmatprep.subr.mxu0 0.0
  %2797 = vmatpush1.msra.mxu0 0.0
  %2798 = vmatprep.subr.mxu0 0.0
  %2799 = vmatpush1.msra.mxu0 0.0
  %2800 = vmatprep.subr.mxu0 0.0
  %2801 = vmatpush1.msra.mxu0 0.0
  %2802 = vmatprep.subr.mxu0 0.0
  %2803 = vmatpush1.msra.mxu0 0.0
  %2804 = vmatprep.subr.mxu0 0.0
  %2805 = vmatpush1.msra.mxu0 0.0
  %2806 = vmatprep.subr.mxu0 0.0
  %2807 = vmatpush1.msra.mxu0 0.0
  %2808 = vmatprep.subr.mxu0 0.0
  %2809 = vmatpush1.msra.mxu0 0.0
  %2810 = vmatprep.subr.mxu0 0.0
  %2811 = vmatpush1.msra.mxu0 0.0
  %2812 = vmatprep.subr.mxu0 0.0
  %2813 = vmatpush1.msra.mxu0 0.0
  %2814 = vmatprep.subr.mxu0 0.0
  %2815 = vmatpush1.msra.mxu0 0.0
  %2816 = vmatprep.subr.mxu0 0.0
  %2817 = vmatpush1.msra.mxu0 0.0
  %2818 = vmatprep.subr.mxu0 0.0
  %2819 = vmatpush1.msra.mxu0 0.0
  %2820 = vmatprep.subr.mxu0 0.0
  %2821 = vmatpush1.msra.mxu0 0.0
  %2822 = vmatprep.subr.mxu0 0.0
  %2823 = vmatpush1.msra.mxu0 0.0
  %2824 = vmatprep.subr.mxu0 0.0
  %2825 = vmatpush1.msra.mxu0 0.0
  %2826 = vmatprep.subr.mxu0 0.0
  %2827 = vmatpush1.msra.mxu0 0.0
  %2828 = vmatprep.subr.mxu0 0.0
  %2829 = vmatpush1.msra.mxu0 0.0
  %2830 = vmatprep.mubr.f32.mxu0 0.0
  %2831 = vmatmul.mubr.f32.gmra.mrb[0].mxu0 %v2762
  %v2832 = vpop.f32.mrb[0].mxu0
  %v2833 = vadd.f32 0.0, %v2832
  %v2834 = vpop.f32.mrb[0].mxu0
  %2835 = vdwg.mxu0
  %2838 = vset.pattern.permute.xlu0 0
  %2839 = vperm.xlu0 %2838, %v2449
  %v2840 = vpop.permute.xlu0 %2839
  %2841 = vset.pattern.permute.xlu0 0
  %2842 = vperm.xlu0 %2841, %v2451
  %v2843 = vpop.permute.xlu0 %2842
  %v2844 = vlaneseq
  %v2845 = vshrl.u32 %v2844, 7
  %v2846 = vsub.s32 %v515, %v2845
  %v2847 = vrot.slane %v2840, %v2846
  %v2848 = vlaneseq
  %v2849 = vshrl.u32 %v2848, 7
  %v2850 = vsub.s32 %v515, %v2849
  %v2851 = vrot.slane %v2843, %v2850
  %v2852 = vsel %vm580, %v2851, %v2847
  %2853 = vrot.lane.b32.xlu0 %v371, 60
  %v2854 = vpop.permute.xlu0 %2853
  %v2855 = vsel %vm1065, %v2852, 0
  %v2857 = vsel %vm1068, %v2854, 0
  %2859 = vmatprep.subr.mxu0 0.0
  %2860 = vmatpush1.msra.mxu0 %v2857
  %2861 = vmatprep.subr.mxu0 0.0
  %2862 = vmatpush1.msra.mxu0 0.0
  %2863 = vmatprep.subr.mxu0 0.0
  %2864 = vmatpush1.msra.mxu0 0.0
  %2865 = vmatprep.subr.mxu0 0.0
  %2866 = vmatpush1.msra.mxu0 0.0
  %2867 = vmatprep.subr.mxu0 0.0
  %2868 = vmatpush1.msra.mxu0 0.0
  %2869 = vmatprep.subr.mxu0 0.0
  %2870 = vmatpush1.msra.mxu0 0.0
  %2871 = vmatprep.subr.mxu0 0.0
  %2872 = vmatpush1.msra.mxu0 0.0
  %2873 = vmatprep.subr.mxu0 0.0
  %2874 = vmatpush1.msra.mxu0 0.0
  %2875 = vmatprep.subr.mxu0 0.0
  %2876 = vmatpush1.msra.mxu0 0.0
  %2877 = vmatprep.subr.mxu0 0.0
  %2878 = vmatpush1.msra.mxu0 0.0
  %2879 = vmatprep.subr.mxu0 0.0
  %2880 = vmatpush1.msra.mxu0 0.0
  %2881 = vmatprep.subr.mxu0 0.0
  %2882 = vmatpush1.msra.mxu0 0.0
  %2883 = vmatprep.subr.mxu0 0.0
  %2884 = vmatpush1.msra.mxu0 0.0
  %2885 = vmatprep.subr.mxu0 0.0
  %2886 = vmatpush1.msra.mxu0 0.0
  %2887 = vmatprep.subr.mxu0 0.0
  %2888 = vmatpush1.msra.mxu0 0.0
  %2889 = vmatprep.subr.mxu0 0.0
  %2890 = vmatpush1.msra.mxu0 0.0
  %2891 = vmatprep.subr.mxu0 0.0
  %2892 = vmatpush1.msra.mxu0 0.0
  %2893 = vmatprep.subr.mxu0 0.0
  %2894 = vmatpush1.msra.mxu0 0.0
  %2895 = vmatprep.subr.mxu0 0.0
  %2896 = vmatpush1.msra.mxu0 0.0
  %2897 = vmatprep.subr.mxu0 0.0
  %2898 = vmatpush1.msra.mxu0 0.0
  %2899 = vmatprep.subr.mxu0 0.0
  %2900 = vmatpush1.msra.mxu0 0.0
  %2901 = vmatprep.subr.mxu0 0.0
  %2902 = vmatpush1.msra.mxu0 0.0
  %2903 = vmatprep.subr.mxu0 0.0
  %2904 = vmatpush1.msra.mxu0 0.0
  %2905 = vmatprep.subr.mxu0 0.0
  %2906 = vmatpush1.msra.mxu0 0.0
  %2907 = vmatprep.subr.mxu0 0.0
  %2908 = vmatpush1.msra.mxu0 0.0
  %2909 = vmatprep.subr.mxu0 0.0
  %2910 = vmatpush1.msra.mxu0 0.0
  %2911 = vmatprep.subr.mxu0 0.0
  %2912 = vmatpush1.msra.mxu0 0.0
  %2913 = vmatprep.subr.mxu0 0.0
  %2914 = vmatpush1.msra.mxu0 0.0
  %2915 = vmatprep.subr.mxu0 0.0
  %2916 = vmatpush1.msra.mxu0 0.0
  %2917 = vmatprep.subr.mxu0 0.0
  %2918 = vmatpush1.msra.mxu0 0.0
  %2919 = vmatprep.subr.mxu0 0.0
  %2920 = vmatpush1.msra.mxu0 0.0
  %2921 = vmatprep.subr.mxu0 0.0
  %2922 = vmatpush1.msra.mxu0 0.0
  %2923 = vmatprep.mubr.f32.mxu0 0.0
  %2924 = vmatmul.mubr.f32.gmra.mrb[0].mxu0 %v2855
  %v2925 = vpop.f32.mrb[0].mxu0
  %v2926 = vadd.f32 0.0, %v2925
  %v2927 = vpop.f32.mrb[0].mxu0
  %2928 = vdwg.mxu0
  %2931 = vset.pattern.permute.xlu0 0
  %2932 = vperm.xlu0 %2931, %v2453
  %v2933 = vpop.permute.xlu0 %2932
  %2934 = vset.pattern.permute.xlu0 0
  %2935 = vperm.xlu0 %2934, %v2455
  %v2936 = vpop.permute.xlu0 %2935
  %v2937 = vlaneseq
  %v2938 = vshrl.u32 %v2937, 7
  %v2939 = vsub.s32 %v515, %v2938
  %v2940 = vrot.slane %v2933, %v2939
  %v2941 = vlaneseq
  %v2942 = vshrl.u32 %v2941, 7
  %v2943 = vsub.s32 %v515, %v2942
  %v2944 = vrot.slane %v2936, %v2943
  %v2945 = vsel %vm580, %v2944, %v2940
  %2946 = vrot.lane.b32.xlu0 %v378, 60
  %v2947 = vpop.permute.xlu0 %2946
  %v2948 = vsel %vm1065, %v2945, 0
  %v2950 = vsel %vm1068, %v2947, 0
  %2952 = vmatprep.subr.mxu0 0.0
  %2953 = vmatpush1.msra.mxu0 %v2950
  %2954 = vmatprep.subr.mxu0 0.0
  %2955 = vmatpush1.msra.mxu0 0.0
  %2956 = vmatprep.subr.mxu0 0.0
  %2957 = vmatpush1.msra.mxu0 0.0
  %2958 = vmatprep.subr.mxu0 0.0
  %2959 = vmatpush1.msra.mxu0 0.0
  %2960 = vmatprep.subr.mxu0 0.0
  %2961 = vmatpush1.msra.mxu0 0.0
  %2962 = vmatprep.subr.mxu0 0.0
  %2963 = vmatpush1.msra.mxu0 0.0
  %2964 = vmatprep.subr.mxu0 0.0
  %2965 = vmatpush1.msra.mxu0 0.0
  %2966 = vmatprep.subr.mxu0 0.0
  %2967 = vmatpush1.msra.mxu0 0.0
  %2968 = vmatprep.subr.mxu0 0.0
  %2969 = vmatpush1.msra.mxu0 0.0
  %2970 = vmatprep.subr.mxu0 0.0
  %2971 = vmatpush1.msra.mxu0 0.0
  %2972 = vmatprep.subr.mxu0 0.0
  %2973 = vmatpush1.msra.mxu0 0.0
  %2974 = vmatprep.subr.mxu0 0.0
  %2975 = vmatpush1.msra.mxu0 0.0
  %2976 = vmatprep.subr.mxu0 0.0
  %2977 = vmatpush1.msra.mxu0 0.0
  %2978 = vmatprep.subr.mxu0 0.0
  %2979 = vmatpush1.msra.mxu0 0.0
  %2980 = vmatprep.subr.mxu0 0.0
  %2981 = vmatpush1.msra.mxu0 0.0
  %2982 = vmatprep.subr.mxu0 0.0
  %2983 = vmatpush1.msra.mxu0 0.0
  %2984 = vmatprep.subr.mxu0 0.0
  %2985 = vmatpush1.msra.mxu0 0.0
  %2986 = vmatprep.subr.mxu0 0.0
  %2987 = vmatpush1.msra.mxu0 0.0
  %2988 = vmatprep.subr.mxu0 0.0
  %2989 = vmatpush1.msra.mxu0 0.0
  %2990 = vmatprep.subr.mxu0 0.0
  %2991 = vmatpush1.msra.mxu0 0.0
  %2992 = vmatprep.subr.mxu0 0.0
  %2993 = vmatpush1.msra.mxu0 0.0
  %2994 = vmatprep.subr.mxu0 0.0
  %2995 = vmatpush1.msra.mxu0 0.0
  %2996 = vmatprep.subr.mxu0 0.0
  %2997 = vmatpush1.msra.mxu0 0.0
  %2998 = vmatprep.subr.mxu0 0.0
  %2999 = vmatpush1.msra.mxu0 0.0
  %3000 = vmatprep.subr.mxu0 0.0
  %3001 = vmatpush1.msra.mxu0 0.0
  %3002 = vmatprep.subr.mxu0 0.0
  %3003 = vmatpush1.msra.mxu0 0.0
  %3004 = vmatprep.subr.mxu0 0.0
  %3005 = vmatpush1.msra.mxu0 0.0
  %3006 = vmatprep.subr.mxu0 0.0
  %3007 = vmatpush1.msra.mxu0 0.0
  %3008 = vmatprep.subr.mxu0 0.0
  %3009 = vmatpush1.msra.mxu0 0.0
  %3010 = vmatprep.subr.mxu0 0.0
  %3011 = vmatpush1.msra.mxu0 0.0
  %3012 = vmatprep.subr.mxu0 0.0
  %3013 = vmatpush1.msra.mxu0 0.0
  %3014 = vmatprep.subr.mxu0 0.0
  %3015 = vmatpush1.msra.mxu0 0.0
  %3016 = vmatprep.mubr.f32.mxu0 0.0
  %3017 = vmatmul.mubr.f32.gmra.mrb[0].mxu0 %v2948
  %v3018 = vpop.f32.mrb[0].mxu0
  %v3019 = vadd.f32 0.0, %v3018
  %v3020 = vpop.f32.mrb[0].mxu0
  %3021 = vdwg.mxu0
  %3024 = vset.pattern.permute.xlu0 0
  %3025 = vperm.xlu0 %3024, %v2457
  %v3026 = vpop.permute.xlu0 %3025
  %3027 = vset.pattern.permute.xlu0 0
  %3028 = vperm.xlu0 %3027, %v2459
  %v3029 = vpop.permute.xlu0 %3028
  %v3030 = vlaneseq
  %v3031 = vshrl.u32 %v3030, 7
  %v3032 = vsub.s32 %v515, %v3031
  %v3033 = vrot.slane %v3026, %v3032
  %v3034 = vlaneseq
  %v3035 = vshrl.u32 %v3034, 7
  %v3036 = vsub.s32 %v515, %v3035
  %v3037 = vrot.slane %v3029, %v3036
  %v3038 = vsel %vm580, %v3037, %v3033
  %3039 = vrot.lane.b32.xlu0 %v385, 60
  %v3040 = vpop.permute.xlu0 %3039
  %v3041 = vsel %vm1065, %v3038, 0
  %v3043 = vsel %vm1068, %v3040, 0
  %3045 = vmatprep.subr.mxu0 0.0
  %3046 = vmatpush1.msra.mxu0 %v3043
  %3047 = vmatprep.subr.mxu0 0.0
  %3048 = vmatpush1.msra.mxu0 0.0
  %3049 = vmatprep.subr.mxu0 0.0
  %3050 = vmatpush1.msra.mxu0 0.0
  %3051 = vmatprep.subr.mxu0 0.0
  %3052 = vmatpush1.msra.mxu0 0.0
  %3053 = vmatprep.subr.mxu0 0.0
  %3054 = vmatpush1.msra.mxu0 0.0
  %3055 = vmatprep.subr.mxu0 0.0
  %3056 = vmatpush1.msra.mxu0 0.0
  %3057 = vmatprep.subr.mxu0 0.0
  %3058 = vmatpush1.msra.mxu0 0.0
  %3059 = vmatprep.subr.mxu0 0.0
  %3060 = vmatpush1.msra.mxu0 0.0
  %3061 = vmatprep.subr.mxu0 0.0
  %3062 = vmatpush1.msra.mxu0 0.0
  %3063 = vmatprep.subr.mxu0 0.0
  %3064 = vmatpush1.msra.mxu0 0.0
  %3065 = vmatprep.subr.mxu0 0.0
  %3066 = vmatpush1.msra.mxu0 0.0
  %3067 = vmatprep.subr.mxu0 0.0
  %3068 = vmatpush1.msra.mxu0 0.0
  %3069 = vmatprep.subr.mxu0 0.0
  %3070 = vmatpush1.msra.mxu0 0.0
  %3071 = vmatprep.subr.mxu0 0.0
  %3072 = vmatpush1.msra.mxu0 0.0
  %3073 = vmatprep.subr.mxu0 0.0
  %3074 = vmatpush1.msra.mxu0 0.0
  %3075 = vmatprep.subr.mxu0 0.0
  %3076 = vmatpush1.msra.mxu0 0.0
  %3077 = vmatprep.subr.mxu0 0.0
  %3078 = vmatpush1.msra.mxu0 0.0
  %3079 = vmatprep.subr.mxu0 0.0
  %3080 = vmatpush1.msra.mxu0 0.0
  %3081 = vmatprep.subr.mxu0 0.0
  %3082 = vmatpush1.msra.mxu0 0.0
  %3083 = vmatprep.subr.mxu0 0.0
  %3084 = vmatpush1.msra.mxu0 0.0
  %3085 = vmatprep.subr.mxu0 0.0
  %3086 = vmatpush1.msra.mxu0 0.0
  %3087 = vmatprep.subr.mxu0 0.0
  %3088 = vmatpush1.msra.mxu0 0.0
  %3089 = vmatprep.subr.mxu0 0.0
  %3090 = vmatpush1.msra.mxu0 0.0
  %3091 = vmatprep.subr.mxu0 0.0
  %3092 = vmatpush1.msra.mxu0 0.0
  %3093 = vmatprep.subr.mxu0 0.0
  %3094 = vmatpush1.msra.mxu0 0.0
  %3095 = vmatprep.subr.mxu0 0.0
  %3096 = vmatpush1.msra.mxu0 0.0
  %3097 = vmatprep.subr.mxu0 0.0
  %3098 = vmatpush1.msra.mxu0 0.0
  %3099 = vmatprep.subr.mxu0 0.0
  %3100 = vmatpush1.msra.mxu0 0.0
  %3101 = vmatprep.subr.mxu0 0.0
  %3102 = vmatpush1.msra.mxu0 0.0
  %3103 = vmatprep.subr.mxu0 0.0
  %3104 = vmatpush1.msra.mxu0 0.0
  %3105 = vmatprep.subr.mxu0 0.0
  %3106 = vmatpush1.msra.mxu0 0.0
  %3107 = vmatprep.subr.mxu0 0.0
  %3108 = vmatpush1.msra.mxu0 0.0
  %3109 = vmatprep.mubr.f32.mxu0 0.0
  %3110 = vmatmul.mubr.f32.gmra.mrb[0].mxu0 %v3041
  %v3111 = vpop.f32.mrb[0].mxu0
  %v3112 = vadd.f32 0.0, %v3111
  %v3113 = vpop.f32.mrb[0].mxu0
  %3114 = vdwg.mxu0
  %3117 = vset.pattern.permute.xlu0 0
  %3118 = vperm.xlu0 %3117, %v2461
  %v3119 = vpop.permute.xlu0 %3118
  %3120 = vset.pattern.permute.xlu0 0
  %3121 = vperm.xlu0 %3120, %v2463
  %v3122 = vpop.permute.xlu0 %3121
  %v3123 = vlaneseq
  %v3124 = vshrl.u32 %v3123, 7
  %v3125 = vsub.s32 %v515, %v3124
  %v3126 = vrot.slane %v3119, %v3125
  %v3127 = vlaneseq
  %v3128 = vshrl.u32 %v3127, 7
  %v3129 = vsub.s32 %v515, %v3128
  %v3130 = vrot.slane %v3122, %v3129
  %v3131 = vsel %vm580, %v3130, %v3126
  %3132 = vrot.lane.b32.xlu0 %v392, 60
  %v3133 = vpop.permute.xlu0 %3132
  %v3134 = vsel %vm1065, %v3131, 0
  %v3136 = vsel %vm1068, %v3133, 0
  %3138 = vmatprep.subr.mxu0 0.0
  %3139 = vmatpush1.msra.mxu0 %v3136
  %3140 = vmatprep.subr.mxu0 0.0
  %3141 = vmatpush1.msra.mxu0 0.0
  %3142 = vmatprep.subr.mxu0 0.0
  %3143 = vmatpush1.msra.mxu0 0.0
  %3144 = vmatprep.subr.mxu0 0.0
  %3145 = vmatpush1.msra.mxu0 0.0
  %3146 = vmatprep.subr.mxu0 0.0
  %3147 = vmatpush1.msra.mxu0 0.0
  %3148 = vmatprep.subr.mxu0 0.0
  %3149 = vmatpush1.msra.mxu0 0.0
  %3150 = vmatprep.subr.mxu0 0.0
  %3151 = vmatpush1.msra.mxu0 0.0
  %3152 = vmatprep.subr.mxu0 0.0
  %3153 = vmatpush1.msra.mxu0 0.0
  %3154 = vmatprep.subr.mxu0 0.0
  %3155 = vmatpush1.msra.mxu0 0.0
  %3156 = vmatprep.subr.mxu0 0.0
  %3157 = vmatpush1.msra.mxu0 0.0
  %3158 = vmatprep.subr.mxu0 0.0
  %3159 = vmatpush1.msra.mxu0 0.0
  %3160 = vmatprep.subr.mxu0 0.0
  %3161 = vmatpush1.msra.mxu0 0.0
  %3162 = vmatprep.subr.mxu0 0.0
  %3163 = vmatpush1.msra.mxu0 0.0
  %3164 = vmatprep.subr.mxu0 0.0
  %3165 = vmatpush1.msra.mxu0 0.0
  %3166 = vmatprep.subr.mxu0 0.0
  %3167 = vmatpush1.msra.mxu0 0.0
  %3168 = vmatprep.subr.mxu0 0.0
  %3169 = vmatpush1.msra.mxu0 0.0
  %3170 = vmatprep.subr.mxu0 0.0
  %3171 = vmatpush1.msra.mxu0 0.0
  %3172 = vmatprep.subr.mxu0 0.0
  %3173 = vmatpush1.msra.mxu0 0.0
  %3174 = vmatprep.subr.mxu0 0.0
  %3175 = vmatpush1.msra.mxu0 0.0
  %3176 = vmatprep.subr.mxu0 0.0
  %3177 = vmatpush1.msra.mxu0 0.0
  %3178 = vmatprep.subr.mxu0 0.0
  %3179 = vmatpush1.msra.mxu0 0.0
  %3180 = vmatprep.subr.mxu0 0.0
  %3181 = vmatpush1.msra.mxu0 0.0
  %3182 = vmatprep.subr.mxu0 0.0
  %3183 = vmatpush1.msra.mxu0 0.0
  %3184 = vmatprep.subr.mxu0 0.0
  %3185 = vmatpush1.msra.mxu0 0.0
  %3186 = vmatprep.subr.mxu0 0.0
  %3187 = vmatpush1.msra.mxu0 0.0
  %3188 = vmatprep.subr.mxu0 0.0
  %3189 = vmatpush1.msra.mxu0 0.0
  %3190 = vmatprep.subr.mxu0 0.0
  %3191 = vmatpush1.msra.mxu0 0.0
  %3192 = vmatprep.subr.mxu0 0.0
  %3193 = vmatpush1.msra.mxu0 0.0
  %3194 = vmatprep.subr.mxu0 0.0
  %3195 = vmatpush1.msra.mxu0 0.0
  %3196 = vmatprep.subr.mxu0 0.0
  %3197 = vmatpush1.msra.mxu0 0.0
  %3198 = vmatprep.subr.mxu0 0.0
  %3199 = vmatpush1.msra.mxu0 0.0
  %3200 = vmatprep.subr.mxu0 0.0
  %3201 = vmatpush1.msra.mxu0 0.0
  %3202 = vmatprep.mubr.f32.mxu0 0.0
  %3203 = vmatmul.mubr.f32.gmra.mrb[0].mxu0 %v3134
  %v3204 = vpop.f32.mrb[0].mxu0
  %v3205 = vadd.f32 0.0, %v3204
  %v3206 = vpop.f32.mrb[0].mxu0
  %3207 = vdwg.mxu0
  %v3216 = vcombine.low %v2554, %v2647
  %v3217 = vcombine.low %v2740, %v2833
  %v3219 = vunpack.c.l.s4 1983009808
  %v3220 = vunpack.c.0.s8 %v3219
  %v3221 = vlaneseq
  %v3222 = vshrl.u32 %v3221, 7
  %v3223 = vsub.s32 %v3220, %v3222
  %v3224 = vrot.slane %v3216, %v3223
  %v3226 = vunpack.c.l.s4 1983009808
  %v3227 = vunpack.c.0.s8 %v3226
  %v3228 = vlaneseq
  %v3229 = vshrl.u32 %v3228, 7
  %v3230 = vsub.s32 %v3227, %v3229
  %v3231 = vrot.slane %v3217, %v3230
  %v3232 = vcombine.low %v3224, %v3231
  %v3233 = vcombine.low %v2926, %v3019
  %v3234 = vcombine.low %v3112, %v3205
  %v3236 = vunpack.c.l.s4 1983009808
  %v3237 = vunpack.c.0.s8 %v3236
  %v3238 = vlaneseq
  %v3239 = vshrl.u32 %v3238, 7
  %v3240 = vsub.s32 %v3237, %v3239
  %v3241 = vrot.slane %v3233, %v3240
  %v3243 = vunpack.c.l.s4 1983009808
  %v3244 = vunpack.c.0.s8 %v3243
  %v3245 = vlaneseq
  %v3246 = vshrl.u32 %v3245, 7
  %v3247 = vsub.s32 %v3244, %v3246
  %v3248 = vrot.slane %v3234, %v3247
  %v3249 = vcombine.low %v3241, %v3248
  %v3251 = vrot.slane %v121, 4
  %vm3252 = vcmask 31744
  %v3253 = vsel %vm3252, %v3232, 0
  %v3255 = vsel %vm3252, %v3249, 0
  %vm3257 = vcmask 1043456
  %v3258 = vsel %vm3257, %v3251, 0
  %3260 = vmatprep.subr.mxu0 0.0
  %3261 = vmatpush1.msra.mxu0 %v3258
  %3262 = vmatprep.subr.mxu0 0.0
  %3263 = vmatpush1.msra.mxu0 0.0
  %3264 = vmatprep.subr.mxu0 0.0
  %3265 = vmatpush1.msra.mxu0 0.0
  %3266 = vmatprep.subr.mxu0 0.0
  %3267 = vmatpush1.msra.mxu0 0.0
  %3268 = vmatprep.subr.mxu0 0.0
  %3269 = vmatpush1.msra.mxu0 0.0
  %3270 = vmatprep.subr.mxu0 0.0
  %3271 = vmatpush1.msra.mxu0 0.0
  %3272 = vmatprep.subr.mxu0 0.0
  %3273 = vmatpush1.msra.mxu0 0.0
  %3274 = vmatprep.subr.mxu0 0.0
  %3275 = vmatpush1.msra.mxu0 0.0
  %3276 = vmatprep.subr.mxu0 0.0
  %3277 = vmatpush1.msra.mxu0 0.0
  %3278 = vmatprep.subr.mxu0 0.0
  %3279 = vmatpush1.msra.mxu0 0.0
  %3280 = vmatprep.subr.mxu0 0.0
  %3281 = vmatpush1.msra.mxu0 0.0
  %3282 = vmatprep.subr.mxu0 0.0
  %3283 = vmatpush1.msra.mxu0 0.0
  %3284 = vmatprep.subr.mxu0 0.0
  %3285 = vmatpush1.msra.mxu0 0.0
  %3286 = vmatprep.subr.mxu0 0.0
  %3287 = vmatpush1.msra.mxu0 0.0
  %3288 = vmatprep.subr.mxu0 0.0
  %3289 = vmatpush1.msra.mxu0 0.0
  %3290 = vmatprep.subr.mxu0 0.0
  %3291 = vmatpush1.msra.mxu0 0.0
  %3292 = vmatprep.subr.mxu0 0.0
  %3293 = vmatpush1.msra.mxu0 0.0
  %3294 = vmatprep.subr.mxu0 0.0
  %3295 = vmatpush1.msra.mxu0 0.0
  %3296 = vmatprep.subr.mxu0 0.0
  %3297 = vmatpush1.msra.mxu0 0.0
  %3298 = vmatprep.subr.mxu0 0.0
  %3299 = vmatpush1.msra.mxu0 0.0
  %3300 = vmatprep.subr.mxu0 0.0
  %3301 = vmatpush1.msra.mxu0 0.0
  %3302 = vmatprep.subr.mxu0 0.0
  %3303 = vmatpush1.msra.mxu0 0.0
  %3304 = vmatprep.subr.mxu0 0.0
  %3305 = vmatpush1.msra.mxu0 0.0
  %3306 = vmatprep.subr.mxu0 0.0
  %3307 = vmatpush1.msra.mxu0 0.0
  %3308 = vmatprep.subr.mxu0 0.0
  %3309 = vmatpush1.msra.mxu0 0.0
  %3310 = vmatprep.subr.mxu0 0.0
  %3311 = vmatpush1.msra.mxu0 0.0
  %3312 = vmatprep.subr.mxu0 0.0
  %3313 = vmatpush1.msra.mxu0 0.0
  %3314 = vmatprep.subr.mxu0 0.0
  %3315 = vmatpush1.msra.mxu0 0.0
  %3316 = vmatprep.subr.mxu0 0.0
  %3317 = vmatpush1.msra.mxu0 0.0
  %3318 = vmatprep.subr.mxu0 0.0
  %3319 = vmatpush1.msra.mxu0 0.0
  %3320 = vmatprep.subr.mxu0 0.0
  %3321 = vmatpush1.msra.mxu0 0.0
  %3322 = vmatprep.subr.mxu0 0.0
  %3323 = vmatpush1.msra.mxu0 0.0
  %3324 = vmatprep.mubr.f32.mxu0 0.0
  %3325 = vmatmul.mubr.f32.gmra.mrb[0].mxu0 %v3253
  %v3326 = vpop.f32.mrb[0].mxu0
  %v3327 = vadd.f32 0.0, %v3326
  %v3328 = vpop.f32.mrb[0].mxu0
  %3329 = vmatprep.mubr.f32.mxu0 0.0
  %3330 = vmatmul.mubr.f32.gmra.mrb[0].mxu0 %v3255
  %v3331 = vpop.f32.mrb[0].mxu0
  %v3332 = vadd.f32 0.0, %v3331
  %v3333 = vpop.f32.mrb[0].mxu0
  %3334 = vdwg.mxu0
  %v3343 = vcombine.low %v1138, %v1231
  %v3344 = vcombine.low %v1324, %v1417
  %v3346 = vunpack.c.l.s4 1983009808
  %v3347 = vunpack.c.0.s8 %v3346
  %v3348 = vlaneseq
  %v3349 = vshrl.u32 %v3348, 7
  %v3350 = vsub.s32 %v3347, %v3349
  %v3351 = vrot.slane %v3343, %v3350
  %v3353 = vunpack.c.l.s4 1983009808
  %v3354 = vunpack.c.0.s8 %v3353
  %v3355 = vlaneseq
  %v3356 = vshrl.u32 %v3355, 7
  %v3357 = vsub.s32 %v3354, %v3356
  %v3358 = vrot.slane %v3344, %v3357
  %v3359 = vcombine.low %v3351, %v3358
  %v3360 = vcombine.low %v1510, %v1603
  %v3361 = vcombine.low %v1696, %v1789
  %v3363 = vunpack.c.l.s4 1983009808
  %v3364 = vunpack.c.0.s8 %v3363
  %v3365 = vlaneseq
  %v3366 = vshrl.u32 %v3365, 7
  %v3367 = vsub.s32 %v3364, %v3366
  %v3368 = vrot.slane %v3360, %v3367
  %v3370 = vunpack.c.l.s4 1983009808
  %v3371 = vunpack.c.0.s8 %v3370
  %v3372 = vlaneseq
  %v3373 = vshrl.u32 %v3372, 7
  %v3374 = vsub.s32 %v3371, %v3373
  %v3375 = vrot.slane %v3361, %v3374
  %v3376 = vcombine.low %v3368, %v3375
  %v3377 = vsel %vm3252, %v3359, 0
  %v3379 = vsel %vm3252, %v3376, 0
  %v3381 = vsel %vm3257, %v121, 0
  %3383 = vmatprep.subr.mxu0 0.0
  %3384 = vmatpush1.msra.mxu0 %v3381
  %3385 = vmatprep.subr.mxu0 0.0
  %3386 = vmatpush1.msra.mxu0 0.0
  %3387 = vmatprep.subr.mxu0 0.0
  %3388 = vmatpush1.msra.mxu0 0.0
  %3389 = vmatprep.subr.mxu0 0.0
  %3390 = vmatpush1.msra.mxu0 0.0
  %3391 = vmatprep.subr.mxu0 0.0
  %3392 = vmatpush1.msra.mxu0 0.0
  %3393 = vmatprep.subr.mxu0 0.0
  %3394 = vmatpush1.msra.mxu0 0.0
  %3395 = vmatprep.subr.mxu0 0.0
  %3396 = vmatpush1.msra.mxu0 0.0
  %3397 = vmatprep.subr.mxu0 0.0
  %3398 = vmatpush1.msra.mxu0 0.0
  %3399 = vmatprep.subr.mxu0 0.0
  %3400 = vmatpush1.msra.mxu0 0.0
  %3401 = vmatprep.subr.mxu0 0.0
  %3402 = vmatpush1.msra.mxu0 0.0
  %3403 = vmatprep.subr.mxu0 0.0
  %3404 = vmatpush1.msra.mxu0 0.0
  %3405 = vmatprep.subr.mxu0 0.0
  %3406 = vmatpush1.msra.mxu0 0.0
  %3407 = vmatprep.subr.mxu0 0.0
  %3408 = vmatpush1.msra.mxu0 0.0
  %3409 = vmatprep.subr.mxu0 0.0
  %3410 = vmatpush1.msra.mxu0 0.0
  %3411 = vmatprep.subr.mxu0 0.0
  %3412 = vmatpush1.msra.mxu0 0.0
  %3413 = vmatprep.subr.mxu0 0.0
  %3414 = vmatpush1.msra.mxu0 0.0
  %3415 = vmatprep.subr.mxu0 0.0
  %3416 = vmatpush1.msra.mxu0 0.0
  %3417 = vmatprep.subr.mxu0 0.0
  %3418 = vmatpush1.msra.mxu0 0.0
  %3419 = vmatprep.subr.mxu0 0.0
  %3420 = vmatpush1.msra.mxu0 0.0
  %3421 = vmatprep.subr.mxu0 0.0
  %3422 = vmatpush1.msra.mxu0 0.0
  %3423 = vmatprep.subr.mxu0 0.0
  %3424 = vmatpush1.msra.mxu0 0.0
  %3425 = vmatprep.subr.mxu0 0.0
  %3426 = vmatpush1.msra.mxu0 0.0
  %3427 = vmatprep.subr.mxu0 0.0
  %3428 = vmatpush1.msra.mxu0 0.0
  %3429 = vmatprep.subr.mxu0 0.0
  %3430 = vmatpush1.msra.mxu0 0.0
  %3431 = vmatprep.subr.mxu0 0.0
  %3432 = vmatpush1.msra.mxu0 0.0
  %3433 = vmatprep.subr.mxu0 0.0
  %3434 = vmatpush1.msra.mxu0 0.0
  %3435 = vmatprep.subr.mxu0 0.0
  %3436 = vmatpush1.msra.mxu0 0.0
  %3437 = vmatprep.subr.mxu0 0.0
  %3438 = vmatpush1.msra.mxu0 0.0
  %3439 = vmatprep.subr.mxu0 0.0
  %3440 = vmatpush1.msra.mxu0 0.0
  %3441 = vmatprep.subr.mxu0 0.0
  %3442 = vmatpush1.msra.mxu0 0.0
  %3443 = vmatprep.subr.mxu0 0.0
  %3444 = vmatpush1.msra.mxu0 0.0
  %3445 = vmatprep.subr.mxu0 0.0
  %3446 = vmatpush1.msra.mxu0 0.0
  %3447 = vmatprep.mubr.f32.mxu0 0.0
  %3448 = vmatmul.mubr.f32.gmra.mrb[0].mxu0 %v3377
  %v3449 = vpop.f32.mrb[0].mxu0
  %v3450 = vadd.f32 %v3327, %v3449
  %v3451 = vpop.f32.mrb[0].mxu0
  %3452 = vmatprep.mubr.f32.mxu0 0.0
  %3453 = vmatmul.mubr.f32.gmra.mrb[0].mxu0 %v3379
  %v3454 = vpop.f32.mrb[0].mxu0
  %v3455 = vadd.f32 %v3332, %v3454
  %v3456 = vpop.f32.mrb[0].mxu0
  %3457 = vdwg.mxu0
  %3458 = vrot.lane.b32.xlu0 %v417, 120
  %v3459 = vpop.permute.xlu0 %3458
  %3460 = vrot.lane.b32.xlu0 %v418, 120
  %v3461 = vpop.permute.xlu0 %3460
  %3462 = vrot.lane.b32.xlu0 %v419, 120
  %v3463 = vpop.permute.xlu0 %3462
  %3464 = vrot.lane.b32.xlu0 %v420, 120
  %v3465 = vpop.permute.xlu0 %3464
  %3466 = vrot.lane.b32.xlu0 %v421, 120
  %v3467 = vpop.permute.xlu0 %3466
  %3468 = vrot.lane.b32.xlu0 %v422, 120
  %v3469 = vpop.permute.xlu0 %3468
  %3470 = vrot.lane.b32.xlu0 %v423, 120
  %v3471 = vpop.permute.xlu0 %3470
  %3472 = vrot.lane.b32.xlu0 %v424, 120
  %v3473 = vpop.permute.xlu0 %3472
  %3474 = vrot.lane.b32.xlu0 %v425, 120
  %v3475 = vpop.permute.xlu0 %3474
  %3476 = vrot.lane.b32.xlu0 %v426, 120
  %v3477 = vpop.permute.xlu0 %3476
  %3478 = vrot.lane.b32.xlu0 %v427, 120
  %v3479 = vpop.permute.xlu0 %3478
  %3480 = vrot.lane.b32.xlu0 %v428, 120
  %v3481 = vpop.permute.xlu0 %3480
  %3482 = vrot.lane.b32.xlu0 %v429, 120
  %v3483 = vpop.permute.xlu0 %3482
  %3484 = vrot.lane.b32.xlu0 %v430, 120
  %v3485 = vpop.permute.xlu0 %3484
  %3486 = vrot.lane.b32.xlu0 %v431, 120
  %v3487 = vpop.permute.xlu0 %3486
  %3488 = vrot.lane.b32.xlu0 %v432, 120
  %v3489 = vpop.permute.xlu0 %3488
  %v3506 = vsel %vm433, %v3459, 0.0
  %3507 = vadd.xlane.f32.xlu0 %v3506
  %v3508 = vpop.xlane.xlu0 %3507
  %v3509 = vsel %vm433, %v3461, 0.0
  %3510 = vadd.xlane.f32.xlu0 %v3509
  %v3511 = vpop.xlane.xlu0 %3510
  %v3512 = vsel %vm433, %v3463, 0.0
  %3513 = vadd.xlane.f32.xlu0 %v3512
  %v3514 = vpop.xlane.xlu0 %3513
  %v3515 = vsel %vm433, %v3465, 0.0
  %3516 = vadd.xlane.f32.xlu0 %v3515
  %v3517 = vpop.xlane.xlu0 %3516
  %v3518 = vsel %vm433, %v3467, 0.0
  %3519 = vadd.xlane.f32.xlu0 %v3518
  %v3520 = vpop.xlane.xlu0 %3519
  %v3521 = vsel %vm433, %v3469, 0.0
  %3522 = vadd.xlane.f32.xlu0 %v3521
  %v3523 = vpop.xlane.xlu0 %3522
  %v3524 = vsel %vm433, %v3471, 0.0
  %3525 = vadd.xlane.f32.xlu0 %v3524
  %v3526 = vpop.xlane.xlu0 %3525
  %v3527 = vsel %vm433, %v3473, 0.0
  %3528 = vadd.xlane.f32.xlu0 %v3527
  %v3529 = vpop.xlane.xlu0 %3528
  %v3530 = vsel %vm433, %v3475, 0.0
  %3531 = vadd.xlane.f32.xlu0 %v3530
  %v3532 = vpop.xlane.xlu0 %3531
  %v3533 = vsel %vm433, %v3477, 0.0
  %3534 = vadd.xlane.f32.xlu0 %v3533
  %v3535 = vpop.xlane.xlu0 %3534
  %v3536 = vsel %vm433, %v3479, 0.0
  %3537 = vadd.xlane.f32.xlu0 %v3536
  %v3538 = vpop.xlane.xlu0 %3537
  %v3539 = vsel %vm433, %v3481, 0.0
  %3540 = vadd.xlane.f32.xlu0 %v3539
  %v3541 = vpop.xlane.xlu0 %3540
  %v3542 = vsel %vm433, %v3483, 0.0
  %3543 = vadd.xlane.f32.xlu0 %v3542
  %v3544 = vpop.xlane.xlu0 %3543
  %v3545 = vsel %vm433, %v3485, 0.0
  %3546 = vadd.xlane.f32.xlu0 %v3545
  %v3547 = vpop.xlane.xlu0 %3546
  %v3548 = vsel %vm433, %v3487, 0.0
  %3549 = vadd.xlane.f32.xlu0 %v3548
  %v3550 = vpop.xlane.xlu0 %3549
  %v3551 = vsel %vm433, %v3489, 0.0
  %3552 = vadd.xlane.f32.xlu0 %v3551
  %v3553 = vpop.xlane.xlu0 %3552
  %v3554 = vmul.f32 %v3508, 0.5
  %v3555 = vmul.f32 %v3511, 0.5
  %v3556 = vmul.f32 %v3514, 0.5
  %v3557 = vmul.f32 %v3517, 0.5
  %v3558 = vmul.f32 %v3520, 0.5
  %v3559 = vmul.f32 %v3523, 0.5
  %v3560 = vmul.f32 %v3526, 0.5
  %v3561 = vmul.f32 %v3529, 0.5
  %v3562 = vmul.f32 %v3532, 0.5
  %v3563 = vmul.f32 %v3535, 0.5
  %v3564 = vmul.f32 %v3538, 0.5
  %v3565 = vmul.f32 %v3541, 0.5
  %v3566 = vmul.f32 %v3544, 0.5
  %v3567 = vmul.f32 %v3547, 0.5
  %v3568 = vmul.f32 %v3550, 0.5
  %v3569 = vmul.f32 %v3553, 0.5
  %v3586 = vlaneseq
  %v3587 = vshrl.u32 %v3586, 7
  %v3588 = vsub.s32 %v515, %v3587
  %v3589 = vrot.slane %v3554, %v3588
  %v3590 = vlaneseq
  %v3591 = vshrl.u32 %v3590, 7
  %v3592 = vsub.s32 %v515, %v3591
  %v3593 = vrot.slane %v3555, %v3592
  %v3594 = vlaneseq
  %v3595 = vshrl.u32 %v3594, 7
  %v3596 = vsub.s32 %v515, %v3595
  %v3597 = vrot.slane %v3556, %v3596
  %v3598 = vlaneseq
  %v3599 = vshrl.u32 %v3598, 7
  %v3600 = vsub.s32 %v515, %v3599
  %v3601 = vrot.slane %v3557, %v3600
  %v3602 = vlaneseq
  %v3603 = vshrl.u32 %v3602, 7
  %v3604 = vsub.s32 %v515, %v3603
  %v3605 = vrot.slane %v3558, %v3604
  %v3606 = vlaneseq
  %v3607 = vshrl.u32 %v3606, 7
  %v3608 = vsub.s32 %v515, %v3607
  %v3609 = vrot.slane %v3559, %v3608
  %v3610 = vlaneseq
  %v3611 = vshrl.u32 %v3610, 7
  %v3612 = vsub.s32 %v515, %v3611
  %v3613 = vrot.slane %v3560, %v3612
  %v3614 = vlaneseq
  %v3615 = vshrl.u32 %v3614, 7
  %v3616 = vsub.s32 %v515, %v3615
  %v3617 = vrot.slane %v3561, %v3616
  %v3618 = vlaneseq
  %v3619 = vshrl.u32 %v3618, 7
  %v3620 = vsub.s32 %v515, %v3619
  %v3621 = vrot.slane %v3562, %v3620
  %v3622 = vlaneseq
  %v3623 = vshrl.u32 %v3622, 7
  %v3624 = vsub.s32 %v515, %v3623
  %v3625 = vrot.slane %v3563, %v3624
  %v3626 = vlaneseq
  %v3627 = vshrl.u32 %v3626, 7
  %v3628 = vsub.s32 %v515, %v3627
  %v3629 = vrot.slane %v3564, %v3628
  %v3630 = vlaneseq
  %v3631 = vshrl.u32 %v3630, 7
  %v3632 = vsub.s32 %v515, %v3631
  %v3633 = vrot.slane %v3565, %v3632
  %v3634 = vlaneseq
  %v3635 = vshrl.u32 %v3634, 7
  %v3636 = vsub.s32 %v515, %v3635
  %v3637 = vrot.slane %v3566, %v3636
  %v3638 = vlaneseq
  %v3639 = vshrl.u32 %v3638, 7
  %v3640 = vsub.s32 %v515, %v3639
  %v3641 = vrot.slane %v3567, %v3640
  %v3642 = vlaneseq
  %v3643 = vshrl.u32 %v3642, 7
  %v3644 = vsub.s32 %v515, %v3643
  %v3645 = vrot.slane %v3568, %v3644
  %v3646 = vlaneseq
  %v3647 = vshrl.u32 %v3646, 7
  %v3648 = vsub.s32 %v515, %v3647
  %v3649 = vrot.slane %v3569, %v3648
  %v3650 = vsel %vm580, %v3593, %v3589
  %v3651 = vsel %vm580, %v3601, %v3597
  %v3652 = vsel %vm580, %v3609, %v3605
  %v3653 = vsel %vm580, %v3617, %v3613
  %v3654 = vsel %vm580, %v3625, %v3621
  %v3655 = vsel %vm580, %v3633, %v3629
  %v3656 = vsel %vm580, %v3641, %v3637
  %v3657 = vsel %vm580, %v3649, %v3645
  %v3666 = vsel %vm597, %v3650, -inf
  %3667 = vmax.xlane.f32.xlu0 %v3666
  %v3668 = vpop.xlane.xlu0 %3667
  %v3669 = vsel %vm597, %v3651, -inf
  %3670 = vmax.xlane.f32.xlu0 %v3669
  %v3671 = vpop.xlane.xlu0 %3670
  %v3672 = vsel %vm597, %v3652, -inf
  %3673 = vmax.xlane.f32.xlu0 %v3672
  %v3674 = vpop.xlane.xlu0 %3673
  %v3675 = vsel %vm597, %v3653, -inf
  %3676 = vmax.xlane.f32.xlu0 %v3675
  %v3677 = vpop.xlane.xlu0 %3676
  %v3678 = vsel %vm597, %v3654, -inf
  %3679 = vmax.xlane.f32.xlu0 %v3678
  %v3680 = vpop.xlane.xlu0 %3679
  %v3681 = vsel %vm597, %v3655, -inf
  %3682 = vmax.xlane.f32.xlu0 %v3681
  %v3683 = vpop.xlane.xlu0 %3682
  %v3684 = vsel %vm597, %v3656, -inf
  %3685 = vmax.xlane.f32.xlu0 %v3684
  %v3686 = vpop.xlane.xlu0 %3685
  %v3687 = vsel %vm597, %v3657, -inf
  %3688 = vmax.xlane.f32.xlu0 %v3687
  %v3689 = vpop.xlane.xlu0 %3688
  %v3698 = vlaneseq
  %v3699 = vshrl.u32 %v3698, 7
  %v3700 = vsub.s32 0, %v3699
  %v3701 = vrot.slane %v3668, %v3700
  %v3702 = vlaneseq
  %v3703 = vshrl.u32 %v3702, 7
  %v3704 = vsub.s32 1, %v3703
  %v3705 = vrot.slane %v3668, %v3704
  %v3706 = vlaneseq
  %v3707 = vshrl.u32 %v3706, 7
  %v3708 = vsub.s32 0, %v3707
  %v3709 = vrot.slane %v3671, %v3708
  %v3710 = vlaneseq
  %v3711 = vshrl.u32 %v3710, 7
  %v3712 = vsub.s32 1, %v3711
  %v3713 = vrot.slane %v3671, %v3712
  %v3714 = vlaneseq
  %v3715 = vshrl.u32 %v3714, 7
  %v3716 = vsub.s32 0, %v3715
  %v3717 = vrot.slane %v3674, %v3716
  %v3718 = vlaneseq
  %v3719 = vshrl.u32 %v3718, 7
  %v3720 = vsub.s32 1, %v3719
  %v3721 = vrot.slane %v3674, %v3720
  %v3722 = vlaneseq
  %v3723 = vshrl.u32 %v3722, 7
  %v3724 = vsub.s32 0, %v3723
  %v3725 = vrot.slane %v3677, %v3724
  %v3726 = vlaneseq
  %v3727 = vshrl.u32 %v3726, 7
  %v3728 = vsub.s32 1, %v3727
  %v3729 = vrot.slane %v3677, %v3728
  %v3730 = vlaneseq
  %v3731 = vshrl.u32 %v3730, 7
  %v3732 = vsub.s32 0, %v3731
  %v3733 = vrot.slane %v3680, %v3732
  %v3734 = vlaneseq
  %v3735 = vshrl.u32 %v3734, 7
  %v3736 = vsub.s32 1, %v3735
  %v3737 = vrot.slane %v3680, %v3736
  %v3738 = vlaneseq
  %v3739 = vshrl.u32 %v3738, 7
  %v3740 = vsub.s32 0, %v3739
  %v3741 = vrot.slane %v3683, %v3740
  %v3742 = vlaneseq
  %v3743 = vshrl.u32 %v3742, 7
  %v3744 = vsub.s32 1, %v3743
  %v3745 = vrot.slane %v3683, %v3744
  %v3746 = vlaneseq
  %v3747 = vshrl.u32 %v3746, 7
  %v3748 = vsub.s32 0, %v3747
  %v3749 = vrot.slane %v3686, %v3748
  %v3750 = vlaneseq
  %v3751 = vshrl.u32 %v3750, 7
  %v3752 = vsub.s32 1, %v3751
  %v3753 = vrot.slane %v3686, %v3752
  %v3754 = vlaneseq
  %v3755 = vshrl.u32 %v3754, 7
  %v3756 = vsub.s32 0, %v3755
  %v3757 = vrot.slane %v3689, %v3756
  %v3758 = vlaneseq
  %v3759 = vshrl.u32 %v3758, 7
  %v3760 = vsub.s32 1, %v3759
  %v3761 = vrot.slane %v3689, %v3760
  %v3778 = vsub.f32 %v3554, %v3701
  %v3779 = vsub.f32 %v3555, %v3705
  %v3780 = vsub.f32 %v3556, %v3709
  %v3781 = vsub.f32 %v3557, %v3713
  %v3782 = vsub.f32 %v3558, %v3717
  %v3783 = vsub.f32 %v3559, %v3721
  %v3784 = vsub.f32 %v3560, %v3725
  %v3785 = vsub.f32 %v3561, %v3729
  %v3786 = vsub.f32 %v3562, %v3733
  %v3787 = vsub.f32 %v3563, %v3737
  %v3788 = vsub.f32 %v3564, %v3741
  %v3789 = vsub.f32 %v3565, %v3745
  %v3790 = vsub.f32 %v3566, %v3749
  %v3791 = vsub.f32 %v3567, %v3753
  %v3792 = vsub.f32 %v3568, %v3757
  %v3793 = vsub.f32 %v3569, %v3761
  %v3794 = vmul.f32 %v3778, 1.442695
  %v3795 = vpow.pop %v3794
  %v3796 = vmul.f32 %v3779, 1.442695
  %v3797 = vpow.pop %v3796
  %v3798 = vmul.f32 %v3780, 1.442695
  %v3799 = vpow.pop %v3798
  %v3800 = vmul.f32 %v3781, 1.442695
  %v3801 = vpow.pop %v3800
  %v3802 = vmul.f32 %v3782, 1.442695
  %v3803 = vpow.pop %v3802
  %v3804 = vmul.f32 %v3783, 1.442695
  %v3805 = vpow.pop %v3804
  %v3806 = vmul.f32 %v3784, 1.442695
  %v3807 = vpow.pop %v3806
  %v3808 = vmul.f32 %v3785, 1.442695
  %v3809 = vpow.pop %v3808
  %v3810 = vmul.f32 %v3786, 1.442695
  %v3811 = vpow.pop %v3810
  %v3812 = vmul.f32 %v3787, 1.442695
  %v3813 = vpow.pop %v3812
  %v3814 = vmul.f32 %v3788, 1.442695
  %v3815 = vpow.pop %v3814
  %v3816 = vmul.f32 %v3789, 1.442695
  %v3817 = vpow.pop %v3816
  %v3818 = vmul.f32 %v3790, 1.442695
  %v3819 = vpow.pop %v3818
  %v3820 = vmul.f32 %v3791, 1.442695
  %v3821 = vpow.pop %v3820
  %v3822 = vmul.f32 %v3792, 1.442695
  %v3823 = vpow.pop %v3822
  %v3824 = vmul.f32 %v3793, 1.442695
  %v3825 = vpow.pop %v3824
  %3842 = vset.pattern.permute.xlu0 0
  %3843 = vperm.xlu0 %3842, %v3795
  %v3844 = vpop.permute.xlu0 %3843
  %3845 = vset.pattern.permute.xlu0 0
  %3846 = vperm.xlu0 %3845, %v3797
  %v3847 = vpop.permute.xlu0 %3846
  %3848 = vset.pattern.permute.xlu0 0
  %3849 = vperm.xlu0 %3848, %v3799
  %v3850 = vpop.permute.xlu0 %3849
  %3851 = vset.pattern.permute.xlu0 0
  %3852 = vperm.xlu0 %3851, %v3801
  %v3853 = vpop.permute.xlu0 %3852
  %3854 = vset.pattern.permute.xlu0 0
  %3855 = vperm.xlu0 %3854, %v3803
  %v3856 = vpop.permute.xlu0 %3855
  %3857 = vset.pattern.permute.xlu0 0
  %3858 = vperm.xlu0 %3857, %v3805
  %v3859 = vpop.permute.xlu0 %3858
  %3860 = vset.pattern.permute.xlu0 0
  %3861 = vperm.xlu0 %3860, %v3807
  %v3862 = vpop.permute.xlu0 %3861
  %3863 = vset.pattern.permute.xlu0 0
  %3864 = vperm.xlu0 %3863, %v3809
  %v3865 = vpop.permute.xlu0 %3864
  %3866 = vset.pattern.permute.xlu0 0
  %3867 = vperm.xlu0 %3866, %v3811
  %v3868 = vpop.permute.xlu0 %3867
  %3869 = vset.pattern.permute.xlu0 0
  %3870 = vperm.xlu0 %3869, %v3813
  %v3871 = vpop.permute.xlu0 %3870
  %3872 = vset.pattern.permute.xlu0 0
  %3873 = vperm.xlu0 %3872, %v3815
  %v3874 = vpop.permute.xlu0 %3873
  %3875 = vset.pattern.permute.xlu0 0
  %3876 = vperm.xlu0 %3875, %v3817
  %v3877 = vpop.permute.xlu0 %3876
  %3878 = vset.pattern.permute.xlu0 0
  %3879 = vperm.xlu0 %3878, %v3819
  %v3880 = vpop.permute.xlu0 %3879
  %3881 = vset.pattern.permute.xlu0 0
  %3882 = vperm.xlu0 %3881, %v3821
  %v3883 = vpop.permute.xlu0 %3882
  %3884 = vset.pattern.permute.xlu0 0
  %3885 = vperm.xlu0 %3884, %v3823
  %v3886 = vpop.permute.xlu0 %3885
  %3887 = vset.pattern.permute.xlu0 0
  %3888 = vperm.xlu0 %3887, %v3825
  %v3889 = vpop.permute.xlu0 %3888
  %v3890 = vlaneseq
  %v3891 = vshrl.u32 %v3890, 7
  %v3892 = vsub.s32 %v515, %v3891
  %v3893 = vrot.slane %v3844, %v3892
  %v3894 = vlaneseq
  %v3895 = vshrl.u32 %v3894, 7
  %v3896 = vsub.s32 %v515, %v3895
  %v3897 = vrot.slane %v3847, %v3896
  %v3898 = vlaneseq
  %v3899 = vshrl.u32 %v3898, 7
  %v3900 = vsub.s32 %v515, %v3899
  %v3901 = vrot.slane %v3850, %v3900
  %v3902 = vlaneseq
  %v3903 = vshrl.u32 %v3902, 7
  %v3904 = vsub.s32 %v515, %v3903
  %v3905 = vrot.slane %v3853, %v3904
  %v3906 = vlaneseq
  %v3907 = vshrl.u32 %v3906, 7
  %v3908 = vsub.s32 %v515, %v3907
  %v3909 = vrot.slane %v3856, %v3908
  %v3910 = vlaneseq
  %v3911 = vshrl.u32 %v3910, 7
  %v3912 = vsub.s32 %v515, %v3911
  %v3913 = vrot.slane %v3859, %v3912
  %v3914 = vlaneseq
  %v3915 = vshrl.u32 %v3914, 7
  %v3916 = vsub.s32 %v515, %v3915
  %v3917 = vrot.slane %v3862, %v3916
  %v3918 = vlaneseq
  %v3919 = vshrl.u32 %v3918, 7
  %v3920 = vsub.s32 %v515, %v3919
  %v3921 = vrot.slane %v3865, %v3920
  %v3922 = vlaneseq
  %v3923 = vshrl.u32 %v3922, 7
  %v3924 = vsub.s32 %v515, %v3923
  %v3925 = vrot.slane %v3868, %v3924
  %v3926 = vlaneseq
  %v3927 = vshrl.u32 %v3926, 7
  %v3928 = vsub.s32 %v515, %v3927
  %v3929 = vrot.slane %v3871, %v3928
  %v3930 = vlaneseq
  %v3931 = vshrl.u32 %v3930, 7
  %v3932 = vsub.s32 %v515, %v3931
  %v3933 = vrot.slane %v3874, %v3932
  %v3934 = vlaneseq
  %v3935 = vshrl.u32 %v3934, 7
  %v3936 = vsub.s32 %v515, %v3935
  %v3937 = vrot.slane %v3877, %v3936
  %v3938 = vlaneseq
  %v3939 = vshrl.u32 %v3938, 7
  %v3940 = vsub.s32 %v515, %v3939
  %v3941 = vrot.slane %v3880, %v3940
  %v3942 = vlaneseq
  %v3943 = vshrl.u32 %v3942, 7
  %v3944 = vsub.s32 %v515, %v3943
  %v3945 = vrot.slane %v3883, %v3944
  %v3946 = vlaneseq
  %v3947 = vshrl.u32 %v3946, 7
  %v3948 = vsub.s32 %v515, %v3947
  %v3949 = vrot.slane %v3886, %v3948
  %v3950 = vlaneseq
  %v3951 = vshrl.u32 %v3950, 7
  %v3952 = vsub.s32 %v515, %v3951
  %v3953 = vrot.slane %v3889, %v3952
  %v3954 = vsel %vm580, %v3897, %v3893
  %v3955 = vsel %vm580, %v3905, %v3901
  %v3956 = vsel %vm580, %v3913, %v3909
  %v3957 = vsel %vm580, %v3921, %v3917
  %v3958 = vsel %vm580, %v3929, %v3925
  %v3959 = vsel %vm580, %v3937, %v3933
  %v3960 = vsel %vm580, %v3945, %v3941
  %v3961 = vsel %vm580, %v3953, %v3949
  %v3970 = vsel %vm597, %v3954, 0.0
  %3971 = vadd.xlane.f32.xlu0 %v3970
  %v3972 = vpop.xlane.xlu0 %3971
  %v3973 = vsel %vm597, %v3955, 0.0
  %3974 = vadd.xlane.f32.xlu0 %v3973
  %v3975 = vpop.xlane.xlu0 %3974
  %v3976 = vsel %vm597, %v3956, 0.0
  %3977 = vadd.xlane.f32.xlu0 %v3976
  %v3978 = vpop.xlane.xlu0 %3977
  %v3979 = vsel %vm597, %v3957, 0.0
  %3980 = vadd.xlane.f32.xlu0 %v3979
  %v3981 = vpop.xlane.xlu0 %3980
  %v3982 = vsel %vm597, %v3958, 0.0
  %3983 = vadd.xlane.f32.xlu0 %v3982
  %v3984 = vpop.xlane.xlu0 %3983
  %v3985 = vsel %vm597, %v3959, 0.0
  %3986 = vadd.xlane.f32.xlu0 %v3985
  %v3987 = vpop.xlane.xlu0 %3986
  %v3988 = vsel %vm597, %v3960, 0.0
  %3989 = vadd.xlane.f32.xlu0 %v3988
  %v3990 = vpop.xlane.xlu0 %3989
  %v3991 = vsel %vm597, %v3961, 0.0
  %3992 = vadd.xlane.f32.xlu0 %v3991
  %v3993 = vpop.xlane.xlu0 %3992
  %v4002 = vlaneseq
  %v4003 = vshrl.u32 %v4002, 7
  %v4004 = vsub.s32 0, %v4003
  %v4005 = vrot.slane %v3972, %v4004
  %v4006 = vlaneseq
  %v4007 = vshrl.u32 %v4006, 7
  %v4008 = vsub.s32 1, %v4007
  %v4009 = vrot.slane %v3972, %v4008
  %v4010 = vlaneseq
  %v4011 = vshrl.u32 %v4010, 7
  %v4012 = vsub.s32 0, %v4011
  %v4013 = vrot.slane %v3975, %v4012
  %v4014 = vlaneseq
  %v4015 = vshrl.u32 %v4014, 7
  %v4016 = vsub.s32 1, %v4015
  %v4017 = vrot.slane %v3975, %v4016
  %v4018 = vlaneseq
  %v4019 = vshrl.u32 %v4018, 7
  %v4020 = vsub.s32 0, %v4019
  %v4021 = vrot.slane %v3978, %v4020
  %v4022 = vlaneseq
  %v4023 = vshrl.u32 %v4022, 7
  %v4024 = vsub.s32 1, %v4023
  %v4025 = vrot.slane %v3978, %v4024
  %v4026 = vlaneseq
  %v4027 = vshrl.u32 %v4026, 7
  %v4028 = vsub.s32 0, %v4027
  %v4029 = vrot.slane %v3981, %v4028
  %v4030 = vlaneseq
  %v4031 = vshrl.u32 %v4030, 7
  %v4032 = vsub.s32 1, %v4031
  %v4033 = vrot.slane %v3981, %v4032
  %v4034 = vlaneseq
  %v4035 = vshrl.u32 %v4034, 7
  %v4036 = vsub.s32 0, %v4035
  %v4037 = vrot.slane %v3984, %v4036
  %v4038 = vlaneseq
  %v4039 = vshrl.u32 %v4038, 7
  %v4040 = vsub.s32 1, %v4039
  %v4041 = vrot.slane %v3984, %v4040
  %v4042 = vlaneseq
  %v4043 = vshrl.u32 %v4042, 7
  %v4044 = vsub.s32 0, %v4043
  %v4045 = vrot.slane %v3987, %v4044
  %v4046 = vlaneseq
  %v4047 = vshrl.u32 %v4046, 7
  %v4048 = vsub.s32 1, %v4047
  %v4049 = vrot.slane %v3987, %v4048
  %v4050 = vlaneseq
  %v4051 = vshrl.u32 %v4050, 7
  %v4052 = vsub.s32 0, %v4051
  %v4053 = vrot.slane %v3990, %v4052
  %v4054 = vlaneseq
  %v4055 = vshrl.u32 %v4054, 7
  %v4056 = vsub.s32 1, %v4055
  %v4057 = vrot.slane %v3990, %v4056
  %v4058 = vlaneseq
  %v4059 = vshrl.u32 %v4058, 7
  %v4060 = vsub.s32 0, %v4059
  %v4061 = vrot.slane %v3993, %v4060
  %v4062 = vlaneseq
  %v4063 = vshrl.u32 %v4062, 7
  %v4064 = vsub.s32 1, %v4063
  %v4065 = vrot.slane %v3993, %v4064
  %v4082 = vrcp.pop %v4005
  %v4083 = vmul.f32 %v3795, %v4082
  %v4084 = vrcp.pop %v4009
  %v4085 = vmul.f32 %v3797, %v4084
  %v4086 = vrcp.pop %v4013
  %v4087 = vmul.f32 %v3799, %v4086
  %v4088 = vrcp.pop %v4017
  %v4089 = vmul.f32 %v3801, %v4088
  %v4090 = vrcp.pop %v4021
  %v4091 = vmul.f32 %v3803, %v4090
  %v4092 = vrcp.pop %v4025
  %v4093 = vmul.f32 %v3805, %v4092
  %v4094 = vrcp.pop %v4029
  %v4095 = vmul.f32 %v3807, %v4094
  %v4096 = vrcp.pop %v4033
  %v4097 = vmul.f32 %v3809, %v4096
  %v4098 = vrcp.pop %v4037
  %v4099 = vmul.f32 %v3811, %v4098
  %v4100 = vrcp.pop %v4041
  %v4101 = vmul.f32 %v3813, %v4100
  %v4102 = vrcp.pop %v4045
  %v4103 = vmul.f32 %v3815, %v4102
  %v4104 = vrcp.pop %v4049
  %v4105 = vmul.f32 %v3817, %v4104
  %v4106 = vrcp.pop %v4053
  %v4107 = vmul.f32 %v3819, %v4106
  %v4108 = vrcp.pop %v4057
  %v4109 = vmul.f32 %v3821, %v4108
  %v4110 = vrcp.pop %v4061
  %v4111 = vmul.f32 %v3823, %v4110
  %v4112 = vrcp.pop %v4065
  %v4113 = vmul.f32 %v3825, %v4112
  %4116 = vset.pattern.permute.xlu0 0
  %4117 = vperm.xlu0 %4116, %v4083
  %v4118 = vpop.permute.xlu0 %4117
  %4119 = vset.pattern.permute.xlu0 0
  %4120 = vperm.xlu0 %4119, %v4085
  %v4121 = vpop.permute.xlu0 %4120
  %v4122 = vlaneseq
  %v4123 = vshrl.u32 %v4122, 7
  %v4124 = vsub.s32 %v515, %v4123
  %v4125 = vrot.slane %v4118, %v4124
  %v4126 = vlaneseq
  %v4127 = vshrl.u32 %v4126, 7
  %v4128 = vsub.s32 %v515, %v4127
  %v4129 = vrot.slane %v4121, %v4128
  %v4130 = vsel %vm580, %v4129, %v4125
  %4131 = vrot.lane.b32.xlu0 %v343, 56
  %v4132 = vpop.permute.xlu0 %4131
  %v4133 = vsel %vm1065, %v4130, 0
  %v4135 = vsel %vm1068, %v4132, 0
  %4137 = vmatprep.subr.mxu0 0.0
  %4138 = vmatpush1.msra.mxu0 %v4135
  %4139 = vmatprep.subr.mxu0 0.0
  %4140 = vmatpush1.msra.mxu0 0.0
  %4141 = vmatprep.subr.mxu0 0.0
  %4142 = vmatpush1.msra.mxu0 0.0
  %4143 = vmatprep.subr.mxu0 0.0
  %4144 = vmatpush1.msra.mxu0 0.0
  %4145 = vmatprep.subr.mxu0 0.0
  %4146 = vmatpush1.msra.mxu0 0.0
  %4147 = vmatprep.subr.mxu0 0.0
  %4148 = vmatpush1.msra.mxu0 0.0
  %4149 = vmatprep.subr.mxu0 0.0
  %4150 = vmatpush1.msra.mxu0 0.0
  %4151 = vmatprep.subr.mxu0 0.0
  %4152 = vmatpush1.msra.mxu0 0.0
  %4153 = vmatprep.subr.mxu0 0.0
  %4154 = vmatpush1.msra.mxu0 0.0
  %4155 = vmatprep.subr.mxu0 0.0
  %4156 = vmatpush1.msra.mxu0 0.0
  %4157 = vmatprep.subr.mxu0 0.0
  %4158 = vmatpush1.msra.mxu0 0.0
  %4159 = vmatprep.subr.mxu0 0.0
  %4160 = vmatpush1.msra.mxu0 0.0
  %4161 = vmatprep.subr.mxu0 0.0
  %4162 = vmatpush1.msra.mxu0 0.0
  %4163 = vmatprep.subr.mxu0 0.0
  %4164 = vmatpush1.msra.mxu0 0.0
  %4165 = vmatprep.subr.mxu0 0.0
  %4166 = vmatpush1.msra.mxu0 0.0
  %4167 = vmatprep.subr.mxu0 0.0
  %4168 = vmatpush1.msra.mxu0 0.0
  %4169 = vmatprep.subr.mxu0 0.0
  %4170 = vmatpush1.msra.mxu0 0.0
  %4171 = vmatprep.subr.mxu0 0.0
  %4172 = vmatpush1.msra.mxu0 0.0
  %4173 = vmatprep.subr.mxu0 0.0
  %4174 = vmatpush1.msra.mxu0 0.0
  %4175 = vmatprep.subr.mxu0 0.0
  %4176 = vmatpush1.msra.mxu0 0.0
  %4177 = vmatprep.subr.mxu0 0.0
  %4178 = vmatpush1.msra.mxu0 0.0
  %4179 = vmatprep.subr.mxu0 0.0
  %4180 = vmatpush1.msra.mxu0 0.0
  %4181 = vmatprep.subr.mxu0 0.0
  %4182 = vmatpush1.msra.mxu0 0.0
  %4183 = vmatprep.subr.mxu0 0.0
  %4184 = vmatpush1.msra.mxu0 0.0
  %4185 = vmatprep.subr.mxu0 0.0
  %4186 = vmatpush1.msra.mxu0 0.0
  %4187 = vmatprep.subr.mxu0 0.0
  %4188 = vmatpush1.msra.mxu0 0.0
  %4189 = vmatprep.subr.mxu0 0.0
  %4190 = vmatpush1.msra.mxu0 0.0
  %4191 = vmatprep.subr.mxu0 0.0
  %4192 = vmatpush1.msra.mxu0 0.0
  %4193 = vmatprep.subr.mxu0 0.0
  %4194 = vmatpush1.msra.mxu0 0.0
  %4195 = vmatprep.subr.mxu0 0.0
  %4196 = vmatpush1.msra.mxu0 0.0
  %4197 = vmatprep.subr.mxu0 0.0
  %4198 = vmatpush1.msra.mxu0 0.0
  %4199 = vmatprep.subr.mxu0 0.0
  %4200 = vmatpush1.msra.mxu0 0.0
  %4201 = vmatprep.mubr.f32.mxu0 0.0
  %4202 = vmatmul.mubr.f32.gmra.mrb[0].mxu0 %v4133
  %v4203 = vpop.f32.mrb[0].mxu0
  %v4204 = vadd.f32 0.0, %v4203
  %v4205 = vpop.f32.mrb[0].mxu0
  %4206 = vdwg.mxu0
  %4209 = vset.pattern.permute.xlu0 0
  %4210 = vperm.xlu0 %4209, %v4087
  %v4211 = vpop.permute.xlu0 %4210
  %4212 = vset.pattern.permute.xlu0 0
  %4213 = vperm.xlu0 %4212, %v4089
  %v4214 = vpop.permute.xlu0 %4213
  %v4215 = vlaneseq
  %v4216 = vshrl.u32 %v4215, 7
  %v4217 = vsub.s32 %v515, %v4216
  %v4218 = vrot.slane %v4211, %v4217
  %v4219 = vlaneseq
  %v4220 = vshrl.u32 %v4219, 7
  %v4221 = vsub.s32 %v515, %v4220
  %v4222 = vrot.slane %v4214, %v4221
  %v4223 = vsel %vm580, %v4222, %v4218
  %4224 = vrot.lane.b32.xlu0 %v350, 56
  %v4225 = vpop.permute.xlu0 %4224
  %v4226 = vsel %vm1065, %v4223, 0
  %v4228 = vsel %vm1068, %v4225, 0
  %4230 = vmatprep.subr.mxu0 0.0
  %4231 = vmatpush1.msra.mxu0 %v4228
  %4232 = vmatprep.subr.mxu0 0.0
  %4233 = vmatpush1.msra.mxu0 0.0
  %4234 = vmatprep.subr.mxu0 0.0
  %4235 = vmatpush1.msra.mxu0 0.0
  %4236 = vmatprep.subr.mxu0 0.0
  %4237 = vmatpush1.msra.mxu0 0.0
  %4238 = vmatprep.subr.mxu0 0.0
  %4239 = vmatpush1.msra.mxu0 0.0
  %4240 = vmatprep.subr.mxu0 0.0
  %4241 = vmatpush1.msra.mxu0 0.0
  %4242 = vmatprep.subr.mxu0 0.0
  %4243 = vmatpush1.msra.mxu0 0.0
  %4244 = vmatprep.subr.mxu0 0.0
  %4245 = vmatpush1.msra.mxu0 0.0
  %4246 = vmatprep.subr.mxu0 0.0
  %4247 = vmatpush1.msra.mxu0 0.0
  %4248 = vmatprep.subr.mxu0 0.0
  %4249 = vmatpush1.msra.mxu0 0.0
  %4250 = vmatprep.subr.mxu0 0.0
  %4251 = vmatpush1.msra.mxu0 0.0
  %4252 = vmatprep.subr.mxu0 0.0
  %4253 = vmatpush1.msra.mxu0 0.0
  %4254 = vmatprep.subr.mxu0 0.0
  %4255 = vmatpush1.msra.mxu0 0.0
  %4256 = vmatprep.subr.mxu0 0.0
  %4257 = vmatpush1.msra.mxu0 0.0
  %4258 = vmatprep.subr.mxu0 0.0
  %4259 = vmatpush1.msra.mxu0 0.0
  %4260 = vmatprep.subr.mxu0 0.0
  %4261 = vmatpush1.msra.mxu0 0.0
  %4262 = vmatprep.subr.mxu0 0.0
  %4263 = vmatpush1.msra.mxu0 0.0
  %4264 = vmatprep.subr.mxu0 0.0
  %4265 = vmatpush1.msra.mxu0 0.0
  %4266 = vmatprep.subr.mxu0 0.0
  %4267 = vmatpush1.msra.mxu0 0.0
  %4268 = vmatprep.subr.mxu0 0.0
  %4269 = vmatpush1.msra.mxu0 0.0
  %4270 = vmatprep.subr.mxu0 0.0
  %4271 = vmatpush1.msra.mxu0 0.0
  %4272 = vmatprep.subr.mxu0 0.0
  %4273 = vmatpush1.msra.mxu0 0.0
  %4274 = vmatprep.subr.mxu0 0.0
  %4275 = vmatpush1.msra.mxu0 0.0
  %4276 = vmatprep.subr.mxu0 0.0
  %4277 = vmatpush1.msra.mxu0 0.0
  %4278 = vmatprep.subr.mxu0 0.0
  %4279 = vmatpush1.msra.mxu0 0.0
  %4280 = vmatprep.subr.mxu0 0.0
  %4281 = vmatpush1.msra.mxu0 0.0
  %4282 = vmatprep.subr.mxu0 0.0
  %4283 = vmatpush1.msra.mxu0 0.0
  %4284 = vmatprep.subr.mxu0 0.0
  %4285 = vmatpush1.msra.mxu0 0.0
  %4286 = vmatprep.subr.mxu0 0.0
  %4287 = vmatpush1.msra.mxu0 0.0
  %4288 = vmatprep.subr.mxu0 0.0
  %4289 = vmatpush1.msra.mxu0 0.0
  %4290 = vmatprep.subr.mxu0 0.0
  %4291 = vmatpush1.msra.mxu0 0.0
  %4292 = vmatprep.subr.mxu0 0.0
  %4293 = vmatpush1.msra.mxu0 0.0
  %4294 = vmatprep.mubr.f32.mxu0 0.0
  %4295 = vmatmul.mubr.f32.gmra.mrb[0].mxu0 %v4226
  %v4296 = vpop.f32.mrb[0].mxu0
  %v4297 = vadd.f32 0.0, %v4296
  %v4298 = vpop.f32.mrb[0].mxu0
  %4299 = vdwg.mxu0
  %4302 = vset.pattern.permute.xlu0 0
  %4303 = vperm.xlu0 %4302, %v4091
  %v4304 = vpop.permute.xlu0 %4303
  %4305 = vset.pattern.permute.xlu0 0
  %4306 = vperm.xlu0 %4305, %v4093
  %v4307 = vpop.permute.xlu0 %4306
  %v4308 = vlaneseq
  %v4309 = vshrl.u32 %v4308, 7
  %v4310 = vsub.s32 %v515, %v4309
  %v4311 = vrot.slane %v4304, %v4310
  %v4312 = vlaneseq
  %v4313 = vshrl.u32 %v4312, 7
  %v4314 = vsub.s32 %v515, %v4313
  %v4315 = vrot.slane %v4307, %v4314
  %v4316 = vsel %vm580, %v4315, %v4311
  %4317 = vrot.lane.b32.xlu0 %v357, 56
  %v4318 = vpop.permute.xlu0 %4317
  %v4319 = vsel %vm1065, %v4316, 0
  %v4321 = vsel %vm1068, %v4318, 0
  %4323 = vmatprep.subr.mxu0 0.0
  %4324 = vmatpush1.msra.mxu0 %v4321
  %4325 = vmatprep.subr.mxu0 0.0
  %4326 = vmatpush1.msra.mxu0 0.0
  %4327 = vmatprep.subr.mxu0 0.0
  %4328 = vmatpush1.msra.mxu0 0.0
  %4329 = vmatprep.subr.mxu0 0.0
  %4330 = vmatpush1.msra.mxu0 0.0
  %4331 = vmatprep.subr.mxu0 0.0
  %4332 = vmatpush1.msra.mxu0 0.0
  %4333 = vmatprep.subr.mxu0 0.0
  %4334 = vmatpush1.msra.mxu0 0.0
  %4335 = vmatprep.subr.mxu0 0.0
  %4336 = vmatpush1.msra.mxu0 0.0
  %4337 = vmatprep.subr.mxu0 0.0
  %4338 = vmatpush1.msra.mxu0 0.0
  %4339 = vmatprep.subr.mxu0 0.0
  %4340 = vmatpush1.msra.mxu0 0.0
  %4341 = vmatprep.subr.mxu0 0.0
  %4342 = vmatpush1.msra.mxu0 0.0
  %4343 = vmatprep.subr.mxu0 0.0
  %4344 = vmatpush1.msra.mxu0 0.0
  %4345 = vmatprep.subr.mxu0 0.0
  %4346 = vmatpush1.msra.mxu0 0.0
  %4347 = vmatprep.subr.mxu0 0.0
  %4348 = vmatpush1.msra.mxu0 0.0
  %4349 = vmatprep.subr.mxu0 0.0
  %4350 = vmatpush1.msra.mxu0 0.0
  %4351 = vmatprep.subr.mxu0 0.0
  %4352 = vmatpush1.msra.mxu0 0.0
  %4353 = vmatprep.subr.mxu0 0.0
  %4354 = vmatpush1.msra.mxu0 0.0
  %4355 = vmatprep.subr.mxu0 0.0
  %4356 = vmatpush1.msra.mxu0 0.0
  %4357 = vmatprep.subr.mxu0 0.0
  %4358 = vmatpush1.msra.mxu0 0.0
  %4359 = vmatprep.subr.mxu0 0.0
  %4360 = vmatpush1.msra.mxu0 0.0
  %4361 = vmatprep.subr.mxu0 0.0
  %4362 = vmatpush1.msra.mxu0 0.0
  %4363 = vmatprep.subr.mxu0 0.0
  %4364 = vmatpush1.msra.mxu0 0.0
  %4365 = vmatprep.subr.mxu0 0.0
  %4366 = vmatpush1.msra.mxu0 0.0
  %4367 = vmatprep.subr.mxu0 0.0
  %4368 = vmatpush1.msra.mxu0 0.0
  %4369 = vmatprep.subr.mxu0 0.0
  %4370 = vmatpush1.msra.mxu0 0.0
  %4371 = vmatprep.subr.mxu0 0.0
  %4372 = vmatpush1.msra.mxu0 0.0
  %4373 = vmatprep.subr.mxu0 0.0
  %4374 = vmatpush1.msra.mxu0 0.0
  %4375 = vmatprep.subr.mxu0 0.0
  %4376 = vmatpush1.msra.mxu0 0.0
  %4377 = vmatprep.subr.mxu0 0.0
  %4378 = vmatpush1.msra.mxu0 0.0
  %4379 = vmatprep.subr.mxu0 0.0
  %4380 = vmatpush1.msra.mxu0 0.0
  %4381 = vmatprep.subr.mxu0 0.0
  %4382 = vmatpush1.msra.mxu0 0.0
  %4383 = vmatprep.subr.mxu0 0.0
  %4384 = vmatpush1.msra.mxu0 0.0
  %4385 = vmatprep.subr.mxu0 0.0
  %4386 = vmatpush1.msra.mxu0 0.0
  %4387 = vmatprep.mubr.f32.mxu0 0.0
  %4388 = vmatmul.mubr.f32.gmra.mrb[0].mxu0 %v4319
  %v4389 = vpop.f32.mrb[0].mxu0
  %v4390 = vadd.f32 0.0, %v4389
  %v4391 = vpop.f32.mrb[0].mxu0
  %4392 = vdwg.mxu0
  %4395 = vset.pattern.permute.xlu0 0
  %4396 = vperm.xlu0 %4395, %v4095
  %v4397 = vpop.permute.xlu0 %4396
  %4398 = vset.pattern.permute.xlu0 0
  %4399 = vperm.xlu0 %4398, %v4097
  %v4400 = vpop.permute.xlu0 %4399
  %v4401 = vlaneseq
  %v4402 = vshrl.u32 %v4401, 7
  %v4403 = vsub.s32 %v515, %v4402
  %v4404 = vrot.slane %v4397, %v4403
  %v4405 = vlaneseq
  %v4406 = vshrl.u32 %v4405, 7
  %v4407 = vsub.s32 %v515, %v4406
  %v4408 = vrot.slane %v4400, %v4407
  %v4409 = vsel %vm580, %v4408, %v4404
  %4410 = vrot.lane.b32.xlu0 %v364, 56
  %v4411 = vpop.permute.xlu0 %4410
  %v4412 = vsel %vm1065, %v4409, 0
  %v4414 = vsel %vm1068, %v4411, 0
  %4416 = vmatprep.subr.mxu0 0.0
  %4417 = vmatpush1.msra.mxu0 %v4414
  %4418 = vmatprep.subr.mxu0 0.0
  %4419 = vmatpush1.msra.mxu0 0.0
  %4420 = vmatprep.subr.mxu0 0.0
  %4421 = vmatpush1.msra.mxu0 0.0
  %4422 = vmatprep.subr.mxu0 0.0
  %4423 = vmatpush1.msra.mxu0 0.0
  %4424 = vmatprep.subr.mxu0 0.0
  %4425 = vmatpush1.msra.mxu0 0.0
  %4426 = vmatprep.subr.mxu0 0.0
  %4427 = vmatpush1.msra.mxu0 0.0
  %4428 = vmatprep.subr.mxu0 0.0
  %4429 = vmatpush1.msra.mxu0 0.0
  %4430 = vmatprep.subr.mxu0 0.0
  %4431 = vmatpush1.msra.mxu0 0.0
  %4432 = vmatprep.subr.mxu0 0.0
  %4433 = vmatpush1.msra.mxu0 0.0
  %4434 = vmatprep.subr.mxu0 0.0
  %4435 = vmatpush1.msra.mxu0 0.0
  %4436 = vmatprep.subr.mxu0 0.0
  %4437 = vmatpush1.msra.mxu0 0.0
  %4438 = vmatprep.subr.mxu0 0.0
  %4439 = vmatpush1.msra.mxu0 0.0
  %4440 = vmatprep.subr.mxu0 0.0
  %4441 = vmatpush1.msra.mxu0 0.0
  %4442 = vmatprep.subr.mxu0 0.0
  %4443 = vmatpush1.msra.mxu0 0.0
  %4444 = vmatprep.subr.mxu0 0.0
  %4445 = vmatpush1.msra.mxu0 0.0
  %4446 = vmatprep.subr.mxu0 0.0
  %4447 = vmatpush1.msra.mxu0 0.0
  %4448 = vmatprep.subr.mxu0 0.0
  %4449 = vmatpush1.msra.mxu0 0.0
  %4450 = vmatprep.subr.mxu0 0.0
  %4451 = vmatpush1.msra.mxu0 0.0
  %4452 = vmatprep.subr.mxu0 0.0
  %4453 = vmatpush1.msra.mxu0 0.0
  %4454 = vmatprep.subr.mxu0 0.0
  %4455 = vmatpush1.msra.mxu0 0.0
  %4456 = vmatprep.subr.mxu0 0.0
  %4457 = vmatpush1.msra.mxu0 0.0
  %4458 = vmatprep.subr.mxu0 0.0
  %4459 = vmatpush1.msra.mxu0 0.0
  %4460 = vmatprep.subr.mxu0 0.0
  %4461 = vmatpush1.msra.mxu0 0.0
  %4462 = vmatprep.subr.mxu0 0.0
  %4463 = vmatpush1.msra.mxu0 0.0
  %4464 = vmatprep.subr.mxu0 0.0
  %4465 = vmatpush1.msra.mxu0 0.0
  %4466 = vmatprep.subr.mxu0 0.0
  %4467 = vmatpush1.msra.mxu0 0.0
  %4468 = vmatprep.subr.mxu0 0.0
  %4469 = vmatpush1.msra.mxu0 0.0
  %4470 = vmatprep.subr.mxu0 0.0
  %4471 = vmatpush1.msra.mxu0 0.0
  %4472 = vmatprep.subr.mxu0 0.0
  %4473 = vmatpush1.msra.mxu0 0.0
  %4474 = vmatprep.subr.mxu0 0.0
  %4475 = vmatpush1.msra.mxu0 0.0
  %4476 = vmatprep.subr.mxu0 0.0
  %4477 = vmatpush1.msra.mxu0 0.0
  %4478 = vmatprep.subr.mxu0 0.0
  %4479 = vmatpush1.msra.mxu0 0.0
  %4480 = vmatprep.mubr.f32.mxu0 0.0
  %4481 = vmatmul.mubr.f32.gmra.mrb[0].mxu0 %v4412
  %v4482 = vpop.f32.mrb[0].mxu0
  %v4483 = vadd.f32 0.0, %v4482
  %v4484 = vpop.f32.mrb[0].mxu0
  %4485 = vdwg.mxu0
  %4488 = vset.pattern.permute.xlu0 0
  %4489 = vperm.xlu0 %4488, %v4099
  %v4490 = vpop.permute.xlu0 %4489
  %4491 = vset.pattern.permute.xlu0 0
  %4492 = vperm.xlu0 %4491, %v4101
  %v4493 = vpop.permute.xlu0 %4492
  %v4494 = vlaneseq
  %v4495 = vshrl.u32 %v4494, 7
  %v4496 = vsub.s32 %v515, %v4495
  %v4497 = vrot.slane %v4490, %v4496
  %v4498 = vlaneseq
  %v4499 = vshrl.u32 %v4498, 7
  %v4500 = vsub.s32 %v515, %v4499
  %v4501 = vrot.slane %v4493, %v4500
  %v4502 = vsel %vm580, %v4501, %v4497
  %4503 = vrot.lane.b32.xlu0 %v371, 56
  %v4504 = vpop.permute.xlu0 %4503
  %v4505 = vsel %vm1065, %v4502, 0
  %v4507 = vsel %vm1068, %v4504, 0
  %4509 = vmatprep.subr.mxu0 0.0
  %4510 = vmatpush1.msra.mxu0 %v4507
  %4511 = vmatprep.subr.mxu0 0.0
  %4512 = vmatpush1.msra.mxu0 0.0
  %4513 = vmatprep.subr.mxu0 0.0
  %4514 = vmatpush1.msra.mxu0 0.0
  %4515 = vmatprep.subr.mxu0 0.0
  %4516 = vmatpush1.msra.mxu0 0.0
  %4517 = vmatprep.subr.mxu0 0.0
  %4518 = vmatpush1.msra.mxu0 0.0
  %4519 = vmatprep.subr.mxu0 0.0
  %4520 = vmatpush1.msra.mxu0 0.0
  %4521 = vmatprep.subr.mxu0 0.0
  %4522 = vmatpush1.msra.mxu0 0.0
  %4523 = vmatprep.subr.mxu0 0.0
  %4524 = vmatpush1.msra.mxu0 0.0
  %4525 = vmatprep.subr.mxu0 0.0
  %4526 = vmatpush1.msra.mxu0 0.0
  %4527 = vmatprep.subr.mxu0 0.0
  %4528 = vmatpush1.msra.mxu0 0.0
  %4529 = vmatprep.subr.mxu0 0.0
  %4530 = vmatpush1.msra.mxu0 0.0
  %4531 = vmatprep.subr.mxu0 0.0
  %4532 = vmatpush1.msra.mxu0 0.0
  %4533 = vmatprep.subr.mxu0 0.0
  %4534 = vmatpush1.msra.mxu0 0.0
  %4535 = vmatprep.subr.mxu0 0.0
  %4536 = vmatpush1.msra.mxu0 0.0
  %4537 = vmatprep.subr.mxu0 0.0
  %4538 = vmatpush1.msra.mxu0 0.0
  %4539 = vmatprep.subr.mxu0 0.0
  %4540 = vmatpush1.msra.mxu0 0.0
  %4541 = vmatprep.subr.mxu0 0.0
  %4542 = vmatpush1.msra.mxu0 0.0
  %4543 = vmatprep.subr.mxu0 0.0
  %4544 = vmatpush1.msra.mxu0 0.0
  %4545 = vmatprep.subr.mxu0 0.0
  %4546 = vmatpush1.msra.mxu0 0.0
  %4547 = vmatprep.subr.mxu0 0.0
  %4548 = vmatpush1.msra.mxu0 0.0
  %4549 = vmatprep.subr.mxu0 0.0
  %4550 = vmatpush1.msra.mxu0 0.0
  %4551 = vmatprep.subr.mxu0 0.0
  %4552 = vmatpush1.msra.mxu0 0.0
  %4553 = vmatprep.subr.mxu0 0.0
  %4554 = vmatpush1.msra.mxu0 0.0
  %4555 = vmatprep.subr.mxu0 0.0
  %4556 = vmatpush1.msra.mxu0 0.0
  %4557 = vmatprep.subr.mxu0 0.0
  %4558 = vmatpush1.msra.mxu0 0.0
  %4559 = vmatprep.subr.mxu0 0.0
  %4560 = vmatpush1.msra.mxu0 0.0
  %4561 = vmatprep.subr.mxu0 0.0
  %4562 = vmatpush1.msra.mxu0 0.0
  %4563 = vmatprep.subr.mxu0 0.0
  %4564 = vmatpush1.msra.mxu0 0.0
  %4565 = vmatprep.subr.mxu0 0.0
  %4566 = vmatpush1.msra.mxu0 0.0
  %4567 = vmatprep.subr.mxu0 0.0
  %4568 = vmatpush1.msra.mxu0 0.0
  %4569 = vmatprep.subr.mxu0 0.0
  %4570 = vmatpush1.msra.mxu0 0.0
  %4571 = vmatprep.subr.mxu0 0.0
  %4572 = vmatpush1.msra.mxu0 0.0
  %4573 = vmatprep.mubr.f32.mxu0 0.0
  %4574 = vmatmul.mubr.f32.gmra.mrb[0].mxu0 %v4505
  %v4575 = vpop.f32.mrb[0].mxu0
  %v4576 = vadd.f32 0.0, %v4575
  %v4577 = vpop.f32.mrb[0].mxu0
  %4578 = vdwg.mxu0
  %4581 = vset.pattern.permute.xlu0 0
  %4582 = vperm.xlu0 %4581, %v4103
  %v4583 = vpop.permute.xlu0 %4582
  %4584 = vset.pattern.permute.xlu0 0
  %4585 = vperm.xlu0 %4584, %v4105
  %v4586 = vpop.permute.xlu0 %4585
  %v4587 = vlaneseq
  %v4588 = vshrl.u32 %v4587, 7
  %v4589 = vsub.s32 %v515, %v4588
  %v4590 = vrot.slane %v4583, %v4589
  %v4591 = vlaneseq
  %v4592 = vshrl.u32 %v4591, 7
  %v4593 = vsub.s32 %v515, %v4592
  %v4594 = vrot.slane %v4586, %v4593
  %v4595 = vsel %vm580, %v4594, %v4590
  %4596 = vrot.lane.b32.xlu0 %v378, 56
  %v4597 = vpop.permute.xlu0 %4596
  %v4598 = vsel %vm1065, %v4595, 0
  %v4600 = vsel %vm1068, %v4597, 0
  %4602 = vmatprep.subr.mxu0 0.0
  %4603 = vmatpush1.msra.mxu0 %v4600
  %4604 = vmatprep.subr.mxu0 0.0
  %4605 = vmatpush1.msra.mxu0 0.0
  %4606 = vmatprep.subr.mxu0 0.0
  %4607 = vmatpush1.msra.mxu0 0.0
  %4608 = vmatprep.subr.mxu0 0.0
  %4609 = vmatpush1.msra.mxu0 0.0
  %4610 = vmatprep.subr.mxu0 0.0
  %4611 = vmatpush1.msra.mxu0 0.0
  %4612 = vmatprep.subr.mxu0 0.0
  %4613 = vmatpush1.msra.mxu0 0.0
  %4614 = vmatprep.subr.mxu0 0.0
  %4615 = vmatpush1.msra.mxu0 0.0
  %4616 = vmatprep.subr.mxu0 0.0
  %4617 = vmatpush1.msra.mxu0 0.0
  %4618 = vmatprep.subr.mxu0 0.0
  %4619 = vmatpush1.msra.mxu0 0.0
  %4620 = vmatprep.subr.mxu0 0.0
  %4621 = vmatpush1.msra.mxu0 0.0
  %4622 = vmatprep.subr.mxu0 0.0
  %4623 = vmatpush1.msra.mxu0 0.0
  %4624 = vmatprep.subr.mxu0 0.0
  %4625 = vmatpush1.msra.mxu0 0.0
  %4626 = vmatprep.subr.mxu0 0.0
  %4627 = vmatpush1.msra.mxu0 0.0
  %4628 = vmatprep.subr.mxu0 0.0
  %4629 = vmatpush1.msra.mxu0 0.0
  %4630 = vmatprep.subr.mxu0 0.0
  %4631 = vmatpush1.msra.mxu0 0.0
  %4632 = vmatprep.subr.mxu0 0.0
  %4633 = vmatpush1.msra.mxu0 0.0
  %4634 = vmatprep.subr.mxu0 0.0
  %4635 = vmatpush1.msra.mxu0 0.0
  %4636 = vmatprep.subr.mxu0 0.0
  %4637 = vmatpush1.msra.mxu0 0.0
  %4638 = vmatprep.subr.mxu0 0.0
  %4639 = vmatpush1.msra.mxu0 0.0
  %4640 = vmatprep.subr.mxu0 0.0
  %4641 = vmatpush1.msra.mxu0 0.0
  %4642 = vmatprep.subr.mxu0 0.0
  %4643 = vmatpush1.msra.mxu0 0.0
  %4644 = vmatprep.subr.mxu0 0.0
  %4645 = vmatpush1.msra.mxu0 0.0
  %4646 = vmatprep.subr.mxu0 0.0
  %4647 = vmatpush1.msra.mxu0 0.0
  %4648 = vmatprep.subr.mxu0 0.0
  %4649 = vmatpush1.msra.mxu0 0.0
  %4650 = vmatprep.subr.mxu0 0.0
  %4651 = vmatpush1.msra.mxu0 0.0
  %4652 = vmatprep.subr.mxu0 0.0
  %4653 = vmatpush1.msra.mxu0 0.0
  %4654 = vmatprep.subr.mxu0 0.0
  %4655 = vmatpush1.msra.mxu0 0.0
  %4656 = vmatprep.subr.mxu0 0.0
  %4657 = vmatpush1.msra.mxu0 0.0
  %4658 = vmatprep.subr.mxu0 0.0
  %4659 = vmatpush1.msra.mxu0 0.0
  %4660 = vmatprep.subr.mxu0 0.0
  %4661 = vmatpush1.msra.mxu0 0.0
  %4662 = vmatprep.subr.mxu0 0.0
  %4663 = vmatpush1.msra.mxu0 0.0
  %4664 = vmatprep.subr.mxu0 0.0
  %4665 = vmatpush1.msra.mxu0 0.0
  %4666 = vmatprep.mubr.f32.mxu0 0.0
  %4667 = vmatmul.mubr.f32.gmra.mrb[0].mxu0 %v4598
  %v4668 = vpop.f32.mrb[0].mxu0
  %v4669 = vadd.f32 0.0, %v4668
  %v4670 = vpop.f32.mrb[0].mxu0
  %4671 = vdwg.mxu0
  %4674 = vset.pattern.permute.xlu0 0
  %4675 = vperm.xlu0 %4674, %v4107
  %v4676 = vpop.permute.xlu0 %4675
  %4677 = vset.pattern.permute.xlu0 0
  %4678 = vperm.xlu0 %4677, %v4109
  %v4679 = vpop.permute.xlu0 %4678
  %v4680 = vlaneseq
  %v4681 = vshrl.u32 %v4680, 7
  %v4682 = vsub.s32 %v515, %v4681
  %v4683 = vrot.slane %v4676, %v4682
  %v4684 = vlaneseq
  %v4685 = vshrl.u32 %v4684, 7
  %v4686 = vsub.s32 %v515, %v4685
  %v4687 = vrot.slane %v4679, %v4686
  %v4688 = vsel %vm580, %v4687, %v4683
  %4689 = vrot.lane.b32.xlu0 %v385, 56
  %v4690 = vpop.permute.xlu0 %4689
  %v4691 = vsel %vm1065, %v4688, 0
  %v4693 = vsel %vm1068, %v4690, 0
  %4695 = vmatprep.subr.mxu0 0.0
  %4696 = vmatpush1.msra.mxu0 %v4693
  %4697 = vmatprep.subr.mxu0 0.0
  %4698 = vmatpush1.msra.mxu0 0.0
  %4699 = vmatprep.subr.mxu0 0.0
  %4700 = vmatpush1.msra.mxu0 0.0
  %4701 = vmatprep.subr.mxu0 0.0
  %4702 = vmatpush1.msra.mxu0 0.0
  %4703 = vmatprep.subr.mxu0 0.0
  %4704 = vmatpush1.msra.mxu0 0.0
  %4705 = vmatprep.subr.mxu0 0.0
  %4706 = vmatpush1.msra.mxu0 0.0
  %4707 = vmatprep.subr.mxu0 0.0
  %4708 = vmatpush1.msra.mxu0 0.0
  %4709 = vmatprep.subr.mxu0 0.0
  %4710 = vmatpush1.msra.mxu0 0.0
  %4711 = vmatprep.subr.mxu0 0.0
  %4712 = vmatpush1.msra.mxu0 0.0
  %4713 = vmatprep.subr.mxu0 0.0
  %4714 = vmatpush1.msra.mxu0 0.0
  %4715 = vmatprep.subr.mxu0 0.0
  %4716 = vmatpush1.msra.mxu0 0.0
  %4717 = vmatprep.subr.mxu0 0.0
  %4718 = vmatpush1.msra.mxu0 0.0
  %4719 = vmatprep.subr.mxu0 0.0
  %4720 = vmatpush1.msra.mxu0 0.0
  %4721 = vmatprep.subr.mxu0 0.0
  %4722 = vmatpush1.msra.mxu0 0.0
  %4723 = vmatprep.subr.mxu0 0.0
  %4724 = vmatpush1.msra.mxu0 0.0
  %4725 = vmatprep.subr.mxu0 0.0
  %4726 = vmatpush1.msra.mxu0 0.0
  %4727 = vmatprep.subr.mxu0 0.0
  %4728 = vmatpush1.msra.mxu0 0.0
  %4729 = vmatprep.subr.mxu0 0.0
  %4730 = vmatpush1.msra.mxu0 0.0
  %4731 = vmatprep.subr.mxu0 0.0
  %4732 = vmatpush1.msra.mxu0 0.0
  %4733 = vmatprep.subr.mxu0 0.0
  %4734 = vmatpush1.msra.mxu0 0.0
  %4735 = vmatprep.subr.mxu0 0.0
  %4736 = vmatpush1.msra.mxu0 0.0
  %4737 = vmatprep.subr.mxu0 0.0
  %4738 = vmatpush1.msra.mxu0 0.0
  %4739 = vmatprep.subr.mxu0 0.0
  %4740 = vmatpush1.msra.mxu0 0.0
  %4741 = vmatprep.subr.mxu0 0.0
  %4742 = vmatpush1.msra.mxu0 0.0
  %4743 = vmatprep.subr.mxu0 0.0
  %4744 = vmatpush1.msra.mxu0 0.0
  %4745 = vmatprep.subr.mxu0 0.0
  %4746 = vmatpush1.msra.mxu0 0.0
  %4747 = vmatprep.subr.mxu0 0.0
  %4748 = vmatpush1.msra.mxu0 0.0
  %4749 = vmatprep.subr.mxu0 0.0
  %4750 = vmatpush1.msra.mxu0 0.0
  %4751 = vmatprep.subr.mxu0 0.0
  %4752 = vmatpush1.msra.mxu0 0.0
  %4753 = vmatprep.subr.mxu0 0.0
  %4754 = vmatpush1.msra.mxu0 0.0
  %4755 = vmatprep.subr.mxu0 0.0
  %4756 = vmatpush1.msra.mxu0 0.0
  %4757 = vmatprep.subr.mxu0 0.0
  %4758 = vmatpush1.msra.mxu0 0.0
  %4759 = vmatprep.mubr.f32.mxu0 0.0
  %4760 = vmatmul.mubr.f32.gmra.mrb[0].mxu0 %v4691
  %v4761 = vpop.f32.mrb[0].mxu0
  %v4762 = vadd.f32 0.0, %v4761
  %v4763 = vpop.f32.mrb[0].mxu0
  %4764 = vdwg.mxu0
  %4767 = vset.pattern.permute.xlu0 0
  %4768 = vperm.xlu0 %4767, %v4111
  %v4769 = vpop.permute.xlu0 %4768
  %4770 = vset.pattern.permute.xlu0 0
  %4771 = vperm.xlu0 %4770, %v4113
  %v4772 = vpop.permute.xlu0 %4771
  %v4773 = vlaneseq
  %v4774 = vshrl.u32 %v4773, 7
  %v4775 = vsub.s32 %v515, %v4774
  %v4776 = vrot.slane %v4769, %v4775
  %v4777 = vlaneseq
  %v4778 = vshrl.u32 %v4777, 7
  %v4779 = vsub.s32 %v515, %v4778
  %v4780 = vrot.slane %v4772, %v4779
  %v4781 = vsel %vm580, %v4780, %v4776
  %4782 = vrot.lane.b32.xlu0 %v392, 56
  %v4783 = vpop.permute.xlu0 %4782
  %v4784 = vsel %vm1065, %v4781, 0
  %v4786 = vsel %vm1068, %v4783, 0
  %4788 = vmatprep.subr.mxu0 0.0
  %4789 = vmatpush1.msra.mxu0 %v4786
  %4790 = vmatprep.subr.mxu0 0.0
  %4791 = vmatpush1.msra.mxu0 0.0
  %4792 = vmatprep.subr.mxu0 0.0
  %4793 = vmatpush1.msra.mxu0 0.0
  %4794 = vmatprep.subr.mxu0 0.0
  %4795 = vmatpush1.msra.mxu0 0.0
  %4796 = vmatprep.subr.mxu0 0.0
  %4797 = vmatpush1.msra.mxu0 0.0
  %4798 = vmatprep.subr.mxu0 0.0
  %4799 = vmatpush1.msra.mxu0 0.0
  %4800 = vmatprep.subr.mxu0 0.0
  %4801 = vmatpush1.msra.mxu0 0.0
  %4802 = vmatprep.subr.mxu0 0.0
  %4803 = vmatpush1.msra.mxu0 0.0
  %4804 = vmatprep.subr.mxu0 0.0
  %4805 = vmatpush1.msra.mxu0 0.0
  %4806 = vmatprep.subr.mxu0 0.0
  %4807 = vmatpush1.msra.mxu0 0.0
  %4808 = vmatprep.subr.mxu0 0.0
  %4809 = vmatpush1.msra.mxu0 0.0
  %4810 = vmatprep.subr.mxu0 0.0
  %4811 = vmatpush1.msra.mxu0 0.0
  %4812 = vmatprep.subr.mxu0 0.0
  %4813 = vmatpush1.msra.mxu0 0.0
  %4814 = vmatprep.subr.mxu0 0.0
  %4815 = vmatpush1.msra.mxu0 0.0
  %4816 = vmatprep.subr.mxu0 0.0
  %4817 = vmatpush1.msra.mxu0 0.0
  %4818 = vmatprep.subr.mxu0 0.0
  %4819 = vmatpush1.msra.mxu0 0.0
  %4820 = vmatprep.subr.mxu0 0.0
  %4821 = vmatpush1.msra.mxu0 0.0
  %4822 = vmatprep.subr.mxu0 0.0
  %4823 = vmatpush1.msra.mxu0 0.0
  %4824 = vmatprep.subr.mxu0 0.0
  %4825 = vmatpush1.msra.mxu0 0.0
  %4826 = vmatprep.subr.mxu0 0.0
  %4827 = vmatpush1.msra.mxu0 0.0
  %4828 = vmatprep.subr.mxu0 0.0
  %4829 = vmatpush1.msra.mxu0 0.0
  %4830 = vmatprep.subr.mxu0 0.0
  %4831 = vmatpush1.msra.mxu0 0.0
  %4832 = vmatprep.subr.mxu0 0.0
  %4833 = vmatpush1.msra.mxu0 0.0
  %4834 = vmatprep.subr.mxu0 0.0
  %4835 = vmatpush1.msra.mxu0 0.0
  %4836 = vmatprep.subr.mxu0 0.0
  %4837 = vmatpush1.msra.mxu0 0.0
  %4838 = vmatprep.subr.mxu0 0.0
  %4839 = vmatpush1.msra.mxu0 0.0
  %4840 = vmatprep.subr.mxu0 0.0
  %4841 = vmatpush1.msra.mxu0 0.0
  %4842 = vmatprep.subr.mxu0 0.0
  %4843 = vmatpush1.msra.mxu0 0.0
  %4844 = vmatprep.subr.mxu0 0.0
  %4845 = vmatpush1.msra.mxu0 0.0
  %4846 = vmatprep.subr.mxu0 0.0
  %4847 = vmatpush1.msra.mxu0 0.0
  %4848 = vmatprep.subr.mxu0 0.0
  %4849 = vmatpush1.msra.mxu0 0.0
  %4850 = vmatprep.subr.mxu0 0.0
  %4851 = vmatpush1.msra.mxu0 0.0
  %4852 = vmatprep.mubr.f32.mxu0 0.0
  %4853 = vmatmul.mubr.f32.gmra.mrb[0].mxu0 %v4784
  %v4854 = vpop.f32.mrb[0].mxu0
  %v4855 = vadd.f32 0.0, %v4854
  %v4856 = vpop.f32.mrb[0].mxu0
  %4857 = vdwg.mxu0
  %v4866 = vcombine.low %v4204, %v4297
  %v4867 = vcombine.low %v4390, %v4483
  %v4869 = vunpack.c.l.s4 1983009808
  %v4870 = vunpack.c.0.s8 %v4869
  %v4871 = vlaneseq
  %v4872 = vshrl.u32 %v4871, 7
  %v4873 = vsub.s32 %v4870, %v4872
  %v4874 = vrot.slane %v4866, %v4873
  %v4876 = vunpack.c.l.s4 1983009808
  %v4877 = vunpack.c.0.s8 %v4876
  %v4878 = vlaneseq
  %v4879 = vshrl.u32 %v4878, 7
  %v4880 = vsub.s32 %v4877, %v4879
  %v4881 = vrot.slane %v4867, %v4880
  %v4882 = vcombine.low %v4874, %v4881
  %v4883 = vcombine.low %v4576, %v4669
  %v4884 = vcombine.low %v4762, %v4855
  %v4886 = vunpack.c.l.s4 1983009808
  %v4887 = vunpack.c.0.s8 %v4886
  %v4888 = vlaneseq
  %v4889 = vshrl.u32 %v4888, 7
  %v4890 = vsub.s32 %v4887, %v4889
  %v4891 = vrot.slane %v4883, %v4890
  %v4893 = vunpack.c.l.s4 1983009808
  %v4894 = vunpack.c.0.s8 %v4893
  %v4895 = vlaneseq
  %v4896 = vshrl.u32 %v4895, 7
  %v4897 = vsub.s32 %v4894, %v4896
  %v4898 = vrot.slane %v4884, %v4897
  %v4899 = vcombine.low %v4891, %v4898
  %v4900 = vsel %vm3252, %v4882, 0
  %v4902 = vsel %vm3252, %v4899, 0
  %v4905 = vsel %vm3257, %v122, 0
  %4907 = vmatprep.subr.mxu0 0.0
  %4908 = vmatpush1.msra.mxu0 %v4905
  %4909 = vmatprep.subr.mxu0 0.0
  %4910 = vmatpush1.msra.mxu0 0.0
  %4911 = vmatprep.subr.mxu0 0.0
  %4912 = vmatpush1.msra.mxu0 0.0
  %4913 = vmatprep.subr.mxu0 0.0
  %4914 = vmatpush1.msra.mxu0 0.0
  %4915 = vmatprep.subr.mxu0 0.0
  %4916 = vmatpush1.msra.mxu0 0.0
  %4917 = vmatprep.subr.mxu0 0.0
  %4918 = vmatpush1.msra.mxu0 0.0
  %4919 = vmatprep.subr.mxu0 0.0
  %4920 = vmatpush1.msra.mxu0 0.0
  %4921 = vmatprep.subr.mxu0 0.0
  %4922 = vmatpush1.msra.mxu0 0.0
  %4923 = vmatprep.subr.mxu0 0.0
  %4924 = vmatpush1.msra.mxu0 0.0
  %4925 = vmatprep.subr.mxu0 0.0
  %4926 = vmatpush1.msra.mxu0 0.0
  %4927 = vmatprep.subr.mxu0 0.0
  %4928 = vmatpush1.msra.mxu0 0.0
  %4929 = vmatprep.subr.mxu0 0.0
  %4930 = vmatpush1.msra.mxu0 0.0
  %4931 = vmatprep.subr.mxu0 0.0
  %4932 = vmatpush1.msra.mxu0 0.0
  %4933 = vmatprep.subr.mxu0 0.0
  %4934 = vmatpush1.msra.mxu0 0.0
  %4935 = vmatprep.subr.mxu0 0.0
  %4936 = vmatpush1.msra.mxu0 0.0
  %4937 = vmatprep.subr.mxu0 0.0
  %4938 = vmatpush1.msra.mxu0 0.0
  %4939 = vmatprep.subr.mxu0 0.0
  %4940 = vmatpush1.msra.mxu0 0.0
  %4941 = vmatprep.subr.mxu0 0.0
  %4942 = vmatpush1.msra.mxu0 0.0
  %4943 = vmatprep.subr.mxu0 0.0
  %4944 = vmatpush1.msra.mxu0 0.0
  %4945 = vmatprep.subr.mxu0 0.0
  %4946 = vmatpush1.msra.mxu0 0.0
  %4947 = vmatprep.subr.mxu0 0.0
  %4948 = vmatpush1.msra.mxu0 0.0
  %4949 = vmatprep.subr.mxu0 0.0
  %4950 = vmatpush1.msra.mxu0 0.0
  %4951 = vmatprep.subr.mxu0 0.0
  %4952 = vmatpush1.msra.mxu0 0.0
  %4953 = vmatprep.subr.mxu0 0.0
  %4954 = vmatpush1.msra.mxu0 0.0
  %4955 = vmatprep.subr.mxu0 0.0
  %4956 = vmatpush1.msra.mxu0 0.0
  %4957 = vmatprep.subr.mxu0 0.0
  %4958 = vmatpush1.msra.mxu0 0.0
  %4959 = vmatprep.subr.mxu0 0.0
  %4960 = vmatpush1.msra.mxu0 0.0
  %4961 = vmatprep.subr.mxu0 0.0
  %4962 = vmatpush1.msra.mxu0 0.0
  %4963 = vmatprep.subr.mxu0 0.0
  %4964 = vmatpush1.msra.mxu0 0.0
  %4965 = vmatprep.subr.mxu0 0.0
  %4966 = vmatpush1.msra.mxu0 0.0
  %4967 = vmatprep.subr.mxu0 0.0
  %4968 = vmatpush1.msra.mxu0 0.0
  %4969 = vmatprep.subr.mxu0 0.0
  %4970 = vmatpush1.msra.mxu0 0.0
  %4971 = vmatprep.mubr.f32.mxu0 0.0
  %4972 = vmatmul.mubr.f32.gmra.mrb[0].mxu0 %v4900
  %v4973 = vpop.f32.mrb[0].mxu0
  %v4974 = vadd.f32 0.0, %v4973
  %v4975 = vpop.f32.mrb[0].mxu0
  %4976 = vmatprep.mubr.f32.mxu0 0.0
  %4977 = vmatmul.mubr.f32.gmra.mrb[0].mxu0 %v4902
  %v4978 = vpop.f32.mrb[0].mxu0
  %v4979 = vadd.f32 0.0, %v4978
  %v4980 = vpop.f32.mrb[0].mxu0
  %4981 = vdwg.mxu0
  %v4982 = vadd.f32 %v3450, %v4974
  %v4983 = vadd.f32 %v3455, %v4979
  %4984 = vrot.lane.b32.xlu0 %v417, 116
  %v4985 = vpop.permute.xlu0 %4984
  %4986 = vrot.lane.b32.xlu0 %v418, 116
  %v4987 = vpop.permute.xlu0 %4986
  %4988 = vrot.lane.b32.xlu0 %v419, 116
  %v4989 = vpop.permute.xlu0 %4988
  %4990 = vrot.lane.b32.xlu0 %v420, 116
  %v4991 = vpop.permute.xlu0 %4990
  %4992 = vrot.lane.b32.xlu0 %v421, 116
  %v4993 = vpop.permute.xlu0 %4992
  %4994 = vrot.lane.b32.xlu0 %v422, 116
  %v4995 = vpop.permute.xlu0 %4994
  %4996 = vrot.lane.b32.xlu0 %v423, 116
  %v4997 = vpop.permute.xlu0 %4996
  %4998 = vrot.lane.b32.xlu0 %v424, 116
  %v4999 = vpop.permute.xlu0 %4998
  %5000 = vrot.lane.b32.xlu0 %v425, 116
  %v5001 = vpop.permute.xlu0 %5000
  %5002 = vrot.lane.b32.xlu0 %v426, 116
  %v5003 = vpop.permute.xlu0 %5002
  %5004 = vrot.lane.b32.xlu0 %v427, 116
  %v5005 = vpop.permute.xlu0 %5004
  %5006 = vrot.lane.b32.xlu0 %v428, 116
  %v5007 = vpop.permute.xlu0 %5006
  %5008 = vrot.lane.b32.xlu0 %v429, 116
  %v5009 = vpop.permute.xlu0 %5008
  %5010 = vrot.lane.b32.xlu0 %v430, 116
  %v5011 = vpop.permute.xlu0 %5010
  %5012 = vrot.lane.b32.xlu0 %v431, 116
  %v5013 = vpop.permute.xlu0 %5012
  %5014 = vrot.lane.b32.xlu0 %v432, 116
  %v5015 = vpop.permute.xlu0 %5014
  %v5032 = vsel %vm433, %v4985, 0.0
  %5033 = vadd.xlane.f32.xlu0 %v5032
  %v5034 = vpop.xlane.xlu0 %5033
  %v5035 = vsel %vm433, %v4987, 0.0
  %5036 = vadd.xlane.f32.xlu0 %v5035
  %v5037 = vpop.xlane.xlu0 %5036
  %v5038 = vsel %vm433, %v4989, 0.0
  %5039 = vadd.xlane.f32.xlu0 %v5038
  %v5040 = vpop.xlane.xlu0 %5039
  %v5041 = vsel %vm433, %v4991, 0.0
  %5042 = vadd.xlane.f32.xlu0 %v5041
  %v5043 = vpop.xlane.xlu0 %5042
  %v5044 = vsel %vm433, %v4993, 0.0
  %5045 = vadd.xlane.f32.xlu0 %v5044
  %v5046 = vpop.xlane.xlu0 %5045
  %v5047 = vsel %vm433, %v4995, 0.0
  %5048 = vadd.xlane.f32.xlu0 %v5047
  %v5049 = vpop.xlane.xlu0 %5048
  %v5050 = vsel %vm433, %v4997, 0.0
  %5051 = vadd.xlane.f32.xlu0 %v5050
  %v5052 = vpop.xlane.xlu0 %5051
  %v5053 = vsel %vm433, %v4999, 0.0
  %5054 = vadd.xlane.f32.xlu0 %v5053
  %v5055 = vpop.xlane.xlu0 %5054
  %v5056 = vsel %vm433, %v5001, 0.0
  %5057 = vadd.xlane.f32.xlu0 %v5056
  %v5058 = vpop.xlane.xlu0 %5057
  %v5059 = vsel %vm433, %v5003, 0.0
  %5060 = vadd.xlane.f32.xlu0 %v5059
  %v5061 = vpop.xlane.xlu0 %5060
  %v5062 = vsel %vm433, %v5005, 0.0
  %5063 = vadd.xlane.f32.xlu0 %v5062
  %v5064 = vpop.xlane.xlu0 %5063
  %v5065 = vsel %vm433, %v5007, 0.0
  %5066 = vadd.xlane.f32.xlu0 %v5065
  %v5067 = vpop.xlane.xlu0 %5066
  %v5068 = vsel %vm433, %v5009, 0.0
  %5069 = vadd.xlane.f32.xlu0 %v5068
  %v5070 = vpop.xlane.xlu0 %5069
  %v5071 = vsel %vm433, %v5011, 0.0
  %5072 = vadd.xlane.f32.xlu0 %v5071
  %v5073 = vpop.xlane.xlu0 %5072
  %v5074 = vsel %vm433, %v5013, 0.0
  %5075 = vadd.xlane.f32.xlu0 %v5074
  %v5076 = vpop.xlane.xlu0 %5075
  %v5077 = vsel %vm433, %v5015, 0.0
  %5078 = vadd.xlane.f32.xlu0 %v5077
  %v5079 = vpop.xlane.xlu0 %5078
  %v5080 = vmul.f32 %v5034, 0.5
  %v5081 = vmul.f32 %v5037, 0.5
  %v5082 = vmul.f32 %v5040, 0.5
  %v5083 = vmul.f32 %v5043, 0.5
  %v5084 = vmul.f32 %v5046, 0.5
  %v5085 = vmul.f32 %v5049, 0.5
  %v5086 = vmul.f32 %v5052, 0.5
  %v5087 = vmul.f32 %v5055, 0.5
  %v5088 = vmul.f32 %v5058, 0.5
  %v5089 = vmul.f32 %v5061, 0.5
  %v5090 = vmul.f32 %v5064, 0.5
  %v5091 = vmul.f32 %v5067, 0.5
  %v5092 = vmul.f32 %v5070, 0.5
  %v5093 = vmul.f32 %v5073, 0.5
  %v5094 = vmul.f32 %v5076, 0.5
  %v5095 = vmul.f32 %v5079, 0.5
  %v5112 = vlaneseq
  %v5113 = vshrl.u32 %v5112, 7
  %v5114 = vsub.s32 %v515, %v5113
  %v5115 = vrot.slane %v5080, %v5114
  %v5116 = vlaneseq
  %v5117 = vshrl.u32 %v5116, 7
  %v5118 = vsub.s32 %v515, %v5117
  %v5119 = vrot.slane %v5081, %v5118
  %v5120 = vlaneseq
  %v5121 = vshrl.u32 %v5120, 7
  %v5122 = vsub.s32 %v515, %v5121
  %v5123 = vrot.slane %v5082, %v5122
  %v5124 = vlaneseq
  %v5125 = vshrl.u32 %v5124, 7
  %v5126 = vsub.s32 %v515, %v5125
  %v5127 = vrot.slane %v5083, %v5126
  %v5128 = vlaneseq
  %v5129 = vshrl.u32 %v5128, 7
  %v5130 = vsub.s32 %v515, %v5129
  %v5131 = vrot.slane %v5084, %v5130
  %v5132 = vlaneseq
  %v5133 = vshrl.u32 %v5132, 7
  %v5134 = vsub.s32 %v515, %v5133
  %v5135 = vrot.slane %v5085, %v5134
  %v5136 = vlaneseq
  %v5137 = vshrl.u32 %v5136, 7
  %v5138 = vsub.s32 %v515, %v5137
  %v5139 = vrot.slane %v5086, %v5138
  %v5140 = vlaneseq
  %v5141 = vshrl.u32 %v5140, 7
  %v5142 = vsub.s32 %v515, %v5141
  %v5143 = vrot.slane %v5087, %v5142
  %v5144 = vlaneseq
  %v5145 = vshrl.u32 %v5144, 7
  %v5146 = vsub.s32 %v515, %v5145
  %v5147 = vrot.slane %v5088, %v5146
  %v5148 = vlaneseq
  %v5149 = vshrl.u32 %v5148, 7
  %v5150 = vsub.s32 %v515, %v5149
  %v5151 = vrot.slane %v5089, %v5150
  %v5152 = vlaneseq
  %v5153 = vshrl.u32 %v5152, 7
  %v5154 = vsub.s32 %v515, %v5153
  %v5155 = vrot.slane %v5090, %v5154
  %v5156 = vlaneseq
  %v5157 = vshrl.u32 %v5156, 7
  %v5158 = vsub.s32 %v515, %v5157
  %v5159 = vrot.slane %v5091, %v5158
  %v5160 = vlaneseq
  %v5161 = vshrl.u32 %v5160, 7
  %v5162 = vsub.s32 %v515, %v5161
  %v5163 = vrot.slane %v5092, %v5162
  %v5164 = vlaneseq
  %v5165 = vshrl.u32 %v5164, 7
  %v5166 = vsub.s32 %v515, %v5165
  %v5167 = vrot.slane %v5093, %v5166
  %v5168 = vlaneseq
  %v5169 = vshrl.u32 %v5168, 7
  %v5170 = vsub.s32 %v515, %v5169
  %v5171 = vrot.slane %v5094, %v5170
  %v5172 = vlaneseq
  %v5173 = vshrl.u32 %v5172, 7
  %v5174 = vsub.s32 %v515, %v5173
  %v5175 = vrot.slane %v5095, %v5174
  %v5176 = vsel %vm580, %v5119, %v5115
  %v5177 = vsel %vm580, %v5127, %v5123
  %v5178 = vsel %vm580, %v5135, %v5131
  %v5179 = vsel %vm580, %v5143, %v5139
  %v5180 = vsel %vm580, %v5151, %v5147
  %v5181 = vsel %vm580, %v5159, %v5155
  %v5182 = vsel %vm580, %v5167, %v5163
  %v5183 = vsel %vm580, %v5175, %v5171
  %v5192 = vsel %vm597, %v5176, -inf
  %5193 = vmax.xlane.f32.xlu0 %v5192
  %v5194 = vpop.xlane.xlu0 %5193
  %v5195 = vsel %vm597, %v5177, -inf
  %5196 = vmax.xlane.f32.xlu0 %v5195
  %v5197 = vpop.xlane.xlu0 %5196
  %v5198 = vsel %vm597, %v5178, -inf
  %5199 = vmax.xlane.f32.xlu0 %v5198
  %v5200 = vpop.xlane.xlu0 %5199
  %v5201 = vsel %vm597, %v5179, -inf
  %5202 = vmax.xlane.f32.xlu0 %v5201
  %v5203 = vpop.xlane.xlu0 %5202
  %v5204 = vsel %vm597, %v5180, -inf
  %5205 = vmax.xlane.f32.xlu0 %v5204
  %v5206 = vpop.xlane.xlu0 %5205
  %v5207 = vsel %vm597, %v5181, -inf
  %5208 = vmax.xlane.f32.xlu0 %v5207
  %v5209 = vpop.xlane.xlu0 %5208
  %v5210 = vsel %vm597, %v5182, -inf
  %5211 = vmax.xlane.f32.xlu0 %v5210
  %v5212 = vpop.xlane.xlu0 %5211
  %v5213 = vsel %vm597, %v5183, -inf
  %5214 = vmax.xlane.f32.xlu0 %v5213
  %v5215 = vpop.xlane.xlu0 %5214
  %v5224 = vlaneseq
  %v5225 = vshrl.u32 %v5224, 7
  %v5226 = vsub.s32 0, %v5225
  %v5227 = vrot.slane %v5194, %v5226
  %v5228 = vlaneseq
  %v5229 = vshrl.u32 %v5228, 7
  %v5230 = vsub.s32 1, %v5229
  %v5231 = vrot.slane %v5194, %v5230
  %v5232 = vlaneseq
  %v5233 = vshrl.u32 %v5232, 7
  %v5234 = vsub.s32 0, %v5233
  %v5235 = vrot.slane %v5197, %v5234
  %v5236 = vlaneseq
  %v5237 = vshrl.u32 %v5236, 7
  %v5238 = vsub.s32 1, %v5237
  %v5239 = vrot.slane %v5197, %v5238
  %v5240 = vlaneseq
  %v5241 = vshrl.u32 %v5240, 7
  %v5242 = vsub.s32 0, %v5241
  %v5243 = vrot.slane %v5200, %v5242
  %v5244 = vlaneseq
  %v5245 = vshrl.u32 %v5244, 7
  %v5246 = vsub.s32 1, %v5245
  %v5247 = vrot.slane %v5200, %v5246
  %v5248 = vlaneseq
  %v5249 = vshrl.u32 %v5248, 7
  %v5250 = vsub.s32 0, %v5249
  %v5251 = vrot.slane %v5203, %v5250
  %v5252 = vlaneseq
  %v5253 = vshrl.u32 %v5252, 7
  %v5254 = vsub.s32 1, %v5253
  %v5255 = vrot.slane %v5203, %v5254
  %v5256 = vlaneseq
  %v5257 = vshrl.u32 %v5256, 7
  %v5258 = vsub.s32 0, %v5257
  %v5259 = vrot.slane %v5206, %v5258
  %v5260 = vlaneseq
  %v5261 = vshrl.u32 %v5260, 7
  %v5262 = vsub.s32 1, %v5261
  %v5263 = vrot.slane %v5206, %v5262
  %v5264 = vlaneseq
  %v5265 = vshrl.u32 %v5264, 7
  %v5266 = vsub.s32 0, %v5265
  %v5267 = vrot.slane %v5209, %v5266
  %v5268 = vlaneseq
  %v5269 = vshrl.u32 %v5268, 7
  %v5270 = vsub.s32 1, %v5269
  %v5271 = vrot.slane %v5209, %v5270
  %v5272 = vlaneseq
  %v5273 = vshrl.u32 %v5272, 7
  %v5274 = vsub.s32 0, %v5273
  %v5275 = vrot.slane %v5212, %v5274
  %v5276 = vlaneseq
  %v5277 = vshrl.u32 %v5276, 7
  %v5278 = vsub.s32 1, %v5277
  %v5279 = vrot.slane %v5212, %v5278
  %v5280 = vlaneseq
  %v5281 = vshrl.u32 %v5280, 7
  %v5282 = vsub.s32 0, %v5281
  %v5283 = vrot.slane %v5215, %v5282
  %v5284 = vlaneseq
  %v5285 = vshrl.u32 %v5284, 7
  %v5286 = vsub.s32 1, %v5285
  %v5287 = vrot.slane %v5215, %v5286
  %v5304 = vsub.f32 %v5080, %v5227
  %v5305 = vsub.f32 %v5081, %v5231
  %v5306 = vsub.f32 %v5082, %v5235
  %v5307 = vsub.f32 %v5083, %v5239
  %v5308 = vsub.f32 %v5084, %v5243
  %v5309 = vsub.f32 %v5085, %v5247
  %v5310 = vsub.f32 %v5086, %v5251
  %v5311 = vsub.f32 %v5087, %v5255
  %v5312 = vsub.f32 %v5088, %v5259
  %v5313 = vsub.f32 %v5089, %v5263
  %v5314 = vsub.f32 %v5090, %v5267
  %v5315 = vsub.f32 %v5091, %v5271
  %v5316 = vsub.f32 %v5092, %v5275
  %v5317 = vsub.f32 %v5093, %v5279
  %v5318 = vsub.f32 %v5094, %v5283
  %v5319 = vsub.f32 %v5095, %v5287
  %v5320 = vmul.f32 %v5304, 1.442695
  %v5321 = vpow.pop %v5320
  %v5322 = vmul.f32 %v5305, 1.442695
  %v5323 = vpow.pop %v5322
  %v5324 = vmul.f32 %v5306, 1.442695
  %v5325 = vpow.pop %v5324
  %v5326 = vmul.f32 %v5307, 1.442695
  %v5327 = vpow.pop %v5326
  %v5328 = vmul.f32 %v5308, 1.442695
  %v5329 = vpow.pop %v5328
  %v5330 = vmul.f32 %v5309, 1.442695
  %v5331 = vpow.pop %v5330
  %v5332 = vmul.f32 %v5310, 1.442695
  %v5333 = vpow.pop %v5332
  %v5334 = vmul.f32 %v5311, 1.442695
  %v5335 = vpow.pop %v5334
  %v5336 = vmul.f32 %v5312, 1.442695
  %v5337 = vpow.pop %v5336
  %v5338 = vmul.f32 %v5313, 1.442695
  %v5339 = vpow.pop %v5338
  %v5340 = vmul.f32 %v5314, 1.442695
  %v5341 = vpow.pop %v5340
  %v5342 = vmul.f32 %v5315, 1.442695
  %v5343 = vpow.pop %v5342
  %v5344 = vmul.f32 %v5316, 1.442695
  %v5345 = vpow.pop %v5344
  %v5346 = vmul.f32 %v5317, 1.442695
  %v5347 = vpow.pop %v5346
  %v5348 = vmul.f32 %v5318, 1.442695
  %v5349 = vpow.pop %v5348
  %v5350 = vmul.f32 %v5319, 1.442695
  %v5351 = vpow.pop %v5350
  %5368 = vset.pattern.permute.xlu0 0
  %5369 = vperm.xlu0 %5368, %v5321
  %v5370 = vpop.permute.xlu0 %5369
  %5371 = vset.pattern.permute.xlu0 0
  %5372 = vperm.xlu0 %5371, %v5323
  %v5373 = vpop.permute.xlu0 %5372
  %5374 = vset.pattern.permute.xlu0 0
  %5375 = vperm.xlu0 %5374, %v5325
  %v5376 = vpop.permute.xlu0 %5375
  %5377 = vset.pattern.permute.xlu0 0
  %5378 = vperm.xlu0 %5377, %v5327
  %v5379 = vpop.permute.xlu0 %5378
  %5380 = vset.pattern.permute.xlu0 0
  %5381 = vperm.xlu0 %5380, %v5329
  %v5382 = vpop.permute.xlu0 %5381
  %5383 = vset.pattern.permute.xlu0 0
  %5384 = vperm.xlu0 %5383, %v5331
  %v5385 = vpop.permute.xlu0 %5384
  %5386 = vset.pattern.permute.xlu0 0
  %5387 = vperm.xlu0 %5386, %v5333
  %v5388 = vpop.permute.xlu0 %5387
  %5389 = vset.pattern.permute.xlu0 0
  %5390 = vperm.xlu0 %5389, %v5335
  %v5391 = vpop.permute.xlu0 %5390
  %5392 = vset.pattern.permute.xlu0 0
  %5393 = vperm.xlu0 %5392, %v5337
  %v5394 = vpop.permute.xlu0 %5393
  %5395 = vset.pattern.permute.xlu0 0
  %5396 = vperm.xlu0 %5395, %v5339
  %v5397 = vpop.permute.xlu0 %5396
  %5398 = vset.pattern.permute.xlu0 0
  %5399 = vperm.xlu0 %5398, %v5341
  %v5400 = vpop.permute.xlu0 %5399
  %5401 = vset.pattern.permute.xlu0 0
  %5402 = vperm.xlu0 %5401, %v5343
  %v5403 = vpop.permute.xlu0 %5402
  %5404 = vset.pattern.permute.xlu0 0
  %5405 = vperm.xlu0 %5404, %v5345
  %v5406 = vpop.permute.xlu0 %5405
  %5407 = vset.pattern.permute.xlu0 0
  %5408 = vperm.xlu0 %5407, %v5347
  %v5409 = vpop.permute.xlu0 %5408
  %5410 = vset.pattern.permute.xlu0 0
  %5411 = vperm.xlu0 %5410, %v5349
  %v5412 = vpop.permute.xlu0 %5411
  %5413 = vset.pattern.permute.xlu0 0
  %5414 = vperm.xlu0 %5413, %v5351
  %v5415 = vpop.permute.xlu0 %5414
  %v5416 = vlaneseq
  %v5417 = vshrl.u32 %v5416, 7
  %v5418 = vsub.s32 %v515, %v5417
  %v5419 = vrot.slane %v5370, %v5418
  %v5420 = vlaneseq
  %v5421 = vshrl.u32 %v5420, 7
  %v5422 = vsub.s32 %v515, %v5421
  %v5423 = vrot.slane %v5373, %v5422
  %v5424 = vlaneseq
  %v5425 = vshrl.u32 %v5424, 7
  %v5426 = vsub.s32 %v515, %v5425
  %v5427 = vrot.slane %v5376, %v5426
  %v5428 = vlaneseq
  %v5429 = vshrl.u32 %v5428, 7
  %v5430 = vsub.s32 %v515, %v5429
  %v5431 = vrot.slane %v5379, %v5430
  %v5432 = vlaneseq
  %v5433 = vshrl.u32 %v5432, 7
  %v5434 = vsub.s32 %v515, %v5433
  %v5435 = vrot.slane %v5382, %v5434
  %v5436 = vlaneseq
  %v5437 = vshrl.u32 %v5436, 7
  %v5438 = vsub.s32 %v515, %v5437
  %v5439 = vrot.slane %v5385, %v5438
  %v5440 = vlaneseq
  %v5441 = vshrl.u32 %v5440, 7
  %v5442 = vsub.s32 %v515, %v5441
  %v5443 = vrot.slane %v5388, %v5442
  %v5444 = vlaneseq
  %v5445 = vshrl.u32 %v5444, 7
  %v5446 = vsub.s32 %v515, %v5445
  %v5447 = vrot.slane %v5391, %v5446
  %v5448 = vlaneseq
  %v5449 = vshrl.u32 %v5448, 7
  %v5450 = vsub.s32 %v515, %v5449
  %v5451 = vrot.slane %v5394, %v5450
  %v5452 = vlaneseq
  %v5453 = vshrl.u32 %v5452, 7
  %v5454 = vsub.s32 %v515, %v5453
  %v5455 = vrot.slane %v5397, %v5454
  %v5456 = vlaneseq
  %v5457 = vshrl.u32 %v5456, 7
  %v5458 = vsub.s32 %v515, %v5457
  %v5459 = vrot.slane %v5400, %v5458
  %v5460 = vlaneseq
  %v5461 = vshrl.u32 %v5460, 7
  %v5462 = vsub.s32 %v515, %v5461
  %v5463 = vrot.slane %v5403, %v5462
  %v5464 = vlaneseq
  %v5465 = vshrl.u32 %v5464, 7
  %v5466 = vsub.s32 %v515, %v5465
  %v5467 = vrot.slane %v5406, %v5466
  %v5468 = vlaneseq
  %v5469 = vshrl.u32 %v5468, 7
  %v5470 = vsub.s32 %v515, %v5469
  %v5471 = vrot.slane %v5409, %v5470
  %v5472 = vlaneseq
  %v5473 = vshrl.u32 %v5472, 7
  %v5474 = vsub.s32 %v515, %v5473
  %v5475 = vrot.slane %v5412, %v5474
  %v5476 = vlaneseq
  %v5477 = vshrl.u32 %v5476, 7
  %v5478 = vsub.s32 %v515, %v5477
  %v5479 = vrot.slane %v5415, %v5478
  %v5480 = vsel %vm580, %v5423, %v5419
  %v5481 = vsel %vm580, %v5431, %v5427
  %v5482 = vsel %vm580, %v5439, %v5435
  %v5483 = vsel %vm580, %v5447, %v5443
  %v5484 = vsel %vm580, %v5455, %v5451
  %v5485 = vsel %vm580, %v5463, %v5459
  %v5486 = vsel %vm580, %v5471, %v5467
  %v5487 = vsel %vm580, %v5479, %v5475
  %v5496 = vsel %vm597, %v5480, 0.0
  %5497 = vadd.xlane.f32.xlu0 %v5496
  %v5498 = vpop.xlane.xlu0 %5497
  %v5499 = vsel %vm597, %v5481, 0.0
  %5500 = vadd.xlane.f32.xlu0 %v5499
  %v5501 = vpop.xlane.xlu0 %5500
  %v5502 = vsel %vm597, %v5482, 0.0
  %5503 = vadd.xlane.f32.xlu0 %v5502
  %v5504 = vpop.xlane.xlu0 %5503
  %v5505 = vsel %vm597, %v5483, 0.0
  %5506 = vadd.xlane.f32.xlu0 %v5505
  %v5507 = vpop.xlane.xlu0 %5506
  %v5508 = vsel %vm597, %v5484, 0.0
  %5509 = vadd.xlane.f32.xlu0 %v5508
  %v5510 = vpop.xlane.xlu0 %5509
  %v5511 = vsel %vm597, %v5485, 0.0
  %5512 = vadd.xlane.f32.xlu0 %v5511
  %v5513 = vpop.xlane.xlu0 %5512
  %v5514 = vsel %vm597, %v5486, 0.0
  %5515 = vadd.xlane.f32.xlu0 %v5514
  %v5516 = vpop.xlane.xlu0 %5515
  %v5517 = vsel %vm597, %v5487, 0.0
  %5518 = vadd.xlane.f32.xlu0 %v5517
  %v5519 = vpop.xlane.xlu0 %5518
  %v5528 = vlaneseq
  %v5529 = vshrl.u32 %v5528, 7
  %v5530 = vsub.s32 0, %v5529
  %v5531 = vrot.slane %v5498, %v5530
  %v5532 = vlaneseq
  %v5533 = vshrl.u32 %v5532, 7
  %v5534 = vsub.s32 1, %v5533
  %v5535 = vrot.slane %v5498, %v5534
  %v5536 = vlaneseq
  %v5537 = vshrl.u32 %v5536, 7
  %v5538 = vsub.s32 0, %v5537
  %v5539 = vrot.slane %v5501, %v5538
  %v5540 = vlaneseq
  %v5541 = vshrl.u32 %v5540, 7
  %v5542 = vsub.s32 1, %v5541
  %v5543 = vrot.slane %v5501, %v5542
  %v5544 = vlaneseq
  %v5545 = vshrl.u32 %v5544, 7
  %v5546 = vsub.s32 0, %v5545
  %v5547 = vrot.slane %v5504, %v5546
  %v5548 = vlaneseq
  %v5549 = vshrl.u32 %v5548, 7
  %v5550 = vsub.s32 1, %v5549
  %v5551 = vrot.slane %v5504, %v5550
  %v5552 = vlaneseq
  %v5553 = vshrl.u32 %v5552, 7
  %v5554 = vsub.s32 0, %v5553
  %v5555 = vrot.slane %v5507, %v5554
  %v5556 = vlaneseq
  %v5557 = vshrl.u32 %v5556, 7
  %v5558 = vsub.s32 1, %v5557
  %v5559 = vrot.slane %v5507, %v5558
  %v5560 = vlaneseq
  %v5561 = vshrl.u32 %v5560, 7
  %v5562 = vsub.s32 0, %v5561
  %v5563 = vrot.slane %v5510, %v5562
  %v5564 = vlaneseq
  %v5565 = vshrl.u32 %v5564, 7
  %v5566 = vsub.s32 1, %v5565
  %v5567 = vrot.slane %v5510, %v5566
  %v5568 = vlaneseq
  %v5569 = vshrl.u32 %v5568, 7
  %v5570 = vsub.s32 0, %v5569
  %v5571 = vrot.slane %v5513, %v5570
  %v5572 = vlaneseq
  %v5573 = vshrl.u32 %v5572, 7
  %v5574 = vsub.s32 1, %v5573
  %v5575 = vrot.slane %v5513, %v5574
  %v5576 = vlaneseq
  %v5577 = vshrl.u32 %v5576, 7
  %v5578 = vsub.s32 0, %v5577
  %v5579 = vrot.slane %v5516, %v5578
  %v5580 = vlaneseq
  %v5581 = vshrl.u32 %v5580, 7
  %v5582 = vsub.s32 1, %v5581
  %v5583 = vrot.slane %v5516, %v5582
  %v5584 = vlaneseq
  %v5585 = vshrl.u32 %v5584, 7
  %v5586 = vsub.s32 0, %v5585
  %v5587 = vrot.slane %v5519, %v5586
  %v5588 = vlaneseq
  %v5589 = vshrl.u32 %v5588, 7
  %v5590 = vsub.s32 1, %v5589
  %v5591 = vrot.slane %v5519, %v5590
  %v5608 = vrcp.pop %v5531
  %v5609 = vmul.f32 %v5321, %v5608
  %v5610 = vrcp.pop %v5535
  %v5611 = vmul.f32 %v5323, %v5610
  %v5612 = vrcp.pop %v5539
  %v5613 = vmul.f32 %v5325, %v5612
  %v5614 = vrcp.pop %v5543
  %v5615 = vmul.f32 %v5327, %v5614
  %v5616 = vrcp.pop %v5547
  %v5617 = vmul.f32 %v5329, %v5616
  %v5618 = vrcp.pop %v5551
  %v5619 = vmul.f32 %v5331, %v5618
  %v5620 = vrcp.pop %v5555
  %v5621 = vmul.f32 %v5333, %v5620
  %v5622 = vrcp.pop %v5559
  %v5623 = vmul.f32 %v5335, %v5622
  %v5624 = vrcp.pop %v5563
  %v5625 = vmul.f32 %v5337, %v5624
  %v5626 = vrcp.pop %v5567
  %v5627 = vmul.f32 %v5339, %v5626
  %v5628 = vrcp.pop %v5571
  %v5629 = vmul.f32 %v5341, %v5628
  %v5630 = vrcp.pop %v5575
  %v5631 = vmul.f32 %v5343, %v5630
  %v5632 = vrcp.pop %v5579
  %v5633 = vmul.f32 %v5345, %v5632
  %v5634 = vrcp.pop %v5583
  %v5635 = vmul.f32 %v5347, %v5634
  %v5636 = vrcp.pop %v5587
  %v5637 = vmul.f32 %v5349, %v5636
  %v5638 = vrcp.pop %v5591
  %v5639 = vmul.f32 %v5351, %v5638
  %5642 = vset.pattern.permute.xlu0 0
  %5643 = vperm.xlu0 %5642, %v5609
  %v5644 = vpop.permute.xlu0 %5643
  %5645 = vset.pattern.permute.xlu0 0
  %5646 = vperm.xlu0 %5645, %v5611
  %v5647 = vpop.permute.xlu0 %5646
  %v5648 = vlaneseq
  %v5649 = vshrl.u32 %v5648, 7
  %v5650 = vsub.s32 %v515, %v5649
  %v5651 = vrot.slane %v5644, %v5650
  %v5652 = vlaneseq
  %v5653 = vshrl.u32 %v5652, 7
  %v5654 = vsub.s32 %v515, %v5653
  %v5655 = vrot.slane %v5647, %v5654
  %v5656 = vsel %vm580, %v5655, %v5651
  %5657 = vrot.lane.b32.xlu0 %v343, 52
  %v5658 = vpop.permute.xlu0 %5657
  %v5659 = vsel %vm1065, %v5656, 0
  %v5661 = vsel %vm1068, %v5658, 0
  %5663 = vmatprep.subr.mxu0 0.0
  %5664 = vmatpush1.msra.mxu0 %v5661
  %5665 = vmatprep.subr.mxu0 0.0
  %5666 = vmatpush1.msra.mxu0 0.0
  %5667 = vmatprep.subr.mxu0 0.0
  %5668 = vmatpush1.msra.mxu0 0.0
  %5669 = vmatprep.subr.mxu0 0.0
  %5670 = vmatpush1.msra.mxu0 0.0
  %5671 = vmatprep.subr.mxu0 0.0
  %5672 = vmatpush1.msra.mxu0 0.0
  %5673 = vmatprep.subr.mxu0 0.0
  %5674 = vmatpush1.msra.mxu0 0.0
  %5675 = vmatprep.subr.mxu0 0.0
  %5676 = vmatpush1.msra.mxu0 0.0
  %5677 = vmatprep.subr.mxu0 0.0
  %5678 = vmatpush1.msra.mxu0 0.0
  %5679 = vmatprep.subr.mxu0 0.0
  %5680 = vmatpush1.msra.mxu0 0.0
  %5681 = vmatprep.subr.mxu0 0.0
  %5682 = vmatpush1.msra.mxu0 0.0
  %5683 = vmatprep.subr.mxu0 0.0
  %5684 = vmatpush1.msra.mxu0 0.0
  %5685 = vmatprep.subr.mxu0 0.0
  %5686 = vmatpush1.msra.mxu0 0.0
  %5687 = vmatprep.subr.mxu0 0.0
  %5688 = vmatpush1.msra.mxu0 0.0
  %5689 = vmatprep.subr.mxu0 0.0
  %5690 = vmatpush1.msra.mxu0 0.0
  %5691 = vmatprep.subr.mxu0 0.0
  %5692 = vmatpush1.msra.mxu0 0.0
  %5693 = vmatprep.subr.mxu0 0.0
  %5694 = vmatpush1.msra.mxu0 0.0
  %5695 = vmatprep.subr.mxu0 0.0
  %5696 = vmatpush1.msra.mxu0 0.0
  %5697 = vmatprep.subr.mxu0 0.0
  %5698 = vmatpush1.msra.mxu0 0.0
  %5699 = vmatprep.subr.mxu0 0.0
  %5700 = vmatpush1.msra.mxu0 0.0
  %5701 = vmatprep.subr.mxu0 0.0
  %5702 = vmatpush1.msra.mxu0 0.0
  %5703 = vmatprep.subr.mxu0 0.0
  %5704 = vmatpush1.msra.mxu0 0.0
  %5705 = vmatprep.subr.mxu0 0.0
  %5706 = vmatpush1.msra.mxu0 0.0
  %5707 = vmatprep.subr.mxu0 0.0
  %5708 = vmatpush1.msra.mxu0 0.0
  %5709 = vmatprep.subr.mxu0 0.0
  %5710 = vmatpush1.msra.mxu0 0.0
  %5711 = vmatprep.subr.mxu0 0.0
  %5712 = vmatpush1.msra.mxu0 0.0
  %5713 = vmatprep.subr.mxu0 0.0
  %5714 = vmatpush1.msra.mxu0 0.0
  %5715 = vmatprep.subr.mxu0 0.0
  %5716 = vmatpush1.msra.mxu0 0.0
  %5717 = vmatprep.subr.mxu0 0.0
  %5718 = vmatpush1.msra.mxu0 0.0
  %5719 = vmatprep.subr.mxu0 0.0
  %5720 = vmatpush1.msra.mxu0 0.0
  %5721 = vmatprep.subr.mxu0 0.0
  %5722 = vmatpush1.msra.mxu0 0.0
  %5723 = vmatprep.subr.mxu0 0.0
  %5724 = vmatpush1.msra.mxu0 0.0
  %5725 = vmatprep.subr.mxu0 0.0
  %5726 = vmatpush1.msra.mxu0 0.0
  %5727 = vmatprep.mubr.f32.mxu0 0.0
  %5728 = vmatmul.mubr.f32.gmra.mrb[0].mxu0 %v5659
  %v5729 = vpop.f32.mrb[0].mxu0
  %v5730 = vadd.f32 0.0, %v5729
  %v5731 = vpop.f32.mrb[0].mxu0
  %5732 = vdwg.mxu0
  %5735 = vset.pattern.permute.xlu0 0
  %5736 = vperm.xlu0 %5735, %v5613
  %v5737 = vpop.permute.xlu0 %5736
  %5738 = vset.pattern.permute.xlu0 0
  %5739 = vperm.xlu0 %5738, %v5615
  %v5740 = vpop.permute.xlu0 %5739
  %v5741 = vlaneseq
  %v5742 = vshrl.u32 %v5741, 7
  %v5743 = vsub.s32 %v515, %v5742
  %v5744 = vrot.slane %v5737, %v5743
  %v5745 = vlaneseq
  %v5746 = vshrl.u32 %v5745, 7
  %v5747 = vsub.s32 %v515, %v5746
  %v5748 = vrot.slane %v5740, %v5747
  %v5749 = vsel %vm580, %v5748, %v5744
  %5750 = vrot.lane.b32.xlu0 %v350, 52
  %v5751 = vpop.permute.xlu0 %5750
  %v5752 = vsel %vm1065, %v5749, 0
  %v5754 = vsel %vm1068, %v5751, 0
  %5756 = vmatprep.subr.mxu0 0.0
  %5757 = vmatpush1.msra.mxu0 %v5754
  %5758 = vmatprep.subr.mxu0 0.0
  %5759 = vmatpush1.msra.mxu0 0.0
  %5760 = vmatprep.subr.mxu0 0.0
  %5761 = vmatpush1.msra.mxu0 0.0
  %5762 = vmatprep.subr.mxu0 0.0
  %5763 = vmatpush1.msra.mxu0 0.0
  %5764 = vmatprep.subr.mxu0 0.0
  %5765 = vmatpush1.msra.mxu0 0.0
  %5766 = vmatprep.subr.mxu0 0.0
  %5767 = vmatpush1.msra.mxu0 0.0
  %5768 = vmatprep.subr.mxu0 0.0
  %5769 = vmatpush1.msra.mxu0 0.0
  %5770 = vmatprep.subr.mxu0 0.0
  %5771 = vmatpush1.msra.mxu0 0.0
  %5772 = vmatprep.subr.mxu0 0.0
  %5773 = vmatpush1.msra.mxu0 0.0
  %5774 = vmatprep.subr.mxu0 0.0
  %5775 = vmatpush1.msra.mxu0 0.0
  %5776 = vmatprep.subr.mxu0 0.0
  %5777 = vmatpush1.msra.mxu0 0.0
  %5778 = vmatprep.subr.mxu0 0.0
  %5779 = vmatpush1.msra.mxu0 0.0
  %5780 = vmatprep.subr.mxu0 0.0
  %5781 = vmatpush1.msra.mxu0 0.0
  %5782 = vmatprep.subr.mxu0 0.0
  %5783 = vmatpush1.msra.mxu0 0.0
  %5784 = vmatprep.subr.mxu0 0.0
  %5785 = vmatpush1.msra.mxu0 0.0
  %5786 = vmatprep.subr.mxu0 0.0
  %5787 = vmatpush1.msra.mxu0 0.0
  %5788 = vmatprep.subr.mxu0 0.0
  %5789 = vmatpush1.msra.mxu0 0.0
  %5790 = vmatprep.subr.mxu0 0.0
  %5791 = vmatpush1.msra.mxu0 0.0
  %5792 = vmatprep.subr.mxu0 0.0
  %5793 = vmatpush1.msra.mxu0 0.0
  %5794 = vmatprep.subr.mxu0 0.0
  %5795 = vmatpush1.msra.mxu0 0.0
  %5796 = vmatprep.subr.mxu0 0.0
  %5797 = vmatpush1.msra.mxu0 0.0
  %5798 = vmatprep.subr.mxu0 0.0
  %5799 = vmatpush1.msra.mxu0 0.0
  %5800 = vmatprep.subr.mxu0 0.0
  %5801 = vmatpush1.msra.mxu0 0.0
  %5802 = vmatprep.subr.mxu0 0.0
  %5803 = vmatpush1.msra.mxu0 0.0
  %5804 = vmatprep.subr.mxu0 0.0
  %5805 = vmatpush1.msra.mxu0 0.0
  %5806 = vmatprep.subr.mxu0 0.0
  %5807 = vmatpush1.msra.mxu0 0.0
  %5808 = vmatprep.subr.mxu0 0.0
  %5809 = vmatpush1.msra.mxu0 0.0
  %5810 = vmatprep.subr.mxu0 0.0
  %5811 = vmatpush1.msra.mxu0 0.0
  %5812 = vmatprep.subr.mxu0 0.0
  %5813 = vmatpush1.msra.mxu0 0.0
  %5814 = vmatprep.subr.mxu0 0.0
  %5815 = vmatpush1.msra.mxu0 0.0
  %5816 = vmatprep.subr.mxu0 0.0
  %5817 = vmatpush1.msra.mxu0 0.0
  %5818 = vmatprep.subr.mxu0 0.0
  %5819 = vmatpush1.msra.mxu0 0.0
  %5820 = vmatprep.mubr.f32.mxu0 0.0
  %5821 = vmatmul.mubr.f32.gmra.mrb[0].mxu0 %v5752
  %v5822 = vpop.f32.mrb[0].mxu0
  %v5823 = vadd.f32 0.0, %v5822
  %v5824 = vpop.f32.mrb[0].mxu0
  %5825 = vdwg.mxu0
  %5828 = vset.pattern.permute.xlu0 0
  %5829 = vperm.xlu0 %5828, %v5617
  %v5830 = vpop.permute.xlu0 %5829
  %5831 = vset.pattern.permute.xlu0 0
  %5832 = vperm.xlu0 %5831, %v5619
  %v5833 = vpop.permute.xlu0 %5832
  %v5834 = vlaneseq
  %v5835 = vshrl.u32 %v5834, 7
  %v5836 = vsub.s32 %v515, %v5835
  %v5837 = vrot.slane %v5830, %v5836
  %v5838 = vlaneseq
  %v5839 = vshrl.u32 %v5838, 7
  %v5840 = vsub.s32 %v515, %v5839
  %v5841 = vrot.slane %v5833, %v5840
  %v5842 = vsel %vm580, %v5841, %v5837
  %5843 = vrot.lane.b32.xlu0 %v357, 52
  %v5844 = vpop.permute.xlu0 %5843
  %v5845 = vsel %vm1065, %v5842, 0
  %v5847 = vsel %vm1068, %v5844, 0
  %5849 = vmatprep.subr.mxu0 0.0
  %5850 = vmatpush1.msra.mxu0 %v5847
  %5851 = vmatprep.subr.mxu0 0.0
  %5852 = vmatpush1.msra.mxu0 0.0
  %5853 = vmatprep.subr.mxu0 0.0
  %5854 = vmatpush1.msra.mxu0 0.0
  %5855 = vmatprep.subr.mxu0 0.0
  %5856 = vmatpush1.msra.mxu0 0.0
  %5857 = vmatprep.subr.mxu0 0.0
  %5858 = vmatpush1.msra.mxu0 0.0
  %5859 = vmatprep.subr.mxu0 0.0
  %5860 = vmatpush1.msra.mxu0 0.0
  %5861 = vmatprep.subr.mxu0 0.0
  %5862 = vmatpush1.msra.mxu0 0.0
  %5863 = vmatprep.subr.mxu0 0.0
  %5864 = vmatpush1.msra.mxu0 0.0
  %5865 = vmatprep.subr.mxu0 0.0
  %5866 = vmatpush1.msra.mxu0 0.0
  %5867 = vmatprep.subr.mxu0 0.0
  %5868 = vmatpush1.msra.mxu0 0.0
  %5869 = vmatprep.subr.mxu0 0.0
  %5870 = vmatpush1.msra.mxu0 0.0
  %5871 = vmatprep.subr.mxu0 0.0
  %5872 = vmatpush1.msra.mxu0 0.0
  %5873 = vmatprep.subr.mxu0 0.0
  %5874 = vmatpush1.msra.mxu0 0.0
  %5875 = vmatprep.subr.mxu0 0.0
  %5876 = vmatpush1.msra.mxu0 0.0
  %5877 = vmatprep.subr.mxu0 0.0
  %5878 = vmatpush1.msra.mxu0 0.0
  %5879 = vmatprep.subr.mxu0 0.0
  %5880 = vmatpush1.msra.mxu0 0.0
  %5881 = vmatprep.subr.mxu0 0.0
  %5882 = vmatpush1.msra.mxu0 0.0
  %5883 = vmatprep.subr.mxu0 0.0
  %5884 = vmatpush1.msra.mxu0 0.0
  %5885 = vmatprep.subr.mxu0 0.0
  %5886 = vmatpush1.msra.mxu0 0.0
  %5887 = vmatprep.subr.mxu0 0.0
  %5888 = vmatpush1.msra.mxu0 0.0
  %5889 = vmatprep.subr.mxu0 0.0
  %5890 = vmatpush1.msra.mxu0 0.0
  %5891 = vmatprep.subr.mxu0 0.0
  %5892 = vmatpush1.msra.mxu0 0.0
  %5893 = vmatprep.subr.mxu0 0.0
  %5894 = vmatpush1.msra.mxu0 0.0
  %5895 = vmatprep.subr.mxu0 0.0
  %5896 = vmatpush1.msra.mxu0 0.0
  %5897 = vmatprep.subr.mxu0 0.0
  %5898 = vmatpush1.msra.mxu0 0.0
  %5899 = vmatprep.subr.mxu0 0.0
  %5900 = vmatpush1.msra.mxu0 0.0
  %5901 = vmatprep.subr.mxu0 0.0
  %5902 = vmatpush1.msra.mxu0 0.0
  %5903 = vmatprep.subr.mxu0 0.0
  %5904 = vmatpush1.msra.mxu0 0.0
  %5905 = vmatprep.subr.mxu0 0.0
  %5906 = vmatpush1.msra.mxu0 0.0
  %5907 = vmatprep.subr.mxu0 0.0
  %5908 = vmatpush1.msra.mxu0 0.0
  %5909 = vmatprep.subr.mxu0 0.0
  %5910 = vmatpush1.msra.mxu0 0.0
  %5911 = vmatprep.subr.mxu0 0.0
  %5912 = vmatpush1.msra.mxu0 0.0
  %5913 = vmatprep.mubr.f32.mxu0 0.0
  %5914 = vmatmul.mubr.f32.gmra.mrb[0].mxu0 %v5845
  %v5915 = vpop.f32.mrb[0].mxu0
  %v5916 = vadd.f32 0.0, %v5915
  %v5917 = vpop.f32.mrb[0].mxu0
  %5918 = vdwg.mxu0
  %5921 = vset.pattern.permute.xlu0 0
  %5922 = vperm.xlu0 %5921, %v5621
  %v5923 = vpop.permute.xlu0 %5922
  %5924 = vset.pattern.permute.xlu0 0
  %5925 = vperm.xlu0 %5924, %v5623
  %v5926 = vpop.permute.xlu0 %5925
  %v5927 = vlaneseq
  %v5928 = vshrl.u32 %v5927, 7
  %v5929 = vsub.s32 %v515, %v5928
  %v5930 = vrot.slane %v5923, %v5929
  %v5931 = vlaneseq
  %v5932 = vshrl.u32 %v5931, 7
  %v5933 = vsub.s32 %v515, %v5932
  %v5934 = vrot.slane %v5926, %v5933
  %v5935 = vsel %vm580, %v5934, %v5930
  %5936 = vrot.lane.b32.xlu0 %v364, 52
  %v5937 = vpop.permute.xlu0 %5936
  %v5938 = vsel %vm1065, %v5935, 0
  %v5940 = vsel %vm1068, %v5937, 0
  %5942 = vmatprep.subr.mxu0 0.0
  %5943 = vmatpush1.msra.mxu0 %v5940
  %5944 = vmatprep.subr.mxu0 0.0
  %5945 = vmatpush1.msra.mxu0 0.0
  %5946 = vmatprep.subr.mxu0 0.0
  %5947 = vmatpush1.msra.mxu0 0.0
  %5948 = vmatprep.subr.mxu0 0.0
  %5949 = vmatpush1.msra.mxu0 0.0
  %5950 = vmatprep.subr.mxu0 0.0
  %5951 = vmatpush1.msra.mxu0 0.0
  %5952 = vmatprep.subr.mxu0 0.0
  %5953 = vmatpush1.msra.mxu0 0.0
  %5954 = vmatprep.subr.mxu0 0.0
  %5955 = vmatpush1.msra.mxu0 0.0
  %5956 = vmatprep.subr.mxu0 0.0
  %5957 = vmatpush1.msra.mxu0 0.0
  %5958 = vmatprep.subr.mxu0 0.0
  %5959 = vmatpush1.msra.mxu0 0.0
  %5960 = vmatprep.subr.mxu0 0.0
  %5961 = vmatpush1.msra.mxu0 0.0
  %5962 = vmatprep.subr.mxu0 0.0
  %5963 = vmatpush1.msra.mxu0 0.0
  %5964 = vmatprep.subr.mxu0 0.0
  %5965 = vmatpush1.msra.mxu0 0.0
  %5966 = vmatprep.subr.mxu0 0.0
  %5967 = vmatpush1.msra.mxu0 0.0
  %5968 = vmatprep.subr.mxu0 0.0
  %5969 = vmatpush1.msra.mxu0 0.0
  %5970 = vmatprep.subr.mxu0 0.0
  %5971 = vmatpush1.msra.mxu0 0.0
  %5972 = vmatprep.subr.mxu0 0.0
  %5973 = vmatpush1.msra.mxu0 0.0
  %5974 = vmatprep.subr.mxu0 0.0
  %5975 = vmatpush1.msra.mxu0 0.0
  %5976 = vmatprep.subr.mxu0 0.0
  %5977 = vmatpush1.msra.mxu0 0.0
  %5978 = vmatprep.subr.mxu0 0.0
  %5979 = vmatpush1.msra.mxu0 0.0
  %5980 = vmatprep.subr.mxu0 0.0
  %5981 = vmatpush1.msra.mxu0 0.0
  %5982 = vmatprep.subr.mxu0 0.0
  %5983 = vmatpush1.msra.mxu0 0.0
  %5984 = vmatprep.subr.mxu0 0.0
  %5985 = vmatpush1.msra.mxu0 0.0
  %5986 = vmatprep.subr.mxu0 0.0
  %5987 = vmatpush1.msra.mxu0 0.0
  %5988 = vmatprep.subr.mxu0 0.0
  %5989 = vmatpush1.msra.mxu0 0.0
  %5990 = vmatprep.subr.mxu0 0.0
  %5991 = vmatpush1.msra.mxu0 0.0
  %5992 = vmatprep.subr.mxu0 0.0
  %5993 = vmatpush1.msra.mxu0 0.0
  %5994 = vmatprep.subr.mxu0 0.0
  %5995 = vmatpush1.msra.mxu0 0.0
  %5996 = vmatprep.subr.mxu0 0.0
  %5997 = vmatpush1.msra.mxu0 0.0
  %5998 = vmatprep.subr.mxu0 0.0
  %5999 = vmatpush1.msra.mxu0 0.0
  %6000 = vmatprep.subr.mxu0 0.0
  %6001 = vmatpush1.msra.mxu0 0.0
  %6002 = vmatprep.subr.mxu0 0.0
  %6003 = vmatpush1.msra.mxu0 0.0
  %6004 = vmatprep.subr.mxu0 0.0
  %6005 = vmatpush1.msra.mxu0 0.0
  %6006 = vmatprep.mubr.f32.mxu0 0.0
  %6007 = vmatmul.mubr.f32.gmra.mrb[0].mxu0 %v5938
  %v6008 = vpop.f32.mrb[0].mxu0
  %v6009 = vadd.f32 0.0, %v6008
  %v6010 = vpop.f32.mrb[0].mxu0
  %6011 = vdwg.mxu0
  %6014 = vset.pattern.permute.xlu0 0
  %6015 = vperm.xlu0 %6014, %v5625
  %v6016 = vpop.permute.xlu0 %6015
  %6017 = vset.pattern.permute.xlu0 0
  %6018 = vperm.xlu0 %6017, %v5627
  %v6019 = vpop.permute.xlu0 %6018
  %v6020 = vlaneseq
  %v6021 = vshrl.u32 %v6020, 7
  %v6022 = vsub.s32 %v515, %v6021
  %v6023 = vrot.slane %v6016, %v6022
  %v6024 = vlaneseq
  %v6025 = vshrl.u32 %v6024, 7
  %v6026 = vsub.s32 %v515, %v6025
  %v6027 = vrot.slane %v6019, %v6026
  %v6028 = vsel %vm580, %v6027, %v6023
  %6029 = vrot.lane.b32.xlu0 %v371, 52
  %v6030 = vpop.permute.xlu0 %6029
  %v6031 = vsel %vm1065, %v6028, 0
  %v6033 = vsel %vm1068, %v6030, 0
  %6035 = vmatprep.subr.mxu0 0.0
  %6036 = vmatpush1.msra.mxu0 %v6033
  %6037 = vmatprep.subr.mxu0 0.0
  %6038 = vmatpush1.msra.mxu0 0.0
  %6039 = vmatprep.subr.mxu0 0.0
  %6040 = vmatpush1.msra.mxu0 0.0
  %6041 = vmatprep.subr.mxu0 0.0
  %6042 = vmatpush1.msra.mxu0 0.0
  %6043 = vmatprep.subr.mxu0 0.0
  %6044 = vmatpush1.msra.mxu0 0.0
  %6045 = vmatprep.subr.mxu0 0.0
  %6046 = vmatpush1.msra.mxu0 0.0
  %6047 = vmatprep.subr.mxu0 0.0
  %6048 = vmatpush1.msra.mxu0 0.0
  %6049 = vmatprep.subr.mxu0 0.0
  %6050 = vmatpush1.msra.mxu0 0.0
  %6051 = vmatprep.subr.mxu0 0.0
  %6052 = vmatpush1.msra.mxu0 0.0
  %6053 = vmatprep.subr.mxu0 0.0
  %6054 = vmatpush1.msra.mxu0 0.0
  %6055 = vmatprep.subr.mxu0 0.0
  %6056 = vmatpush1.msra.mxu0 0.0
  %6057 = vmatprep.subr.mxu0 0.0
  %6058 = vmatpush1.msra.mxu0 0.0
  %6059 = vmatprep.subr.mxu0 0.0
  %6060 = vmatpush1.msra.mxu0 0.0
  %6061 = vmatprep.subr.mxu0 0.0
  %6062 = vmatpush1.msra.mxu0 0.0
  %6063 = vmatprep.subr.mxu0 0.0
  %6064 = vmatpush1.msra.mxu0 0.0
  %6065 = vmatprep.subr.mxu0 0.0
  %6066 = vmatpush1.msra.mxu0 0.0
  %6067 = vmatprep.subr.mxu0 0.0
  %6068 = vmatpush1.msra.mxu0 0.0
  %6069 = vmatprep.subr.mxu0 0.0
  %6070 = vmatpush1.msra.mxu0 0.0
  %6071 = vmatprep.subr.mxu0 0.0
  %6072 = vmatpush1.msra.mxu0 0.0
  %6073 = vmatprep.subr.mxu0 0.0
  %6074 = vmatpush1.msra.mxu0 0.0
  %6075 = vmatprep.subr.mxu0 0.0
  %6076 = vmatpush1.msra.mxu0 0.0
  %6077 = vmatprep.subr.mxu0 0.0
  %6078 = vmatpush1.msra.mxu0 0.0
  %6079 = vmatprep.subr.mxu0 0.0
  %6080 = vmatpush1.msra.mxu0 0.0
  %6081 = vmatprep.subr.mxu0 0.0
  %6082 = vmatpush1.msra.mxu0 0.0
  %6083 = vmatprep.subr.mxu0 0.0
  %6084 = vmatpush1.msra.mxu0 0.0
  %6085 = vmatprep.subr.mxu0 0.0
  %6086 = vmatpush1.msra.mxu0 0.0
  %6087 = vmatprep.subr.mxu0 0.0
  %6088 = vmatpush1.msra.mxu0 0.0
  %6089 = vmatprep.subr.mxu0 0.0
  %6090 = vmatpush1.msra.mxu0 0.0
  %6091 = vmatprep.subr.mxu0 0.0
  %6092 = vmatpush1.msra.mxu0 0.0
  %6093 = vmatprep.subr.mxu0 0.0
  %6094 = vmatpush1.msra.mxu0 0.0
  %6095 = vmatprep.subr.mxu0 0.0
  %6096 = vmatpush1.msra.mxu0 0.0
  %6097 = vmatprep.subr.mxu0 0.0
  %6098 = vmatpush1.msra.mxu0 0.0
  %6099 = vmatprep.mubr.f32.mxu0 0.0
  %6100 = vmatmul.mubr.f32.gmra.mrb[0].mxu0 %v6031
  %v6101 = vpop.f32.mrb[0].mxu0
  %v6102 = vadd.f32 0.0, %v6101
  %v6103 = vpop.f32.mrb[0].mxu0
  %6104 = vdwg.mxu0
  %6107 = vset.pattern.permute.xlu0 0
  %6108 = vperm.xlu0 %6107, %v5629
  %v6109 = vpop.permute.xlu0 %6108
  %6110 = vset.pattern.permute.xlu0 0
  %6111 = vperm.xlu0 %6110, %v5631
  %v6112 = vpop.permute.xlu0 %6111
  %v6113 = vlaneseq
  %v6114 = vshrl.u32 %v6113, 7
  %v6115 = vsub.s32 %v515, %v6114
  %v6116 = vrot.slane %v6109, %v6115
  %v6117 = vlaneseq
  %v6118 = vshrl.u32 %v6117, 7
  %v6119 = vsub.s32 %v515, %v6118
  %v6120 = vrot.slane %v6112, %v6119
  %v6121 = vsel %vm580, %v6120, %v6116
  %6122 = vrot.lane.b32.xlu0 %v378, 52
  %v6123 = vpop.permute.xlu0 %6122
  %v6124 = vsel %vm1065, %v6121, 0
  %v6126 = vsel %vm1068, %v6123, 0
  %6128 = vmatprep.subr.mxu0 0.0
  %6129 = vmatpush1.msra.mxu0 %v6126
  %6130 = vmatprep.subr.mxu0 0.0
  %6131 = vmatpush1.msra.mxu0 0.0
  %6132 = vmatprep.subr.mxu0 0.0
  %6133 = vmatpush1.msra.mxu0 0.0
  %6134 = vmatprep.subr.mxu0 0.0
  %6135 = vmatpush1.msra.mxu0 0.0
  %6136 = vmatprep.subr.mxu0 0.0
  %6137 = vmatpush1.msra.mxu0 0.0
  %6138 = vmatprep.subr.mxu0 0.0
  %6139 = vmatpush1.msra.mxu0 0.0
  %6140 = vmatprep.subr.mxu0 0.0
  %6141 = vmatpush1.msra.mxu0 0.0
  %6142 = vmatprep.subr.mxu0 0.0
  %6143 = vmatpush1.msra.mxu0 0.0
  %6144 = vmatprep.subr.mxu0 0.0
  %6145 = vmatpush1.msra.mxu0 0.0
  %6146 = vmatprep.subr.mxu0 0.0
  %6147 = vmatpush1.msra.mxu0 0.0
  %6148 = vmatprep.subr.mxu0 0.0
  %6149 = vmatpush1.msra.mxu0 0.0
  %6150 = vmatprep.subr.mxu0 0.0
  %6151 = vmatpush1.msra.mxu0 0.0
  %6152 = vmatprep.subr.mxu0 0.0
  %6153 = vmatpush1.msra.mxu0 0.0
  %6154 = vmatprep.subr.mxu0 0.0
  %6155 = vmatpush1.msra.mxu0 0.0
  %6156 = vmatprep.subr.mxu0 0.0
  %6157 = vmatpush1.msra.mxu0 0.0
  %6158 = vmatprep.subr.mxu0 0.0
  %6159 = vmatpush1.msra.mxu0 0.0
  %6160 = vmatprep.subr.mxu0 0.0
  %6161 = vmatpush1.msra.mxu0 0.0
  %6162 = vmatprep.subr.mxu0 0.0
  %6163 = vmatpush1.msra.mxu0 0.0
  %6164 = vmatprep.subr.mxu0 0.0
  %6165 = vmatpush1.msra.mxu0 0.0
  %6166 = vmatprep.subr.mxu0 0.0
  %6167 = vmatpush1.msra.mxu0 0.0
  %6168 = vmatprep.subr.mxu0 0.0
  %6169 = vmatpush1.msra.mxu0 0.0
  %6170 = vmatprep.subr.mxu0 0.0
  %6171 = vmatpush1.msra.mxu0 0.0
  %6172 = vmatprep.subr.mxu0 0.0
  %6173 = vmatpush1.msra.mxu0 0.0
  %6174 = vmatprep.subr.mxu0 0.0
  %6175 = vmatpush1.msra.mxu0 0.0
  %6176 = vmatprep.subr.mxu0 0.0
  %6177 = vmatpush1.msra.mxu0 0.0
  %6178 = vmatprep.subr.mxu0 0.0
  %6179 = vmatpush1.msra.mxu0 0.0
  %6180 = vmatprep.subr.mxu0 0.0
  %6181 = vmatpush1.msra.mxu0 0.0
  %6182 = vmatprep.subr.mxu0 0.0
  %6183 = vmatpush1.msra.mxu0 0.0
  %6184 = vmatprep.subr.mxu0 0.0
  %6185 = vmatpush1.msra.mxu0 0.0
  %6186 = vmatprep.subr.mxu0 0.0
  %6187 = vmatpush1.msra.mxu0 0.0
  %6188 = vmatprep.subr.mxu0 0.0
  %6189 = vmatpush1.msra.mxu0 0.0
  %6190 = vmatprep.subr.mxu0 0.0
  %6191 = vmatpush1.msra.mxu0 0.0
  %6192 = vmatprep.mubr.f32.mxu0 0.0
  %6193 = vmatmul.mubr.f32.gmra.mrb[0].mxu0 %v6124
  %v6194 = vpop.f32.mrb[0].mxu0
  %v6195 = vadd.f32 0.0, %v6194
  %v6196 = vpop.f32.mrb[0].mxu0
  %6197 = vdwg.mxu0
  %6200 = vset.pattern.permute.xlu0 0
  %6201 = vperm.xlu0 %6200, %v5633
  %v6202 = vpop.permute.xlu0 %6201
  %6203 = vset.pattern.permute.xlu0 0
  %6204 = vperm.xlu0 %6203, %v5635
  %v6205 = vpop.permute.xlu0 %6204
  %v6206 = vlaneseq
  %v6207 = vshrl.u32 %v6206, 7
  %v6208 = vsub.s32 %v515, %v6207
  %v6209 = vrot.slane %v6202, %v6208
  %v6210 = vlaneseq
  %v6211 = vshrl.u32 %v6210, 7
  %v6212 = vsub.s32 %v515, %v6211
  %v6213 = vrot.slane %v6205, %v6212
  %v6214 = vsel %vm580, %v6213, %v6209
  %6215 = vrot.lane.b32.xlu0 %v385, 52
  %v6216 = vpop.permute.xlu0 %6215
  %v6217 = vsel %vm1065, %v6214, 0
  %v6219 = vsel %vm1068, %v6216, 0
  %6221 = vmatprep.subr.mxu0 0.0
  %6222 = vmatpush1.msra.mxu0 %v6219
  %6223 = vmatprep.subr.mxu0 0.0
  %6224 = vmatpush1.msra.mxu0 0.0
  %6225 = vmatprep.subr.mxu0 0.0
  %6226 = vmatpush1.msra.mxu0 0.0
  %6227 = vmatprep.subr.mxu0 0.0
  %6228 = vmatpush1.msra.mxu0 0.0
  %6229 = vmatprep.subr.mxu0 0.0
  %6230 = vmatpush1.msra.mxu0 0.0
  %6231 = vmatprep.subr.mxu0 0.0
  %6232 = vmatpush1.msra.mxu0 0.0
  %6233 = vmatprep.subr.mxu0 0.0
  %6234 = vmatpush1.msra.mxu0 0.0
  %6235 = vmatprep.subr.mxu0 0.0
  %6236 = vmatpush1.msra.mxu0 0.0
  %6237 = vmatprep.subr.mxu0 0.0
  %6238 = vmatpush1.msra.mxu0 0.0
  %6239 = vmatprep.subr.mxu0 0.0
  %6240 = vmatpush1.msra.mxu0 0.0
  %6241 = vmatprep.subr.mxu0 0.0
  %6242 = vmatpush1.msra.mxu0 0.0
  %6243 = vmatprep.subr.mxu0 0.0
  %6244 = vmatpush1.msra.mxu0 0.0
  %6245 = vmatprep.subr.mxu0 0.0
  %6246 = vmatpush1.msra.mxu0 0.0
  %6247 = vmatprep.subr.mxu0 0.0
  %6248 = vmatpush1.msra.mxu0 0.0
  %6249 = vmatprep.subr.mxu0 0.0
  %6250 = vmatpush1.msra.mxu0 0.0
  %6251 = vmatprep.subr.mxu0 0.0
  %6252 = vmatpush1.msra.mxu0 0.0
  %6253 = vmatprep.subr.mxu0 0.0
  %6254 = vmatpush1.msra.mxu0 0.0
  %6255 = vmatprep.subr.mxu0 0.0
  %6256 = vmatpush1.msra.mxu0 0.0
  %6257 = vmatprep.subr.mxu0 0.0
  %6258 = vmatpush1.msra.mxu0 0.0
  %6259 = vmatprep.subr.mxu0 0.0
  %6260 = vmatpush1.msra.mxu0 0.0
  %6261 = vmatprep.subr.mxu0 0.0
  %6262 = vmatpush1.msra.mxu0 0.0
  %6263 = vmatprep.subr.mxu0 0.0
  %6264 = vmatpush1.msra.mxu0 0.0
  %6265 = vmatprep.subr.mxu0 0.0
  %6266 = vmatpush1.msra.mxu0 0.0
  %6267 = vmatprep.subr.mxu0 0.0
  %6268 = vmatpush1.msra.mxu0 0.0
  %6269 = vmatprep.subr.mxu0 0.0
  %6270 = vmatpush1.msra.mxu0 0.0
  %6271 = vmatprep.subr.mxu0 0.0
  %6272 = vmatpush1.msra.mxu0 0.0
  %6273 = vmatprep.subr.mxu0 0.0
  %6274 = vmatpush1.msra.mxu0 0.0
  %6275 = vmatprep.subr.mxu0 0.0
  %6276 = vmatpush1.msra.mxu0 0.0
  %6277 = vmatprep.subr.mxu0 0.0
  %6278 = vmatpush1.msra.mxu0 0.0
  %6279 = vmatprep.subr.mxu0 0.0
  %6280 = vmatpush1.msra.mxu0 0.0
  %6281 = vmatprep.subr.mxu0 0.0
  %6282 = vmatpush1.msra.mxu0 0.0
  %6283 = vmatprep.subr.mxu0 0.0
  %6284 = vmatpush1.msra.mxu0 0.0
  %6285 = vmatprep.mubr.f32.mxu0 0.0
  %6286 = vmatmul.mubr.f32.gmra.mrb[0].mxu0 %v6217
  %v6287 = vpop.f32.mrb[0].mxu0
  %v6288 = vadd.f32 0.0, %v6287
  %v6289 = vpop.f32.mrb[0].mxu0
  %6290 = vdwg.mxu0
  %6293 = vset.pattern.permute.xlu0 0
  %6294 = vperm.xlu0 %6293, %v5637
  %v6295 = vpop.permute.xlu0 %6294
  %6296 = vset.pattern.permute.xlu0 0
  %6297 = vperm.xlu0 %6296, %v5639
  %v6298 = vpop.permute.xlu0 %6297
  %v6299 = vlaneseq
  %v6300 = vshrl.u32 %v6299, 7
  %v6301 = vsub.s32 %v515, %v6300
  %v6302 = vrot.slane %v6295, %v6301
  %v6303 = vlaneseq
  %v6304 = vshrl.u32 %v6303, 7
  %v6305 = vsub.s32 %v515, %v6304
  %v6306 = vrot.slane %v6298, %v6305
  %v6307 = vsel %vm580, %v6306, %v6302
  %6308 = vrot.lane.b32.xlu0 %v392, 52
  %v6309 = vpop.permute.xlu0 %6308
  %v6310 = vsel %vm1065, %v6307, 0
  %v6312 = vsel %vm1068, %v6309, 0
  %6314 = vmatprep.subr.mxu0 0.0
  %6315 = vmatpush1.msra.mxu0 %v6312
  %6316 = vmatprep.subr.mxu0 0.0
  %6317 = vmatpush1.msra.mxu0 0.0
  %6318 = vmatprep.subr.mxu0 0.0
  %6319 = vmatpush1.msra.mxu0 0.0
  %6320 = vmatprep.subr.mxu0 0.0
  %6321 = vmatpush1.msra.mxu0 0.0
  %6322 = vmatprep.subr.mxu0 0.0
  %6323 = vmatpush1.msra.mxu0 0.0
  %6324 = vmatprep.subr.mxu0 0.0
  %6325 = vmatpush1.msra.mxu0 0.0
  %6326 = vmatprep.subr.mxu0 0.0
  %6327 = vmatpush1.msra.mxu0 0.0
  %6328 = vmatprep.subr.mxu0 0.0
  %6329 = vmatpush1.msra.mxu0 0.0
  %6330 = vmatprep.subr.mxu0 0.0
  %6331 = vmatpush1.msra.mxu0 0.0
  %6332 = vmatprep.subr.mxu0 0.0
  %6333 = vmatpush1.msra.mxu0 0.0
  %6334 = vmatprep.subr.mxu0 0.0
  %6335 = vmatpush1.msra.mxu0 0.0
  %6336 = vmatprep.subr.mxu0 0.0
  %6337 = vmatpush1.msra.mxu0 0.0
  %6338 = vmatprep.subr.mxu0 0.0
  %6339 = vmatpush1.msra.mxu0 0.0
  %6340 = vmatprep.subr.mxu0 0.0
  %6341 = vmatpush1.msra.mxu0 0.0
  %6342 = vmatprep.subr.mxu0 0.0
  %6343 = vmatpush1.msra.mxu0 0.0
  %6344 = vmatprep.subr.mxu0 0.0
  %6345 = vmatpush1.msra.mxu0 0.0
  %6346 = vmatprep.subr.mxu0 0.0
  %6347 = vmatpush1.msra.mxu0 0.0
  %6348 = vmatprep.subr.mxu0 0.0
  %6349 = vmatpush1.msra.mxu0 0.0
  %6350 = vmatprep.subr.mxu0 0.0
  %6351 = vmatpush1.msra.mxu0 0.0
  %6352 = vmatprep.subr.mxu0 0.0
  %6353 = vmatpush1.msra.mxu0 0.0
  %6354 = vmatprep.subr.mxu0 0.0
  %6355 = vmatpush1.msra.mxu0 0.0
  %6356 = vmatprep.subr.mxu0 0.0
  %6357 = vmatpush1.msra.mxu0 0.0
  %6358 = vmatprep.subr.mxu0 0.0
  %6359 = vmatpush1.msra.mxu0 0.0
  %6360 = vmatprep.subr.mxu0 0.0
  %6361 = vmatpush1.msra.mxu0 0.0
  %6362 = vmatprep.subr.mxu0 0.0
  %6363 = vmatpush1.msra.mxu0 0.0
  %6364 = vmatprep.subr.mxu0 0.0
  %6365 = vmatpush1.msra.mxu0 0.0
  %6366 = vmatprep.subr.mxu0 0.0
  %6367 = vmatpush1.msra.mxu0 0.0
  %6368 = vmatprep.subr.mxu0 0.0
  %6369 = vmatpush1.msra.mxu0 0.0
  %6370 = vmatprep.subr.mxu0 0.0
  %6371 = vmatpush1.msra.mxu0 0.0
  %6372 = vmatprep.subr.mxu0 0.0
  %6373 = vmatpush1.msra.mxu0 0.0
  %6374 = vmatprep.subr.mxu0 0.0
  %6375 = vmatpush1.msra.mxu0 0.0
  %6376 = vmatprep.subr.mxu0 0.0
  %6377 = vmatpush1.msra.mxu0 0.0
  %6378 = vmatprep.mubr.f32.mxu0 0.0
  %6379 = vmatmul.mubr.f32.gmra.mrb[0].mxu0 %v6310
  %v6380 = vpop.f32.mrb[0].mxu0
  %v6381 = vadd.f32 0.0, %v6380
  %v6382 = vpop.f32.mrb[0].mxu0
  %6383 = vdwg.mxu0
  %v6392 = vcombine.low %v5730, %v5823
  %v6393 = vcombine.low %v5916, %v6009
  %v6395 = vunpack.c.l.s4 1983009808
  %v6396 = vunpack.c.0.s8 %v6395
  %v6397 = vlaneseq
  %v6398 = vshrl.u32 %v6397, 7
  %v6399 = vsub.s32 %v6396, %v6398
  %v6400 = vrot.slane %v6392, %v6399
  %v6402 = vunpack.c.l.s4 1983009808
  %v6403 = vunpack.c.0.s8 %v6402
  %v6404 = vlaneseq
  %v6405 = vshrl.u32 %v6404, 7
  %v6406 = vsub.s32 %v6403, %v6405
  %v6407 = vrot.slane %v6393, %v6406
  %v6408 = vcombine.low %v6400, %v6407
  %v6409 = vcombine.low %v6102, %v6195
  %v6410 = vcombine.low %v6288, %v6381
  %v6412 = vunpack.c.l.s4 1983009808
  %v6413 = vunpack.c.0.s8 %v6412
  %v6414 = vlaneseq
  %v6415 = vshrl.u32 %v6414, 7
  %v6416 = vsub.s32 %v6413, %v6415
  %v6417 = vrot.slane %v6409, %v6416
  %v6419 = vunpack.c.l.s4 1983009808
  %v6420 = vunpack.c.0.s8 %v6419
  %v6421 = vlaneseq
  %v6422 = vshrl.u32 %v6421, 7
  %v6423 = vsub.s32 %v6420, %v6422
  %v6424 = vrot.slane %v6410, %v6423
  %v6425 = vcombine.low %v6417, %v6424
  %v6426 = vrot.slane %v122, 4
  %v6427 = vsel %vm3252, %v6408, 0
  %v6429 = vsel %vm3252, %v6425, 0
  %v6431 = vsel %vm3257, %v6426, 0
  %6433 = vmatprep.subr.mxu0 0.0
  %6434 = vmatpush1.msra.mxu0 %v6431
  %6435 = vmatprep.subr.mxu0 0.0
  %6436 = vmatpush1.msra.mxu0 0.0
  %6437 = vmatprep.subr.mxu0 0.0
  %6438 = vmatpush1.msra.mxu0 0.0
  %6439 = vmatprep.subr.mxu0 0.0
  %6440 = vmatpush1.msra.mxu0 0.0
  %6441 = vmatprep.subr.mxu0 0.0
  %6442 = vmatpush1.msra.mxu0 0.0
  %6443 = vmatprep.subr.mxu0 0.0
  %6444 = vmatpush1.msra.mxu0 0.0
  %6445 = vmatprep.subr.mxu0 0.0
  %6446 = vmatpush1.msra.mxu0 0.0
  %6447 = vmatprep.subr.mxu0 0.0
  %6448 = vmatpush1.msra.mxu0 0.0
  %6449 = vmatprep.subr.mxu0 0.0
  %6450 = vmatpush1.msra.mxu0 0.0
  %6451 = vmatprep.subr.mxu0 0.0
  %6452 = vmatpush1.msra.mxu0 0.0
  %6453 = vmatprep.subr.mxu0 0.0
  %6454 = vmatpush1.msra.mxu0 0.0
  %6455 = vmatprep.subr.mxu0 0.0
  %6456 = vmatpush1.msra.mxu0 0.0
  %6457 = vmatprep.subr.mxu0 0.0
  %6458 = vmatpush1.msra.mxu0 0.0
  %6459 = vmatprep.subr.mxu0 0.0
  %6460 = vmatpush1.msra.mxu0 0.0
  %6461 = vmatprep.subr.mxu0 0.0
  %6462 = vmatpush1.msra.mxu0 0.0
  %6463 = vmatprep.subr.mxu0 0.0
  %6464 = vmatpush1.msra.mxu0 0.0
  %6465 = vmatprep.subr.mxu0 0.0
  %6466 = vmatpush1.msra.mxu0 0.0
  %6467 = vmatprep.subr.mxu0 0.0
  %6468 = vmatpush1.msra.mxu0 0.0
  %6469 = vmatprep.subr.mxu0 0.0
  %6470 = vmatpush1.msra.mxu0 0.0
  %6471 = vmatprep.subr.mxu0 0.0
  %6472 = vmatpush1.msra.mxu0 0.0
  %6473 = vmatprep.subr.mxu0 0.0
  %6474 = vmatpush1.msra.mxu0 0.0
  %6475 = vmatprep.subr.mxu0 0.0
  %6476 = vmatpush1.msra.mxu0 0.0
  %6477 = vmatprep.subr.mxu0 0.0
  %6478 = vmatpush1.msra.mxu0 0.0
  %6479 = vmatprep.subr.mxu0 0.0
  %6480 = vmatpush1.msra.mxu0 0.0
  %6481 = vmatprep.subr.mxu0 0.0
  %6482 = vmatpush1.msra.mxu0 0.0
  %6483 = vmatprep.subr.mxu0 0.0
  %6484 = vmatpush1.msra.mxu0 0.0
  %6485 = vmatprep.subr.mxu0 0.0
  %6486 = vmatpush1.msra.mxu0 0.0
  %6487 = vmatprep.subr.mxu0 0.0
  %6488 = vmatpush1.msra.mxu0 0.0
  %6489 = vmatprep.subr.mxu0 0.0
  %6490 = vmatpush1.msra.mxu0 0.0
  %6491 = vmatprep.subr.mxu0 0.0
  %6492 = vmatpush1.msra.mxu0 0.0
  %6493 = vmatprep.subr.mxu0 0.0
  %6494 = vmatpush1.msra.mxu0 0.0
  %6495 = vmatprep.subr.mxu0 0.0
  %6496 = vmatpush1.msra.mxu0 0.0
  %6497 = vmatprep.mubr.f32.mxu0 0.0
  %6498 = vmatmul.mubr.f32.gmra.mrb[0].mxu0 %v6427
  %v6499 = vpop.f32.mrb[0].mxu0
  %v6500 = vadd.f32 0.0, %v6499
  %v6501 = vpop.f32.mrb[0].mxu0
  %6502 = vmatprep.mubr.f32.mxu0 0.0
  %6503 = vmatmul.mubr.f32.gmra.mrb[0].mxu0 %v6429
  %v6504 = vpop.f32.mrb[0].mxu0
  %v6505 = vadd.f32 0.0, %v6504
  %v6506 = vpop.f32.mrb[0].mxu0
  %6507 = vdwg.mxu0
  %v6508 = vadd.f32 %v4982, %v6500
  %v6509 = vadd.f32 %v4983, %v6505
  %6510 = vrot.lane.b32.xlu0 %v417, 112
  %v6511 = vpop.permute.xlu0 %6510
  %6512 = vrot.lane.b32.xlu0 %v418, 112
  %v6513 = vpop.permute.xlu0 %6512
  %6514 = vrot.lane.b32.xlu0 %v419, 112
  %v6515 = vpop.permute.xlu0 %6514
  %6516 = vrot.lane.b32.xlu0 %v420, 112
  %v6517 = vpop.permute.xlu0 %6516
  %6518 = vrot.lane.b32.xlu0 %v421, 112
  %v6519 = vpop.permute.xlu0 %6518
  %6520 = vrot.lane.b32.xlu0 %v422, 112
  %v6521 = vpop.permute.xlu0 %6520
  %6522 = vrot.lane.b32.xlu0 %v423, 112
  %v6523 = vpop.permute.xlu0 %6522
  %6524 = vrot.lane.b32.xlu0 %v424, 112
  %v6525 = vpop.permute.xlu0 %6524
  %6526 = vrot.lane.b32.xlu0 %v425, 112
  %v6527 = vpop.permute.xlu0 %6526
  %6528 = vrot.lane.b32.xlu0 %v426, 112
  %v6529 = vpop.permute.xlu0 %6528
  %6530 = vrot.lane.b32.xlu0 %v427, 112
  %v6531 = vpop.permute.xlu0 %6530
  %6532 = vrot.lane.b32.xlu0 %v428, 112
  %v6533 = vpop.permute.xlu0 %6532
  %6534 = vrot.lane.b32.xlu0 %v429, 112
  %v6535 = vpop.permute.xlu0 %6534
  %6536 = vrot.lane.b32.xlu0 %v430, 112
  %v6537 = vpop.permute.xlu0 %6536
  %6538 = vrot.lane.b32.xlu0 %v431, 112
  %v6539 = vpop.permute.xlu0 %6538
  %6540 = vrot.lane.b32.xlu0 %v432, 112
  %v6541 = vpop.permute.xlu0 %6540
  %v6558 = vsel %vm433, %v6511, 0.0
  %6559 = vadd.xlane.f32.xlu0 %v6558
  %v6560 = vpop.xlane.xlu0 %6559
  %v6561 = vsel %vm433, %v6513, 0.0
  %6562 = vadd.xlane.f32.xlu0 %v6561
  %v6563 = vpop.xlane.xlu0 %6562
  %v6564 = vsel %vm433, %v6515, 0.0
  %6565 = vadd.xlane.f32.xlu0 %v6564
  %v6566 = vpop.xlane.xlu0 %6565
  %v6567 = vsel %vm433, %v6517, 0.0
  %6568 = vadd.xlane.f32.xlu0 %v6567
  %v6569 = vpop.xlane.xlu0 %6568
  %v6570 = vsel %vm433, %v6519, 0.0
  %6571 = vadd.xlane.f32.xlu0 %v6570
  %v6572 = vpop.xlane.xlu0 %6571
  %v6573 = vsel %vm433, %v6521, 0.0
  %6574 = vadd.xlane.f32.xlu0 %v6573
  %v6575 = vpop.xlane.xlu0 %6574
  %v6576 = vsel %vm433, %v6523, 0.0
  %6577 = vadd.xlane.f32.xlu0 %v6576
  %v6578 = vpop.xlane.xlu0 %6577
  %v6579 = vsel %vm433, %v6525, 0.0
  %6580 = vadd.xlane.f32.xlu0 %v6579
  %v6581 = vpop.xlane.xlu0 %6580
  %v6582 = vsel %vm433, %v6527, 0.0
  %6583 = vadd.xlane.f32.xlu0 %v6582
  %v6584 = vpop.xlane.xlu0 %6583
  %v6585 = vsel %vm433, %v6529, 0.0
  %6586 = vadd.xlane.f32.xlu0 %v6585
  %v6587 = vpop.xlane.xlu0 %6586
  %v6588 = vsel %vm433, %v6531, 0.0
  %6589 = vadd.xlane.f32.xlu0 %v6588
  %v6590 = vpop.xlane.xlu0 %6589
  %v6591 = vsel %vm433, %v6533, 0.0
  %6592 = vadd.xlane.f32.xlu0 %v6591
  %v6593 = vpop.xlane.xlu0 %6592
  %v6594 = vsel %vm433, %v6535, 0.0
  %6595 = vadd.xlane.f32.xlu0 %v6594
  %v6596 = vpop.xlane.xlu0 %6595
  %v6597 = vsel %vm433, %v6537, 0.0
  %6598 = vadd.xlane.f32.xlu0 %v6597
  %v6599 = vpop.xlane.xlu0 %6598
  %v6600 = vsel %vm433, %v6539, 0.0
  %6601 = vadd.xlane.f32.xlu0 %v6600
  %v6602 = vpop.xlane.xlu0 %6601
  %v6603 = vsel %vm433, %v6541, 0.0
  %6604 = vadd.xlane.f32.xlu0 %v6603
  %v6605 = vpop.xlane.xlu0 %6604
  %v6606 = vmul.f32 %v6560, 0.5
  %v6607 = vmul.f32 %v6563, 0.5
  %v6608 = vmul.f32 %v6566, 0.5
  %v6609 = vmul.f32 %v6569, 0.5
  %v6610 = vmul.f32 %v6572, 0.5
  %v6611 = vmul.f32 %v6575, 0.5
  %v6612 = vmul.f32 %v6578, 0.5
  %v6613 = vmul.f32 %v6581, 0.5
  %v6614 = vmul.f32 %v6584, 0.5
  %v6615 = vmul.f32 %v6587, 0.5
  %v6616 = vmul.f32 %v6590, 0.5
  %v6617 = vmul.f32 %v6593, 0.5
  %v6618 = vmul.f32 %v6596, 0.5
  %v6619 = vmul.f32 %v6599, 0.5
  %v6620 = vmul.f32 %v6602, 0.5
  %v6621 = vmul.f32 %v6605, 0.5
  %v6638 = vlaneseq
  %v6639 = vshrl.u32 %v6638, 7
  %v6640 = vsub.s32 %v515, %v6639
  %v6641 = vrot.slane %v6606, %v6640
  %v6642 = vlaneseq
  %v6643 = vshrl.u32 %v6642, 7
  %v6644 = vsub.s32 %v515, %v6643
  %v6645 = vrot.slane %v6607, %v6644
  %v6646 = vlaneseq
  %v6647 = vshrl.u32 %v6646, 7
  %v6648 = vsub.s32 %v515, %v6647
  %v6649 = vrot.slane %v6608, %v6648
  %v6650 = vlaneseq
  %v6651 = vshrl.u32 %v6650, 7
  %v6652 = vsub.s32 %v515, %v6651
  %v6653 = vrot.slane %v6609, %v6652
  %v6654 = vlaneseq
  %v6655 = vshrl.u32 %v6654, 7
  %v6656 = vsub.s32 %v515, %v6655
  %v6657 = vrot.slane %v6610, %v6656
  %v6658 = vlaneseq
  %v6659 = vshrl.u32 %v6658, 7
  %v6660 = vsub.s32 %v515, %v6659
  %v6661 = vrot.slane %v6611, %v6660
  %v6662 = vlaneseq
  %v6663 = vshrl.u32 %v6662, 7
  %v6664 = vsub.s32 %v515, %v6663
  %v6665 = vrot.slane %v6612, %v6664
  %v6666 = vlaneseq
  %v6667 = vshrl.u32 %v6666, 7
  %v6668 = vsub.s32 %v515, %v6667
  %v6669 = vrot.slane %v6613, %v6668
  %v6670 = vlaneseq
  %v6671 = vshrl.u32 %v6670, 7
  %v6672 = vsub.s32 %v515, %v6671
  %v6673 = vrot.slane %v6614, %v6672
  %v6674 = vlaneseq
  %v6675 = vshrl.u32 %v6674, 7
  %v6676 = vsub.s32 %v515, %v6675
  %v6677 = vrot.slane %v6615, %v6676
  %v6678 = vlaneseq
  %v6679 = vshrl.u32 %v6678, 7
  %v6680 = vsub.s32 %v515, %v6679
  %v6681 = vrot.slane %v6616, %v6680
  %v6682 = vlaneseq
  %v6683 = vshrl.u32 %v6682, 7
  %v6684 = vsub.s32 %v515, %v6683
  %v6685 = vrot.slane %v6617, %v6684
  %v6686 = vlaneseq
  %v6687 = vshrl.u32 %v6686, 7
  %v6688 = vsub.s32 %v515, %v6687
  %v6689 = vrot.slane %v6618, %v6688
  %v6690 = vlaneseq
  %v6691 = vshrl.u32 %v6690, 7
  %v6692 = vsub.s32 %v515, %v6691
  %v6693 = vrot.slane %v6619, %v6692
  %v6694 = vlaneseq
  %v6695 = vshrl.u32 %v6694, 7
  %v6696 = vsub.s32 %v515, %v6695
  %v6697 = vrot.slane %v6620, %v6696
  %v6698 = vlaneseq
  %v6699 = vshrl.u32 %v6698, 7
  %v6700 = vsub.s32 %v515, %v6699
  %v6701 = vrot.slane %v6621, %v6700
  %v6702 = vsel %vm580, %v6645, %v6641
  %v6703 = vsel %vm580, %v6653, %v6649
  %v6704 = vsel %vm580, %v6661, %v6657
  %v6705 = vsel %vm580, %v6669, %v6665
  %v6706 = vsel %vm580, %v6677, %v6673
  %v6707 = vsel %vm580, %v6685, %v6681
  %v6708 = vsel %vm580, %v6693, %v6689
  %v6709 = vsel %vm580, %v6701, %v6697
  %v6718 = vsel %vm597, %v6702, -inf
  %6719 = vmax.xlane.f32.xlu0 %v6718
  %v6720 = vpop.xlane.xlu0 %6719
  %v6721 = vsel %vm597, %v6703, -inf
  %6722 = vmax.xlane.f32.xlu0 %v6721
  %v6723 = vpop.xlane.xlu0 %6722
  %v6724 = vsel %vm597, %v6704, -inf
  %6725 = vmax.xlane.f32.xlu0 %v6724
  %v6726 = vpop.xlane.xlu0 %6725
  %v6727 = vsel %vm597, %v6705, -inf
  %6728 = vmax.xlane.f32.xlu0 %v6727
  %v6729 = vpop.xlane.xlu0 %6728
  %v6730 = vsel %vm597, %v6706, -inf
  %6731 = vmax.xlane.f32.xlu0 %v6730
  %v6732 = vpop.xlane.xlu0 %6731
  %v6733 = vsel %vm597, %v6707, -inf
  %6734 = vmax.xlane.f32.xlu0 %v6733
  %v6735 = vpop.xlane.xlu0 %6734
  %v6736 = vsel %vm597, %v6708, -inf
  %6737 = vmax.xlane.f32.xlu0 %v6736
  %v6738 = vpop.xlane.xlu0 %6737
  %v6739 = vsel %vm597, %v6709, -inf
  %6740 = vmax.xlane.f32.xlu0 %v6739
  %v6741 = vpop.xlane.xlu0 %6740
  %v6750 = vlaneseq
  %v6751 = vshrl.u32 %v6750, 7
  %v6752 = vsub.s32 0, %v6751
  %v6753 = vrot.slane %v6720, %v6752
  %v6754 = vlaneseq
  %v6755 = vshrl.u32 %v6754, 7
  %v6756 = vsub.s32 1, %v6755
  %v6757 = vrot.slane %v6720, %v6756
  %v6758 = vlaneseq
  %v6759 = vshrl.u32 %v6758, 7
  %v6760 = vsub.s32 0, %v6759
  %v6761 = vrot.slane %v6723, %v6760
  %v6762 = vlaneseq
  %v6763 = vshrl.u32 %v6762, 7
  %v6764 = vsub.s32 1, %v6763
  %v6765 = vrot.slane %v6723, %v6764
  %v6766 = vlaneseq
  %v6767 = vshrl.u32 %v6766, 7
  %v6768 = vsub.s32 0, %v6767
  %v6769 = vrot.slane %v6726, %v6768
  %v6770 = vlaneseq
  %v6771 = vshrl.u32 %v6770, 7
  %v6772 = vsub.s32 1, %v6771
  %v6773 = vrot.slane %v6726, %v6772
  %v6774 = vlaneseq
  %v6775 = vshrl.u32 %v6774, 7
  %v6776 = vsub.s32 0, %v6775
  %v6777 = vrot.slane %v6729, %v6776
  %v6778 = vlaneseq
  %v6779 = vshrl.u32 %v6778, 7
  %v6780 = vsub.s32 1, %v6779
  %v6781 = vrot.slane %v6729, %v6780
  %v6782 = vlaneseq
  %v6783 = vshrl.u32 %v6782, 7
  %v6784 = vsub.s32 0, %v6783
  %v6785 = vrot.slane %v6732, %v6784
  %v6786 = vlaneseq
  %v6787 = vshrl.u32 %v6786, 7
  %v6788 = vsub.s32 1, %v6787
  %v6789 = vrot.slane %v6732, %v6788
  %v6790 = vlaneseq
  %v6791 = vshrl.u32 %v6790, 7
  %v6792 = vsub.s32 0, %v6791
  %v6793 = vrot.slane %v6735, %v6792
  %v6794 = vlaneseq
  %v6795 = vshrl.u32 %v6794, 7
  %v6796 = vsub.s32 1, %v6795
  %v6797 = vrot.slane %v6735, %v6796
  %v6798 = vlaneseq
  %v6799 = vshrl.u32 %v6798, 7
  %v6800 = vsub.s32 0, %v6799
  %v6801 = vrot.slane %v6738, %v6800
  %v6802 = vlaneseq
  %v6803 = vshrl.u32 %v6802, 7
  %v6804 = vsub.s32 1, %v6803
  %v6805 = vrot.slane %v6738, %v6804
  %v6806 = vlaneseq
  %v6807 = vshrl.u32 %v6806, 7
  %v6808 = vsub.s32 0, %v6807
  %v6809 = vrot.slane %v6741, %v6808
  %v6810 = vlaneseq
  %v6811 = vshrl.u32 %v6810, 7
  %v6812 = vsub.s32 1, %v6811
  %v6813 = vrot.slane %v6741, %v6812
  %v6830 = vsub.f32 %v6606, %v6753
  %v6831 = vsub.f32 %v6607, %v6757
  %v6832 = vsub.f32 %v6608, %v6761
  %v6833 = vsub.f32 %v6609, %v6765
  %v6834 = vsub.f32 %v6610, %v6769
  %v6835 = vsub.f32 %v6611, %v6773
  %v6836 = vsub.f32 %v6612, %v6777
  %v6837 = vsub.f32 %v6613, %v6781
  %v6838 = vsub.f32 %v6614, %v6785
  %v6839 = vsub.f32 %v6615, %v6789
  %v6840 = vsub.f32 %v6616, %v6793
  %v6841 = vsub.f32 %v6617, %v6797
  %v6842 = vsub.f32 %v6618, %v6801
  %v6843 = vsub.f32 %v6619, %v6805
  %v6844 = vsub.f32 %v6620, %v6809
  %v6845 = vsub.f32 %v6621, %v6813
  %v6846 = vmul.f32 %v6830, 1.442695
  %v6847 = vpow.pop %v6846
  %v6848 = vmul.f32 %v6831, 1.442695
  %v6849 = vpow.pop %v6848
  %v6850 = vmul.f32 %v6832, 1.442695
  %v6851 = vpow.pop %v6850
  %v6852 = vmul.f32 %v6833, 1.442695
  %v6853 = vpow.pop %v6852
  %v6854 = vmul.f32 %v6834, 1.442695
  %v6855 = vpow.pop %v6854
  %v6856 = vmul.f32 %v6835, 1.442695
  %v6857 = vpow.pop %v6856
  %v6858 = vmul.f32 %v6836, 1.442695
  %v6859 = vpow.pop %v6858
  %v6860 = vmul.f32 %v6837, 1.442695
  %v6861 = vpow.pop %v6860
  %v6862 = vmul.f32 %v6838, 1.442695
  %v6863 = vpow.pop %v6862
  %v6864 = vmul.f32 %v6839, 1.442695
  %v6865 = vpow.pop %v6864
  %v6866 = vmul.f32 %v6840, 1.442695
  %v6867 = vpow.pop %v6866
  %v6868 = vmul.f32 %v6841, 1.442695
  %v6869 = vpow.pop %v6868
  %v6870 = vmul.f32 %v6842, 1.442695
  %v6871 = vpow.pop %v6870
  %v6872 = vmul.f32 %v6843, 1.442695
  %v6873 = vpow.pop %v6872
  %v6874 = vmul.f32 %v6844, 1.442695
  %v6875 = vpow.pop %v6874
  %v6876 = vmul.f32 %v6845, 1.442695
  %v6877 = vpow.pop %v6876
  %6894 = vset.pattern.permute.xlu0 0
  %6895 = vperm.xlu0 %6894, %v6847
  %v6896 = vpop.permute.xlu0 %6895
  %6897 = vset.pattern.permute.xlu0 0
  %6898 = vperm.xlu0 %6897, %v6849
  %v6899 = vpop.permute.xlu0 %6898
  %6900 = vset.pattern.permute.xlu0 0
  %6901 = vperm.xlu0 %6900, %v6851
  %v6902 = vpop.permute.xlu0 %6901
  %6903 = vset.pattern.permute.xlu0 0
  %6904 = vperm.xlu0 %6903, %v6853
  %v6905 = vpop.permute.xlu0 %6904
  %6906 = vset.pattern.permute.xlu0 0
  %6907 = vperm.xlu0 %6906, %v6855
  %v6908 = vpop.permute.xlu0 %6907
  %6909 = vset.pattern.permute.xlu0 0
  %6910 = vperm.xlu0 %6909, %v6857
  %v6911 = vpop.permute.xlu0 %6910
  %6912 = vset.pattern.permute.xlu0 0
  %6913 = vperm.xlu0 %6912, %v6859
  %v6914 = vpop.permute.xlu0 %6913
  %6915 = vset.pattern.permute.xlu0 0
  %6916 = vperm.xlu0 %6915, %v6861
  %v6917 = vpop.permute.xlu0 %6916
  %6918 = vset.pattern.permute.xlu0 0
  %6919 = vperm.xlu0 %6918, %v6863
  %v6920 = vpop.permute.xlu0 %6919
  %6921 = vset.pattern.permute.xlu0 0
  %6922 = vperm.xlu0 %6921, %v6865
  %v6923 = vpop.permute.xlu0 %6922
  %6924 = vset.pattern.permute.xlu0 0
  %6925 = vperm.xlu0 %6924, %v6867
  %v6926 = vpop.permute.xlu0 %6925
  %6927 = vset.pattern.permute.xlu0 0
  %6928 = vperm.xlu0 %6927, %v6869
  %v6929 = vpop.permute.xlu0 %6928
  %6930 = vset.pattern.permute.xlu0 0
  %6931 = vperm.xlu0 %6930, %v6871
  %v6932 = vpop.permute.xlu0 %6931
  %6933 = vset.pattern.permute.xlu0 0
  %6934 = vperm.xlu0 %6933, %v6873
  %v6935 = vpop.permute.xlu0 %6934
  %6936 = vset.pattern.permute.xlu0 0
  %6937 = vperm.xlu0 %6936, %v6875
  %v6938 = vpop.permute.xlu0 %6937
  %6939 = vset.pattern.permute.xlu0 0
  %6940 = vperm.xlu0 %6939, %v6877
  %v6941 = vpop.permute.xlu0 %6940
  %v6942 = vlaneseq
  %v6943 = vshrl.u32 %v6942, 7
  %v6944 = vsub.s32 %v515, %v6943
  %v6945 = vrot.slane %v6896, %v6944
  %v6946 = vlaneseq
  %v6947 = vshrl.u32 %v6946, 7
  %v6948 = vsub.s32 %v515, %v6947
  %v6949 = vrot.slane %v6899, %v6948
  %v6950 = vlaneseq
  %v6951 = vshrl.u32 %v6950, 7
  %v6952 = vsub.s32 %v515, %v6951
  %v6953 = vrot.slane %v6902, %v6952
  %v6954 = vlaneseq
  %v6955 = vshrl.u32 %v6954, 7
  %v6956 = vsub.s32 %v515, %v6955
  %v6957 = vrot.slane %v6905, %v6956
  %v6958 = vlaneseq
  %v6959 = vshrl.u32 %v6958, 7
  %v6960 = vsub.s32 %v515, %v6959
  %v6961 = vrot.slane %v6908, %v6960
  %v6962 = vlaneseq
  %v6963 = vshrl.u32 %v6962, 7
  %v6964 = vsub.s32 %v515, %v6963
  %v6965 = vrot.slane %v6911, %v6964
  %v6966 = vlaneseq
  %v6967 = vshrl.u32 %v6966, 7
  %v6968 = vsub.s32 %v515, %v6967
  %v6969 = vrot.slane %v6914, %v6968
  %v6970 = vlaneseq
  %v6971 = vshrl.u32 %v6970, 7
  %v6972 = vsub.s32 %v515, %v6971
  %v6973 = vrot.slane %v6917, %v6972
  %v6974 = vlaneseq
  %v6975 = vshrl.u32 %v6974, 7
  %v6976 = vsub.s32 %v515, %v6975
  %v6977 = vrot.slane %v6920, %v6976
  %v6978 = vlaneseq
  %v6979 = vshrl.u32 %v6978, 7
  %v6980 = vsub.s32 %v515, %v6979
  %v6981 = vrot.slane %v6923, %v6980
  %v6982 = vlaneseq
  %v6983 = vshrl.u32 %v6982, 7
  %v6984 = vsub.s32 %v515, %v6983
  %v6985 = vrot.slane %v6926, %v6984
  %v6986 = vlaneseq
  %v6987 = vshrl.u32 %v6986, 7
  %v6988 = vsub.s32 %v515, %v6987
  %v6989 = vrot.slane %v6929, %v6988
  %v6990 = vlaneseq
  %v6991 = vshrl.u32 %v6990, 7
  %v6992 = vsub.s32 %v515, %v6991
  %v6993 = vrot.slane %v6932, %v6992
  %v6994 = vlaneseq
  %v6995 = vshrl.u32 %v6994, 7
  %v6996 = vsub.s32 %v515, %v6995
  %v6997 = vrot.slane %v6935, %v6996
  %v6998 = vlaneseq
  %v6999 = vshrl.u32 %v6998, 7
  %v7000 = vsub.s32 %v515, %v6999
  %v7001 = vrot.slane %v6938, %v7000
  %v7002 = vlaneseq
  %v7003 = vshrl.u32 %v7002, 7
  %v7004 = vsub.s32 %v515, %v7003
  %v7005 = vrot.slane %v6941, %v7004
  %v7006 = vsel %vm580, %v6949, %v6945
  %v7007 = vsel %vm580, %v6957, %v6953
  %v7008 = vsel %vm580, %v6965, %v6961
  %v7009 = vsel %vm580, %v6973, %v6969
  %v7010 = vsel %vm580, %v6981, %v6977
  %v7011 = vsel %vm580, %v6989, %v6985
  %v7012 = vsel %vm580, %v6997, %v6993
  %v7013 = vsel %vm580, %v7005, %v7001
  %v7022 = vsel %vm597, %v7006, 0.0
  %7023 = vadd.xlane.f32.xlu0 %v7022
  %v7024 = vpop.xlane.xlu0 %7023
  %v7025 = vsel %vm597, %v7007, 0.0
  %7026 = vadd.xlane.f32.xlu0 %v7025
  %v7027 = vpop.xlane.xlu0 %7026
  %v7028 = vsel %vm597, %v7008, 0.0
  %7029 = vadd.xlane.f32.xlu0 %v7028
  %v7030 = vpop.xlane.xlu0 %7029
  %v7031 = vsel %vm597, %v7009, 0.0
  %7032 = vadd.xlane.f32.xlu0 %v7031
  %v7033 = vpop.xlane.xlu0 %7032
  %v7034 = vsel %vm597, %v7010, 0.0
  %7035 = vadd.xlane.f32.xlu0 %v7034
  %v7036 = vpop.xlane.xlu0 %7035
  %v7037 = vsel %vm597, %v7011, 0.0
  %7038 = vadd.xlane.f32.xlu0 %v7037
  %v7039 = vpop.xlane.xlu0 %7038
  %v7040 = vsel %vm597, %v7012, 0.0
  %7041 = vadd.xlane.f32.xlu0 %v7040
  %v7042 = vpop.xlane.xlu0 %7041
  %v7043 = vsel %vm597, %v7013, 0.0
  %7044 = vadd.xlane.f32.xlu0 %v7043
  %v7045 = vpop.xlane.xlu0 %7044
  %v7054 = vlaneseq
  %v7055 = vshrl.u32 %v7054, 7
  %v7056 = vsub.s32 0, %v7055
  %v7057 = vrot.slane %v7024, %v7056
  %v7058 = vlaneseq
  %v7059 = vshrl.u32 %v7058, 7
  %v7060 = vsub.s32 1, %v7059
  %v7061 = vrot.slane %v7024, %v7060
  %v7062 = vlaneseq
  %v7063 = vshrl.u32 %v7062, 7
  %v7064 = vsub.s32 0, %v7063
  %v7065 = vrot.slane %v7027, %v7064
  %v7066 = vlaneseq
  %v7067 = vshrl.u32 %v7066, 7
  %v7068 = vsub.s32 1, %v7067
  %v7069 = vrot.slane %v7027, %v7068
  %v7070 = vlaneseq
  %v7071 = vshrl.u32 %v7070, 7
  %v7072 = vsub.s32 0, %v7071
  %v7073 = vrot.slane %v7030, %v7072
  %v7074 = vlaneseq
  %v7075 = vshrl.u32 %v7074, 7
  %v7076 = vsub.s32 1, %v7075
  %v7077 = vrot.slane %v7030, %v7076
  %v7078 = vlaneseq
  %v7079 = vshrl.u32 %v7078, 7
  %v7080 = vsub.s32 0, %v7079
  %v7081 = vrot.slane %v7033, %v7080
  %v7082 = vlaneseq
  %v7083 = vshrl.u32 %v7082, 7
  %v7084 = vsub.s32 1, %v7083
  %v7085 = vrot.slane %v7033, %v7084
  %v7086 = vlaneseq
  %v7087 = vshrl.u32 %v7086, 7
  %v7088 = vsub.s32 0, %v7087
  %v7089 = vrot.slane %v7036, %v7088
  %v7090 = vlaneseq
  %v7091 = vshrl.u32 %v7090, 7
  %v7092 = vsub.s32 1, %v7091
  %v7093 = vrot.slane %v7036, %v7092
  %v7094 = vlaneseq
  %v7095 = vshrl.u32 %v7094, 7
  %v7096 = vsub.s32 0, %v7095
  %v7097 = vrot.slane %v7039, %v7096
  %v7098 = vlaneseq
  %v7099 = vshrl.u32 %v7098, 7
  %v7100 = vsub.s32 1, %v7099
  %v7101 = vrot.slane %v7039, %v7100
  %v7102 = vlaneseq
  %v7103 = vshrl.u32 %v7102, 7
  %v7104 = vsub.s32 0, %v7103
  %v7105 = vrot.slane %v7042, %v7104
  %v7106 = vlaneseq
  %v7107 = vshrl.u32 %v7106, 7
  %v7108 = vsub.s32 1, %v7107
  %v7109 = vrot.slane %v7042, %v7108
  %v7110 = vlaneseq
  %v7111 = vshrl.u32 %v7110, 7
  %v7112 = vsub.s32 0, %v7111
  %v7113 = vrot.slane %v7045, %v7112
  %v7114 = vlaneseq
  %v7115 = vshrl.u32 %v7114, 7
  %v7116 = vsub.s32 1, %v7115
  %v7117 = vrot.slane %v7045, %v7116
  %v7134 = vrcp.pop %v7057
  %v7135 = vmul.f32 %v6847, %v7134
  %v7136 = vrcp.pop %v7061
  %v7137 = vmul.f32 %v6849, %v7136
  %v7138 = vrcp.pop %v7065
  %v7139 = vmul.f32 %v6851, %v7138
  %v7140 = vrcp.pop %v7069
  %v7141 = vmul.f32 %v6853, %v7140
  %v7142 = vrcp.pop %v7073
  %v7143 = vmul.f32 %v6855, %v7142
  %v7144 = vrcp.pop %v7077
  %v7145 = vmul.f32 %v6857, %v7144
  %v7146 = vrcp.pop %v7081
  %v7147 = vmul.f32 %v6859, %v7146
  %v7148 = vrcp.pop %v7085
  %v7149 = vmul.f32 %v6861, %v7148
  %v7150 = vrcp.pop %v7089
  %v7151 = vmul.f32 %v6863, %v7150
  %v7152 = vrcp.pop %v7093
  %v7153 = vmul.f32 %v6865, %v7152
  %v7154 = vrcp.pop %v7097
  %v7155 = vmul.f32 %v6867, %v7154
  %v7156 = vrcp.pop %v7101
  %v7157 = vmul.f32 %v6869, %v7156
  %v7158 = vrcp.pop %v7105
  %v7159 = vmul.f32 %v6871, %v7158
  %v7160 = vrcp.pop %v7109
  %v7161 = vmul.f32 %v6873, %v7160
  %v7162 = vrcp.pop %v7113
  %v7163 = vmul.f32 %v6875, %v7162
  %v7164 = vrcp.pop %v7117
  %v7165 = vmul.f32 %v6877, %v7164
  %7168 = vset.pattern.permute.xlu0 0
  %7169 = vperm.xlu0 %7168, %v7135
  %v7170 = vpop.permute.xlu0 %7169
  %7171 = vset.pattern.permute.xlu0 0
  %7172 = vperm.xlu0 %7171, %v7137
  %v7173 = vpop.permute.xlu0 %7172
  %v7174 = vlaneseq
  %v7175 = vshrl.u32 %v7174, 7
  %v7176 = vsub.s32 %v515, %v7175
  %v7177 = vrot.slane %v7170, %v7176
  %v7178 = vlaneseq
  %v7179 = vshrl.u32 %v7178, 7
  %v7180 = vsub.s32 %v515, %v7179
  %v7181 = vrot.slane %v7173, %v7180
  %v7182 = vsel %vm580, %v7181, %v7177
  %7183 = vrot.lane.b32.xlu0 %v343, 48
  %v7184 = vpop.permute.xlu0 %7183
  %v7185 = vsel %vm1065, %v7182, 0
  %v7187 = vsel %vm1068, %v7184, 0
  %7189 = vmatprep.subr.mxu0 0.0
  %7190 = vmatpush1.msra.mxu0 %v7187
  %7191 = vmatprep.subr.mxu0 0.0
  %7192 = vmatpush1.msra.mxu0 0.0
  %7193 = vmatprep.subr.mxu0 0.0
  %7194 = vmatpush1.msra.mxu0 0.0
  %7195 = vmatprep.subr.mxu0 0.0
  %7196 = vmatpush1.msra.mxu0 0.0
  %7197 = vmatprep.subr.mxu0 0.0
  %7198 = vmatpush1.msra.mxu0 0.0
  %7199 = vmatprep.subr.mxu0 0.0
  %7200 = vmatpush1.msra.mxu0 0.0
  %7201 = vmatprep.subr.mxu0 0.0
  %7202 = vmatpush1.msra.mxu0 0.0
  %7203 = vmatprep.subr.mxu0 0.0
  %7204 = vmatpush1.msra.mxu0 0.0
  %7205 = vmatprep.subr.mxu0 0.0
  %7206 = vmatpush1.msra.mxu0 0.0
  %7207 = vmatprep.subr.mxu0 0.0
  %7208 = vmatpush1.msra.mxu0 0.0
  %7209 = vmatprep.subr.mxu0 0.0
  %7210 = vmatpush1.msra.mxu0 0.0
  %7211 = vmatprep.subr.mxu0 0.0
  %7212 = vmatpush1.msra.mxu0 0.0
  %7213 = vmatprep.subr.mxu0 0.0
  %7214 = vmatpush1.msra.mxu0 0.0
  %7215 = vmatprep.subr.mxu0 0.0
  %7216 = vmatpush1.msra.mxu0 0.0
  %7217 = vmatprep.subr.mxu0 0.0
  %7218 = vmatpush1.msra.mxu0 0.0
  %7219 = vmatprep.subr.mxu0 0.0
  %7220 = vmatpush1.msra.mxu0 0.0
  %7221 = vmatprep.subr.mxu0 0.0
  %7222 = vmatpush1.msra.mxu0 0.0
  %7223 = vmatprep.subr.mxu0 0.0
  %7224 = vmatpush1.msra.mxu0 0.0
  %7225 = vmatprep.subr.mxu0 0.0
  %7226 = vmatpush1.msra.mxu0 0.0
  %7227 = vmatprep.subr.mxu0 0.0
  %7228 = vmatpush1.msra.mxu0 0.0
  %7229 = vmatprep.subr.mxu0 0.0
  %7230 = vmatpush1.msra.mxu0 0.0
  %7231 = vmatprep.subr.mxu0 0.0
  %7232 = vmatpush1.msra.mxu0 0.0
  %7233 = vmatprep.subr.mxu0 0.0
  %7234 = vmatpush1.msra.mxu0 0.0
  %7235 = vmatprep.subr.mxu0 0.0
  %7236 = vmatpush1.msra.mxu0 0.0
  %7237 = vmatprep.subr.mxu0 0.0
  %7238 = vmatpush1.msra.mxu0 0.0
  %7239 = vmatprep.subr.mxu0 0.0
  %7240 = vmatpush1.msra.mxu0 0.0
  %7241 = vmatprep.subr.mxu0 0.0
  %7242 = vmatpush1.msra.mxu0 0.0
  %7243 = vmatprep.subr.mxu0 0.0
  %7244 = vmatpush1.msra.mxu0 0.0
  %7245 = vmatprep.subr.mxu0 0.0
  %7246 = vmatpush1.msra.mxu0 0.0
  %7247 = vmatprep.subr.mxu0 0.0
  %7248 = vmatpush1.msra.mxu0 0.0
  %7249 = vmatprep.subr.mxu0 0.0
  %7250 = vmatpush1.msra.mxu0 0.0
  %7251 = vmatprep.subr.mxu0 0.0
  %7252 = vmatpush1.msra.mxu0 0.0
  %7253 = vmatprep.mubr.f32.mxu0 0.0
  %7254 = vmatmul.mubr.f32.gmra.mrb[0].mxu0 %v7185
  %v7255 = vpop.f32.mrb[0].mxu0
  %v7256 = vadd.f32 0.0, %v7255
  %v7257 = vpop.f32.mrb[0].mxu0
  %7258 = vdwg.mxu0
  %7261 = vset.pattern.permute.xlu0 0
  %7262 = vperm.xlu0 %7261, %v7139
  %v7263 = vpop.permute.xlu0 %7262
  %7264 = vset.pattern.permute.xlu0 0
  %7265 = vperm.xlu0 %7264, %v7141
  %v7266 = vpop.permute.xlu0 %7265
  %v7267 = vlaneseq
  %v7268 = vshrl.u32 %v7267, 7
  %v7269 = vsub.s32 %v515, %v7268
  %v7270 = vrot.slane %v7263, %v7269
  %v7271 = vlaneseq
  %v7272 = vshrl.u32 %v7271, 7
  %v7273 = vsub.s32 %v515, %v7272
  %v7274 = vrot.slane %v7266, %v7273
  %v7275 = vsel %vm580, %v7274, %v7270
  %7276 = vrot.lane.b32.xlu0 %v350, 48
  %v7277 = vpop.permute.xlu0 %7276
  %v7278 = vsel %vm1065, %v7275, 0
  %v7280 = vsel %vm1068, %v7277, 0
  %7282 = vmatprep.subr.mxu0 0.0
  %7283 = vmatpush1.msra.mxu0 %v7280
  %7284 = vmatprep.subr.mxu0 0.0
  %7285 = vmatpush1.msra.mxu0 0.0
  %7286 = vmatprep.subr.mxu0 0.0
  %7287 = vmatpush1.msra.mxu0 0.0
  %7288 = vmatprep.subr.mxu0 0.0
  %7289 = vmatpush1.msra.mxu0 0.0
  %7290 = vmatprep.subr.mxu0 0.0
  %7291 = vmatpush1.msra.mxu0 0.0
  %7292 = vmatprep.subr.mxu0 0.0
  %7293 = vmatpush1.msra.mxu0 0.0
  %7294 = vmatprep.subr.mxu0 0.0
  %7295 = vmatpush1.msra.mxu0 0.0
  %7296 = vmatprep.subr.mxu0 0.0
  %7297 = vmatpush1.msra.mxu0 0.0
  %7298 = vmatprep.subr.mxu0 0.0
  %7299 = vmatpush1.msra.mxu0 0.0
  %7300 = vmatprep.subr.mxu0 0.0
  %7301 = vmatpush1.msra.mxu0 0.0
  %7302 = vmatprep.subr.mxu0 0.0
  %7303 = vmatpush1.msra.mxu0 0.0
  %7304 = vmatprep.subr.mxu0 0.0
  %7305 = vmatpush1.msra.mxu0 0.0
  %7306 = vmatprep.subr.mxu0 0.0
  %7307 = vmatpush1.msra.mxu0 0.0
  %7308 = vmatprep.subr.mxu0 0.0
  %7309 = vmatpush1.msra.mxu0 0.0
  %7310 = vmatprep.subr.mxu0 0.0
  %7311 = vmatpush1.msra.mxu0 0.0
  %7312 = vmatprep.subr.mxu0 0.0
  %7313 = vmatpush1.msra.mxu0 0.0
  %7314 = vmatprep.subr.mxu0 0.0
  %7315 = vmatpush1.msra.mxu0 0.0
  %7316 = vmatprep.subr.mxu0 0.0
  %7317 = vmatpush1.msra.mxu0 0.0
  %7318 = vmatprep.subr.mxu0 0.0
  %7319 = vmatpush1.msra.mxu0 0.0
  %7320 = vmatprep.subr.mxu0 0.0
  %7321 = vmatpush1.msra.mxu0 0.0
  %7322 = vmatprep.subr.mxu0 0.0
  %7323 = vmatpush1.msra.mxu0 0.0
  %7324 = vmatprep.subr.mxu0 0.0
  %7325 = vmatpush1.msra.mxu0 0.0
  %7326 = vmatprep.subr.mxu0 0.0
  %7327 = vmatpush1.msra.mxu0 0.0
  %7328 = vmatprep.subr.mxu0 0.0
  %7329 = vmatpush1.msra.mxu0 0.0
  %7330 = vmatprep.subr.mxu0 0.0
  %7331 = vmatpush1.msra.mxu0 0.0
  %7332 = vmatprep.subr.mxu0 0.0
  %7333 = vmatpush1.msra.mxu0 0.0
  %7334 = vmatprep.subr.mxu0 0.0
  %7335 = vmatpush1.msra.mxu0 0.0
  %7336 = vmatprep.subr.mxu0 0.0
  %7337 = vmatpush1.msra.mxu0 0.0
  %7338 = vmatprep.subr.mxu0 0.0
  %7339 = vmatpush1.msra.mxu0 0.0
  %7340 = vmatprep.subr.mxu0 0.0
  %7341 = vmatpush1.msra.mxu0 0.0
  %7342 = vmatprep.subr.mxu0 0.0
  %7343 = vmatpush1.msra.mxu0 0.0
  %7344 = vmatprep.subr.mxu0 0.0
  %7345 = vmatpush1.msra.mxu0 0.0
  %7346 = vmatprep.mubr.f32.mxu0 0.0
  %7347 = vmatmul.mubr.f32.gmra.mrb[0].mxu0 %v7278
  %v7348 = vpop.f32.mrb[0].mxu0
  %v7349 = vadd.f32 0.0, %v7348
  %v7350 = vpop.f32.mrb[0].mxu0
  %7351 = vdwg.mxu0
  %7354 = vset.pattern.permute.xlu0 0
  %7355 = vperm.xlu0 %7354, %v7143
  %v7356 = vpop.permute.xlu0 %7355
  %7357 = vset.pattern.permute.xlu0 0
  %7358 = vperm.xlu0 %7357, %v7145
  %v7359 = vpop.permute.xlu0 %7358
  %v7360 = vlaneseq
  %v7361 = vshrl.u32 %v7360, 7
  %v7362 = vsub.s32 %v515, %v7361
  %v7363 = vrot.slane %v7356, %v7362
  %v7364 = vlaneseq
  %v7365 = vshrl.u32 %v7364, 7
  %v7366 = vsub.s32 %v515, %v7365
  %v7367 = vrot.slane %v7359, %v7366
  %v7368 = vsel %vm580, %v7367, %v7363
  %7369 = vrot.lane.b32.xlu0 %v357, 48
  %v7370 = vpop.permute.xlu0 %7369
  %v7371 = vsel %vm1065, %v7368, 0
  %v7373 = vsel %vm1068, %v7370, 0
  %7375 = vmatprep.subr.mxu0 0.0
  %7376 = vmatpush1.msra.mxu0 %v7373
  %7377 = vmatprep.subr.mxu0 0.0
  %7378 = vmatpush1.msra.mxu0 0.0
  %7379 = vmatprep.subr.mxu0 0.0
  %7380 = vmatpush1.msra.mxu0 0.0
  %7381 = vmatprep.subr.mxu0 0.0
  %7382 = vmatpush1.msra.mxu0 0.0
  %7383 = vmatprep.subr.mxu0 0.0
  %7384 = vmatpush1.msra.mxu0 0.0
  %7385 = vmatprep.subr.mxu0 0.0
  %7386 = vmatpush1.msra.mxu0 0.0
  %7387 = vmatprep.subr.mxu0 0.0
  %7388 = vmatpush1.msra.mxu0 0.0
  %7389 = vmatprep.subr.mxu0 0.0
  %7390 = vmatpush1.msra.mxu0 0.0
  %7391 = vmatprep.subr.mxu0 0.0
  %7392 = vmatpush1.msra.mxu0 0.0
  %7393 = vmatprep.subr.mxu0 0.0
  %7394 = vmatpush1.msra.mxu0 0.0
  %7395 = vmatprep.subr.mxu0 0.0
  %7396 = vmatpush1.msra.mxu0 0.0
  %7397 = vmatprep.subr.mxu0 0.0
  %7398 = vmatpush1.msra.mxu0 0.0
  %7399 = vmatprep.subr.mxu0 0.0
  %7400 = vmatpush1.msra.mxu0 0.0
  %7401 = vmatprep.subr.mxu0 0.0
  %7402 = vmatpush1.msra.mxu0 0.0
  %7403 = vmatprep.subr.mxu0 0.0
  %7404 = vmatpush1.msra.mxu0 0.0
  %7405 = vmatprep.subr.mxu0 0.0
  %7406 = vmatpush1.msra.mxu0 0.0
  %7407 = vmatprep.subr.mxu0 0.0
  %7408 = vmatpush1.msra.mxu0 0.0
  %7409 = vmatprep.subr.mxu0 0.0
  %7410 = vmatpush1.msra.mxu0 0.0
  %7411 = vmatprep.subr.mxu0 0.0
  %7412 = vmatpush1.msra.mxu0 0.0
  %7413 = vmatprep.subr.mxu0 0.0
  %7414 = vmatpush1.msra.mxu0 0.0
  %7415 = vmatprep.subr.mxu0 0.0
  %7416 = vmatpush1.msra.mxu0 0.0
  %7417 = vmatprep.subr.mxu0 0.0
  %7418 = vmatpush1.msra.mxu0 0.0
  %7419 = vmatprep.subr.mxu0 0.0
  %7420 = vmatpush1.msra.mxu0 0.0
  %7421 = vmatprep.subr.mxu0 0.0
  %7422 = vmatpush1.msra.mxu0 0.0
  %7423 = vmatprep.subr.mxu0 0.0
  %7424 = vmatpush1.msra.mxu0 0.0
  %7425 = vmatprep.subr.mxu0 0.0
  %7426 = vmatpush1.msra.mxu0 0.0
  %7427 = vmatprep.subr.mxu0 0.0
  %7428 = vmatpush1.msra.mxu0 0.0
  %7429 = vmatprep.subr.mxu0 0.0
  %7430 = vmatpush1.msra.mxu0 0.0
  %7431 = vmatprep.subr.mxu0 0.0
  %7432 = vmatpush1.msra.mxu0 0.0
  %7433 = vmatprep.subr.mxu0 0.0
  %7434 = vmatpush1.msra.mxu0 0.0
  %7435 = vmatprep.subr.mxu0 0.0
  %7436 = vmatpush1.msra.mxu0 0.0
  %7437 = vmatprep.subr.mxu0 0.0
  %7438 = vmatpush1.msra.mxu0 0.0
  %7439 = vmatprep.mubr.f32.mxu0 0.0
  %7440 = vmatmul.mubr.f32.gmra.mrb[0].mxu0 %v7371
  %v7441 = vpop.f32.mrb[0].mxu0
  %v7442 = vadd.f32 0.0, %v7441
  %v7443 = vpop.f32.mrb[0].mxu0
  %7444 = vdwg.mxu0
  %7447 = vset.pattern.permute.xlu0 0
  %7448 = vperm.xlu0 %7447, %v7147
  %v7449 = vpop.permute.xlu0 %7448
  %7450 = vset.pattern.permute.xlu0 0
  %7451 = vperm.xlu0 %7450, %v7149
  %v7452 = vpop.permute.xlu0 %7451
  %v7453 = vlaneseq
  %v7454 = vshrl.u32 %v7453, 7
  %v7455 = vsub.s32 %v515, %v7454
  %v7456 = vrot.slane %v7449, %v7455
  %v7457 = vlaneseq
  %v7458 = vshrl.u32 %v7457, 7
  %v7459 = vsub.s32 %v515, %v7458
  %v7460 = vrot.slane %v7452, %v7459
  %v7461 = vsel %vm580, %v7460, %v7456
  %7462 = vrot.lane.b32.xlu0 %v364, 48
  %v7463 = vpop.permute.xlu0 %7462
  %v7464 = vsel %vm1065, %v7461, 0
  %v7466 = vsel %vm1068, %v7463, 0
  %7468 = vmatprep.subr.mxu0 0.0
  %7469 = vmatpush1.msra.mxu0 %v7466
  %7470 = vmatprep.subr.mxu0 0.0
  %7471 = vmatpush1.msra.mxu0 0.0
  %7472 = vmatprep.subr.mxu0 0.0
  %7473 = vmatpush1.msra.mxu0 0.0
  %7474 = vmatprep.subr.mxu0 0.0
  %7475 = vmatpush1.msra.mxu0 0.0
  %7476 = vmatprep.subr.mxu0 0.0
  %7477 = vmatpush1.msra.mxu0 0.0
  %7478 = vmatprep.subr.mxu0 0.0
  %7479 = vmatpush1.msra.mxu0 0.0
  %7480 = vmatprep.subr.mxu0 0.0
  %7481 = vmatpush1.msra.mxu0 0.0
  %7482 = vmatprep.subr.mxu0 0.0
  %7483 = vmatpush1.msra.mxu0 0.0
  %7484 = vmatprep.subr.mxu0 0.0
  %7485 = vmatpush1.msra.mxu0 0.0
  %7486 = vmatprep.subr.mxu0 0.0
  %7487 = vmatpush1.msra.mxu0 0.0
  %7488 = vmatprep.subr.mxu0 0.0
  %7489 = vmatpush1.msra.mxu0 0.0
  %7490 = vmatprep.subr.mxu0 0.0
  %7491 = vmatpush1.msra.mxu0 0.0
  %7492 = vmatprep.subr.mxu0 0.0
  %7493 = vmatpush1.msra.mxu0 0.0
  %7494 = vmatprep.subr.mxu0 0.0
  %7495 = vmatpush1.msra.mxu0 0.0
  %7496 = vmatprep.subr.mxu0 0.0
  %7497 = vmatpush1.msra.mxu0 0.0
  %7498 = vmatprep.subr.mxu0 0.0
  %7499 = vmatpush1.msra.mxu0 0.0
  %7500 = vmatprep.subr.mxu0 0.0
  %7501 = vmatpush1.msra.mxu0 0.0
  %7502 = vmatprep.subr.mxu0 0.0
  %7503 = vmatpush1.msra.mxu0 0.0
  %7504 = vmatprep.subr.mxu0 0.0
  %7505 = vmatpush1.msra.mxu0 0.0
  %7506 = vmatprep.subr.mxu0 0.0
  %7507 = vmatpush1.msra.mxu0 0.0
  %7508 = vmatprep.subr.mxu0 0.0
  %7509 = vmatpush1.msra.mxu0 0.0
  %7510 = vmatprep.subr.mxu0 0.0
  %7511 = vmatpush1.msra.mxu0 0.0
  %7512 = vmatprep.subr.mxu0 0.0
  %7513 = vmatpush1.msra.mxu0 0.0
  %7514 = vmatprep.subr.mxu0 0.0
  %7515 = vmatpush1.msra.mxu0 0.0
  %7516 = vmatprep.subr.mxu0 0.0
  %7517 = vmatpush1.msra.mxu0 0.0
  %7518 = vmatprep.subr.mxu0 0.0
  %7519 = vmatpush1.msra.mxu0 0.0
  %7520 = vmatprep.subr.mxu0 0.0
  %7521 = vmatpush1.msra.mxu0 0.0
  %7522 = vmatprep.subr.mxu0 0.0
  %7523 = vmatpush1.msra.mxu0 0.0
  %7524 = vmatprep.subr.mxu0 0.0
  %7525 = vmatpush1.msra.mxu0 0.0
  %7526 = vmatprep.subr.mxu0 0.0
  %7527 = vmatpush1.msra.mxu0 0.0
  %7528 = vmatprep.subr.mxu0 0.0
  %7529 = vmatpush1.msra.mxu0 0.0
  %7530 = vmatprep.subr.mxu0 0.0
  %7531 = vmatpush1.msra.mxu0 0.0
  %7532 = vmatprep.mubr.f32.mxu0 0.0
  %7533 = vmatmul.mubr.f32.gmra.mrb[0].mxu0 %v7464
  %v7534 = vpop.f32.mrb[0].mxu0
  %v7535 = vadd.f32 0.0, %v7534
  %v7536 = vpop.f32.mrb[0].mxu0
  %7537 = vdwg.mxu0
  %7540 = vset.pattern.permute.xlu0 0
  %7541 = vperm.xlu0 %7540, %v7151
  %v7542 = vpop.permute.xlu0 %7541
  %7543 = vset.pattern.permute.xlu0 0
  %7544 = vperm.xlu0 %7543, %v7153
  %v7545 = vpop.permute.xlu0 %7544
  %v7546 = vlaneseq
  %v7547 = vshrl.u32 %v7546, 7
  %v7548 = vsub.s32 %v515, %v7547
  %v7549 = vrot.slane %v7542, %v7548
  %v7550 = vlaneseq
  %v7551 = vshrl.u32 %v7550, 7
  %v7552 = vsub.s32 %v515, %v7551
  %v7553 = vrot.slane %v7545, %v7552
  %v7554 = vsel %vm580, %v7553, %v7549
  %7555 = vrot.lane.b32.xlu0 %v371, 48
  %v7556 = vpop.permute.xlu0 %7555
  %v7557 = vsel %vm1065, %v7554, 0
  %v7559 = vsel %vm1068, %v7556, 0
  %7561 = vmatprep.subr.mxu0 0.0
  %7562 = vmatpush1.msra.mxu0 %v7559
  %7563 = vmatprep.subr.mxu0 0.0
  %7564 = vmatpush1.msra.mxu0 0.0
  %7565 = vmatprep.subr.mxu0 0.0
  %7566 = vmatpush1.msra.mxu0 0.0
  %7567 = vmatprep.subr.mxu0 0.0
  %7568 = vmatpush1.msra.mxu0 0.0
  %7569 = vmatprep.subr.mxu0 0.0
  %7570 = vmatpush1.msra.mxu0 0.0
  %7571 = vmatprep.subr.mxu0 0.0
  %7572 = vmatpush1.msra.mxu0 0.0
  %7573 = vmatprep.subr.mxu0 0.0
  %7574 = vmatpush1.msra.mxu0 0.0
  %7575 = vmatprep.subr.mxu0 0.0
  %7576 = vmatpush1.msra.mxu0 0.0
  %7577 = vmatprep.subr.mxu0 0.0
  %7578 = vmatpush1.msra.mxu0 0.0
  %7579 = vmatprep.subr.mxu0 0.0
  %7580 = vmatpush1.msra.mxu0 0.0
  %7581 = vmatprep.subr.mxu0 0.0
  %7582 = vmatpush1.msra.mxu0 0.0
  %7583 = vmatprep.subr.mxu0 0.0
  %7584 = vmatpush1.msra.mxu0 0.0
  %7585 = vmatprep.subr.mxu0 0.0
  %7586 = vmatpush1.msra.mxu0 0.0
  %7587 = vmatprep.subr.mxu0 0.0
  %7588 = vmatpush1.msra.mxu0 0.0
  %7589 = vmatprep.subr.mxu0 0.0
  %7590 = vmatpush1.msra.mxu0 0.0
  %7591 = vmatprep.subr.mxu0 0.0
  %7592 = vmatpush1.msra.mxu0 0.0
  %7593 = vmatprep.subr.mxu0 0.0
  %7594 = vmatpush1.msra.mxu0 0.0
  %7595 = vmatprep.subr.mxu0 0.0
  %7596 = vmatpush1.msra.mxu0 0.0
  %7597 = vmatprep.subr.mxu0 0.0
  %7598 = vmatpush1.msra.mxu0 0.0
  %7599 = vmatprep.subr.mxu0 0.0
  %7600 = vmatpush1.msra.mxu0 0.0
  %7601 = vmatprep.subr.mxu0 0.0
  %7602 = vmatpush1.msra.mxu0 0.0
  %7603 = vmatprep.subr.mxu0 0.0
  %7604 = vmatpush1.msra.mxu0 0.0
  %7605 = vmatprep.subr.mxu0 0.0
  %7606 = vmatpush1.msra.mxu0 0.0
  %7607 = vmatprep.subr.mxu0 0.0
  %7608 = vmatpush1.msra.mxu0 0.0
  %7609 = vmatprep.subr.mxu0 0.0
  %7610 = vmatpush1.msra.mxu0 0.0
  %7611 = vmatprep.subr.mxu0 0.0
  %7612 = vmatpush1.msra.mxu0 0.0
  %7613 = vmatprep.subr.mxu0 0.0
  %7614 = vmatpush1.msra.mxu0 0.0
  %7615 = vmatprep.subr.mxu0 0.0
  %7616 = vmatpush1.msra.mxu0 0.0
  %7617 = vmatprep.subr.mxu0 0.0
  %7618 = vmatpush1.msra.mxu0 0.0
  %7619 = vmatprep.subr.mxu0 0.0
  %7620 = vmatpush1.msra.mxu0 0.0
  %7621 = vmatprep.subr.mxu0 0.0
  %7622 = vmatpush1.msra.mxu0 0.0
  %7623 = vmatprep.subr.mxu0 0.0
  %7624 = vmatpush1.msra.mxu0 0.0
  %7625 = vmatprep.mubr.f32.mxu0 0.0
  %7626 = vmatmul.mubr.f32.gmra.mrb[0].mxu0 %v7557
  %v7627 = vpop.f32.mrb[0].mxu0
  %v7628 = vadd.f32 0.0, %v7627
  %v7629 = vpop.f32.mrb[0].mxu0
  %7630 = vdwg.mxu0
  %7633 = vset.pattern.permute.xlu0 0
  %7634 = vperm.xlu0 %7633, %v7155
  %v7635 = vpop.permute.xlu0 %7634
  %7636 = vset.pattern.permute.xlu0 0
  %7637 = vperm.xlu0 %7636, %v7157
  %v7638 = vpop.permute.xlu0 %7637
  %v7639 = vlaneseq
  %v7640 = vshrl.u32 %v7639, 7
  %v7641 = vsub.s32 %v515, %v7640
  %v7642 = vrot.slane %v7635, %v7641
  %v7643 = vlaneseq
  %v7644 = vshrl.u32 %v7643, 7
  %v7645 = vsub.s32 %v515, %v7644
  %v7646 = vrot.slane %v7638, %v7645
  %v7647 = vsel %vm580, %v7646, %v7642
  %7648 = vrot.lane.b32.xlu0 %v378, 48
  %v7649 = vpop.permute.xlu0 %7648
  %v7650 = vsel %vm1065, %v7647, 0
  %v7652 = vsel %vm1068, %v7649, 0
  %7654 = vmatprep.subr.mxu0 0.0
  %7655 = vmatpush1.msra.mxu0 %v7652
  %7656 = vmatprep.subr.mxu0 0.0
  %7657 = vmatpush1.msra.mxu0 0.0
  %7658 = vmatprep.subr.mxu0 0.0
  %7659 = vmatpush1.msra.mxu0 0.0
  %7660 = vmatprep.subr.mxu0 0.0
  %7661 = vmatpush1.msra.mxu0 0.0
  %7662 = vmatprep.subr.mxu0 0.0
  %7663 = vmatpush1.msra.mxu0 0.0
  %7664 = vmatprep.subr.mxu0 0.0
  %7665 = vmatpush1.msra.mxu0 0.0
  %7666 = vmatprep.subr.mxu0 0.0
  %7667 = vmatpush1.msra.mxu0 0.0
  %7668 = vmatprep.subr.mxu0 0.0
  %7669 = vmatpush1.msra.mxu0 0.0
  %7670 = vmatprep.subr.mxu0 0.0
  %7671 = vmatpush1.msra.mxu0 0.0
  %7672 = vmatprep.subr.mxu0 0.0
  %7673 = vmatpush1.msra.mxu0 0.0
  %7674 = vmatprep.subr.mxu0 0.0
  %7675 = vmatpush1.msra.mxu0 0.0
  %7676 = vmatprep.subr.mxu0 0.0
  %7677 = vmatpush1.msra.mxu0 0.0
  %7678 = vmatprep.subr.mxu0 0.0
  %7679 = vmatpush1.msra.mxu0 0.0
  %7680 = vmatprep.subr.mxu0 0.0
  %7681 = vmatpush1.msra.mxu0 0.0
  %7682 = vmatprep.subr.mxu0 0.0
  %7683 = vmatpush1.msra.mxu0 0.0
  %7684 = vmatprep.subr.mxu0 0.0
  %7685 = vmatpush1.msra.mxu0 0.0
  %7686 = vmatprep.subr.mxu0 0.0
  %7687 = vmatpush1.msra.mxu0 0.0
  %7688 = vmatprep.subr.mxu0 0.0
  %7689 = vmatpush1.msra.mxu0 0.0
  %7690 = vmatprep.subr.mxu0 0.0
  %7691 = vmatpush1.msra.mxu0 0.0
  %7692 = vmatprep.subr.mxu0 0.0
  %7693 = vmatpush1.msra.mxu0 0.0
  %7694 = vmatprep.subr.mxu0 0.0
  %7695 = vmatpush1.msra.mxu0 0.0
  %7696 = vmatprep.subr.mxu0 0.0
  %7697 = vmatpush1.msra.mxu0 0.0
  %7698 = vmatprep.subr.mxu0 0.0
  %7699 = vmatpush1.msra.mxu0 0.0
  %7700 = vmatprep.subr.mxu0 0.0
  %7701 = vmatpush1.msra.mxu0 0.0
  %7702 = vmatprep.subr.mxu0 0.0
  %7703 = vmatpush1.msra.mxu0 0.0
  %7704 = vmatprep.subr.mxu0 0.0
  %7705 = vmatpush1.msra.mxu0 0.0
  %7706 = vmatprep.subr.mxu0 0.0
  %7707 = vmatpush1.msra.mxu0 0.0
  %7708 = vmatprep.subr.mxu0 0.0
  %7709 = vmatpush1.msra.mxu0 0.0
  %7710 = vmatprep.subr.mxu0 0.0
  %7711 = vmatpush1.msra.mxu0 0.0
  %7712 = vmatprep.subr.mxu0 0.0
  %7713 = vmatpush1.msra.mxu0 0.0
  %7714 = vmatprep.subr.mxu0 0.0
  %7715 = vmatpush1.msra.mxu0 0.0
  %7716 = vmatprep.subr.mxu0 0.0
  %7717 = vmatpush1.msra.mxu0 0.0
  %7718 = vmatprep.mubr.f32.mxu0 0.0
  %7719 = vmatmul.mubr.f32.gmra.mrb[0].mxu0 %v7650
  %v7720 = vpop.f32.mrb[0].mxu0
  %v7721 = vadd.f32 0.0, %v7720
  %v7722 = vpop.f32.mrb[0].mxu0
  %7723 = vdwg.mxu0
  %7726 = vset.pattern.permute.xlu0 0
  %7727 = vperm.xlu0 %7726, %v7159
  %v7728 = vpop.permute.xlu0 %7727
  %7729 = vset.pattern.permute.xlu0 0
  %7730 = vperm.xlu0 %7729, %v7161
  %v7731 = vpop.permute.xlu0 %7730
  %v7732 = vlaneseq
  %v7733 = vshrl.u32 %v7732, 7
  %v7734 = vsub.s32 %v515, %v7733
  %v7735 = vrot.slane %v7728, %v7734
  %v7736 = vlaneseq
  %v7737 = vshrl.u32 %v7736, 7
  %v7738 = vsub.s32 %v515, %v7737
  %v7739 = vrot.slane %v7731, %v7738
  %v7740 = vsel %vm580, %v7739, %v7735
  %7741 = vrot.lane.b32.xlu0 %v385, 48
  %v7742 = vpop.permute.xlu0 %7741
  %v7743 = vsel %vm1065, %v7740, 0
  %v7745 = vsel %vm1068, %v7742, 0
  %7747 = vmatprep.subr.mxu0 0.0
  %7748 = vmatpush1.msra.mxu0 %v7745
  %7749 = vmatprep.subr.mxu0 0.0
  %7750 = vmatpush1.msra.mxu0 0.0
  %7751 = vmatprep.subr.mxu0 0.0
  %7752 = vmatpush1.msra.mxu0 0.0
  %7753 = vmatprep.subr.mxu0 0.0
  %7754 = vmatpush1.msra.mxu0 0.0
  %7755 = vmatprep.subr.mxu0 0.0
  %7756 = vmatpush1.msra.mxu0 0.0
  %7757 = vmatprep.subr.mxu0 0.0
  %7758 = vmatpush1.msra.mxu0 0.0
  %7759 = vmatprep.subr.mxu0 0.0
  %7760 = vmatpush1.msra.mxu0 0.0
  %7761 = vmatprep.subr.mxu0 0.0
  %7762 = vmatpush1.msra.mxu0 0.0
  %7763 = vmatprep.subr.mxu0 0.0
  %7764 = vmatpush1.msra.mxu0 0.0
  %7765 = vmatprep.subr.mxu0 0.0
  %7766 = vmatpush1.msra.mxu0 0.0
  %7767 = vmatprep.subr.mxu0 0.0
  %7768 = vmatpush1.msra.mxu0 0.0
  %7769 = vmatprep.subr.mxu0 0.0
  %7770 = vmatpush1.msra.mxu0 0.0
  %7771 = vmatprep.subr.mxu0 0.0
  %7772 = vmatpush1.msra.mxu0 0.0
  %7773 = vmatprep.subr.mxu0 0.0
  %7774 = vmatpush1.msra.mxu0 0.0
  %7775 = vmatprep.subr.mxu0 0.0
  %7776 = vmatpush1.msra.mxu0 0.0
  %7777 = vmatprep.subr.mxu0 0.0
  %7778 = vmatpush1.msra.mxu0 0.0
  %7779 = vmatprep.subr.mxu0 0.0
  %7780 = vmatpush1.msra.mxu0 0.0
  %7781 = vmatprep.subr.mxu0 0.0
  %7782 = vmatpush1.msra.mxu0 0.0
  %7783 = vmatprep.subr.mxu0 0.0
  %7784 = vmatpush1.msra.mxu0 0.0
  %7785 = vmatprep.subr.mxu0 0.0
  %7786 = vmatpush1.msra.mxu0 0.0
  %7787 = vmatprep.subr.mxu0 0.0
  %7788 = vmatpush1.msra.mxu0 0.0
  %7789 = vmatprep.subr.mxu0 0.0
  %7790 = vmatpush1.msra.mxu0 0.0
  %7791 = vmatprep.subr.mxu0 0.0
  %7792 = vmatpush1.msra.mxu0 0.0
  %7793 = vmatprep.subr.mxu0 0.0
  %7794 = vmatpush1.msra.mxu0 0.0
  %7795 = vmatprep.subr.mxu0 0.0
  %7796 = vmatpush1.msra.mxu0 0.0
  %7797 = vmatprep.subr.mxu0 0.0
  %7798 = vmatpush1.msra.mxu0 0.0
  %7799 = vmatprep.subr.mxu0 0.0
  %7800 = vmatpush1.msra.mxu0 0.0
  %7801 = vmatprep.subr.mxu0 0.0
  %7802 = vmatpush1.msra.mxu0 0.0
  %7803 = vmatprep.subr.mxu0 0.0
  %7804 = vmatpush1.msra.mxu0 0.0
  %7805 = vmatprep.subr.mxu0 0.0
  %7806 = vmatpush1.msra.mxu0 0.0
  %7807 = vmatprep.subr.mxu0 0.0
  %7808 = vmatpush1.msra.mxu0 0.0
  %7809 = vmatprep.subr.mxu0 0.0
  %7810 = vmatpush1.msra.mxu0 0.0
  %7811 = vmatprep.mubr.f32.mxu0 0.0
  %7812 = vmatmul.mubr.f32.gmra.mrb[0].mxu0 %v7743
  %v7813 = vpop.f32.mrb[0].mxu0
  %v7814 = vadd.f32 0.0, %v7813
  %v7815 = vpop.f32.mrb[0].mxu0
  %7816 = vdwg.mxu0
  %7819 = vset.pattern.permute.xlu0 0
  %7820 = vperm.xlu0 %7819, %v7163
  %v7821 = vpop.permute.xlu0 %7820
  %7822 = vset.pattern.permute.xlu0 0
  %7823 = vperm.xlu0 %7822, %v7165
  %v7824 = vpop.permute.xlu0 %7823
  %v7825 = vlaneseq
  %v7826 = vshrl.u32 %v7825, 7
  %v7827 = vsub.s32 %v515, %v7826
  %v7828 = vrot.slane %v7821, %v7827
  %v7829 = vlaneseq
  %v7830 = vshrl.u32 %v7829, 7
  %v7831 = vsub.s32 %v515, %v7830
  %v7832 = vrot.slane %v7824, %v7831
  %v7833 = vsel %vm580, %v7832, %v7828
  %7834 = vrot.lane.b32.xlu0 %v392, 48
  %v7835 = vpop.permute.xlu0 %7834
  %v7836 = vsel %vm1065, %v7833, 0
  %v7838 = vsel %vm1068, %v7835, 0
  %7840 = vmatprep.subr.mxu0 0.0
  %7841 = vmatpush1.msra.mxu0 %v7838
  %7842 = vmatprep.subr.mxu0 0.0
  %7843 = vmatpush1.msra.mxu0 0.0
  %7844 = vmatprep.subr.mxu0 0.0
  %7845 = vmatpush1.msra.mxu0 0.0
  %7846 = vmatprep.subr.mxu0 0.0
  %7847 = vmatpush1.msra.mxu0 0.0
  %7848 = vmatprep.subr.mxu0 0.0
  %7849 = vmatpush1.msra.mxu0 0.0
  %7850 = vmatprep.subr.mxu0 0.0
  %7851 = vmatpush1.msra.mxu0 0.0
  %7852 = vmatprep.subr.mxu0 0.0
  %7853 = vmatpush1.msra.mxu0 0.0
  %7854 = vmatprep.subr.mxu0 0.0
  %7855 = vmatpush1.msra.mxu0 0.0
  %7856 = vmatprep.subr.mxu0 0.0
  %7857 = vmatpush1.msra.mxu0 0.0
  %7858 = vmatprep.subr.mxu0 0.0
  %7859 = vmatpush1.msra.mxu0 0.0
  %7860 = vmatprep.subr.mxu0 0.0
  %7861 = vmatpush1.msra.mxu0 0.0
  %7862 = vmatprep.subr.mxu0 0.0
  %7863 = vmatpush1.msra.mxu0 0.0
  %7864 = vmatprep.subr.mxu0 0.0
  %7865 = vmatpush1.msra.mxu0 0.0
  %7866 = vmatprep.subr.mxu0 0.0
  %7867 = vmatpush1.msra.mxu0 0.0
  %7868 = vmatprep.subr.mxu0 0.0
  %7869 = vmatpush1.msra.mxu0 0.0
  %7870 = vmatprep.subr.mxu0 0.0
  %7871 = vmatpush1.msra.mxu0 0.0
  %7872 = vmatprep.subr.mxu0 0.0
  %7873 = vmatpush1.msra.mxu0 0.0
  %7874 = vmatprep.subr.mxu0 0.0
  %7875 = vmatpush1.msra.mxu0 0.0
  %7876 = vmatprep.subr.mxu0 0.0
  %7877 = vmatpush1.msra.mxu0 0.0
  %7878 = vmatprep.subr.mxu0 0.0
  %7879 = vmatpush1.msra.mxu0 0.0
  %7880 = vmatprep.subr.mxu0 0.0
  %7881 = vmatpush1.msra.mxu0 0.0
  %7882 = vmatprep.subr.mxu0 0.0
  %7883 = vmatpush1.msra.mxu0 0.0
  %7884 = vmatprep.subr.mxu0 0.0
  %7885 = vmatpush1.msra.mxu0 0.0
  %7886 = vmatprep.subr.mxu0 0.0
  %7887 = vmatpush1.msra.mxu0 0.0
  %7888 = vmatprep.subr.mxu0 0.0
  %7889 = vmatpush1.msra.mxu0 0.0
  %7890 = vmatprep.subr.mxu0 0.0
  %7891 = vmatpush1.msra.mxu0 0.0
  %7892 = vmatprep.subr.mxu0 0.0
  %7893 = vmatpush1.msra.mxu0 0.0
  %7894 = vmatprep.subr.mxu0 0.0
  %7895 = vmatpush1.msra.mxu0 0.0
  %7896 = vmatprep.subr.mxu0 0.0
  %7897 = vmatpush1.msra.mxu0 0.0
  %7898 = vmatprep.subr.mxu0 0.0
  %7899 = vmatpush1.msra.mxu0 0.0
  %7900 = vmatprep.subr.mxu0 0.0
  %7901 = vmatpush1.msra.mxu0 0.0
  %7902 = vmatprep.subr.mxu0 0.0
  %7903 = vmatpush1.msra.mxu0 0.0
  %7904 = vmatprep.mubr.f32.mxu0 0.0
  %7905 = vmatmul.mubr.f32.gmra.mrb[0].mxu0 %v7836
  %v7906 = vpop.f32.mrb[0].mxu0
  %v7907 = vadd.f32 0.0, %v7906
  %v7908 = vpop.f32.mrb[0].mxu0
  %7909 = vdwg.mxu0
  %v7918 = vcombine.low %v7256, %v7349
  %v7919 = vcombine.low %v7442, %v7535
  %v7921 = vunpack.c.l.s4 1983009808
  %v7922 = vunpack.c.0.s8 %v7921
  %v7923 = vlaneseq
  %v7924 = vshrl.u32 %v7923, 7
  %v7925 = vsub.s32 %v7922, %v7924
  %v7926 = vrot.slane %v7918, %v7925
  %v7928 = vunpack.c.l.s4 1983009808
  %v7929 = vunpack.c.0.s8 %v7928
  %v7930 = vlaneseq
  %v7931 = vshrl.u32 %v7930, 7
  %v7932 = vsub.s32 %v7929, %v7931
  %v7933 = vrot.slane %v7919, %v7932
  %v7934 = vcombine.low %v7926, %v7933
  %v7935 = vcombine.low %v7628, %v7721
  %v7936 = vcombine.low %v7814, %v7907
  %v7938 = vunpack.c.l.s4 1983009808
  %v7939 = vunpack.c.0.s8 %v7938
  %v7940 = vlaneseq
  %v7941 = vshrl.u32 %v7940, 7
  %v7942 = vsub.s32 %v7939, %v7941
  %v7943 = vrot.slane %v7935, %v7942
  %v7945 = vunpack.c.l.s4 1983009808
  %v7946 = vunpack.c.0.s8 %v7945
  %v7947 = vlaneseq
  %v7948 = vshrl.u32 %v7947, 7
  %v7949 = vsub.s32 %v7946, %v7948
  %v7950 = vrot.slane %v7936, %v7949
  %v7951 = vcombine.low %v7943, %v7950
  %v7952 = vsel %vm3252, %v7934, 0
  %v7954 = vsel %vm3252, %v7951, 0
  %v7957 = vsel %vm3257, %v123, 0
  %7959 = vmatprep.subr.mxu0 0.0
  %7960 = vmatpush1.msra.mxu0 %v7957
  %7961 = vmatprep.subr.mxu0 0.0
  %7962 = vmatpush1.msra.mxu0 0.0
  %7963 = vmatprep.subr.mxu0 0.0
  %7964 = vmatpush1.msra.mxu0 0.0
  %7965 = vmatprep.subr.mxu0 0.0
  %7966 = vmatpush1.msra.mxu0 0.0
  %7967 = vmatprep.subr.mxu0 0.0
  %7968 = vmatpush1.msra.mxu0 0.0
  %7969 = vmatprep.subr.mxu0 0.0
  %7970 = vmatpush1.msra.mxu0 0.0
  %7971 = vmatprep.subr.mxu0 0.0
  %7972 = vmatpush1.msra.mxu0 0.0
  %7973 = vmatprep.subr.mxu0 0.0
  %7974 = vmatpush1.msra.mxu0 0.0
  %7975 = vmatprep.subr.mxu0 0.0
  %7976 = vmatpush1.msra.mxu0 0.0
  %7977 = vmatprep.subr.mxu0 0.0
  %7978 = vmatpush1.msra.mxu0 0.0
  %7979 = vmatprep.subr.mxu0 0.0
  %7980 = vmatpush1.msra.mxu0 0.0
  %7981 = vmatprep.subr.mxu0 0.0
  %7982 = vmatpush1.msra.mxu0 0.0
  %7983 = vmatprep.subr.mxu0 0.0
  %7984 = vmatpush1.msra.mxu0 0.0
  %7985 = vmatprep.subr.mxu0 0.0
  %7986 = vmatpush1.msra.mxu0 0.0
  %7987 = vmatprep.subr.mxu0 0.0
  %7988 = vmatpush1.msra.mxu0 0.0
  %7989 = vmatprep.subr.mxu0 0.0
  %7990 = vmatpush1.msra.mxu0 0.0
  %7991 = vmatprep.subr.mxu0 0.0
  %7992 = vmatpush1.msra.mxu0 0.0
  %7993 = vmatprep.subr.mxu0 0.0
  %7994 = vmatpush1.msra.mxu0 0.0
  %7995 = vmatprep.subr.mxu0 0.0
  %7996 = vmatpush1.msra.mxu0 0.0
  %7997 = vmatprep.subr.mxu0 0.0
  %7998 = vmatpush1.msra.mxu0 0.0
  %7999 = vmatprep.subr.mxu0 0.0
  %8000 = vmatpush1.msra.mxu0 0.0
  %8001 = vmatprep.subr.mxu0 0.0
  %8002 = vmatpush1.msra.mxu0 0.0
  %8003 = vmatprep.subr.mxu0 0.0
  %8004 = vmatpush1.msra.mxu0 0.0
  %8005 = vmatprep.subr.mxu0 0.0
  %8006 = vmatpush1.msra.mxu0 0.0
  %8007 = vmatprep.subr.mxu0 0.0
  %8008 = vmatpush1.msra.mxu0 0.0
  %8009 = vmatprep.subr.mxu0 0.0
  %8010 = vmatpush1.msra.mxu0 0.0
  %8011 = vmatprep.subr.mxu0 0.0
  %8012 = vmatpush1.msra.mxu0 0.0
  %8013 = vmatprep.subr.mxu0 0.0
  %8014 = vmatpush1.msra.mxu0 0.0
  %8015 = vmatprep.subr.mxu0 0.0
  %8016 = vmatpush1.msra.mxu0 0.0
  %8017 = vmatprep.subr.mxu0 0.0
  %8018 = vmatpush1.msra.mxu0 0.0
  %8019 = vmatprep.subr.mxu0 0.0
  %8020 = vmatpush1.msra.mxu0 0.0
  %8021 = vmatprep.subr.mxu0 0.0
  %8022 = vmatpush1.msra.mxu0 0.0
  %8023 = vmatprep.mubr.f32.mxu0 0.0
  %8024 = vmatmul.mubr.f32.gmra.mrb[0].mxu0 %v7952
  %v8025 = vpop.f32.mrb[0].mxu0
  %v8026 = vadd.f32 0.0, %v8025
  %v8027 = vpop.f32.mrb[0].mxu0
  %8028 = vmatprep.mubr.f32.mxu0 0.0
  %8029 = vmatmul.mubr.f32.gmra.mrb[0].mxu0 %v7954
  %v8030 = vpop.f32.mrb[0].mxu0
  %v8031 = vadd.f32 0.0, %v8030
  %v8032 = vpop.f32.mrb[0].mxu0
  %8033 = vdwg.mxu0
  %v8034 = vadd.f32 %v6508, %v8026
  %v8035 = vadd.f32 %v6509, %v8031
  %8036 = vrot.lane.b32.xlu0 %v417, 108
  %v8037 = vpop.permute.xlu0 %8036
  %8038 = vrot.lane.b32.xlu0 %v418, 108
  %v8039 = vpop.permute.xlu0 %8038
  %8040 = vrot.lane.b32.xlu0 %v419, 108
  %v8041 = vpop.permute.xlu0 %8040
  %8042 = vrot.lane.b32.xlu0 %v420, 108
  %v8043 = vpop.permute.xlu0 %8042
  %8044 = vrot.lane.b32.xlu0 %v421, 108
  %v8045 = vpop.permute.xlu0 %8044
  %8046 = vrot.lane.b32.xlu0 %v422, 108
  %v8047 = vpop.permute.xlu0 %8046
  %8048 = vrot.lane.b32.xlu0 %v423, 108
  %v8049 = vpop.permute.xlu0 %8048
  %8050 = vrot.lane.b32.xlu0 %v424, 108
  %v8051 = vpop.permute.xlu0 %8050
  %8052 = vrot.lane.b32.xlu0 %v425, 108
  %v8053 = vpop.permute.xlu0 %8052
  %8054 = vrot.lane.b32.xlu0 %v426, 108
  %v8055 = vpop.permute.xlu0 %8054
  %8056 = vrot.lane.b32.xlu0 %v427, 108
  %v8057 = vpop.permute.xlu0 %8056
  %8058 = vrot.lane.b32.xlu0 %v428, 108
  %v8059 = vpop.permute.xlu0 %8058
  %8060 = vrot.lane.b32.xlu0 %v429, 108
  %v8061 = vpop.permute.xlu0 %8060
  %8062 = vrot.lane.b32.xlu0 %v430, 108
  %v8063 = vpop.permute.xlu0 %8062
  %8064 = vrot.lane.b32.xlu0 %v431, 108
  %v8065 = vpop.permute.xlu0 %8064
  %8066 = vrot.lane.b32.xlu0 %v432, 108
  %v8067 = vpop.permute.xlu0 %8066
  %v8084 = vsel %vm433, %v8037, 0.0
  %8085 = vadd.xlane.f32.xlu0 %v8084
  %v8086 = vpop.xlane.xlu0 %8085
  %v8087 = vsel %vm433, %v8039, 0.0
  %8088 = vadd.xlane.f32.xlu0 %v8087
  %v8089 = vpop.xlane.xlu0 %8088
  %v8090 = vsel %vm433, %v8041, 0.0
  %8091 = vadd.xlane.f32.xlu0 %v8090
  %v8092 = vpop.xlane.xlu0 %8091
  %v8093 = vsel %vm433, %v8043, 0.0
  %8094 = vadd.xlane.f32.xlu0 %v8093
  %v8095 = vpop.xlane.xlu0 %8094
  %v8096 = vsel %vm433, %v8045, 0.0
  %8097 = vadd.xlane.f32.xlu0 %v8096
  %v8098 = vpop.xlane.xlu0 %8097
  %v8099 = vsel %vm433, %v8047, 0.0
  %8100 = vadd.xlane.f32.xlu0 %v8099
  %v8101 = vpop.xlane.xlu0 %8100
  %v8102 = vsel %vm433, %v8049, 0.0
  %8103 = vadd.xlane.f32.xlu0 %v8102
  %v8104 = vpop.xlane.xlu0 %8103
  %v8105 = vsel %vm433, %v8051, 0.0
  %8106 = vadd.xlane.f32.xlu0 %v8105
  %v8107 = vpop.xlane.xlu0 %8106
  %v8108 = vsel %vm433, %v8053, 0.0
  %8109 = vadd.xlane.f32.xlu0 %v8108
  %v8110 = vpop.xlane.xlu0 %8109
  %v8111 = vsel %vm433, %v8055, 0.0
  %8112 = vadd.xlane.f32.xlu0 %v8111
  %v8113 = vpop.xlane.xlu0 %8112
  %v8114 = vsel %vm433, %v8057, 0.0
  %8115 = vadd.xlane.f32.xlu0 %v8114
  %v8116 = vpop.xlane.xlu0 %8115
  %v8117 = vsel %vm433, %v8059, 0.0
  %8118 = vadd.xlane.f32.xlu0 %v8117
  %v8119 = vpop.xlane.xlu0 %8118
  %v8120 = vsel %vm433, %v8061, 0.0
  %8121 = vadd.xlane.f32.xlu0 %v8120
  %v8122 = vpop.xlane.xlu0 %8121
  %v8123 = vsel %vm433, %v8063, 0.0
  %8124 = vadd.xlane.f32.xlu0 %v8123
  %v8125 = vpop.xlane.xlu0 %8124
  %v8126 = vsel %vm433, %v8065, 0.0
  %8127 = vadd.xlane.f32.xlu0 %v8126
  %v8128 = vpop.xlane.xlu0 %8127
  %v8129 = vsel %vm433, %v8067, 0.0
  %8130 = vadd.xlane.f32.xlu0 %v8129
  %v8131 = vpop.xlane.xlu0 %8130
  %v8132 = vmul.f32 %v8086, 0.5
  %v8133 = vmul.f32 %v8089, 0.5
  %v8134 = vmul.f32 %v8092, 0.5
  %v8135 = vmul.f32 %v8095, 0.5
  %v8136 = vmul.f32 %v8098, 0.5
  %v8137 = vmul.f32 %v8101, 0.5
  %v8138 = vmul.f32 %v8104, 0.5
  %v8139 = vmul.f32 %v8107, 0.5
  %v8140 = vmul.f32 %v8110, 0.5
  %v8141 = vmul.f32 %v8113, 0.5
  %v8142 = vmul.f32 %v8116, 0.5
  %v8143 = vmul.f32 %v8119, 0.5
  %v8144 = vmul.f32 %v8122, 0.5
  %v8145 = vmul.f32 %v8125, 0.5
  %v8146 = vmul.f32 %v8128, 0.5
  %v8147 = vmul.f32 %v8131, 0.5
  %v8164 = vlaneseq
  %v8165 = vshrl.u32 %v8164, 7
  %v8166 = vsub.s32 %v515, %v8165
  %v8167 = vrot.slane %v8132, %v8166
  %v8168 = vlaneseq
  %v8169 = vshrl.u32 %v8168, 7
  %v8170 = vsub.s32 %v515, %v8169
  %v8171 = vrot.slane %v8133, %v8170
  %v8172 = vlaneseq
  %v8173 = vshrl.u32 %v8172, 7
  %v8174 = vsub.s32 %v515, %v8173
  %v8175 = vrot.slane %v8134, %v8174
  %v8176 = vlaneseq
  %v8177 = vshrl.u32 %v8176, 7
  %v8178 = vsub.s32 %v515, %v8177
  %v8179 = vrot.slane %v8135, %v8178
  %v8180 = vlaneseq
  %v8181 = vshrl.u32 %v8180, 7
  %v8182 = vsub.s32 %v515, %v8181
  %v8183 = vrot.slane %v8136, %v8182
  %v8184 = vlaneseq
  %v8185 = vshrl.u32 %v8184, 7
  %v8186 = vsub.s32 %v515, %v8185
  %v8187 = vrot.slane %v8137, %v8186
  %v8188 = vlaneseq
  %v8189 = vshrl.u32 %v8188, 7
  %v8190 = vsub.s32 %v515, %v8189
  %v8191 = vrot.slane %v8138, %v8190
  %v8192 = vlaneseq
  %v8193 = vshrl.u32 %v8192, 7
  %v8194 = vsub.s32 %v515, %v8193
  %v8195 = vrot.slane %v8139, %v8194
  %v8196 = vlaneseq
  %v8197 = vshrl.u32 %v8196, 7
  %v8198 = vsub.s32 %v515, %v8197
  %v8199 = vrot.slane %v8140, %v8198
  %v8200 = vlaneseq
  %v8201 = vshrl.u32 %v8200, 7
  %v8202 = vsub.s32 %v515, %v8201
  %v8203 = vrot.slane %v8141, %v8202
  %v8204 = vlaneseq
  %v8205 = vshrl.u32 %v8204, 7
  %v8206 = vsub.s32 %v515, %v8205
  %v8207 = vrot.slane %v8142, %v8206
  %v8208 = vlaneseq
  %v8209 = vshrl.u32 %v8208, 7
  %v8210 = vsub.s32 %v515, %v8209
  %v8211 = vrot.slane %v8143, %v8210
  %v8212 = vlaneseq
  %v8213 = vshrl.u32 %v8212, 7
  %v8214 = vsub.s32 %v515, %v8213
  %v8215 = vrot.slane %v8144, %v8214
  %v8216 = vlaneseq
  %v8217 = vshrl.u32 %v8216, 7
  %v8218 = vsub.s32 %v515, %v8217
  %v8219 = vrot.slane %v8145, %v8218
  %v8220 = vlaneseq
  %v8221 = vshrl.u32 %v8220, 7
  %v8222 = vsub.s32 %v515, %v8221
  %v8223 = vrot.slane %v8146, %v8222
  %v8224 = vlaneseq
  %v8225 = vshrl.u32 %v8224, 7
  %v8226 = vsub.s32 %v515, %v8225
  %v8227 = vrot.slane %v8147, %v8226
  %v8228 = vsel %vm580, %v8171, %v8167
  %v8229 = vsel %vm580, %v8179, %v8175
  %v8230 = vsel %vm580, %v8187, %v8183
  %v8231 = vsel %vm580, %v8195, %v8191
  %v8232 = vsel %vm580, %v8203, %v8199
  %v8233 = vsel %vm580, %v8211, %v8207
  %v8234 = vsel %vm580, %v8219, %v8215
  %v8235 = vsel %vm580, %v8227, %v8223
  %v8244 = vsel %vm597, %v8228, -inf
  %8245 = vmax.xlane.f32.xlu0 %v8244
  %v8246 = vpop.xlane.xlu0 %8245
  %v8247 = vsel %vm597, %v8229, -inf
  %8248 = vmax.xlane.f32.xlu0 %v8247
  %v8249 = vpop.xlane.xlu0 %8248
  %v8250 = vsel %vm597, %v8230, -inf
  %8251 = vmax.xlane.f32.xlu0 %v8250
  %v8252 = vpop.xlane.xlu0 %8251
  %v8253 = vsel %vm597, %v8231, -inf
  %8254 = vmax.xlane.f32.xlu0 %v8253
  %v8255 = vpop.xlane.xlu0 %8254
  %v8256 = vsel %vm597, %v8232, -inf
  %8257 = vmax.xlane.f32.xlu0 %v8256
  %v8258 = vpop.xlane.xlu0 %8257
  %v8259 = vsel %vm597, %v8233, -inf
  %8260 = vmax.xlane.f32.xlu0 %v8259
  %v8261 = vpop.xlane.xlu0 %8260
  %v8262 = vsel %vm597, %v8234, -inf
  %8263 = vmax.xlane.f32.xlu0 %v8262
  %v8264 = vpop.xlane.xlu0 %8263
  %v8265 = vsel %vm597, %v8235, -inf
  %8266 = vmax.xlane.f32.xlu0 %v8265
  %v8267 = vpop.xlane.xlu0 %8266
  %v8276 = vlaneseq
  %v8277 = vshrl.u32 %v8276, 7
  %v8278 = vsub.s32 0, %v8277
  %v8279 = vrot.slane %v8246, %v8278
  %v8280 = vlaneseq
  %v8281 = vshrl.u32 %v8280, 7
  %v8282 = vsub.s32 1, %v8281
  %v8283 = vrot.slane %v8246, %v8282
  %v8284 = vlaneseq
  %v8285 = vshrl.u32 %v8284, 7
  %v8286 = vsub.s32 0, %v8285
  %v8287 = vrot.slane %v8249, %v8286
  %v8288 = vlaneseq
  %v8289 = vshrl.u32 %v8288, 7
  %v8290 = vsub.s32 1, %v8289
  %v8291 = vrot.slane %v8249, %v8290
  %v8292 = vlaneseq
  %v8293 = vshrl.u32 %v8292, 7
  %v8294 = vsub.s32 0, %v8293
  %v8295 = vrot.slane %v8252, %v8294
  %v8296 = vlaneseq
  %v8297 = vshrl.u32 %v8296, 7
  %v8298 = vsub.s32 1, %v8297
  %v8299 = vrot.slane %v8252, %v8298
  %v8300 = vlaneseq
  %v8301 = vshrl.u32 %v8300, 7
  %v8302 = vsub.s32 0, %v8301
  %v8303 = vrot.slane %v8255, %v8302
  %v8304 = vlaneseq
  %v8305 = vshrl.u32 %v8304, 7
  %v8306 = vsub.s32 1, %v8305
  %v8307 = vrot.slane %v8255, %v8306
  %v8308 = vlaneseq
  %v8309 = vshrl.u32 %v8308, 7
  %v8310 = vsub.s32 0, %v8309
  %v8311 = vrot.slane %v8258, %v8310
  %v8312 = vlaneseq
  %v8313 = vshrl.u32 %v8312, 7
  %v8314 = vsub.s32 1, %v8313
  %v8315 = vrot.slane %v8258, %v8314
  %v8316 = vlaneseq
  %v8317 = vshrl.u32 %v8316, 7
  %v8318 = vsub.s32 0, %v8317
  %v8319 = vrot.slane %v8261, %v8318
  %v8320 = vlaneseq
  %v8321 = vshrl.u32 %v8320, 7
  %v8322 = vsub.s32 1, %v8321
  %v8323 = vrot.slane %v8261, %v8322
  %v8324 = vlaneseq
  %v8325 = vshrl.u32 %v8324, 7
  %v8326 = vsub.s32 0, %v8325
  %v8327 = vrot.slane %v8264, %v8326
  %v8328 = vlaneseq
  %v8329 = vshrl.u32 %v8328, 7
  %v8330 = vsub.s32 1, %v8329
  %v8331 = vrot.slane %v8264, %v8330
  %v8332 = vlaneseq
  %v8333 = vshrl.u32 %v8332, 7
  %v8334 = vsub.s32 0, %v8333
  %v8335 = vrot.slane %v8267, %v8334
  %v8336 = vlaneseq
  %v8337 = vshrl.u32 %v8336, 7
  %v8338 = vsub.s32 1, %v8337
  %v8339 = vrot.slane %v8267, %v8338
  %v8356 = vsub.f32 %v8132, %v8279
  %v8357 = vsub.f32 %v8133, %v8283
  %v8358 = vsub.f32 %v8134, %v8287
  %v8359 = vsub.f32 %v8135, %v8291
  %v8360 = vsub.f32 %v8136, %v8295
  %v8361 = vsub.f32 %v8137, %v8299
  %v8362 = vsub.f32 %v8138, %v8303
  %v8363 = vsub.f32 %v8139, %v8307
  %v8364 = vsub.f32 %v8140, %v8311
  %v8365 = vsub.f32 %v8141, %v8315
  %v8366 = vsub.f32 %v8142, %v8319
  %v8367 = vsub.f32 %v8143, %v8323
  %v8368 = vsub.f32 %v8144, %v8327
  %v8369 = vsub.f32 %v8145, %v8331
  %v8370 = vsub.f32 %v8146, %v8335
  %v8371 = vsub.f32 %v8147, %v8339
  %v8372 = vmul.f32 %v8356, 1.442695
  %v8373 = vpow.pop %v8372
  %v8374 = vmul.f32 %v8357, 1.442695
  %v8375 = vpow.pop %v8374
  %v8376 = vmul.f32 %v8358, 1.442695
  %v8377 = vpow.pop %v8376
  %v8378 = vmul.f32 %v8359, 1.442695
  %v8379 = vpow.pop %v8378
  %v8380 = vmul.f32 %v8360, 1.442695
  %v8381 = vpow.pop %v8380
  %v8382 = vmul.f32 %v8361, 1.442695
  %v8383 = vpow.pop %v8382
  %v8384 = vmul.f32 %v8362, 1.442695
  %v8385 = vpow.pop %v8384
  %v8386 = vmul.f32 %v8363, 1.442695
  %v8387 = vpow.pop %v8386
  %v8388 = vmul.f32 %v8364, 1.442695
  %v8389 = vpow.pop %v8388
  %v8390 = vmul.f32 %v8365, 1.442695
  %v8391 = vpow.pop %v8390
  %v8392 = vmul.f32 %v8366, 1.442695
  %v8393 = vpow.pop %v8392
  %v8394 = vmul.f32 %v8367, 1.442695
  %v8395 = vpow.pop %v8394
  %v8396 = vmul.f32 %v8368, 1.442695
  %v8397 = vpow.pop %v8396
  %v8398 = vmul.f32 %v8369, 1.442695
  %v8399 = vpow.pop %v8398
  %v8400 = vmul.f32 %v8370, 1.442695
  %v8401 = vpow.pop %v8400
  %v8402 = vmul.f32 %v8371, 1.442695
  %v8403 = vpow.pop %v8402
  %8420 = vset.pattern.permute.xlu0 0
  %8421 = vperm.xlu0 %8420, %v8373
  %v8422 = vpop.permute.xlu0 %8421
  %8423 = vset.pattern.permute.xlu0 0
  %8424 = vperm.xlu0 %8423, %v8375
  %v8425 = vpop.permute.xlu0 %8424
  %8426 = vset.pattern.permute.xlu0 0
  %8427 = vperm.xlu0 %8426, %v8377
  %v8428 = vpop.permute.xlu0 %8427
  %8429 = vset.pattern.permute.xlu0 0
  %8430 = vperm.xlu0 %8429, %v8379
  %v8431 = vpop.permute.xlu0 %8430
  %8432 = vset.pattern.permute.xlu0 0
  %8433 = vperm.xlu0 %8432, %v8381
  %v8434 = vpop.permute.xlu0 %8433
  %8435 = vset.pattern.permute.xlu0 0
  %8436 = vperm.xlu0 %8435, %v8383
  %v8437 = vpop.permute.xlu0 %8436
  %8438 = vset.pattern.permute.xlu0 0
  %8439 = vperm.xlu0 %8438, %v8385
  %v8440 = vpop.permute.xlu0 %8439
  %8441 = vset.pattern.permute.xlu0 0
  %8442 = vperm.xlu0 %8441, %v8387
  %v8443 = vpop.permute.xlu0 %8442
  %8444 = vset.pattern.permute.xlu0 0
  %8445 = vperm.xlu0 %8444, %v8389
  %v8446 = vpop.permute.xlu0 %8445
  %8447 = vset.pattern.permute.xlu0 0
  %8448 = vperm.xlu0 %8447, %v8391
  %v8449 = vpop.permute.xlu0 %8448
  %8450 = vset.pattern.permute.xlu0 0
  %8451 = vperm.xlu0 %8450, %v8393
  %v8452 = vpop.permute.xlu0 %8451
  %8453 = vset.pattern.permute.xlu0 0
  %8454 = vperm.xlu0 %8453, %v8395
  %v8455 = vpop.permute.xlu0 %8454
  %8456 = vset.pattern.permute.xlu0 0
  %8457 = vperm.xlu0 %8456, %v8397
  %v8458 = vpop.permute.xlu0 %8457
  %8459 = vset.pattern.permute.xlu0 0
  %8460 = vperm.xlu0 %8459, %v8399
  %v8461 = vpop.permute.xlu0 %8460
  %8462 = vset.pattern.permute.xlu0 0
  %8463 = vperm.xlu0 %8462, %v8401
  %v8464 = vpop.permute.xlu0 %8463
  %8465 = vset.pattern.permute.xlu0 0
  %8466 = vperm.xlu0 %8465, %v8403
  %v8467 = vpop.permute.xlu0 %8466
  %v8468 = vlaneseq
  %v8469 = vshrl.u32 %v8468, 7
  %v8470 = vsub.s32 %v515, %v8469
  %v8471 = vrot.slane %v8422, %v8470
  %v8472 = vlaneseq
  %v8473 = vshrl.u32 %v8472, 7
  %v8474 = vsub.s32 %v515, %v8473
  %v8475 = vrot.slane %v8425, %v8474
  %v8476 = vlaneseq
  %v8477 = vshrl.u32 %v8476, 7
  %v8478 = vsub.s32 %v515, %v8477
  %v8479 = vrot.slane %v8428, %v8478
  %v8480 = vlaneseq
  %v8481 = vshrl.u32 %v8480, 7
  %v8482 = vsub.s32 %v515, %v8481
  %v8483 = vrot.slane %v8431, %v8482
  %v8484 = vlaneseq
  %v8485 = vshrl.u32 %v8484, 7
  %v8486 = vsub.s32 %v515, %v8485
  %v8487 = vrot.slane %v8434, %v8486
  %v8488 = vlaneseq
  %v8489 = vshrl.u32 %v8488, 7
  %v8490 = vsub.s32 %v515, %v8489
  %v8491 = vrot.slane %v8437, %v8490
  %v8492 = vlaneseq
  %v8493 = vshrl.u32 %v8492, 7
  %v8494 = vsub.s32 %v515, %v8493
  %v8495 = vrot.slane %v8440, %v8494
  %v8496 = vlaneseq
  %v8497 = vshrl.u32 %v8496, 7
  %v8498 = vsub.s32 %v515, %v8497
  %v8499 = vrot.slane %v8443, %v8498
  %v8500 = vlaneseq
  %v8501 = vshrl.u32 %v8500, 7
  %v8502 = vsub.s32 %v515, %v8501
  %v8503 = vrot.slane %v8446, %v8502
  %v8504 = vlaneseq
  %v8505 = vshrl.u32 %v8504, 7
  %v8506 = vsub.s32 %v515, %v8505
  %v8507 = vrot.slane %v8449, %v8506
  %v8508 = vlaneseq
  %v8509 = vshrl.u32 %v8508, 7
  %v8510 = vsub.s32 %v515, %v8509
  %v8511 = vrot.slane %v8452, %v8510
  %v8512 = vlaneseq
  %v8513 = vshrl.u32 %v8512, 7
  %v8514 = vsub.s32 %v515, %v8513
  %v8515 = vrot.slane %v8455, %v8514
  %v8516 = vlaneseq
  %v8517 = vshrl.u32 %v8516, 7
  %v8518 = vsub.s32 %v515, %v8517
  %v8519 = vrot.slane %v8458, %v8518
  %v8520 = vlaneseq
  %v8521 = vshrl.u32 %v8520, 7
  %v8522 = vsub.s32 %v515, %v8521
  %v8523 = vrot.slane %v8461, %v8522
  %v8524 = vlaneseq
  %v8525 = vshrl.u32 %v8524, 7
  %v8526 = vsub.s32 %v515, %v8525
  %v8527 = vrot.slane %v8464, %v8526
  %v8528 = vlaneseq
  %v8529 = vshrl.u32 %v8528, 7
  %v8530 = vsub.s32 %v515, %v8529
  %v8531 = vrot.slane %v8467, %v8530
  %v8532 = vsel %vm580, %v8475, %v8471
  %v8533 = vsel %vm580, %v8483, %v8479
  %v8534 = vsel %vm580, %v8491, %v8487
  %v8535 = vsel %vm580, %v8499, %v8495
  %v8536 = vsel %vm580, %v8507, %v8503
  %v8537 = vsel %vm580, %v8515, %v8511
  %v8538 = vsel %vm580, %v8523, %v8519
  %v8539 = vsel %vm580, %v8531, %v8527
  %v8548 = vsel %vm597, %v8532, 0.0
  %8549 = vadd.xlane.f32.xlu0 %v8548
  %v8550 = vpop.xlane.xlu0 %8549
  %v8551 = vsel %vm597, %v8533, 0.0
  %8552 = vadd.xlane.f32.xlu0 %v8551
  %v8553 = vpop.xlane.xlu0 %8552
  %v8554 = vsel %vm597, %v8534, 0.0
  %8555 = vadd.xlane.f32.xlu0 %v8554
  %v8556 = vpop.xlane.xlu0 %8555
  %v8557 = vsel %vm597, %v8535, 0.0
  %8558 = vadd.xlane.f32.xlu0 %v8557
  %v8559 = vpop.xlane.xlu0 %8558
  %v8560 = vsel %vm597, %v8536, 0.0
  %8561 = vadd.xlane.f32.xlu0 %v8560
  %v8562 = vpop.xlane.xlu0 %8561
  %v8563 = vsel %vm597, %v8537, 0.0
  %8564 = vadd.xlane.f32.xlu0 %v8563
  %v8565 = vpop.xlane.xlu0 %8564
  %v8566 = vsel %vm597, %v8538, 0.0
  %8567 = vadd.xlane.f32.xlu0 %v8566
  %v8568 = vpop.xlane.xlu0 %8567
  %v8569 = vsel %vm597, %v8539, 0.0
  %8570 = vadd.xlane.f32.xlu0 %v8569
  %v8571 = vpop.xlane.xlu0 %8570
  %v8580 = vlaneseq
  %v8581 = vshrl.u32 %v8580, 7
  %v8582 = vsub.s32 0, %v8581
  %v8583 = vrot.slane %v8550, %v8582
  %v8584 = vlaneseq
  %v8585 = vshrl.u32 %v8584, 7
  %v8586 = vsub.s32 1, %v8585
  %v8587 = vrot.slane %v8550, %v8586
  %v8588 = vlaneseq
  %v8589 = vshrl.u32 %v8588, 7
  %v8590 = vsub.s32 0, %v8589
  %v8591 = vrot.slane %v8553, %v8590
  %v8592 = vlaneseq
  %v8593 = vshrl.u32 %v8592, 7
  %v8594 = vsub.s32 1, %v8593
  %v8595 = vrot.slane %v8553, %v8594
  %v8596 = vlaneseq
  %v8597 = vshrl.u32 %v8596, 7
  %v8598 = vsub.s32 0, %v8597
  %v8599 = vrot.slane %v8556, %v8598
  %v8600 = vlaneseq
  %v8601 = vshrl.u32 %v8600, 7
  %v8602 = vsub.s32 1, %v8601
  %v8603 = vrot.slane %v8556, %v8602
  %v8604 = vlaneseq
  %v8605 = vshrl.u32 %v8604, 7
  %v8606 = vsub.s32 0, %v8605
  %v8607 = vrot.slane %v8559, %v8606
  %v8608 = vlaneseq
  %v8609 = vshrl.u32 %v8608, 7
  %v8610 = vsub.s32 1, %v8609
  %v8611 = vrot.slane %v8559, %v8610
  %v8612 = vlaneseq
  %v8613 = vshrl.u32 %v8612, 7
  %v8614 = vsub.s32 0, %v8613
  %v8615 = vrot.slane %v8562, %v8614
  %v8616 = vlaneseq
  %v8617 = vshrl.u32 %v8616, 7
  %v8618 = vsub.s32 1, %v8617
  %v8619 = vrot.slane %v8562, %v8618
  %v8620 = vlaneseq
  %v8621 = vshrl.u32 %v8620, 7
  %v8622 = vsub.s32 0, %v8621
  %v8623 = vrot.slane %v8565, %v8622
  %v8624 = vlaneseq
  %v8625 = vshrl.u32 %v8624, 7
  %v8626 = vsub.s32 1, %v8625
  %v8627 = vrot.slane %v8565, %v8626
  %v8628 = vlaneseq
  %v8629 = vshrl.u32 %v8628, 7
  %v8630 = vsub.s32 0, %v8629
  %v8631 = vrot.slane %v8568, %v8630
  %v8632 = vlaneseq
  %v8633 = vshrl.u32 %v8632, 7
  %v8634 = vsub.s32 1, %v8633
  %v8635 = vrot.slane %v8568, %v8634
  %v8636 = vlaneseq
  %v8637 = vshrl.u32 %v8636, 7
  %v8638 = vsub.s32 0, %v8637
  %v8639 = vrot.slane %v8571, %v8638
  %v8640 = vlaneseq
  %v8641 = vshrl.u32 %v8640, 7
  %v8642 = vsub.s32 1, %v8641
  %v8643 = vrot.slane %v8571, %v8642
  %v8660 = vrcp.pop %v8583
  %v8661 = vmul.f32 %v8373, %v8660
  %v8662 = vrcp.pop %v8587
  %v8663 = vmul.f32 %v8375, %v8662
  %v8664 = vrcp.pop %v8591
  %v8665 = vmul.f32 %v8377, %v8664
  %v8666 = vrcp.pop %v8595
  %v8667 = vmul.f32 %v8379, %v8666
  %v8668 = vrcp.pop %v8599
  %v8669 = vmul.f32 %v8381, %v8668
  %v8670 = vrcp.pop %v8603
  %v8671 = vmul.f32 %v8383, %v8670
  %v8672 = vrcp.pop %v8607
  %v8673 = vmul.f32 %v8385, %v8672
  %v8674 = vrcp.pop %v8611
  %v8675 = vmul.f32 %v8387, %v8674
  %v8676 = vrcp.pop %v8615
  %v8677 = vmul.f32 %v8389, %v8676
  %v8678 = vrcp.pop %v8619
  %v8679 = vmul.f32 %v8391, %v8678
  %v8680 = vrcp.pop %v8623
  %v8681 = vmul.f32 %v8393, %v8680
  %v8682 = vrcp.pop %v8627
  %v8683 = vmul.f32 %v8395, %v8682
  %v8684 = vrcp.pop %v8631
  %v8685 = vmul.f32 %v8397, %v8684
  %v8686 = vrcp.pop %v8635
  %v8687 = vmul.f32 %v8399, %v8686
  %v8688 = vrcp.pop %v8639
  %v8689 = vmul.f32 %v8401, %v8688
  %v8690 = vrcp.pop %v8643
  %v8691 = vmul.f32 %v8403, %v8690
  %8694 = vset.pattern.permute.xlu0 0
  %8695 = vperm.xlu0 %8694, %v8661
  %v8696 = vpop.permute.xlu0 %8695
  %8697 = vset.pattern.permute.xlu0 0
  %8698 = vperm.xlu0 %8697, %v8663
  %v8699 = vpop.permute.xlu0 %8698
  %v8700 = vlaneseq
  %v8701 = vshrl.u32 %v8700, 7
  %v8702 = vsub.s32 %v515, %v8701
  %v8703 = vrot.slane %v8696, %v8702
  %v8704 = vlaneseq
  %v8705 = vshrl.u32 %v8704, 7
  %v8706 = vsub.s32 %v515, %v8705
  %v8707 = vrot.slane %v8699, %v8706
  %v8708 = vsel %vm580, %v8707, %v8703
  %8709 = vrot.lane.b32.xlu0 %v343, 44
  %v8710 = vpop.permute.xlu0 %8709
  %v8711 = vsel %vm1065, %v8708, 0
  %v8713 = vsel %vm1068, %v8710, 0
  %8715 = vmatprep.subr.mxu0 0.0
  %8716 = vmatpush1.msra.mxu0 %v8713
  %8717 = vmatprep.subr.mxu0 0.0
  %8718 = vmatpush1.msra.mxu0 0.0
  %8719 = vmatprep.subr.mxu0 0.0
  %8720 = vmatpush1.msra.mxu0 0.0
  %8721 = vmatprep.subr.mxu0 0.0
  %8722 = vmatpush1.msra.mxu0 0.0
  %8723 = vmatprep.subr.mxu0 0.0
  %8724 = vmatpush1.msra.mxu0 0.0
  %8725 = vmatprep.subr.mxu0 0.0
  %8726 = vmatpush1.msra.mxu0 0.0
  %8727 = vmatprep.subr.mxu0 0.0
  %8728 = vmatpush1.msra.mxu0 0.0
  %8729 = vmatprep.subr.mxu0 0.0
  %8730 = vmatpush1.msra.mxu0 0.0
  %8731 = vmatprep.subr.mxu0 0.0
  %8732 = vmatpush1.msra.mxu0 0.0
  %8733 = vmatprep.subr.mxu0 0.0
  %8734 = vmatpush1.msra.mxu0 0.0
  %8735 = vmatprep.subr.mxu0 0.0
  %8736 = vmatpush1.msra.mxu0 0.0
  %8737 = vmatprep.subr.mxu0 0.0
  %8738 = vmatpush1.msra.mxu0 0.0
  %8739 = vmatprep.subr.mxu0 0.0
  %8740 = vmatpush1.msra.mxu0 0.0
  %8741 = vmatprep.subr.mxu0 0.0
  %8742 = vmatpush1.msra.mxu0 0.0
  %8743 = vmatprep.subr.mxu0 0.0
  %8744 = vmatpush1.msra.mxu0 0.0
  %8745 = vmatprep.subr.mxu0 0.0
  %8746 = vmatpush1.msra.mxu0 0.0
  %8747 = vmatprep.subr.mxu0 0.0
  %8748 = vmatpush1.msra.mxu0 0.0
  %8749 = vmatprep.subr.mxu0 0.0
  %8750 = vmatpush1.msra.mxu0 0.0
  %8751 = vmatprep.subr.mxu0 0.0
  %8752 = vmatpush1.msra.mxu0 0.0
  %8753 = vmatprep.subr.mxu0 0.0
  %8754 = vmatpush1.msra.mxu0 0.0
  %8755 = vmatprep.subr.mxu0 0.0
  %8756 = vmatpush1.msra.mxu0 0.0
  %8757 = vmatprep.subr.mxu0 0.0
  %8758 = vmatpush1.msra.mxu0 0.0
  %8759 = vmatprep.subr.mxu0 0.0
  %8760 = vmatpush1.msra.mxu0 0.0
  %8761 = vmatprep.subr.mxu0 0.0
  %8762 = vmatpush1.msra.mxu0 0.0
  %8763 = vmatprep.subr.mxu0 0.0
  %8764 = vmatpush1.msra.mxu0 0.0
  %8765 = vmatprep.subr.mxu0 0.0
  %8766 = vmatpush1.msra.mxu0 0.0
  %8767 = vmatprep.subr.mxu0 0.0
  %8768 = vmatpush1.msra.mxu0 0.0
  %8769 = vmatprep.subr.mxu0 0.0
  %8770 = vmatpush1.msra.mxu0 0.0
  %8771 = vmatprep.subr.mxu0 0.0
  %8772 = vmatpush1.msra.mxu0 0.0
  %8773 = vmatprep.subr.mxu0 0.0
  %8774 = vmatpush1.msra.mxu0 0.0
  %8775 = vmatprep.subr.mxu0 0.0
  %8776 = vmatpush1.msra.mxu0 0.0
  %8777 = vmatprep.subr.mxu0 0.0
  %8778 = vmatpush1.msra.mxu0 0.0
  %8779 = vmatprep.mubr.f32.mxu0 0.0
  %8780 = vmatmul.mubr.f32.gmra.mrb[0].mxu0 %v8711
  %v8781 = vpop.f32.mrb[0].mxu0
  %v8782 = vadd.f32 0.0, %v8781
  %v8783 = vpop.f32.mrb[0].mxu0
  %8784 = vdwg.mxu0
  %8787 = vset.pattern.permute.xlu0 0
  %8788 = vperm.xlu0 %8787, %v8665
  %v8789 = vpop.permute.xlu0 %8788
  %8790 = vset.pattern.permute.xlu0 0
  %8791 = vperm.xlu0 %8790, %v8667
  %v8792 = vpop.permute.xlu0 %8791
  %v8793 = vlaneseq
  %v8794 = vshrl.u32 %v8793, 7
  %v8795 = vsub.s32 %v515, %v8794
  %v8796 = vrot.slane %v8789, %v8795
  %v8797 = vlaneseq
  %v8798 = vshrl.u32 %v8797, 7
  %v8799 = vsub.s32 %v515, %v8798
  %v8800 = vrot.slane %v8792, %v8799
  %v8801 = vsel %vm580, %v8800, %v8796
  %8802 = vrot.lane.b32.xlu0 %v350, 44
  %v8803 = vpop.permute.xlu0 %8802
  %v8804 = vsel %vm1065, %v8801, 0
  %v8806 = vsel %vm1068, %v8803, 0
  %8808 = vmatprep.subr.mxu0 0.0
  %8809 = vmatpush1.msra.mxu0 %v8806
  %8810 = vmatprep.subr.mxu0 0.0
  %8811 = vmatpush1.msra.mxu0 0.0
  %8812 = vmatprep.subr.mxu0 0.0
  %8813 = vmatpush1.msra.mxu0 0.0
  %8814 = vmatprep.subr.mxu0 0.0
  %8815 = vmatpush1.msra.mxu0 0.0
  %8816 = vmatprep.subr.mxu0 0.0
  %8817 = vmatpush1.msra.mxu0 0.0
  %8818 = vmatprep.subr.mxu0 0.0
  %8819 = vmatpush1.msra.mxu0 0.0
  %8820 = vmatprep.subr.mxu0 0.0
  %8821 = vmatpush1.msra.mxu0 0.0
  %8822 = vmatprep.subr.mxu0 0.0
  %8823 = vmatpush1.msra.mxu0 0.0
  %8824 = vmatprep.subr.mxu0 0.0
  %8825 = vmatpush1.msra.mxu0 0.0
  %8826 = vmatprep.subr.mxu0 0.0
  %8827 = vmatpush1.msra.mxu0 0.0
  %8828 = vmatprep.subr.mxu0 0.0
  %8829 = vmatpush1.msra.mxu0 0.0
  %8830 = vmatprep.subr.mxu0 0.0
  %8831 = vmatpush1.msra.mxu0 0.0
  %8832 = vmatprep.subr.mxu0 0.0
  %8833 = vmatpush1.msra.mxu0 0.0
  %8834 = vmatprep.subr.mxu0 0.0
  %8835 = vmatpush1.msra.mxu0 0.0
  %8836 = vmatprep.subr.mxu0 0.0
  %8837 = vmatpush1.msra.mxu0 0.0
  %8838 = vmatprep.subr.mxu0 0.0
  %8839 = vmatpush1.msra.mxu0 0.0
  %8840 = vmatprep.subr.mxu0 0.0
  %8841 = vmatpush1.msra.mxu0 0.0
  %8842 = vmatprep.subr.mxu0 0.0
  %8843 = vmatpush1.msra.mxu0 0.0
  %8844 = vmatprep.subr.mxu0 0.0
  %8845 = vmatpush1.msra.mxu0 0.0
  %8846 = vmatprep.subr.mxu0 0.0
  %8847 = vmatpush1.msra.mxu0 0.0
  %8848 = vmatprep.subr.mxu0 0.0
  %8849 = vmatpush1.msra.mxu0 0.0
  %8850 = vmatprep.subr.mxu0 0.0
  %8851 = vmatpush1.msra.mxu0 0.0
  %8852 = vmatprep.subr.mxu0 0.0
  %8853 = vmatpush1.msra.mxu0 0.0
  %8854 = vmatprep.subr.mxu0 0.0
  %8855 = vmatpush1.msra.mxu0 0.0
  %8856 = vmatprep.subr.mxu0 0.0
  %8857 = vmatpush1.msra.mxu0 0.0
  %8858 = vmatprep.subr.mxu0 0.0
  %8859 = vmatpush1.msra.mxu0 0.0
  %8860 = vmatprep.subr.mxu0 0.0
  %8861 = vmatpush1.msra.mxu0 0.0
  %8862 = vmatprep.subr.mxu0 0.0
  %8863 = vmatpush1.msra.mxu0 0.0
  %8864 = vmatprep.subr.mxu0 0.0
  %8865 = vmatpush1.msra.mxu0 0.0
  %8866 = vmatprep.subr.mxu0 0.0
  %8867 = vmatpush1.msra.mxu0 0.0
  %8868 = vmatprep.subr.mxu0 0.0
  %8869 = vmatpush1.msra.mxu0 0.0
  %8870 = vmatprep.subr.mxu0 0.0
  %8871 = vmatpush1.msra.mxu0 0.0
  %8872 = vmatprep.mubr.f32.mxu0 0.0
  %8873 = vmatmul.mubr.f32.gmra.mrb[0].mxu0 %v8804
  %v8874 = vpop.f32.mrb[0].mxu0
  %v8875 = vadd.f32 0.0, %v8874
  %v8876 = vpop.f32.mrb[0].mxu0
  %8877 = vdwg.mxu0
  %8880 = vset.pattern.permute.xlu0 0
  %8881 = vperm.xlu0 %8880, %v8669
  %v8882 = vpop.permute.xlu0 %8881
  %8883 = vset.pattern.permute.xlu0 0
  %8884 = vperm.xlu0 %8883, %v8671
  %v8885 = vpop.permute.xlu0 %8884
  %v8886 = vlaneseq
  %v8887 = vshrl.u32 %v8886, 7
  %v8888 = vsub.s32 %v515, %v8887
  %v8889 = vrot.slane %v8882, %v8888
  %v8890 = vlaneseq
  %v8891 = vshrl.u32 %v8890, 7
  %v8892 = vsub.s32 %v515, %v8891
  %v8893 = vrot.slane %v8885, %v8892
  %v8894 = vsel %vm580, %v8893, %v8889
  %8895 = vrot.lane.b32.xlu0 %v357, 44
  %v8896 = vpop.permute.xlu0 %8895
  %v8897 = vsel %vm1065, %v8894, 0
  %v8899 = vsel %vm1068, %v8896, 0
  %8901 = vmatprep.subr.mxu0 0.0
  %8902 = vmatpush1.msra.mxu0 %v8899
  %8903 = vmatprep.subr.mxu0 0.0
  %8904 = vmatpush1.msra.mxu0 0.0
  %8905 = vmatprep.subr.mxu0 0.0
  %8906 = vmatpush1.msra.mxu0 0.0
  %8907 = vmatprep.subr.mxu0 0.0
  %8908 = vmatpush1.msra.mxu0 0.0
  %8909 = vmatprep.subr.mxu0 0.0
  %8910 = vmatpush1.msra.mxu0 0.0
  %8911 = vmatprep.subr.mxu0 0.0
  %8912 = vmatpush1.msra.mxu0 0.0
  %8913 = vmatprep.subr.mxu0 0.0
  %8914 = vmatpush1.msra.mxu0 0.0
  %8915 = vmatprep.subr.mxu0 0.0
  %8916 = vmatpush1.msra.mxu0 0.0
  %8917 = vmatprep.subr.mxu0 0.0
  %8918 = vmatpush1.msra.mxu0 0.0
  %8919 = vmatprep.subr.mxu0 0.0
  %8920 = vmatpush1.msra.mxu0 0.0
  %8921 = vmatprep.subr.mxu0 0.0
  %8922 = vmatpush1.msra.mxu0 0.0
  %8923 = vmatprep.subr.mxu0 0.0
  %8924 = vmatpush1.msra.mxu0 0.0
  %8925 = vmatprep.subr.mxu0 0.0
  %8926 = vmatpush1.msra.mxu0 0.0
  %8927 = vmatprep.subr.mxu0 0.0
  %8928 = vmatpush1.msra.mxu0 0.0
  %8929 = vmatprep.subr.mxu0 0.0
  %8930 = vmatpush1.msra.mxu0 0.0
  %8931 = vmatprep.subr.mxu0 0.0
  %8932 = vmatpush1.msra.mxu0 0.0
  %8933 = vmatprep.subr.mxu0 0.0
  %8934 = vmatpush1.msra.mxu0 0.0
  %8935 = vmatprep.subr.mxu0 0.0
  %8936 = vmatpush1.msra.mxu0 0.0
  %8937 = vmatprep.subr.mxu0 0.0
  %8938 = vmatpush1.msra.mxu0 0.0
  %8939 = vmatprep.subr.mxu0 0.0
  %8940 = vmatpush1.msra.mxu0 0.0
  %8941 = vmatprep.subr.mxu0 0.0
  %8942 = vmatpush1.msra.mxu0 0.0
  %8943 = vmatprep.subr.mxu0 0.0
  %8944 = vmatpush1.msra.mxu0 0.0
  %8945 = vmatprep.subr.mxu0 0.0
  %8946 = vmatpush1.msra.mxu0 0.0
  %8947 = vmatprep.subr.mxu0 0.0
  %8948 = vmatpush1.msra.mxu0 0.0
  %8949 = vmatprep.subr.mxu0 0.0
  %8950 = vmatpush1.msra.mxu0 0.0
  %8951 = vmatprep.subr.mxu0 0.0
  %8952 = vmatpush1.msra.mxu0 0.0
  %8953 = vmatprep.subr.mxu0 0.0
  %8954 = vmatpush1.msra.mxu0 0.0
  %8955 = vmatprep.subr.mxu0 0.0
  %8956 = vmatpush1.msra.mxu0 0.0
  %8957 = vmatprep.subr.mxu0 0.0
  %8958 = vmatpush1.msra.mxu0 0.0
  %8959 = vmatprep.subr.mxu0 0.0
  %8960 = vmatpush1.msra.mxu0 0.0
  %8961 = vmatprep.subr.mxu0 0.0
  %8962 = vmatpush1.msra.mxu0 0.0
  %8963 = vmatprep.subr.mxu0 0.0
  %8964 = vmatpush1.msra.mxu0 0.0
  %8965 = vmatprep.mubr.f32.mxu0 0.0
  %8966 = vmatmul.mubr.f32.gmra.mrb[0].mxu0 %v8897
  %v8967 = vpop.f32.mrb[0].mxu0
  %v8968 = vadd.f32 0.0, %v8967
  %v8969 = vpop.f32.mrb[0].mxu0
  %8970 = vdwg.mxu0
  %8973 = vset.pattern.permute.xlu0 0
  %8974 = vperm.xlu0 %8973, %v8673
  %v8975 = vpop.permute.xlu0 %8974
  %8976 = vset.pattern.permute.xlu0 0
  %8977 = vperm.xlu0 %8976, %v8675
  %v8978 = vpop.permute.xlu0 %8977
  %v8979 = vlaneseq
  %v8980 = vshrl.u32 %v8979, 7
  %v8981 = vsub.s32 %v515, %v8980
  %v8982 = vrot.slane %v8975, %v8981
  %v8983 = vlaneseq
  %v8984 = vshrl.u32 %v8983, 7
  %v8985 = vsub.s32 %v515, %v8984
  %v8986 = vrot.slane %v8978, %v8985
  %v8987 = vsel %vm580, %v8986, %v8982
  %8988 = vrot.lane.b32.xlu0 %v364, 44
  %v8989 = vpop.permute.xlu0 %8988
  %v8990 = vsel %vm1065, %v8987, 0
  %v8992 = vsel %vm1068, %v8989, 0
  %8994 = vmatprep.subr.mxu0 0.0
  %8995 = vmatpush1.msra.mxu0 %v8992
  %8996 = vmatprep.subr.mxu0 0.0
  %8997 = vmatpush1.msra.mxu0 0.0
  %8998 = vmatprep.subr.mxu0 0.0
  %8999 = vmatpush1.msra.mxu0 0.0
  %9000 = vmatprep.subr.mxu0 0.0
  %9001 = vmatpush1.msra.mxu0 0.0
  %9002 = vmatprep.subr.mxu0 0.0
  %9003 = vmatpush1.msra.mxu0 0.0
  %9004 = vmatprep.subr.mxu0 0.0
  %9005 = vmatpush1.msra.mxu0 0.0
  %9006 = vmatprep.subr.mxu0 0.0
  %9007 = vmatpush1.msra.mxu0 0.0
  %9008 = vmatprep.subr.mxu0 0.0
  %9009 = vmatpush1.msra.mxu0 0.0
  %9010 = vmatprep.subr.mxu0 0.0
  %9011 = vmatpush1.msra.mxu0 0.0
  %9012 = vmatprep.subr.mxu0 0.0
  %9013 = vmatpush1.msra.mxu0 0.0
  %9014 = vmatprep.subr.mxu0 0.0
  %9015 = vmatpush1.msra.mxu0 0.0
  %9016 = vmatprep.subr.mxu0 0.0
  %9017 = vmatpush1.msra.mxu0 0.0
  %9018 = vmatprep.subr.mxu0 0.0
  %9019 = vmatpush1.msra.mxu0 0.0
  %9020 = vmatprep.subr.mxu0 0.0
  %9021 = vmatpush1.msra.mxu0 0.0
  %9022 = vmatprep.subr.mxu0 0.0
  %9023 = vmatpush1.msra.mxu0 0.0
  %9024 = vmatprep.subr.mxu0 0.0
  %9025 = vmatpush1.msra.mxu0 0.0
  %9026 = vmatprep.subr.mxu0 0.0
  %9027 = vmatpush1.msra.mxu0 0.0
  %9028 = vmatprep.subr.mxu0 0.0
  %9029 = vmatpush1.msra.mxu0 0.0
  %9030 = vmatprep.subr.mxu0 0.0
  %9031 = vmatpush1.msra.mxu0 0.0
  %9032 = vmatprep.subr.mxu0 0.0
  %9033 = vmatpush1.msra.mxu0 0.0
  %9034 = vmatprep.subr.mxu0 0.0
  %9035 = vmatpush1.msra.mxu0 0.0
  %9036 = vmatprep.subr.mxu0 0.0
  %9037 = vmatpush1.msra.mxu0 0.0
  %9038 = vmatprep.subr.mxu0 0.0
  %9039 = vmatpush1.msra.mxu0 0.0
  %9040 = vmatprep.subr.mxu0 0.0
  %9041 = vmatpush1.msra.mxu0 0.0
  %9042 = vmatprep.subr.mxu0 0.0
  %9043 = vmatpush1.msra.mxu0 0.0
  %9044 = vmatprep.subr.mxu0 0.0
  %9045 = vmatpush1.msra.mxu0 0.0
  %9046 = vmatprep.subr.mxu0 0.0
  %9047 = vmatpush1.msra.mxu0 0.0
  %9048 = vmatprep.subr.mxu0 0.0
  %9049 = vmatpush1.msra.mxu0 0.0
  %9050 = vmatprep.subr.mxu0 0.0
  %9051 = vmatpush1.msra.mxu0 0.0
  %9052 = vmatprep.subr.mxu0 0.0
  %9053 = vmatpush1.msra.mxu0 0.0
  %9054 = vmatprep.subr.mxu0 0.0
  %9055 = vmatpush1.msra.mxu0 0.0
  %9056 = vmatprep.subr.mxu0 0.0
  %9057 = vmatpush1.msra.mxu0 0.0
  %9058 = vmatprep.mubr.f32.mxu0 0.0
  %9059 = vmatmul.mubr.f32.gmra.mrb[0].mxu0 %v8990
  %v9060 = vpop.f32.mrb[0].mxu0
  %v9061 = vadd.f32 0.0, %v9060
  %v9062 = vpop.f32.mrb[0].mxu0
  %9063 = vdwg.mxu0
  %9066 = vset.pattern.permute.xlu0 0
  %9067 = vperm.xlu0 %9066, %v8677
  %v9068 = vpop.permute.xlu0 %9067
  %9069 = vset.pattern.permute.xlu0 0
  %9070 = vperm.xlu0 %9069, %v8679
  %v9071 = vpop.permute.xlu0 %9070
  %v9072 = vlaneseq
  %v9073 = vshrl.u32 %v9072, 7
  %v9074 = vsub.s32 %v515, %v9073
  %v9075 = vrot.slane %v9068, %v9074
  %v9076 = vlaneseq
  %v9077 = vshrl.u32 %v9076, 7
  %v9078 = vsub.s32 %v515, %v9077
  %v9079 = vrot.slane %v9071, %v9078
  %v9080 = vsel %vm580, %v9079, %v9075
  %9081 = vrot.lane.b32.xlu0 %v371, 44
  %v9082 = vpop.permute.xlu0 %9081
  %v9083 = vsel %vm1065, %v9080, 0
  %v9085 = vsel %vm1068, %v9082, 0
  %9087 = vmatprep.subr.mxu0 0.0
  %9088 = vmatpush1.msra.mxu0 %v9085
  %9089 = vmatprep.subr.mxu0 0.0
  %9090 = vmatpush1.msra.mxu0 0.0
  %9091 = vmatprep.subr.mxu0 0.0
  %9092 = vmatpush1.msra.mxu0 0.0
  %9093 = vmatprep.subr.mxu0 0.0
  %9094 = vmatpush1.msra.mxu0 0.0
  %9095 = vmatprep.subr.mxu0 0.0
  %9096 = vmatpush1.msra.mxu0 0.0
  %9097 = vmatprep.subr.mxu0 0.0
  %9098 = vmatpush1.msra.mxu0 0.0
  %9099 = vmatprep.subr.mxu0 0.0
  %9100 = vmatpush1.msra.mxu0 0.0
  %9101 = vmatprep.subr.mxu0 0.0
  %9102 = vmatpush1.msra.mxu0 0.0
  %9103 = vmatprep.subr.mxu0 0.0
  %9104 = vmatpush1.msra.mxu0 0.0
  %9105 = vmatprep.subr.mxu0 0.0
  %9106 = vmatpush1.msra.mxu0 0.0
  %9107 = vmatprep.subr.mxu0 0.0
  %9108 = vmatpush1.msra.mxu0 0.0
  %9109 = vmatprep.subr.mxu0 0.0
  %9110 = vmatpush1.msra.mxu0 0.0
  %9111 = vmatprep.subr.mxu0 0.0
  %9112 = vmatpush1.msra.mxu0 0.0
  %9113 = vmatprep.subr.mxu0 0.0
  %9114 = vmatpush1.msra.mxu0 0.0
  %9115 = vmatprep.subr.mxu0 0.0
  %9116 = vmatpush1.msra.mxu0 0.0
  %9117 = vmatprep.subr.mxu0 0.0
  %9118 = vmatpush1.msra.mxu0 0.0
  %9119 = vmatprep.subr.mxu0 0.0
  %9120 = vmatpush1.msra.mxu0 0.0
  %9121 = vmatprep.subr.mxu0 0.0
  %9122 = vmatpush1.msra.mxu0 0.0
  %9123 = vmatprep.subr.mxu0 0.0
  %9124 = vmatpush1.msra.mxu0 0.0
  %9125 = vmatprep.subr.mxu0 0.0
  %9126 = vmatpush1.msra.mxu0 0.0
  %9127 = vmatprep.subr.mxu0 0.0
  %9128 = vmatpush1.msra.mxu0 0.0
  %9129 = vmatprep.subr.mxu0 0.0
  %9130 = vmatpush1.msra.mxu0 0.0
  %9131 = vmatprep.subr.mxu0 0.0
  %9132 = vmatpush1.msra.mxu0 0.0
  %9133 = vmatprep.subr.mxu0 0.0
  %9134 = vmatpush1.msra.mxu0 0.0
  %9135 = vmatprep.subr.mxu0 0.0
  %9136 = vmatpush1.msra.mxu0 0.0
  %9137 = vmatprep.subr.mxu0 0.0
  %9138 = vmatpush1.msra.mxu0 0.0
  %9139 = vmatprep.subr.mxu0 0.0
  %9140 = vmatpush1.msra.mxu0 0.0
  %9141 = vmatprep.subr.mxu0 0.0
  %9142 = vmatpush1.msra.mxu0 0.0
  %9143 = vmatprep.subr.mxu0 0.0
  %9144 = vmatpush1.msra.mxu0 0.0
  %9145 = vmatprep.subr.mxu0 0.0
  %9146 = vmatpush1.msra.mxu0 0.0
  %9147 = vmatprep.subr.mxu0 0.0
  %9148 = vmatpush1.msra.mxu0 0.0
  %9149 = vmatprep.subr.mxu0 0.0
  %9150 = vmatpush1.msra.mxu0 0.0
  %9151 = vmatprep.mubr.f32.mxu0 0.0
  %9152 = vmatmul.mubr.f32.gmra.mrb[0].mxu0 %v9083
  %v9153 = vpop.f32.mrb[0].mxu0
  %v9154 = vadd.f32 0.0, %v9153
  %v9155 = vpop.f32.mrb[0].mxu0
  %9156 = vdwg.mxu0
  %9159 = vset.pattern.permute.xlu0 0
  %9160 = vperm.xlu0 %9159, %v8681
  %v9161 = vpop.permute.xlu0 %9160
  %9162 = vset.pattern.permute.xlu0 0
  %9163 = vperm.xlu0 %9162, %v8683
  %v9164 = vpop.permute.xlu0 %9163
  %v9165 = vlaneseq
  %v9166 = vshrl.u32 %v9165, 7
  %v9167 = vsub.s32 %v515, %v9166
  %v9168 = vrot.slane %v9161, %v9167
  %v9169 = vlaneseq
  %v9170 = vshrl.u32 %v9169, 7
  %v9171 = vsub.s32 %v515, %v9170
  %v9172 = vrot.slane %v9164, %v9171
  %v9173 = vsel %vm580, %v9172, %v9168
  %9174 = vrot.lane.b32.xlu0 %v378, 44
  %v9175 = vpop.permute.xlu0 %9174
  %v9176 = vsel %vm1065, %v9173, 0
  %v9178 = vsel %vm1068, %v9175, 0
  %9180 = vmatprep.subr.mxu0 0.0
  %9181 = vmatpush1.msra.mxu0 %v9178
  %9182 = vmatprep.subr.mxu0 0.0
  %9183 = vmatpush1.msra.mxu0 0.0
  %9184 = vmatprep.subr.mxu0 0.0
  %9185 = vmatpush1.msra.mxu0 0.0
  %9186 = vmatprep.subr.mxu0 0.0
  %9187 = vmatpush1.msra.mxu0 0.0
  %9188 = vmatprep.subr.mxu0 0.0
  %9189 = vmatpush1.msra.mxu0 0.0
  %9190 = vmatprep.subr.mxu0 0.0
  %9191 = vmatpush1.msra.mxu0 0.0
  %9192 = vmatprep.subr.mxu0 0.0
  %9193 = vmatpush1.msra.mxu0 0.0
  %9194 = vmatprep.subr.mxu0 0.0
  %9195 = vmatpush1.msra.mxu0 0.0
  %9196 = vmatprep.subr.mxu0 0.0
  %9197 = vmatpush1.msra.mxu0 0.0
  %9198 = vmatprep.subr.mxu0 0.0
  %9199 = vmatpush1.msra.mxu0 0.0
  %9200 = vmatprep.subr.mxu0 0.0
  %9201 = vmatpush1.msra.mxu0 0.0
  %9202 = vmatprep.subr.mxu0 0.0
  %9203 = vmatpush1.msra.mxu0 0.0
  %9204 = vmatprep.subr.mxu0 0.0
  %9205 = vmatpush1.msra.mxu0 0.0
  %9206 = vmatprep.subr.mxu0 0.0
  %9207 = vmatpush1.msra.mxu0 0.0
  %9208 = vmatprep.subr.mxu0 0.0
  %9209 = vmatpush1.msra.mxu0 0.0
  %9210 = vmatprep.subr.mxu0 0.0
  %9211 = vmatpush1.msra.mxu0 0.0
  %9212 = vmatprep.subr.mxu0 0.0
  %9213 = vmatpush1.msra.mxu0 0.0
  %9214 = vmatprep.subr.mxu0 0.0
  %9215 = vmatpush1.msra.mxu0 0.0
  %9216 = vmatprep.subr.mxu0 0.0
  %9217 = vmatpush1.msra.mxu0 0.0
  %9218 = vmatprep.subr.mxu0 0.0
  %9219 = vmatpush1.msra.mxu0 0.0
  %9220 = vmatprep.subr.mxu0 0.0
  %9221 = vmatpush1.msra.mxu0 0.0
  %9222 = vmatprep.subr.mxu0 0.0
  %9223 = vmatpush1.msra.mxu0 0.0
  %9224 = vmatprep.subr.mxu0 0.0
  %9225 = vmatpush1.msra.mxu0 0.0
  %9226 = vmatprep.subr.mxu0 0.0
  %9227 = vmatpush1.msra.mxu0 0.0
  %9228 = vmatprep.subr.mxu0 0.0
  %9229 = vmatpush1.msra.mxu0 0.0
  %9230 = vmatprep.subr.mxu0 0.0
  %9231 = vmatpush1.msra.mxu0 0.0
  %9232 = vmatprep.subr.mxu0 0.0
  %9233 = vmatpush1.msra.mxu0 0.0
  %9234 = vmatprep.subr.mxu0 0.0
  %9235 = vmatpush1.msra.mxu0 0.0
  %9236 = vmatprep.subr.mxu0 0.0
  %9237 = vmatpush1.msra.mxu0 0.0
  %9238 = vmatprep.subr.mxu0 0.0
  %9239 = vmatpush1.msra.mxu0 0.0
  %9240 = vmatprep.subr.mxu0 0.0
  %9241 = vmatpush1.msra.mxu0 0.0
  %9242 = vmatprep.subr.mxu0 0.0
  %9243 = vmatpush1.msra.mxu0 0.0
  %9244 = vmatprep.mubr.f32.mxu0 0.0
  %9245 = vmatmul.mubr.f32.gmra.mrb[0].mxu0 %v9176
  %v9246 = vpop.f32.mrb[0].mxu0
  %v9247 = vadd.f32 0.0, %v9246
  %v9248 = vpop.f32.mrb[0].mxu0
  %9249 = vdwg.mxu0
  %9252 = vset.pattern.permute.xlu0 0
  %9253 = vperm.xlu0 %9252, %v8685
  %v9254 = vpop.permute.xlu0 %9253
  %9255 = vset.pattern.permute.xlu0 0
  %9256 = vperm.xlu0 %9255, %v8687
  %v9257 = vpop.permute.xlu0 %9256
  %v9258 = vlaneseq
  %v9259 = vshrl.u32 %v9258, 7
  %v9260 = vsub.s32 %v515, %v9259
  %v9261 = vrot.slane %v9254, %v9260
  %v9262 = vlaneseq
  %v9263 = vshrl.u32 %v9262, 7
  %v9264 = vsub.s32 %v515, %v9263
  %v9265 = vrot.slane %v9257, %v9264
  %v9266 = vsel %vm580, %v9265, %v9261
  %9267 = vrot.lane.b32.xlu0 %v385, 44
  %v9268 = vpop.permute.xlu0 %9267
  %v9269 = vsel %vm1065, %v9266, 0
  %v9271 = vsel %vm1068, %v9268, 0
  %9273 = vmatprep.subr.mxu0 0.0
  %9274 = vmatpush1.msra.mxu0 %v9271
  %9275 = vmatprep.subr.mxu0 0.0
  %9276 = vmatpush1.msra.mxu0 0.0
  %9277 = vmatprep.subr.mxu0 0.0
  %9278 = vmatpush1.msra.mxu0 0.0
  %9279 = vmatprep.subr.mxu0 0.0
  %9280 = vmatpush1.msra.mxu0 0.0
  %9281 = vmatprep.subr.mxu0 0.0
  %9282 = vmatpush1.msra.mxu0 0.0
  %9283 = vmatprep.subr.mxu0 0.0
  %9284 = vmatpush1.msra.mxu0 0.0
  %9285 = vmatprep.subr.mxu0 0.0
  %9286 = vmatpush1.msra.mxu0 0.0
  %9287 = vmatprep.subr.mxu0 0.0
  %9288 = vmatpush1.msra.mxu0 0.0
  %9289 = vmatprep.subr.mxu0 0.0
  %9290 = vmatpush1.msra.mxu0 0.0
  %9291 = vmatprep.subr.mxu0 0.0
  %9292 = vmatpush1.msra.mxu0 0.0
  %9293 = vmatprep.subr.mxu0 0.0
  %9294 = vmatpush1.msra.mxu0 0.0
  %9295 = vmatprep.subr.mxu0 0.0
  %9296 = vmatpush1.msra.mxu0 0.0
  %9297 = vmatprep.subr.mxu0 0.0
  %9298 = vmatpush1.msra.mxu0 0.0
  %9299 = vmatprep.subr.mxu0 0.0
  %9300 = vmatpush1.msra.mxu0 0.0
  %9301 = vmatprep.subr.mxu0 0.0
  %9302 = vmatpush1.msra.mxu0 0.0
  %9303 = vmatprep.subr.mxu0 0.0
  %9304 = vmatpush1.msra.mxu0 0.0
  %9305 = vmatprep.subr.mxu0 0.0
  %9306 = vmatpush1.msra.mxu0 0.0
  %9307 = vmatprep.subr.mxu0 0.0
  %9308 = vmatpush1.msra.mxu0 0.0
  %9309 = vmatprep.subr.mxu0 0.0
  %9310 = vmatpush1.msra.mxu0 0.0
  %9311 = vmatprep.subr.mxu0 0.0
  %9312 = vmatpush1.msra.mxu0 0.0
  %9313 = vmatprep.subr.mxu0 0.0
  %9314 = vmatpush1.msra.mxu0 0.0
  %9315 = vmatprep.subr.mxu0 0.0
  %9316 = vmatpush1.msra.mxu0 0.0
  %9317 = vmatprep.subr.mxu0 0.0
  %9318 = vmatpush1.msra.mxu0 0.0
  %9319 = vmatprep.subr.mxu0 0.0
  %9320 = vmatpush1.msra.mxu0 0.0
  %9321 = vmatprep.subr.mxu0 0.0
  %9322 = vmatpush1.msra.mxu0 0.0
  %9323 = vmatprep.subr.mxu0 0.0
  %9324 = vmatpush1.msra.mxu0 0.0
  %9325 = vmatprep.subr.mxu0 0.0
  %9326 = vmatpush1.msra.mxu0 0.0
  %9327 = vmatprep.subr.mxu0 0.0
  %9328 = vmatpush1.msra.mxu0 0.0
  %9329 = vmatprep.subr.mxu0 0.0
  %9330 = vmatpush1.msra.mxu0 0.0
  %9331 = vmatprep.subr.mxu0 0.0
  %9332 = vmatpush1.msra.mxu0 0.0
  %9333 = vmatprep.subr.mxu0 0.0
  %9334 = vmatpush1.msra.mxu0 0.0
  %9335 = vmatprep.subr.mxu0 0.0
  %9336 = vmatpush1.msra.mxu0 0.0
  %9337 = vmatprep.mubr.f32.mxu0 0.0
  %9338 = vmatmul.mubr.f32.gmra.mrb[0].mxu0 %v9269
  %v9339 = vpop.f32.mrb[0].mxu0
  %v9340 = vadd.f32 0.0, %v9339
  %v9341 = vpop.f32.mrb[0].mxu0
  %9342 = vdwg.mxu0
  %9345 = vset.pattern.permute.xlu0 0
  %9346 = vperm.xlu0 %9345, %v8689
  %v9347 = vpop.permute.xlu0 %9346
  %9348 = vset.pattern.permute.xlu0 0
  %9349 = vperm.xlu0 %9348, %v8691
  %v9350 = vpop.permute.xlu0 %9349
  %v9351 = vlaneseq
  %v9352 = vshrl.u32 %v9351, 7
  %v9353 = vsub.s32 %v515, %v9352
  %v9354 = vrot.slane %v9347, %v9353
  %v9355 = vlaneseq
  %v9356 = vshrl.u32 %v9355, 7
  %v9357 = vsub.s32 %v515, %v9356
  %v9358 = vrot.slane %v9350, %v9357
  %v9359 = vsel %vm580, %v9358, %v9354
  %9360 = vrot.lane.b32.xlu0 %v392, 44
  %v9361 = vpop.permute.xlu0 %9360
  %v9362 = vsel %vm1065, %v9359, 0
  %v9364 = vsel %vm1068, %v9361, 0
  %9366 = vmatprep.subr.mxu0 0.0
  %9367 = vmatpush1.msra.mxu0 %v9364
  %9368 = vmatprep.subr.mxu0 0.0
  %9369 = vmatpush1.msra.mxu0 0.0
  %9370 = vmatprep.subr.mxu0 0.0
  %9371 = vmatpush1.msra.mxu0 0.0
  %9372 = vmatprep.subr.mxu0 0.0
  %9373 = vmatpush1.msra.mxu0 0.0
  %9374 = vmatprep.subr.mxu0 0.0
  %9375 = vmatpush1.msra.mxu0 0.0
  %9376 = vmatprep.subr.mxu0 0.0
  %9377 = vmatpush1.msra.mxu0 0.0
  %9378 = vmatprep.subr.mxu0 0.0
  %9379 = vmatpush1.msra.mxu0 0.0
  %9380 = vmatprep.subr.mxu0 0.0
  %9381 = vmatpush1.msra.mxu0 0.0
  %9382 = vmatprep.subr.mxu0 0.0
  %9383 = vmatpush1.msra.mxu0 0.0
  %9384 = vmatprep.subr.mxu0 0.0
  %9385 = vmatpush1.msra.mxu0 0.0
  %9386 = vmatprep.subr.mxu0 0.0
  %9387 = vmatpush1.msra.mxu0 0.0
  %9388 = vmatprep.subr.mxu0 0.0
  %9389 = vmatpush1.msra.mxu0 0.0
  %9390 = vmatprep.subr.mxu0 0.0
  %9391 = vmatpush1.msra.mxu0 0.0
  %9392 = vmatprep.subr.mxu0 0.0
  %9393 = vmatpush1.msra.mxu0 0.0
  %9394 = vmatprep.subr.mxu0 0.0
  %9395 = vmatpush1.msra.mxu0 0.0
  %9396 = vmatprep.subr.mxu0 0.0
  %9397 = vmatpush1.msra.mxu0 0.0
  %9398 = vmatprep.subr.mxu0 0.0
  %9399 = vmatpush1.msra.mxu0 0.0
  %9400 = vmatprep.subr.mxu0 0.0
  %9401 = vmatpush1.msra.mxu0 0.0
  %9402 = vmatprep.subr.mxu0 0.0
  %9403 = vmatpush1.msra.mxu0 0.0
  %9404 = vmatprep.subr.mxu0 0.0
  %9405 = vmatpush1.msra.mxu0 0.0
  %9406 = vmatprep.subr.mxu0 0.0
  %9407 = vmatpush1.msra.mxu0 0.0
  %9408 = vmatprep.subr.mxu0 0.0
  %9409 = vmatpush1.msra.mxu0 0.0
  %9410 = vmatprep.subr.mxu0 0.0
  %9411 = vmatpush1.msra.mxu0 0.0
  %9412 = vmatprep.subr.mxu0 0.0
  %9413 = vmatpush1.msra.mxu0 0.0
  %9414 = vmatprep.subr.mxu0 0.0
  %9415 = vmatpush1.msra.mxu0 0.0
  %9416 = vmatprep.subr.mxu0 0.0
  %9417 = vmatpush1.msra.mxu0 0.0
  %9418 = vmatprep.subr.mxu0 0.0
  %9419 = vmatpush1.msra.mxu0 0.0
  %9420 = vmatprep.subr.mxu0 0.0
  %9421 = vmatpush1.msra.mxu0 0.0
  %9422 = vmatprep.subr.mxu0 0.0
  %9423 = vmatpush1.msra.mxu0 0.0
  %9424 = vmatprep.subr.mxu0 0.0
  %9425 = vmatpush1.msra.mxu0 0.0
  %9426 = vmatprep.subr.mxu0 0.0
  %9427 = vmatpush1.msra.mxu0 0.0
  %9428 = vmatprep.subr.mxu0 0.0
  %9429 = vmatpush1.msra.mxu0 0.0
  %9430 = vmatprep.mubr.f32.mxu0 0.0
  %9431 = vmatmul.mubr.f32.gmra.mrb[0].mxu0 %v9362
  %v9432 = vpop.f32.mrb[0].mxu0
  %v9433 = vadd.f32 0.0, %v9432
  %v9434 = vpop.f32.mrb[0].mxu0
  %9435 = vdwg.mxu0
  %v9444 = vcombine.low %v8782, %v8875
  %v9445 = vcombine.low %v8968, %v9061
  %v9447 = vunpack.c.l.s4 1983009808
  %v9448 = vunpack.c.0.s8 %v9447
  %v9449 = vlaneseq
  %v9450 = vshrl.u32 %v9449, 7
  %v9451 = vsub.s32 %v9448, %v9450
  %v9452 = vrot.slane %v9444, %v9451
  %v9454 = vunpack.c.l.s4 1983009808
  %v9455 = vunpack.c.0.s8 %v9454
  %v9456 = vlaneseq
  %v9457 = vshrl.u32 %v9456, 7
  %v9458 = vsub.s32 %v9455, %v9457
  %v9459 = vrot.slane %v9445, %v9458
  %v9460 = vcombine.low %v9452, %v9459
  %v9461 = vcombine.low %v9154, %v9247
  %v9462 = vcombine.low %v9340, %v9433
  %v9464 = vunpack.c.l.s4 1983009808
  %v9465 = vunpack.c.0.s8 %v9464
  %v9466 = vlaneseq
  %v9467 = vshrl.u32 %v9466, 7
  %v9468 = vsub.s32 %v9465, %v9467
  %v9469 = vrot.slane %v9461, %v9468
  %v9471 = vunpack.c.l.s4 1983009808
  %v9472 = vunpack.c.0.s8 %v9471
  %v9473 = vlaneseq
  %v9474 = vshrl.u32 %v9473, 7
  %v9475 = vsub.s32 %v9472, %v9474
  %v9476 = vrot.slane %v9462, %v9475
  %v9477 = vcombine.low %v9469, %v9476
  %v9478 = vrot.slane %v123, 4
  %v9479 = vsel %vm3252, %v9460, 0
  %v9481 = vsel %vm3252, %v9477, 0
  %v9483 = vsel %vm3257, %v9478, 0
  %9485 = vmatprep.subr.mxu0 0.0
  %9486 = vmatpush1.msra.mxu0 %v9483
  %9487 = vmatprep.subr.mxu0 0.0
  %9488 = vmatpush1.msra.mxu0 0.0
  %9489 = vmatprep.subr.mxu0 0.0
  %9490 = vmatpush1.msra.mxu0 0.0
  %9491 = vmatprep.subr.mxu0 0.0
  %9492 = vmatpush1.msra.mxu0 0.0
  %9493 = vmatprep.subr.mxu0 0.0
  %9494 = vmatpush1.msra.mxu0 0.0
  %9495 = vmatprep.subr.mxu0 0.0
  %9496 = vmatpush1.msra.mxu0 0.0
  %9497 = vmatprep.subr.mxu0 0.0
  %9498 = vmatpush1.msra.mxu0 0.0
  %9499 = vmatprep.subr.mxu0 0.0
  %9500 = vmatpush1.msra.mxu0 0.0
  %9501 = vmatprep.subr.mxu0 0.0
  %9502 = vmatpush1.msra.mxu0 0.0
  %9503 = vmatprep.subr.mxu0 0.0
  %9504 = vmatpush1.msra.mxu0 0.0
  %9505 = vmatprep.subr.mxu0 0.0
  %9506 = vmatpush1.msra.mxu0 0.0
  %9507 = vmatprep.subr.mxu0 0.0
  %9508 = vmatpush1.msra.mxu0 0.0
  %9509 = vmatprep.subr.mxu0 0.0
  %9510 = vmatpush1.msra.mxu0 0.0
  %9511 = vmatprep.subr.mxu0 0.0
  %9512 = vmatpush1.msra.mxu0 0.0
  %9513 = vmatprep.subr.mxu0 0.0
  %9514 = vmatpush1.msra.mxu0 0.0
  %9515 = vmatprep.subr.mxu0 0.0
  %9516 = vmatpush1.msra.mxu0 0.0
  %9517 = vmatprep.subr.mxu0 0.0
  %9518 = vmatpush1.msra.mxu0 0.0
  %9519 = vmatprep.subr.mxu0 0.0
  %9520 = vmatpush1.msra.mxu0 0.0
  %9521 = vmatprep.subr.mxu0 0.0
  %9522 = vmatpush1.msra.mxu0 0.0
  %9523 = vmatprep.subr.mxu0 0.0
  %9524 = vmatpush1.msra.mxu0 0.0
  %9525 = vmatprep.subr.mxu0 0.0
  %9526 = vmatpush1.msra.mxu0 0.0
  %9527 = vmatprep.subr.mxu0 0.0
  %9528 = vmatpush1.msra.mxu0 0.0
  %9529 = vmatprep.subr.mxu0 0.0
  %9530 = vmatpush1.msra.mxu0 0.0
  %9531 = vmatprep.subr.mxu0 0.0
  %9532 = vmatpush1.msra.mxu0 0.0
  %9533 = vmatprep.subr.mxu0 0.0
  %9534 = vmatpush1.msra.mxu0 0.0
  %9535 = vmatprep.subr.mxu0 0.0
  %9536 = vmatpush1.msra.mxu0 0.0
  %9537 = vmatprep.subr.mxu0 0.0
  %9538 = vmatpush1.msra.mxu0 0.0
  %9539 = vmatprep.subr.mxu0 0.0
  %9540 = vmatpush1.msra.mxu0 0.0
  %9541 = vmatprep.subr.mxu0 0.0
  %9542 = vmatpush1.msra.mxu0 0.0
  %9543 = vmatprep.subr.mxu0 0.0
  %9544 = vmatpush1.msra.mxu0 0.0
  %9545 = vmatprep.subr.mxu0 0.0
  %9546 = vmatpush1.msra.mxu0 0.0
  %9547 = vmatprep.subr.mxu0 0.0
  %9548 = vmatpush1.msra.mxu0 0.0
  %9549 = vmatprep.mubr.f32.mxu0 0.0
  %9550 = vmatmul.mubr.f32.gmra.mrb[0].mxu0 %v9479
  %v9551 = vpop.f32.mrb[0].mxu0
  %v9552 = vadd.f32 0.0, %v9551
  %v9553 = vpop.f32.mrb[0].mxu0
  %9554 = vmatprep.mubr.f32.mxu0 0.0
  %9555 = vmatmul.mubr.f32.gmra.mrb[0].mxu0 %v9481
  %v9556 = vpop.f32.mrb[0].mxu0
  %v9557 = vadd.f32 0.0, %v9556
  %v9558 = vpop.f32.mrb[0].mxu0
  %9559 = vdwg.mxu0
  %v9560 = vadd.f32 %v8034, %v9552
  %v9561 = vadd.f32 %v8035, %v9557
  %9562 = vrot.lane.b32.xlu0 %v417, 104
  %v9563 = vpop.permute.xlu0 %9562
  %9564 = vrot.lane.b32.xlu0 %v418, 104
  %v9565 = vpop.permute.xlu0 %9564
  %9566 = vrot.lane.b32.xlu0 %v419, 104
  %v9567 = vpop.permute.xlu0 %9566
  %9568 = vrot.lane.b32.xlu0 %v420, 104
  %v9569 = vpop.permute.xlu0 %9568
  %9570 = vrot.lane.b32.xlu0 %v421, 104
  %v9571 = vpop.permute.xlu0 %9570
  %9572 = vrot.lane.b32.xlu0 %v422, 104
  %v9573 = vpop.permute.xlu0 %9572
  %9574 = vrot.lane.b32.xlu0 %v423, 104
  %v9575 = vpop.permute.xlu0 %9574
  %9576 = vrot.lane.b32.xlu0 %v424, 104
  %v9577 = vpop.permute.xlu0 %9576
  %9578 = vrot.lane.b32.xlu0 %v425, 104
  %v9579 = vpop.permute.xlu0 %9578
  %9580 = vrot.lane.b32.xlu0 %v426, 104
  %v9581 = vpop.permute.xlu0 %9580
  %9582 = vrot.lane.b32.xlu0 %v427, 104
  %v9583 = vpop.permute.xlu0 %9582
  %9584 = vrot.lane.b32.xlu0 %v428, 104
  %v9585 = vpop.permute.xlu0 %9584
  %9586 = vrot.lane.b32.xlu0 %v429, 104
  %v9587 = vpop.permute.xlu0 %9586
  %9588 = vrot.lane.b32.xlu0 %v430, 104
  %v9589 = vpop.permute.xlu0 %9588
  %9590 = vrot.lane.b32.xlu0 %v431, 104
  %v9591 = vpop.permute.xlu0 %9590
  %9592 = vrot.lane.b32.xlu0 %v432, 104
  %v9593 = vpop.permute.xlu0 %9592
  %v9610 = vsel %vm433, %v9563, 0.0
  %9611 = vadd.xlane.f32.xlu0 %v9610
  %v9612 = vpop.xlane.xlu0 %9611
  %v9613 = vsel %vm433, %v9565, 0.0
  %9614 = vadd.xlane.f32.xlu0 %v9613
  %v9615 = vpop.xlane.xlu0 %9614
  %v9616 = vsel %vm433, %v9567, 0.0
  %9617 = vadd.xlane.f32.xlu0 %v9616
  %v9618 = vpop.xlane.xlu0 %9617
  %v9619 = vsel %vm433, %v9569, 0.0
  %9620 = vadd.xlane.f32.xlu0 %v9619
  %v9621 = vpop.xlane.xlu0 %9620
  %v9622 = vsel %vm433, %v9571, 0.0
  %9623 = vadd.xlane.f32.xlu0 %v9622
  %v9624 = vpop.xlane.xlu0 %9623
  %v9625 = vsel %vm433, %v9573, 0.0
  %9626 = vadd.xlane.f32.xlu0 %v9625
  %v9627 = vpop.xlane.xlu0 %9626
  %v9628 = vsel %vm433, %v9575, 0.0
  %9629 = vadd.xlane.f32.xlu0 %v9628
  %v9630 = vpop.xlane.xlu0 %9629
  %v9631 = vsel %vm433, %v9577, 0.0
  %9632 = vadd.xlane.f32.xlu0 %v9631
  %v9633 = vpop.xlane.xlu0 %9632
  %v9634 = vsel %vm433, %v9579, 0.0
  %9635 = vadd.xlane.f32.xlu0 %v9634
  %v9636 = vpop.xlane.xlu0 %9635
  %v9637 = vsel %vm433, %v9581, 0.0
  %9638 = vadd.xlane.f32.xlu0 %v9637
  %v9639 = vpop.xlane.xlu0 %9638
  %v9640 = vsel %vm433, %v9583, 0.0
  %9641 = vadd.xlane.f32.xlu0 %v9640
  %v9642 = vpop.xlane.xlu0 %9641
  %v9643 = vsel %vm433, %v9585, 0.0
  %9644 = vadd.xlane.f32.xlu0 %v9643
  %v9645 = vpop.xlane.xlu0 %9644
  %v9646 = vsel %vm433, %v9587, 0.0
  %9647 = vadd.xlane.f32.xlu0 %v9646
  %v9648 = vpop.xlane.xlu0 %9647
  %v9649 = vsel %vm433, %v9589, 0.0
  %9650 = vadd.xlane.f32.xlu0 %v9649
  %v9651 = vpop.xlane.xlu0 %9650
  %v9652 = vsel %vm433, %v9591, 0.0
  %9653 = vadd.xlane.f32.xlu0 %v9652
  %v9654 = vpop.xlane.xlu0 %9653
  %v9655 = vsel %vm433, %v9593, 0.0
  %9656 = vadd.xlane.f32.xlu0 %v9655
  %v9657 = vpop.xlane.xlu0 %9656
  %v9658 = vmul.f32 %v9612, 0.5
  %v9659 = vmul.f32 %v9615, 0.5
  %v9660 = vmul.f32 %v9618, 0.5
  %v9661 = vmul.f32 %v9621, 0.5
  %v9662 = vmul.f32 %v9624, 0.5
  %v9663 = vmul.f32 %v9627, 0.5
  %v9664 = vmul.f32 %v9630, 0.5
  %v9665 = vmul.f32 %v9633, 0.5
  %v9666 = vmul.f32 %v9636, 0.5
  %v9667 = vmul.f32 %v9639, 0.5
  %v9668 = vmul.f32 %v9642, 0.5
  %v9669 = vmul.f32 %v9645, 0.5
  %v9670 = vmul.f32 %v9648, 0.5
  %v9671 = vmul.f32 %v9651, 0.5
  %v9672 = vmul.f32 %v9654, 0.5
  %v9673 = vmul.f32 %v9657, 0.5
  %v9690 = vlaneseq
  %v9691 = vshrl.u32 %v9690, 7
  %v9692 = vsub.s32 %v515, %v9691
  %v9693 = vrot.slane %v9658, %v9692
  %v9694 = vlaneseq
  %v9695 = vshrl.u32 %v9694, 7
  %v9696 = vsub.s32 %v515, %v9695
  %v9697 = vrot.slane %v9659, %v9696
  %v9698 = vlaneseq
  %v9699 = vshrl.u32 %v9698, 7
  %v9700 = vsub.s32 %v515, %v9699
  %v9701 = vrot.slane %v9660, %v9700
  %v9702 = vlaneseq
  %v9703 = vshrl.u32 %v9702, 7
  %v9704 = vsub.s32 %v515, %v9703
  %v9705 = vrot.slane %v9661, %v9704
  %v9706 = vlaneseq
  %v9707 = vshrl.u32 %v9706, 7
  %v9708 = vsub.s32 %v515, %v9707
  %v9709 = vrot.slane %v9662, %v9708
  %v9710 = vlaneseq
  %v9711 = vshrl.u32 %v9710, 7
  %v9712 = vsub.s32 %v515, %v9711
  %v9713 = vrot.slane %v9663, %v9712
  %v9714 = vlaneseq
  %v9715 = vshrl.u32 %v9714, 7
  %v9716 = vsub.s32 %v515, %v9715
  %v9717 = vrot.slane %v9664, %v9716
  %v9718 = vlaneseq
  %v9719 = vshrl.u32 %v9718, 7
  %v9720 = vsub.s32 %v515, %v9719
  %v9721 = vrot.slane %v9665, %v9720
  %v9722 = vlaneseq
  %v9723 = vshrl.u32 %v9722, 7
  %v9724 = vsub.s32 %v515, %v9723
  %v9725 = vrot.slane %v9666, %v9724
  %v9726 = vlaneseq
  %v9727 = vshrl.u32 %v9726, 7
  %v9728 = vsub.s32 %v515, %v9727
  %v9729 = vrot.slane %v9667, %v9728
  %v9730 = vlaneseq
  %v9731 = vshrl.u32 %v9730, 7
  %v9732 = vsub.s32 %v515, %v9731
  %v9733 = vrot.slane %v9668, %v9732
  %v9734 = vlaneseq
  %v9735 = vshrl.u32 %v9734, 7
  %v9736 = vsub.s32 %v515, %v9735
  %v9737 = vrot.slane %v9669, %v9736
  %v9738 = vlaneseq
  %v9739 = vshrl.u32 %v9738, 7
  %v9740 = vsub.s32 %v515, %v9739
  %v9741 = vrot.slane %v9670, %v9740
  %v9742 = vlaneseq
  %v9743 = vshrl.u32 %v9742, 7
  %v9744 = vsub.s32 %v515, %v9743
  %v9745 = vrot.slane %v9671, %v9744
  %v9746 = vlaneseq
  %v9747 = vshrl.u32 %v9746, 7
  %v9748 = vsub.s32 %v515, %v9747
  %v9749 = vrot.slane %v9672, %v9748
  %v9750 = vlaneseq
  %v9751 = vshrl.u32 %v9750, 7
  %v9752 = vsub.s32 %v515, %v9751
  %v9753 = vrot.slane %v9673, %v9752
  %v9754 = vsel %vm580, %v9697, %v9693
  %v9755 = vsel %vm580, %v9705, %v9701
  %v9756 = vsel %vm580, %v9713, %v9709
  %v9757 = vsel %vm580, %v9721, %v9717
  %v9758 = vsel %vm580, %v9729, %v9725
  %v9759 = vsel %vm580, %v9737, %v9733
  %v9760 = vsel %vm580, %v9745, %v9741
  %v9761 = vsel %vm580, %v9753, %v9749
  %v9770 = vsel %vm597, %v9754, -inf
  %9771 = vmax.xlane.f32.xlu0 %v9770
  %v9772 = vpop.xlane.xlu0 %9771
  %v9773 = vsel %vm597, %v9755, -inf
  %9774 = vmax.xlane.f32.xlu0 %v9773
  %v9775 = vpop.xlane.xlu0 %9774
  %v9776 = vsel %vm597, %v9756, -inf
  %9777 = vmax.xlane.f32.xlu0 %v9776
  %v9778 = vpop.xlane.xlu0 %9777
  %v9779 = vsel %vm597, %v9757, -inf
  %9780 = vmax.xlane.f32.xlu0 %v9779
  %v9781 = vpop.xlane.xlu0 %9780
  %v9782 = vsel %vm597, %v9758, -inf
  %9783 = vmax.xlane.f32.xlu0 %v9782
  %v9784 = vpop.xlane.xlu0 %9783
  %v9785 = vsel %vm597, %v9759, -inf
  %9786 = vmax.xlane.f32.xlu0 %v9785
  %v9787 = vpop.xlane.xlu0 %9786
  %v9788 = vsel %vm597, %v9760, -inf
  %9789 = vmax.xlane.f32.xlu0 %v9788
  %v9790 = vpop.xlane.xlu0 %9789
  %v9791 = vsel %vm597, %v9761, -inf
  %9792 = vmax.xlane.f32.xlu0 %v9791
  %v9793 = vpop.xlane.xlu0 %9792
  %v9802 = vlaneseq
  %v9803 = vshrl.u32 %v9802, 7
  %v9804 = vsub.s32 0, %v9803
  %v9805 = vrot.slane %v9772, %v9804
  %v9806 = vlaneseq
  %v9807 = vshrl.u32 %v9806, 7
  %v9808 = vsub.s32 1, %v9807
  %v9809 = vrot.slane %v9772, %v9808
  %v9810 = vlaneseq
  %v9811 = vshrl.u32 %v9810, 7
  %v9812 = vsub.s32 0, %v9811
  %v9813 = vrot.slane %v9775, %v9812
  %v9814 = vlaneseq
  %v9815 = vshrl.u32 %v9814, 7
  %v9816 = vsub.s32 1, %v9815
  %v9817 = vrot.slane %v9775, %v9816
  %v9818 = vlaneseq
  %v9819 = vshrl.u32 %v9818, 7
  %v9820 = vsub.s32 0, %v9819
  %v9821 = vrot.slane %v9778, %v9820
  %v9822 = vlaneseq
  %v9823 = vshrl.u32 %v9822, 7
  %v9824 = vsub.s32 1, %v9823
  %v9825 = vrot.slane %v9778, %v9824
  %v9826 = vlaneseq
  %v9827 = vshrl.u32 %v9826, 7
  %v9828 = vsub.s32 0, %v9827
  %v9829 = vrot.slane %v9781, %v9828
  %v9830 = vlaneseq
  %v9831 = vshrl.u32 %v9830, 7
  %v9832 = vsub.s32 1, %v9831
  %v9833 = vrot.slane %v9781, %v9832
  %v9834 = vlaneseq
  %v9835 = vshrl.u32 %v9834, 7
  %v9836 = vsub.s32 0, %v9835
  %v9837 = vrot.slane %v9784, %v9836
  %v9838 = vlaneseq
  %v9839 = vshrl.u32 %v9838, 7
  %v9840 = vsub.s32 1, %v9839
  %v9841 = vrot.slane %v9784, %v9840
  %v9842 = vlaneseq
  %v9843 = vshrl.u32 %v9842, 7
  %v9844 = vsub.s32 0, %v9843
  %v9845 = vrot.slane %v9787, %v9844
  %v9846 = vlaneseq
  %v9847 = vshrl.u32 %v9846, 7
  %v9848 = vsub.s32 1, %v9847
  %v9849 = vrot.slane %v9787, %v9848
  %v9850 = vlaneseq
  %v9851 = vshrl.u32 %v9850, 7
  %v9852 = vsub.s32 0, %v9851
  %v9853 = vrot.slane %v9790, %v9852
  %v9854 = vlaneseq
  %v9855 = vshrl.u32 %v9854, 7
  %v9856 = vsub.s32 1, %v9855
  %v9857 = vrot.slane %v9790, %v9856
  %v9858 = vlaneseq
  %v9859 = vshrl.u32 %v9858, 7
  %v9860 = vsub.s32 0, %v9859
  %v9861 = vrot.slane %v9793, %v9860
  %v9862 = vlaneseq
  %v9863 = vshrl.u32 %v9862, 7
  %v9864 = vsub.s32 1, %v9863
  %v9865 = vrot.slane %v9793, %v9864
  %v9882 = vsub.f32 %v9658, %v9805
  %v9883 = vsub.f32 %v9659, %v9809
  %v9884 = vsub.f32 %v9660, %v9813
  %v9885 = vsub.f32 %v9661, %v9817
  %v9886 = vsub.f32 %v9662, %v9821
  %v9887 = vsub.f32 %v9663, %v9825
  %v9888 = vsub.f32 %v9664, %v9829
  %v9889 = vsub.f32 %v9665, %v9833
  %v9890 = vsub.f32 %v9666, %v9837
  %v9891 = vsub.f32 %v9667, %v9841
  %v9892 = vsub.f32 %v9668, %v9845
  %v9893 = vsub.f32 %v9669, %v9849
  %v9894 = vsub.f32 %v9670, %v9853
  %v9895 = vsub.f32 %v9671, %v9857
  %v9896 = vsub.f32 %v9672, %v9861
  %v9897 = vsub.f32 %v9673, %v9865
  %v9898 = vmul.f32 %v9882, 1.442695
  %v9899 = vpow.pop %v9898
  %v9900 = vmul.f32 %v9883, 1.442695
  %v9901 = vpow.pop %v9900
  %v9902 = vmul.f32 %v9884, 1.442695
  %v9903 = vpow.pop %v9902
  %v9904 = vmul.f32 %v9885, 1.442695
  %v9905 = vpow.pop %v9904
  %v9906 = vmul.f32 %v9886, 1.442695
  %v9907 = vpow.pop %v9906
  %v9908 = vmul.f32 %v9887, 1.442695
  %v9909 = vpow.pop %v9908
  %v9910 = vmul.f32 %v9888, 1.442695
  %v9911 = vpow.pop %v9910
  %v9912 = vmul.f32 %v9889, 1.442695
  %v9913 = vpow.pop %v9912
  %v9914 = vmul.f32 %v9890, 1.442695
  %v9915 = vpow.pop %v9914
  %v9916 = vmul.f32 %v9891, 1.442695
  %v9917 = vpow.pop %v9916
  %v9918 = vmul.f32 %v9892, 1.442695
  %v9919 = vpow.pop %v9918
  %v9920 = vmul.f32 %v9893, 1.442695
  %v9921 = vpow.pop %v9920
  %v9922 = vmul.f32 %v9894, 1.442695
  %v9923 = vpow.pop %v9922
  %v9924 = vmul.f32 %v9895, 1.442695
  %v9925 = vpow.pop %v9924
  %v9926 = vmul.f32 %v9896, 1.442695
  %v9927 = vpow.pop %v9926
  %v9928 = vmul.f32 %v9897, 1.442695
  %v9929 = vpow.pop %v9928
  %9946 = vset.pattern.permute.xlu0 0
  %9947 = vperm.xlu0 %9946, %v9899
  %v9948 = vpop.permute.xlu0 %9947
  %9949 = vset.pattern.permute.xlu0 0
  %9950 = vperm.xlu0 %9949, %v9901
  %v9951 = vpop.permute.xlu0 %9950
  %9952 = vset.pattern.permute.xlu0 0
  %9953 = vperm.xlu0 %9952, %v9903
  %v9954 = vpop.permute.xlu0 %9953
  %9955 = vset.pattern.permute.xlu0 0
  %9956 = vperm.xlu0 %9955, %v9905
  %v9957 = vpop.permute.xlu0 %9956
  %9958 = vset.pattern.permute.xlu0 0
  %9959 = vperm.xlu0 %9958, %v9907
  %v9960 = vpop.permute.xlu0 %9959
  %9961 = vset.pattern.permute.xlu0 0
  %9962 = vperm.xlu0 %9961, %v9909
  %v9963 = vpop.permute.xlu0 %9962
  %9964 = vset.pattern.permute.xlu0 0
  %9965 = vperm.xlu0 %9964, %v9911
  %v9966 = vpop.permute.xlu0 %9965
  %9967 = vset.pattern.permute.xlu0 0
  %9968 = vperm.xlu0 %9967, %v9913
  %v9969 = vpop.permute.xlu0 %9968
  %9970 = vset.pattern.permute.xlu0 0
  %9971 = vperm.xlu0 %9970, %v9915
  %v9972 = vpop.permute.xlu0 %9971
  %9973 = vset.pattern.permute.xlu0 0
  %9974 = vperm.xlu0 %9973, %v9917
  %v9975 = vpop.permute.xlu0 %9974
  %9976 = vset.pattern.permute.xlu0 0
  %9977 = vperm.xlu0 %9976, %v9919
  %v9978 = vpop.permute.xlu0 %9977
  %9979 = vset.pattern.permute.xlu0 0
  %9980 = vperm.xlu0 %9979, %v9921
  %v9981 = vpop.permute.xlu0 %9980
  %9982 = vset.pattern.permute.xlu0 0
  %9983 = vperm.xlu0 %9982, %v9923
  %v9984 = vpop.permute.xlu0 %9983
  %9985 = vset.pattern.permute.xlu0 0
  %9986 = vperm.xlu0 %9985, %v9925
  %v9987 = vpop.permute.xlu0 %9986
  %9988 = vset.pattern.permute.xlu0 0
  %9989 = vperm.xlu0 %9988, %v9927
  %v9990 = vpop.permute.xlu0 %9989
  %9991 = vset.pattern.permute.xlu0 0
  %9992 = vperm.xlu0 %9991, %v9929
  %v9993 = vpop.permute.xlu0 %9992
  %v9994 = vlaneseq
  %v9995 = vshrl.u32 %v9994, 7
  %v9996 = vsub.s32 %v515, %v9995
  %v9997 = vrot.slane %v9948, %v9996
  %v9998 = vlaneseq
  %v9999 = vshrl.u32 %v9998, 7
  %v10000 = vsub.s32 %v515, %v9999
  %v10001 = vrot.slane %v9951, %v10000
  %v10002 = vlaneseq
  %v10003 = vshrl.u32 %v10002, 7
  %v10004 = vsub.s32 %v515, %v10003
  %v10005 = vrot.slane %v9954, %v10004
  %v10006 = vlaneseq
  %v10007 = vshrl.u32 %v10006, 7
  %v10008 = vsub.s32 %v515, %v10007
  %v10009 = vrot.slane %v9957, %v10008
  %v10010 = vlaneseq
  %v10011 = vshrl.u32 %v10010, 7
  %v10012 = vsub.s32 %v515, %v10011
  %v10013 = vrot.slane %v9960, %v10012
  %v10014 = vlaneseq
  %v10015 = vshrl.u32 %v10014, 7
  %v10016 = vsub.s32 %v515, %v10015
  %v10017 = vrot.slane %v9963, %v10016
  %v10018 = vlaneseq
  %v10019 = vshrl.u32 %v10018, 7
  %v10020 = vsub.s32 %v515, %v10019
  %v10021 = vrot.slane %v9966, %v10020
  %v10022 = vlaneseq
  %v10023 = vshrl.u32 %v10022, 7
  %v10024 = vsub.s32 %v515, %v10023
  %v10025 = vrot.slane %v9969, %v10024
  %v10026 = vlaneseq
  %v10027 = vshrl.u32 %v10026, 7
  %v10028 = vsub.s32 %v515, %v10027
  %v10029 = vrot.slane %v9972, %v10028
  %v10030 = vlaneseq
  %v10031 = vshrl.u32 %v10030, 7
  %v10032 = vsub.s32 %v515, %v10031
  %v10033 = vrot.slane %v9975, %v10032
  %v10034 = vlaneseq
  %v10035 = vshrl.u32 %v10034, 7
  %v10036 = vsub.s32 %v515, %v10035
  %v10037 = vrot.slane %v9978, %v10036
  %v10038 = vlaneseq
  %v10039 = vshrl.u32 %v10038, 7
  %v10040 = vsub.s32 %v515, %v10039
  %v10041 = vrot.slane %v9981, %v10040
  %v10042 = vlaneseq
  %v10043 = vshrl.u32 %v10042, 7
  %v10044 = vsub.s32 %v515, %v10043
  %v10045 = vrot.slane %v9984, %v10044
  %v10046 = vlaneseq
  %v10047 = vshrl.u32 %v10046, 7
  %v10048 = vsub.s32 %v515, %v10047
  %v10049 = vrot.slane %v9987, %v10048
  %v10050 = vlaneseq
  %v10051 = vshrl.u32 %v10050, 7
  %v10052 = vsub.s32 %v515, %v10051
  %v10053 = vrot.slane %v9990, %v10052
  %v10054 = vlaneseq
  %v10055 = vshrl.u32 %v10054, 7
  %v10056 = vsub.s32 %v515, %v10055
  %v10057 = vrot.slane %v9993, %v10056
  %v10058 = vsel %vm580, %v10001, %v9997
  %v10059 = vsel %vm580, %v10009, %v10005
  %v10060 = vsel %vm580, %v10017, %v10013
  %v10061 = vsel %vm580, %v10025, %v10021
  %v10062 = vsel %vm580, %v10033, %v10029
  %v10063 = vsel %vm580, %v10041, %v10037
  %v10064 = vsel %vm580, %v10049, %v10045
  %v10065 = vsel %vm580, %v10057, %v10053
  %v10074 = vsel %vm597, %v10058, 0.0
  %10075 = vadd.xlane.f32.xlu0 %v10074
  %v10076 = vpop.xlane.xlu0 %10075
  %v10077 = vsel %vm597, %v10059, 0.0
  %10078 = vadd.xlane.f32.xlu0 %v10077
  %v10079 = vpop.xlane.xlu0 %10078
  %v10080 = vsel %vm597, %v10060, 0.0
  %10081 = vadd.xlane.f32.xlu0 %v10080
  %v10082 = vpop.xlane.xlu0 %10081
  %v10083 = vsel %vm597, %v10061, 0.0
  %10084 = vadd.xlane.f32.xlu0 %v10083
  %v10085 = vpop.xlane.xlu0 %10084
  %v10086 = vsel %vm597, %v10062, 0.0
  %10087 = vadd.xlane.f32.xlu0 %v10086
  %v10088 = vpop.xlane.xlu0 %10087
  %v10089 = vsel %vm597, %v10063, 0.0
  %10090 = vadd.xlane.f32.xlu0 %v10089
  %v10091 = vpop.xlane.xlu0 %10090
  %v10092 = vsel %vm597, %v10064, 0.0
  %10093 = vadd.xlane.f32.xlu0 %v10092
  %v10094 = vpop.xlane.xlu0 %10093
  %v10095 = vsel %vm597, %v10065, 0.0
  %10096 = vadd.xlane.f32.xlu0 %v10095
  %v10097 = vpop.xlane.xlu0 %10096
  %v10106 = vlaneseq
  %v10107 = vshrl.u32 %v10106, 7
  %v10108 = vsub.s32 0, %v10107
  %v10109 = vrot.slane %v10076, %v10108
  %v10110 = vlaneseq
  %v10111 = vshrl.u32 %v10110, 7
  %v10112 = vsub.s32 1, %v10111
  %v10113 = vrot.slane %v10076, %v10112
  %v10114 = vlaneseq
  %v10115 = vshrl.u32 %v10114, 7
  %v10116 = vsub.s32 0, %v10115
  %v10117 = vrot.slane %v10079, %v10116
  %v10118 = vlaneseq
  %v10119 = vshrl.u32 %v10118, 7
  %v10120 = vsub.s32 1, %v10119
  %v10121 = vrot.slane %v10079, %v10120
  %v10122 = vlaneseq
  %v10123 = vshrl.u32 %v10122, 7
  %v10124 = vsub.s32 0, %v10123
  %v10125 = vrot.slane %v10082, %v10124
  %v10126 = vlaneseq
  %v10127 = vshrl.u32 %v10126, 7
  %v10128 = vsub.s32 1, %v10127
  %v10129 = vrot.slane %v10082, %v10128
  %v10130 = vlaneseq
  %v10131 = vshrl.u32 %v10130, 7
  %v10132 = vsub.s32 0, %v10131
  %v10133 = vrot.slane %v10085, %v10132
  %v10134 = vlaneseq
  %v10135 = vshrl.u32 %v10134, 7
  %v10136 = vsub.s32 1, %v10135
  %v10137 = vrot.slane %v10085, %v10136
  %v10138 = vlaneseq
  %v10139 = vshrl.u32 %v10138, 7
  %v10140 = vsub.s32 0, %v10139
  %v10141 = vrot.slane %v10088, %v10140
  %v10142 = vlaneseq
  %v10143 = vshrl.u32 %v10142, 7
  %v10144 = vsub.s32 1, %v10143
  %v10145 = vrot.slane %v10088, %v10144
  %v10146 = vlaneseq
  %v10147 = vshrl.u32 %v10146, 7
  %v10148 = vsub.s32 0, %v10147
  %v10149 = vrot.slane %v10091, %v10148
  %v10150 = vlaneseq
  %v10151 = vshrl.u32 %v10150, 7
  %v10152 = vsub.s32 1, %v10151
  %v10153 = vrot.slane %v10091, %v10152
  %v10154 = vlaneseq
  %v10155 = vshrl.u32 %v10154, 7
  %v10156 = vsub.s32 0, %v10155
  %v10157 = vrot.slane %v10094, %v10156
  %v10158 = vlaneseq
  %v10159 = vshrl.u32 %v10158, 7
  %v10160 = vsub.s32 1, %v10159
  %v10161 = vrot.slane %v10094, %v10160
  %v10162 = vlaneseq
  %v10163 = vshrl.u32 %v10162, 7
  %v10164 = vsub.s32 0, %v10163
  %v10165 = vrot.slane %v10097, %v10164
  %v10166 = vlaneseq
  %v10167 = vshrl.u32 %v10166, 7
  %v10168 = vsub.s32 1, %v10167
  %v10169 = vrot.slane %v10097, %v10168
  %v10186 = vrcp.pop %v10109
  %v10187 = vmul.f32 %v9899, %v10186
  %v10188 = vrcp.pop %v10113
  %v10189 = vmul.f32 %v9901, %v10188
  %v10190 = vrcp.pop %v10117
  %v10191 = vmul.f32 %v9903, %v10190
  %v10192 = vrcp.pop %v10121
  %v10193 = vmul.f32 %v9905, %v10192
  %v10194 = vrcp.pop %v10125
  %v10195 = vmul.f32 %v9907, %v10194
  %v10196 = vrcp.pop %v10129
  %v10197 = vmul.f32 %v9909, %v10196
  %v10198 = vrcp.pop %v10133
  %v10199 = vmul.f32 %v9911, %v10198
  %v10200 = vrcp.pop %v10137
  %v10201 = vmul.f32 %v9913, %v10200
  %v10202 = vrcp.pop %v10141
  %v10203 = vmul.f32 %v9915, %v10202
  %v10204 = vrcp.pop %v10145
  %v10205 = vmul.f32 %v9917, %v10204
  %v10206 = vrcp.pop %v10149
  %v10207 = vmul.f32 %v9919, %v10206
  %v10208 = vrcp.pop %v10153
  %v10209 = vmul.f32 %v9921, %v10208
  %v10210 = vrcp.pop %v10157
  %v10211 = vmul.f32 %v9923, %v10210
  %v10212 = vrcp.pop %v10161
  %v10213 = vmul.f32 %v9925, %v10212
  %v10214 = vrcp.pop %v10165
  %v10215 = vmul.f32 %v9927, %v10214
  %v10216 = vrcp.pop %v10169
  %v10217 = vmul.f32 %v9929, %v10216
  %10220 = vset.pattern.permute.xlu0 0
  %10221 = vperm.xlu0 %10220, %v10187
  %v10222 = vpop.permute.xlu0 %10221
  %10223 = vset.pattern.permute.xlu0 0
  %10224 = vperm.xlu0 %10223, %v10189
  %v10225 = vpop.permute.xlu0 %10224
  %v10226 = vlaneseq
  %v10227 = vshrl.u32 %v10226, 7
  %v10228 = vsub.s32 %v515, %v10227
  %v10229 = vrot.slane %v10222, %v10228
  %v10230 = vlaneseq
  %v10231 = vshrl.u32 %v10230, 7
  %v10232 = vsub.s32 %v515, %v10231
  %v10233 = vrot.slane %v10225, %v10232
  %v10234 = vsel %vm580, %v10233, %v10229
  %10235 = vrot.lane.b32.xlu0 %v343, 40
  %v10236 = vpop.permute.xlu0 %10235
  %v10237 = vsel %vm1065, %v10234, 0
  %v10239 = vsel %vm1068, %v10236, 0
  %10241 = vmatprep.subr.mxu0 0.0
  %10242 = vmatpush1.msra.mxu0 %v10239
  %10243 = vmatprep.subr.mxu0 0.0
  %10244 = vmatpush1.msra.mxu0 0.0
  %10245 = vmatprep.subr.mxu0 0.0
  %10246 = vmatpush1.msra.mxu0 0.0
  %10247 = vmatprep.subr.mxu0 0.0
  %10248 = vmatpush1.msra.mxu0 0.0
  %10249 = vmatprep.subr.mxu0 0.0
  %10250 = vmatpush1.msra.mxu0 0.0
  %10251 = vmatprep.subr.mxu0 0.0
  %10252 = vmatpush1.msra.mxu0 0.0
  %10253 = vmatprep.subr.mxu0 0.0
  %10254 = vmatpush1.msra.mxu0 0.0
  %10255 = vmatprep.subr.mxu0 0.0
  %10256 = vmatpush1.msra.mxu0 0.0
  %10257 = vmatprep.subr.mxu0 0.0
  %10258 = vmatpush1.msra.mxu0 0.0
  %10259 = vmatprep.subr.mxu0 0.0
  %10260 = vmatpush1.msra.mxu0 0.0
  %10261 = vmatprep.subr.mxu0 0.0
  %10262 = vmatpush1.msra.mxu0 0.0
  %10263 = vmatprep.subr.mxu0 0.0
  %10264 = vmatpush1.msra.mxu0 0.0
  %10265 = vmatprep.subr.mxu0 0.0
  %10266 = vmatpush1.msra.mxu0 0.0
  %10267 = vmatprep.subr.mxu0 0.0
  %10268 = vmatpush1.msra.mxu0 0.0
  %10269 = vmatprep.subr.mxu0 0.0
  %10270 = vmatpush1.msra.mxu0 0.0
  %10271 = vmatprep.subr.mxu0 0.0
  %10272 = vmatpush1.msra.mxu0 0.0
  %10273 = vmatprep.subr.mxu0 0.0
  %10274 = vmatpush1.msra.mxu0 0.0
  %10275 = vmatprep.subr.mxu0 0.0
  %10276 = vmatpush1.msra.mxu0 0.0
  %10277 = vmatprep.subr.mxu0 0.0
  %10278 = vmatpush1.msra.mxu0 0.0
  %10279 = vmatprep.subr.mxu0 0.0
  %10280 = vmatpush1.msra.mxu0 0.0
  %10281 = vmatprep.subr.mxu0 0.0
  %10282 = vmatpush1.msra.mxu0 0.0
  %10283 = vmatprep.subr.mxu0 0.0
  %10284 = vmatpush1.msra.mxu0 0.0
  %10285 = vmatprep.subr.mxu0 0.0
  %10286 = vmatpush1.msra.mxu0 0.0
  %10287 = vmatprep.subr.mxu0 0.0
  %10288 = vmatpush1.msra.mxu0 0.0
  %10289 = vmatprep.subr.mxu0 0.0
  %10290 = vmatpush1.msra.mxu0 0.0
  %10291 = vmatprep.subr.mxu0 0.0
  %10292 = vmatpush1.msra.mxu0 0.0
  %10293 = vmatprep.subr.mxu0 0.0
  %10294 = vmatpush1.msra.mxu0 0.0
  %10295 = vmatprep.subr.mxu0 0.0
  %10296 = vmatpush1.msra.mxu0 0.0
  %10297 = vmatprep.subr.mxu0 0.0
  %10298 = vmatpush1.msra.mxu0 0.0
  %10299 = vmatprep.subr.mxu0 0.0
  %10300 = vmatpush1.msra.mxu0 0.0
  %10301 = vmatprep.subr.mxu0 0.0
  %10302 = vmatpush1.msra.mxu0 0.0
  %10303 = vmatprep.subr.mxu0 0.0
  %10304 = vmatpush1.msra.mxu0 0.0
  %10305 = vmatprep.mubr.f32.mxu0 0.0
  %10306 = vmatmul.mubr.f32.gmra.mrb[0].mxu0 %v10237
  %v10307 = vpop.f32.mrb[0].mxu0
  %v10308 = vadd.f32 0.0, %v10307
  %v10309 = vpop.f32.mrb[0].mxu0
  %10310 = vdwg.mxu0
  %10313 = vset.pattern.permute.xlu0 0
  %10314 = vperm.xlu0 %10313, %v10191
  %v10315 = vpop.permute.xlu0 %10314
  %10316 = vset.pattern.permute.xlu0 0
  %10317 = vperm.xlu0 %10316, %v10193
  %v10318 = vpop.permute.xlu0 %10317
  %v10319 = vlaneseq
  %v10320 = vshrl.u32 %v10319, 7
  %v10321 = vsub.s32 %v515, %v10320
  %v10322 = vrot.slane %v10315, %v10321
  %v10323 = vlaneseq
  %v10324 = vshrl.u32 %v10323, 7
  %v10325 = vsub.s32 %v515, %v10324
  %v10326 = vrot.slane %v10318, %v10325
  %v10327 = vsel %vm580, %v10326, %v10322
  %10328 = vrot.lane.b32.xlu0 %v350, 40
  %v10329 = vpop.permute.xlu0 %10328
  %v10330 = vsel %vm1065, %v10327, 0
  %v10332 = vsel %vm1068, %v10329, 0
  %10334 = vmatprep.subr.mxu0 0.0
  %10335 = vmatpush1.msra.mxu0 %v10332
  %10336 = vmatprep.subr.mxu0 0.0
  %10337 = vmatpush1.msra.mxu0 0.0
  %10338 = vmatprep.subr.mxu0 0.0
  %10339 = vmatpush1.msra.mxu0 0.0
  %10340 = vmatprep.subr.mxu0 0.0
  %10341 = vmatpush1.msra.mxu0 0.0
  %10342 = vmatprep.subr.mxu0 0.0
  %10343 = vmatpush1.msra.mxu0 0.0
  %10344 = vmatprep.subr.mxu0 0.0
  %10345 = vmatpush1.msra.mxu0 0.0
  %10346 = vmatprep.subr.mxu0 0.0
  %10347 = vmatpush1.msra.mxu0 0.0
  %10348 = vmatprep.subr.mxu0 0.0
  %10349 = vmatpush1.msra.mxu0 0.0
  %10350 = vmatprep.subr.mxu0 0.0
  %10351 = vmatpush1.msra.mxu0 0.0
  %10352 = vmatprep.subr.mxu0 0.0
  %10353 = vmatpush1.msra.mxu0 0.0
  %10354 = vmatprep.subr.mxu0 0.0
  %10355 = vmatpush1.msra.mxu0 0.0
  %10356 = vmatprep.subr.mxu0 0.0
  %10357 = vmatpush1.msra.mxu0 0.0
  %10358 = vmatprep.subr.mxu0 0.0
  %10359 = vmatpush1.msra.mxu0 0.0
  %10360 = vmatprep.subr.mxu0 0.0
  %10361 = vmatpush1.msra.mxu0 0.0
  %10362 = vmatprep.subr.mxu0 0.0
  %10363 = vmatpush1.msra.mxu0 0.0
  %10364 = vmatprep.subr.mxu0 0.0
  %10365 = vmatpush1.msra.mxu0 0.0
  %10366 = vmatprep.subr.mxu0 0.0
  %10367 = vmatpush1.msra.mxu0 0.0
  %10368 = vmatprep.subr.mxu0 0.0
  %10369 = vmatpush1.msra.mxu0 0.0
  %10370 = vmatprep.subr.mxu0 0.0
  %10371 = vmatpush1.msra.mxu0 0.0
  %10372 = vmatprep.subr.mxu0 0.0
  %10373 = vmatpush1.msra.mxu0 0.0
  %10374 = vmatprep.subr.mxu0 0.0
  %10375 = vmatpush1.msra.mxu0 0.0
  %10376 = vmatprep.subr.mxu0 0.0
  %10377 = vmatpush1.msra.mxu0 0.0
  %10378 = vmatprep.subr.mxu0 0.0
  %10379 = vmatpush1.msra.mxu0 0.0
  %10380 = vmatprep.subr.mxu0 0.0
  %10381 = vmatpush1.msra.mxu0 0.0
  %10382 = vmatprep.subr.mxu0 0.0
  %10383 = vmatpush1.msra.mxu0 0.0
  %10384 = vmatprep.subr.mxu0 0.0
  %10385 = vmatpush1.msra.mxu0 0.0
  %10386 = vmatprep.subr.mxu0 0.0
  %10387 = vmatpush1.msra.mxu0 0.0
  %10388 = vmatprep.subr.mxu0 0.0
  %10389 = vmatpush1.msra.mxu0 0.0
  %10390 = vmatprep.subr.mxu0 0.0
  %10391 = vmatpush1.msra.mxu0 0.0
  %10392 = vmatprep.subr.mxu0 0.0
  %10393 = vmatpush1.msra.mxu0 0.0
  %10394 = vmatprep.subr.mxu0 0.0
  %10395 = vmatpush1.msra.mxu0 0.0
  %10396 = vmatprep.subr.mxu0 0.0
  %10397 = vmatpush1.msra.mxu0 0.0
  %10398 = vmatprep.mubr.f32.mxu0 0.0
  %10399 = vmatmul.mubr.f32.gmra.mrb[0].mxu0 %v10330
  %v10400 = vpop.f32.mrb[0].mxu0
  %v10401 = vadd.f32 0.0, %v10400
  %v10402 = vpop.f32.mrb[0].mxu0
  %10403 = vdwg.mxu0
  %10406 = vset.pattern.permute.xlu0 0
  %10407 = vperm.xlu0 %10406, %v10195
  %v10408 = vpop.permute.xlu0 %10407
  %10409 = vset.pattern.permute.xlu0 0
  %10410 = vperm.xlu0 %10409, %v10197
  %v10411 = vpop.permute.xlu0 %10410
  %v10412 = vlaneseq
  %v10413 = vshrl.u32 %v10412, 7
  %v10414 = vsub.s32 %v515, %v10413
  %v10415 = vrot.slane %v10408, %v10414
  %v10416 = vlaneseq
  %v10417 = vshrl.u32 %v10416, 7
  %v10418 = vsub.s32 %v515, %v10417
  %v10419 = vrot.slane %v10411, %v10418
  %v10420 = vsel %vm580, %v10419, %v10415
  %10421 = vrot.lane.b32.xlu0 %v357, 40
  %v10422 = vpop.permute.xlu0 %10421
  %v10423 = vsel %vm1065, %v10420, 0
  %v10425 = vsel %vm1068, %v10422, 0
  %10427 = vmatprep.subr.mxu0 0.0
  %10428 = vmatpush1.msra.mxu0 %v10425
  %10429 = vmatprep.subr.mxu0 0.0
  %10430 = vmatpush1.msra.mxu0 0.0
  %10431 = vmatprep.subr.mxu0 0.0
  %10432 = vmatpush1.msra.mxu0 0.0
  %10433 = vmatprep.subr.mxu0 0.0
  %10434 = vmatpush1.msra.mxu0 0.0
  %10435 = vmatprep.subr.mxu0 0.0
  %10436 = vmatpush1.msra.mxu0 0.0
  %10437 = vmatprep.subr.mxu0 0.0
  %10438 = vmatpush1.msra.mxu0 0.0
  %10439 = vmatprep.subr.mxu0 0.0
  %10440 = vmatpush1.msra.mxu0 0.0
  %10441 = vmatprep.subr.mxu0 0.0
  %10442 = vmatpush1.msra.mxu0 0.0
  %10443 = vmatprep.subr.mxu0 0.0
  %10444 = vmatpush1.msra.mxu0 0.0
  %10445 = vmatprep.subr.mxu0 0.0
  %10446 = vmatpush1.msra.mxu0 0.0
  %10447 = vmatprep.subr.mxu0 0.0
  %10448 = vmatpush1.msra.mxu0 0.0
  %10449 = vmatprep.subr.mxu0 0.0
  %10450 = vmatpush1.msra.mxu0 0.0
  %10451 = vmatprep.subr.mxu0 0.0
  %10452 = vmatpush1.msra.mxu0 0.0
  %10453 = vmatprep.subr.mxu0 0.0
  %10454 = vmatpush1.msra.mxu0 0.0
  %10455 = vmatprep.subr.mxu0 0.0
  %10456 = vmatpush1.msra.mxu0 0.0
  %10457 = vmatprep.subr.mxu0 0.0
  %10458 = vmatpush1.msra.mxu0 0.0
  %10459 = vmatprep.subr.mxu0 0.0
  %10460 = vmatpush1.msra.mxu0 0.0
  %10461 = vmatprep.subr.mxu0 0.0
  %10462 = vmatpush1.msra.mxu0 0.0
  %10463 = vmatprep.subr.mxu0 0.0
  %10464 = vmatpush1.msra.mxu0 0.0
  %10465 = vmatprep.subr.mxu0 0.0
  %10466 = vmatpush1.msra.mxu0 0.0
  %10467 = vmatprep.subr.mxu0 0.0
  %10468 = vmatpush1.msra.mxu0 0.0
  %10469 = vmatprep.subr.mxu0 0.0
  %10470 = vmatpush1.msra.mxu0 0.0
  %10471 = vmatprep.subr.mxu0 0.0
  %10472 = vmatpush1.msra.mxu0 0.0
  %10473 = vmatprep.subr.mxu0 0.0
  %10474 = vmatpush1.msra.mxu0 0.0
  %10475 = vmatprep.subr.mxu0 0.0
  %10476 = vmatpush1.msra.mxu0 0.0
  %10477 = vmatprep.subr.mxu0 0.0
  %10478 = vmatpush1.msra.mxu0 0.0
  %10479 = vmatprep.subr.mxu0 0.0
  %10480 = vmatpush1.msra.mxu0 0.0
  %10481 = vmatprep.subr.mxu0 0.0
  %10482 = vmatpush1.msra.mxu0 0.0
  %10483 = vmatprep.subr.mxu0 0.0
  %10484 = vmatpush1.msra.mxu0 0.0
  %10485 = vmatprep.subr.mxu0 0.0
  %10486 = vmatpush1.msra.mxu0 0.0
  %10487 = vmatprep.subr.mxu0 0.0
  %10488 = vmatpush1.msra.mxu0 0.0
  %10489 = vmatprep.subr.mxu0 0.0
  %10490 = vmatpush1.msra.mxu0 0.0
  %10491 = vmatprep.mubr.f32.mxu0 0.0
  %10492 = vmatmul.mubr.f32.gmra.mrb[0].mxu0 %v10423
  %v10493 = vpop.f32.mrb[0].mxu0
  %v10494 = vadd.f32 0.0, %v10493
  %v10495 = vpop.f32.mrb[0].mxu0
  %10496 = vdwg.mxu0
  %10499 = vset.pattern.permute.xlu0 0
  %10500 = vperm.xlu0 %10499, %v10199
  %v10501 = vpop.permute.xlu0 %10500
  %10502 = vset.pattern.permute.xlu0 0
  %10503 = vperm.xlu0 %10502, %v10201
  %v10504 = vpop.permute.xlu0 %10503
  %v10505 = vlaneseq
  %v10506 = vshrl.u32 %v10505, 7
  %v10507 = vsub.s32 %v515, %v10506
  %v10508 = vrot.slane %v10501, %v10507
  %v10509 = vlaneseq
  %v10510 = vshrl.u32 %v10509, 7
  %v10511 = vsub.s32 %v515, %v10510
  %v10512 = vrot.slane %v10504, %v10511
  %v10513 = vsel %vm580, %v10512, %v10508
  %10514 = vrot.lane.b32.xlu0 %v364, 40
  %v10515 = vpop.permute.xlu0 %10514
  %v10516 = vsel %vm1065, %v10513, 0
  %v10518 = vsel %vm1068, %v10515, 0
  %10520 = vmatprep.subr.mxu0 0.0
  %10521 = vmatpush1.msra.mxu0 %v10518
  %10522 = vmatprep.subr.mxu0 0.0
  %10523 = vmatpush1.msra.mxu0 0.0
  %10524 = vmatprep.subr.mxu0 0.0
  %10525 = vmatpush1.msra.mxu0 0.0
  %10526 = vmatprep.subr.mxu0 0.0
  %10527 = vmatpush1.msra.mxu0 0.0
  %10528 = vmatprep.subr.mxu0 0.0
  %10529 = vmatpush1.msra.mxu0 0.0
  %10530 = vmatprep.subr.mxu0 0.0
  %10531 = vmatpush1.msra.mxu0 0.0
  %10532 = vmatprep.subr.mxu0 0.0
  %10533 = vmatpush1.msra.mxu0 0.0
  %10534 = vmatprep.subr.mxu0 0.0
  %10535 = vmatpush1.msra.mxu0 0.0
  %10536 = vmatprep.subr.mxu0 0.0
  %10537 = vmatpush1.msra.mxu0 0.0
  %10538 = vmatprep.subr.mxu0 0.0
  %10539 = vmatpush1.msra.mxu0 0.0
  %10540 = vmatprep.subr.mxu0 0.0
  %10541 = vmatpush1.msra.mxu0 0.0
  %10542 = vmatprep.subr.mxu0 0.0
  %10543 = vmatpush1.msra.mxu0 0.0
  %10544 = vmatprep.subr.mxu0 0.0
  %10545 = vmatpush1.msra.mxu0 0.0
  %10546 = vmatprep.subr.mxu0 0.0
  %10547 = vmatpush1.msra.mxu0 0.0
  %10548 = vmatprep.subr.mxu0 0.0
  %10549 = vmatpush1.msra.mxu0 0.0
  %10550 = vmatprep.subr.mxu0 0.0
  %10551 = vmatpush1.msra.mxu0 0.0
  %10552 = vmatprep.subr.mxu0 0.0
  %10553 = vmatpush1.msra.mxu0 0.0
  %10554 = vmatprep.subr.mxu0 0.0
  %10555 = vmatpush1.msra.mxu0 0.0
  %10556 = vmatprep.subr.mxu0 0.0
  %10557 = vmatpush1.msra.mxu0 0.0
  %10558 = vmatprep.subr.mxu0 0.0
  %10559 = vmatpush1.msra.mxu0 0.0
  %10560 = vmatprep.subr.mxu0 0.0
  %10561 = vmatpush1.msra.mxu0 0.0
  %10562 = vmatprep.subr.mxu0 0.0
  %10563 = vmatpush1.msra.mxu0 0.0
  %10564 = vmatprep.subr.mxu0 0.0
  %10565 = vmatpush1.msra.mxu0 0.0
  %10566 = vmatprep.subr.mxu0 0.0
  %10567 = vmatpush1.msra.mxu0 0.0
  %10568 = vmatprep.subr.mxu0 0.0
  %10569 = vmatpush1.msra.mxu0 0.0
  %10570 = vmatprep.subr.mxu0 0.0
  %10571 = vmatpush1.msra.mxu0 0.0
  %10572 = vmatprep.subr.mxu0 0.0
  %10573 = vmatpush1.msra.mxu0 0.0
  %10574 = vmatprep.subr.mxu0 0.0
  %10575 = vmatpush1.msra.mxu0 0.0
  %10576 = vmatprep.subr.mxu0 0.0
  %10577 = vmatpush1.msra.mxu0 0.0
  %10578 = vmatprep.subr.mxu0 0.0
  %10579 = vmatpush1.msra.mxu0 0.0
  %10580 = vmatprep.subr.mxu0 0.0
  %10581 = vmatpush1.msra.mxu0 0.0
  %10582 = vmatprep.subr.mxu0 0.0
  %10583 = vmatpush1.msra.mxu0 0.0
  %10584 = vmatprep.mubr.f32.mxu0 0.0
  %10585 = vmatmul.mubr.f32.gmra.mrb[0].mxu0 %v10516
  %v10586 = vpop.f32.mrb[0].mxu0
  %v10587 = vadd.f32 0.0, %v10586
  %v10588 = vpop.f32.mrb[0].mxu0
  %10589 = vdwg.mxu0
  %10592 = vset.pattern.permute.xlu0 0
  %10593 = vperm.xlu0 %10592, %v10203
  %v10594 = vpop.permute.xlu0 %10593
  %10595 = vset.pattern.permute.xlu0 0
  %10596 = vperm.xlu0 %10595, %v10205
  %v10597 = vpop.permute.xlu0 %10596
  %v10598 = vlaneseq
  %v10599 = vshrl.u32 %v10598, 7
  %v10600 = vsub.s32 %v515, %v10599
  %v10601 = vrot.slane %v10594, %v10600
  %v10602 = vlaneseq
  %v10603 = vshrl.u32 %v10602, 7
  %v10604 = vsub.s32 %v515, %v10603
  %v10605 = vrot.slane %v10597, %v10604
  %v10606 = vsel %vm580, %v10605, %v10601
  %10607 = vrot.lane.b32.xlu0 %v371, 40
  %v10608 = vpop.permute.xlu0 %10607
  %v10609 = vsel %vm1065, %v10606, 0
  %v10611 = vsel %vm1068, %v10608, 0
  %10613 = vmatprep.subr.mxu0 0.0
  %10614 = vmatpush1.msra.mxu0 %v10611
  %10615 = vmatprep.subr.mxu0 0.0
  %10616 = vmatpush1.msra.mxu0 0.0
  %10617 = vmatprep.subr.mxu0 0.0
  %10618 = vmatpush1.msra.mxu0 0.0
  %10619 = vmatprep.subr.mxu0 0.0
  %10620 = vmatpush1.msra.mxu0 0.0
  %10621 = vmatprep.subr.mxu0 0.0
  %10622 = vmatpush1.msra.mxu0 0.0
  %10623 = vmatprep.subr.mxu0 0.0
  %10624 = vmatpush1.msra.mxu0 0.0
  %10625 = vmatprep.subr.mxu0 0.0
  %10626 = vmatpush1.msra.mxu0 0.0
  %10627 = vmatprep.subr.mxu0 0.0
  %10628 = vmatpush1.msra.mxu0 0.0
  %10629 = vmatprep.subr.mxu0 0.0
  %10630 = vmatpush1.msra.mxu0 0.0
  %10631 = vmatprep.subr.mxu0 0.0
  %10632 = vmatpush1.msra.mxu0 0.0
  %10633 = vmatprep.subr.mxu0 0.0
  %10634 = vmatpush1.msra.mxu0 0.0
  %10635 = vmatprep.subr.mxu0 0.0
  %10636 = vmatpush1.msra.mxu0 0.0
  %10637 = vmatprep.subr.mxu0 0.0
  %10638 = vmatpush1.msra.mxu0 0.0
  %10639 = vmatprep.subr.mxu0 0.0
  %10640 = vmatpush1.msra.mxu0 0.0
  %10641 = vmatprep.subr.mxu0 0.0
  %10642 = vmatpush1.msra.mxu0 0.0
  %10643 = vmatprep.subr.mxu0 0.0
  %10644 = vmatpush1.msra.mxu0 0.0
  %10645 = vmatprep.subr.mxu0 0.0
  %10646 = vmatpush1.msra.mxu0 0.0
  %10647 = vmatprep.subr.mxu0 0.0
  %10648 = vmatpush1.msra.mxu0 0.0
  %10649 = vmatprep.subr.mxu0 0.0
  %10650 = vmatpush1.msra.mxu0 0.0
  %10651 = vmatprep.subr.mxu0 0.0
  %10652 = vmatpush1.msra.mxu0 0.0
  %10653 = vmatprep.subr.mxu0 0.0
  %10654 = vmatpush1.msra.mxu0 0.0
  %10655 = vmatprep.subr.mxu0 0.0
  %10656 = vmatpush1.msra.mxu0 0.0
  %10657 = vmatprep.subr.mxu0 0.0
  %10658 = vmatpush1.msra.mxu0 0.0
  %10659 = vmatprep.subr.mxu0 0.0
  %10660 = vmatpush1.msra.mxu0 0.0
  %10661 = vmatprep.subr.mxu0 0.0
  %10662 = vmatpush1.msra.mxu0 0.0
  %10663 = vmatprep.subr.mxu0 0.0
  %10664 = vmatpush1.msra.mxu0 0.0
  %10665 = vmatprep.subr.mxu0 0.0
  %10666 = vmatpush1.msra.mxu0 0.0
  %10667 = vmatprep.subr.mxu0 0.0
  %10668 = vmatpush1.msra.mxu0 0.0
  %10669 = vmatprep.subr.mxu0 0.0
  %10670 = vmatpush1.msra.mxu0 0.0
  %10671 = vmatprep.subr.mxu0 0.0
  %10672 = vmatpush1.msra.mxu0 0.0
  %10673 = vmatprep.subr.mxu0 0.0
  %10674 = vmatpush1.msra.mxu0 0.0
  %10675 = vmatprep.subr.mxu0 0.0
  %10676 = vmatpush1.msra.mxu0 0.0
  %10677 = vmatprep.mubr.f32.mxu0 0.0
  %10678 = vmatmul.mubr.f32.gmra.mrb[0].mxu0 %v10609
  %v10679 = vpop.f32.mrb[0].mxu0
  %v10680 = vadd.f32 0.0, %v10679
  %v10681 = vpop.f32.mrb[0].mxu0
  %10682 = vdwg.mxu0
  %10685 = vset.pattern.permute.xlu0 0
  %10686 = vperm.xlu0 %10685, %v10207
  %v10687 = vpop.permute.xlu0 %10686
  %10688 = vset.pattern.permute.xlu0 0
  %10689 = vperm.xlu0 %10688, %v10209
  %v10690 = vpop.permute.xlu0 %10689
  %v10691 = vlaneseq
  %v10692 = vshrl.u32 %v10691, 7
  %v10693 = vsub.s32 %v515, %v10692
  %v10694 = vrot.slane %v10687, %v10693
  %v10695 = vlaneseq
  %v10696 = vshrl.u32 %v10695, 7
  %v10697 = vsub.s32 %v515, %v10696
  %v10698 = vrot.slane %v10690, %v10697
  %v10699 = vsel %vm580, %v10698, %v10694
  %10700 = vrot.lane.b32.xlu0 %v378, 40
  %v10701 = vpop.permute.xlu0 %10700
  %v10702 = vsel %vm1065, %v10699, 0
  %v10704 = vsel %vm1068, %v10701, 0
  %10706 = vmatprep.subr.mxu0 0.0
  %10707 = vmatpush1.msra.mxu0 %v10704
  %10708 = vmatprep.subr.mxu0 0.0
  %10709 = vmatpush1.msra.mxu0 0.0
  %10710 = vmatprep.subr.mxu0 0.0
  %10711 = vmatpush1.msra.mxu0 0.0
  %10712 = vmatprep.subr.mxu0 0.0
  %10713 = vmatpush1.msra.mxu0 0.0
  %10714 = vmatprep.subr.mxu0 0.0
  %10715 = vmatpush1.msra.mxu0 0.0
  %10716 = vmatprep.subr.mxu0 0.0
  %10717 = vmatpush1.msra.mxu0 0.0
  %10718 = vmatprep.subr.mxu0 0.0
  %10719 = vmatpush1.msra.mxu0 0.0
  %10720 = vmatprep.subr.mxu0 0.0
  %10721 = vmatpush1.msra.mxu0 0.0
  %10722 = vmatprep.subr.mxu0 0.0
  %10723 = vmatpush1.msra.mxu0 0.0
  %10724 = vmatprep.subr.mxu0 0.0
  %10725 = vmatpush1.msra.mxu0 0.0
  %10726 = vmatprep.subr.mxu0 0.0
  %10727 = vmatpush1.msra.mxu0 0.0
  %10728 = vmatprep.subr.mxu0 0.0
  %10729 = vmatpush1.msra.mxu0 0.0
  %10730 = vmatprep.subr.mxu0 0.0
  %10731 = vmatpush1.msra.mxu0 0.0
  %10732 = vmatprep.subr.mxu0 0.0
  %10733 = vmatpush1.msra.mxu0 0.0
  %10734 = vmatprep.subr.mxu0 0.0
  %10735 = vmatpush1.msra.mxu0 0.0
  %10736 = vmatprep.subr.mxu0 0.0
  %10737 = vmatpush1.msra.mxu0 0.0
  %10738 = vmatprep.subr.mxu0 0.0
  %10739 = vmatpush1.msra.mxu0 0.0
  %10740 = vmatprep.subr.mxu0 0.0
  %10741 = vmatpush1.msra.mxu0 0.0
  %10742 = vmatprep.subr.mxu0 0.0
  %10743 = vmatpush1.msra.mxu0 0.0
  %10744 = vmatprep.subr.mxu0 0.0
  %10745 = vmatpush1.msra.mxu0 0.0
  %10746 = vmatprep.subr.mxu0 0.0
  %10747 = vmatpush1.msra.mxu0 0.0
  %10748 = vmatprep.subr.mxu0 0.0
  %10749 = vmatpush1.msra.mxu0 0.0
  %10750 = vmatprep.subr.mxu0 0.0
  %10751 = vmatpush1.msra.mxu0 0.0
  %10752 = vmatprep.subr.mxu0 0.0
  %10753 = vmatpush1.msra.mxu0 0.0
  %10754 = vmatprep.subr.mxu0 0.0
  %10755 = vmatpush1.msra.mxu0 0.0
  %10756 = vmatprep.subr.mxu0 0.0
  %10757 = vmatpush1.msra.mxu0 0.0
  %10758 = vmatprep.subr.mxu0 0.0
  %10759 = vmatpush1.msra.mxu0 0.0
  %10760 = vmatprep.subr.mxu0 0.0
  %10761 = vmatpush1.msra.mxu0 0.0
  %10762 = vmatprep.subr.mxu0 0.0
  %10763 = vmatpush1.msra.mxu0 0.0
  %10764 = vmatprep.subr.mxu0 0.0
  %10765 = vmatpush1.msra.mxu0 0.0
  %10766 = vmatprep.subr.mxu0 0.0
  %10767 = vmatpush1.msra.mxu0 0.0
  %10768 = vmatprep.subr.mxu0 0.0
  %10769 = vmatpush1.msra.mxu0 0.0
  %10770 = vmatprep.mubr.f32.mxu0 0.0
  %10771 = vmatmul.mubr.f32.gmra.mrb[0].mxu0 %v10702
  %v10772 = vpop.f32.mrb[0].mxu0
  %v10773 = vadd.f32 0.0, %v10772
  %v10774 = vpop.f32.mrb[0].mxu0
  %10775 = vdwg.mxu0
  %10778 = vset.pattern.permute.xlu0 0
  %10779 = vperm.xlu0 %10778, %v10211
  %v10780 = vpop.permute.xlu0 %10779
  %10781 = vset.pattern.permute.xlu0 0
  %10782 = vperm.xlu0 %10781, %v10213
  %v10783 = vpop.permute.xlu0 %10782
  %v10784 = vlaneseq
  %v10785 = vshrl.u32 %v10784, 7
  %v10786 = vsub.s32 %v515, %v10785
  %v10787 = vrot.slane %v10780, %v10786
  %v10788 = vlaneseq
  %v10789 = vshrl.u32 %v10788, 7
  %v10790 = vsub.s32 %v515, %v10789
  %v10791 = vrot.slane %v10783, %v10790
  %v10792 = vsel %vm580, %v10791, %v10787
  %10793 = vrot.lane.b32.xlu0 %v385, 40
  %v10794 = vpop.permute.xlu0 %10793
  %v10795 = vsel %vm1065, %v10792, 0
  %v10797 = vsel %vm1068, %v10794, 0
  %10799 = vmatprep.subr.mxu0 0.0
  %10800 = vmatpush1.msra.mxu0 %v10797
  %10801 = vmatprep.subr.mxu0 0.0
  %10802 = vmatpush1.msra.mxu0 0.0
  %10803 = vmatprep.subr.mxu0 0.0
  %10804 = vmatpush1.msra.mxu0 0.0
  %10805 = vmatprep.subr.mxu0 0.0
  %10806 = vmatpush1.msra.mxu0 0.0
  %10807 = vmatprep.subr.mxu0 0.0
  %10808 = vmatpush1.msra.mxu0 0.0
  %10809 = vmatprep.subr.mxu0 0.0
  %10810 = vmatpush1.msra.mxu0 0.0
  %10811 = vmatprep.subr.mxu0 0.0
  %10812 = vmatpush1.msra.mxu0 0.0
  %10813 = vmatprep.subr.mxu0 0.0
  %10814 = vmatpush1.msra.mxu0 0.0
  %10815 = vmatprep.subr.mxu0 0.0
  %10816 = vmatpush1.msra.mxu0 0.0
  %10817 = vmatprep.subr.mxu0 0.0
  %10818 = vmatpush1.msra.mxu0 0.0
  %10819 = vmatprep.subr.mxu0 0.0
  %10820 = vmatpush1.msra.mxu0 0.0
  %10821 = vmatprep.subr.mxu0 0.0
  %10822 = vmatpush1.msra.mxu0 0.0
  %10823 = vmatprep.subr.mxu0 0.0
  %10824 = vmatpush1.msra.mxu0 0.0
  %10825 = vmatprep.subr.mxu0 0.0
  %10826 = vmatpush1.msra.mxu0 0.0
  %10827 = vmatprep.subr.mxu0 0.0
  %10828 = vmatpush1.msra.mxu0 0.0
  %10829 = vmatprep.subr.mxu0 0.0
  %10830 = vmatpush1.msra.mxu0 0.0
  %10831 = vmatprep.subr.mxu0 0.0
  %10832 = vmatpush1.msra.mxu0 0.0
  %10833 = vmatprep.subr.mxu0 0.0
  %10834 = vmatpush1.msra.mxu0 0.0
  %10835 = vmatprep.subr.mxu0 0.0
  %10836 = vmatpush1.msra.mxu0 0.0
  %10837 = vmatprep.subr.mxu0 0.0
  %10838 = vmatpush1.msra.mxu0 0.0
  %10839 = vmatprep.subr.mxu0 0.0
  %10840 = vmatpush1.msra.mxu0 0.0
  %10841 = vmatprep.subr.mxu0 0.0
  %10842 = vmatpush1.msra.mxu0 0.0
  %10843 = vmatprep.subr.mxu0 0.0
  %10844 = vmatpush1.msra.mxu0 0.0
  %10845 = vmatprep.subr.mxu0 0.0
  %10846 = vmatpush1.msra.mxu0 0.0
  %10847 = vmatprep.subr.mxu0 0.0
  %10848 = vmatpush1.msra.mxu0 0.0
  %10849 = vmatprep.subr.mxu0 0.0
  %10850 = vmatpush1.msra.mxu0 0.0
  %10851 = vmatprep.subr.mxu0 0.0
  %10852 = vmatpush1.msra.mxu0 0.0
  %10853 = vmatprep.subr.mxu0 0.0
  %10854 = vmatpush1.msra.mxu0 0.0
  %10855 = vmatprep.subr.mxu0 0.0
  %10856 = vmatpush1.msra.mxu0 0.0
  %10857 = vmatprep.subr.mxu0 0.0
  %10858 = vmatpush1.msra.mxu0 0.0
  %10859 = vmatprep.subr.mxu0 0.0
  %10860 = vmatpush1.msra.mxu0 0.0
  %10861 = vmatprep.subr.mxu0 0.0
  %10862 = vmatpush1.msra.mxu0 0.0
  %10863 = vmatprep.mubr.f32.mxu0 0.0
  %10864 = vmatmul.mubr.f32.gmra.mrb[0].mxu0 %v10795
  %v10865 = vpop.f32.mrb[0].mxu0
  %v10866 = vadd.f32 0.0, %v10865
  %v10867 = vpop.f32.mrb[0].mxu0
  %10868 = vdwg.mxu0
  %10871 = vset.pattern.permute.xlu0 0
  %10872 = vperm.xlu0 %10871, %v10215
  %v10873 = vpop.permute.xlu0 %10872
  %10874 = vset.pattern.permute.xlu0 0
  %10875 = vperm.xlu0 %10874, %v10217
  %v10876 = vpop.permute.xlu0 %10875
  %v10877 = vlaneseq
  %v10878 = vshrl.u32 %v10877, 7
  %v10879 = vsub.s32 %v515, %v10878
  %v10880 = vrot.slane %v10873, %v10879
  %v10881 = vlaneseq
  %v10882 = vshrl.u32 %v10881, 7
  %v10883 = vsub.s32 %v515, %v10882
  %v10884 = vrot.slane %v10876, %v10883
  %v10885 = vsel %vm580, %v10884, %v10880
  %10886 = vrot.lane.b32.xlu0 %v392, 40
  %v10887 = vpop.permute.xlu0 %10886
  %v10888 = vsel %vm1065, %v10885, 0
  %v10890 = vsel %vm1068, %v10887, 0
  %10892 = vmatprep.subr.mxu0 0.0
  %10893 = vmatpush1.msra.mxu0 %v10890
  %10894 = vmatprep.subr.mxu0 0.0
  %10895 = vmatpush1.msra.mxu0 0.0
  %10896 = vmatprep.subr.mxu0 0.0
  %10897 = vmatpush1.msra.mxu0 0.0
  %10898 = vmatprep.subr.mxu0 0.0
  %10899 = vmatpush1.msra.mxu0 0.0
  %10900 = vmatprep.subr.mxu0 0.0
  %10901 = vmatpush1.msra.mxu0 0.0
  %10902 = vmatprep.subr.mxu0 0.0
  %10903 = vmatpush1.msra.mxu0 0.0
  %10904 = vmatprep.subr.mxu0 0.0
  %10905 = vmatpush1.msra.mxu0 0.0
  %10906 = vmatprep.subr.mxu0 0.0
  %10907 = vmatpush1.msra.mxu0 0.0
  %10908 = vmatprep.subr.mxu0 0.0
  %10909 = vmatpush1.msra.mxu0 0.0
  %10910 = vmatprep.subr.mxu0 0.0
  %10911 = vmatpush1.msra.mxu0 0.0
  %10912 = vmatprep.subr.mxu0 0.0
  %10913 = vmatpush1.msra.mxu0 0.0
  %10914 = vmatprep.subr.mxu0 0.0
  %10915 = vmatpush1.msra.mxu0 0.0
  %10916 = vmatprep.subr.mxu0 0.0
  %10917 = vmatpush1.msra.mxu0 0.0
  %10918 = vmatprep.subr.mxu0 0.0
  %10919 = vmatpush1.msra.mxu0 0.0
  %10920 = vmatprep.subr.mxu0 0.0
  %10921 = vmatpush1.msra.mxu0 0.0
  %10922 = vmatprep.subr.mxu0 0.0
  %10923 = vmatpush1.msra.mxu0 0.0
  %10924 = vmatprep.subr.mxu0 0.0
  %10925 = vmatpush1.msra.mxu0 0.0
  %10926 = vmatprep.subr.mxu0 0.0
  %10927 = vmatpush1.msra.mxu0 0.0
  %10928 = vmatprep.subr.mxu0 0.0
  %10929 = vmatpush1.msra.mxu0 0.0
  %10930 = vmatprep.subr.mxu0 0.0
  %10931 = vmatpush1.msra.mxu0 0.0
  %10932 = vmatprep.subr.mxu0 0.0
  %10933 = vmatpush1.msra.mxu0 0.0
  %10934 = vmatprep.subr.mxu0 0.0
  %10935 = vmatpush1.msra.mxu0 0.0
  %10936 = vmatprep.subr.mxu0 0.0
  %10937 = vmatpush1.msra.mxu0 0.0
  %10938 = vmatprep.subr.mxu0 0.0
  %10939 = vmatpush1.msra.mxu0 0.0
  %10940 = vmatprep.subr.mxu0 0.0
  %10941 = vmatpush1.msra.mxu0 0.0
  %10942 = vmatprep.subr.mxu0 0.0
  %10943 = vmatpush1.msra.mxu0 0.0
  %10944 = vmatprep.subr.mxu0 0.0
  %10945 = vmatpush1.msra.mxu0 0.0
  %10946 = vmatprep.subr.mxu0 0.0
  %10947 = vmatpush1.msra.mxu0 0.0
  %10948 = vmatprep.subr.mxu0 0.0
  %10949 = vmatpush1.msra.mxu0 0.0
  %10950 = vmatprep.subr.mxu0 0.0
  %10951 = vmatpush1.msra.mxu0 0.0
  %10952 = vmatprep.subr.mxu0 0.0
  %10953 = vmatpush1.msra.mxu0 0.0
  %10954 = vmatprep.subr.mxu0 0.0
  %10955 = vmatpush1.msra.mxu0 0.0
  %10956 = vmatprep.mubr.f32.mxu0 0.0
  %10957 = vmatmul.mubr.f32.gmra.mrb[0].mxu0 %v10888
  %v10958 = vpop.f32.mrb[0].mxu0
  %v10959 = vadd.f32 0.0, %v10958
  %v10960 = vpop.f32.mrb[0].mxu0
  %10961 = vdwg.mxu0
  %v10970 = vcombine.low %v10308, %v10401
  %v10971 = vcombine.low %v10494, %v10587
  %v10973 = vunpack.c.l.s4 1983009808
  %v10974 = vunpack.c.0.s8 %v10973
  %v10975 = vlaneseq
  %v10976 = vshrl.u32 %v10975, 7
  %v10977 = vsub.s32 %v10974, %v10976
  %v10978 = vrot.slane %v10970, %v10977
  %v10980 = vunpack.c.l.s4 1983009808
  %v10981 = vunpack.c.0.s8 %v10980
  %v10982 = vlaneseq
  %v10983 = vshrl.u32 %v10982, 7
  %v10984 = vsub.s32 %v10981, %v10983
  %v10985 = vrot.slane %v10971, %v10984
  %v10986 = vcombine.low %v10978, %v10985
  %v10987 = vcombine.low %v10680, %v10773
  %v10988 = vcombine.low %v10866, %v10959
  %v10990 = vunpack.c.l.s4 1983009808
  %v10991 = vunpack.c.0.s8 %v10990
  %v10992 = vlaneseq
  %v10993 = vshrl.u32 %v10992, 7
  %v10994 = vsub.s32 %v10991, %v10993
  %v10995 = vrot.slane %v10987, %v10994
  %v10997 = vunpack.c.l.s4 1983009808
  %v10998 = vunpack.c.0.s8 %v10997
  %v10999 = vlaneseq
  %v11000 = vshrl.u32 %v10999, 7
  %v11001 = vsub.s32 %v10998, %v11000
  %v11002 = vrot.slane %v10988, %v11001
  %v11003 = vcombine.low %v10995, %v11002
  %v11004 = vsel %vm3252, %v10986, 0
  %v11006 = vsel %vm3252, %v11003, 0
  %v11009 = vsel %vm3257, %v124, 0
  %11011 = vmatprep.subr.mxu0 0.0
  %11012 = vmatpush1.msra.mxu0 %v11009
  %11013 = vmatprep.subr.mxu0 0.0
  %11014 = vmatpush1.msra.mxu0 0.0
  %11015 = vmatprep.subr.mxu0 0.0
  %11016 = vmatpush1.msra.mxu0 0.0
  %11017 = vmatprep.subr.mxu0 0.0
  %11018 = vmatpush1.msra.mxu0 0.0
  %11019 = vmatprep.subr.mxu0 0.0
  %11020 = vmatpush1.msra.mxu0 0.0
  %11021 = vmatprep.subr.mxu0 0.0
  %11022 = vmatpush1.msra.mxu0 0.0
  %11023 = vmatprep.subr.mxu0 0.0
  %11024 = vmatpush1.msra.mxu0 0.0
  %11025 = vmatprep.subr.mxu0 0.0
  %11026 = vmatpush1.msra.mxu0 0.0
  %11027 = vmatprep.subr.mxu0 0.0
  %11028 = vmatpush1.msra.mxu0 0.0
  %11029 = vmatprep.subr.mxu0 0.0
  %11030 = vmatpush1.msra.mxu0 0.0
  %11031 = vmatprep.subr.mxu0 0.0
  %11032 = vmatpush1.msra.mxu0 0.0
  %11033 = vmatprep.subr.mxu0 0.0
  %11034 = vmatpush1.msra.mxu0 0.0
  %11035 = vmatprep.subr.mxu0 0.0
  %11036 = vmatpush1.msra.mxu0 0.0
  %11037 = vmatprep.subr.mxu0 0.0
  %11038 = vmatpush1.msra.mxu0 0.0
  %11039 = vmatprep.subr.mxu0 0.0
  %11040 = vmatpush1.msra.mxu0 0.0
  %11041 = vmatprep.subr.mxu0 0.0
  %11042 = vmatpush1.msra.mxu0 0.0
  %11043 = vmatprep.subr.mxu0 0.0
  %11044 = vmatpush1.msra.mxu0 0.0
  %11045 = vmatprep.subr.mxu0 0.0
  %11046 = vmatpush1.msra.mxu0 0.0
  %11047 = vmatprep.subr.mxu0 0.0
  %11048 = vmatpush1.msra.mxu0 0.0
  %11049 = vmatprep.subr.mxu0 0.0
  %11050 = vmatpush1.msra.mxu0 0.0
  %11051 = vmatprep.subr.mxu0 0.0
  %11052 = vmatpush1.msra.mxu0 0.0
  %11053 = vmatprep.subr.mxu0 0.0
  %11054 = vmatpush1.msra.mxu0 0.0
  %11055 = vmatprep.subr.mxu0 0.0
  %11056 = vmatpush1.msra.mxu0 0.0
  %11057 = vmatprep.subr.mxu0 0.0
  %11058 = vmatpush1.msra.mxu0 0.0
  %11059 = vmatprep.subr.mxu0 0.0
  %11060 = vmatpush1.msra.mxu0 0.0
  %11061 = vmatprep.subr.mxu0 0.0
  %11062 = vmatpush1.msra.mxu0 0.0
  %11063 = vmatprep.subr.mxu0 0.0
  %11064 = vmatpush1.msra.mxu0 0.0
  %11065 = vmatprep.subr.mxu0 0.0
  %11066 = vmatpush1.msra.mxu0 0.0
  %11067 = vmatprep.subr.mxu0 0.0
  %11068 = vmatpush1.msra.mxu0 0.0
  %11069 = vmatprep.subr.mxu0 0.0
  %11070 = vmatpush1.msra.mxu0 0.0
  %11071 = vmatprep.subr.mxu0 0.0
  %11072 = vmatpush1.msra.mxu0 0.0
  %11073 = vmatprep.subr.mxu0 0.0
  %11074 = vmatpush1.msra.mxu0 0.0
  %11075 = vmatprep.mubr.f32.mxu0 0.0
  %11076 = vmatmul.mubr.f32.gmra.mrb[0].mxu0 %v11004
  %v11077 = vpop.f32.mrb[0].mxu0
  %v11078 = vadd.f32 0.0, %v11077
  %v11079 = vpop.f32.mrb[0].mxu0
  %11080 = vmatprep.mubr.f32.mxu0 0.0
  %11081 = vmatmul.mubr.f32.gmra.mrb[0].mxu0 %v11006
  %v11082 = vpop.f32.mrb[0].mxu0
  %v11083 = vadd.f32 0.0, %v11082
  %v11084 = vpop.f32.mrb[0].mxu0
  %11085 = vdwg.mxu0
  %v11086 = vadd.f32 %v9560, %v11078
  %v11087 = vadd.f32 %v9561, %v11083
  %11088 = vrot.lane.b32.xlu0 %v417, 100
  %v11089 = vpop.permute.xlu0 %11088
  %11090 = vrot.lane.b32.xlu0 %v418, 100
  %v11091 = vpop.permute.xlu0 %11090
  %11092 = vrot.lane.b32.xlu0 %v419, 100
  %v11093 = vpop.permute.xlu0 %11092
  %11094 = vrot.lane.b32.xlu0 %v420, 100
  %v11095 = vpop.permute.xlu0 %11094
  %11096 = vrot.lane.b32.xlu0 %v421, 100
  %v11097 = vpop.permute.xlu0 %11096
  %11098 = vrot.lane.b32.xlu0 %v422, 100
  %v11099 = vpop.permute.xlu0 %11098
  %11100 = vrot.lane.b32.xlu0 %v423, 100
  %v11101 = vpop.permute.xlu0 %11100
  %11102 = vrot.lane.b32.xlu0 %v424, 100
  %v11103 = vpop.permute.xlu0 %11102
  %11104 = vrot.lane.b32.xlu0 %v425, 100
  %v11105 = vpop.permute.xlu0 %11104
  %11106 = vrot.lane.b32.xlu0 %v426, 100
  %v11107 = vpop.permute.xlu0 %11106
  %11108 = vrot.lane.b32.xlu0 %v427, 100
  %v11109 = vpop.permute.xlu0 %11108
  %11110 = vrot.lane.b32.xlu0 %v428, 100
  %v11111 = vpop.permute.xlu0 %11110
  %11112 = vrot.lane.b32.xlu0 %v429, 100
  %v11113 = vpop.permute.xlu0 %11112
  %11114 = vrot.lane.b32.xlu0 %v430, 100
  %v11115 = vpop.permute.xlu0 %11114
  %11116 = vrot.lane.b32.xlu0 %v431, 100
  %v11117 = vpop.permute.xlu0 %11116
  %11118 = vrot.lane.b32.xlu0 %v432, 100
  %v11119 = vpop.permute.xlu0 %11118
  %v11136 = vsel %vm433, %v11089, 0.0
  %11137 = vadd.xlane.f32.xlu0 %v11136
  %v11138 = vpop.xlane.xlu0 %11137
  %v11139 = vsel %vm433, %v11091, 0.0
  %11140 = vadd.xlane.f32.xlu0 %v11139
  %v11141 = vpop.xlane.xlu0 %11140
  %v11142 = vsel %vm433, %v11093, 0.0
  %11143 = vadd.xlane.f32.xlu0 %v11142
  %v11144 = vpop.xlane.xlu0 %11143
  %v11145 = vsel %vm433, %v11095, 0.0
  %11146 = vadd.xlane.f32.xlu0 %v11145
  %v11147 = vpop.xlane.xlu0 %11146
  %v11148 = vsel %vm433, %v11097, 0.0
  %11149 = vadd.xlane.f32.xlu0 %v11148
  %v11150 = vpop.xlane.xlu0 %11149
  %v11151 = vsel %vm433, %v11099, 0.0
  %11152 = vadd.xlane.f32.xlu0 %v11151
  %v11153 = vpop.xlane.xlu0 %11152
  %v11154 = vsel %vm433, %v11101, 0.0
  %11155 = vadd.xlane.f32.xlu0 %v11154
  %v11156 = vpop.xlane.xlu0 %11155
  %v11157 = vsel %vm433, %v11103, 0.0
  %11158 = vadd.xlane.f32.xlu0 %v11157
  %v11159 = vpop.xlane.xlu0 %11158
  %v11160 = vsel %vm433, %v11105, 0.0
  %11161 = vadd.xlane.f32.xlu0 %v11160
  %v11162 = vpop.xlane.xlu0 %11161
  %v11163 = vsel %vm433, %v11107, 0.0
  %11164 = vadd.xlane.f32.xlu0 %v11163
  %v11165 = vpop.xlane.xlu0 %11164
  %v11166 = vsel %vm433, %v11109, 0.0
  %11167 = vadd.xlane.f32.xlu0 %v11166
  %v11168 = vpop.xlane.xlu0 %11167
  %v11169 = vsel %vm433, %v11111, 0.0
  %11170 = vadd.xlane.f32.xlu0 %v11169
  %v11171 = vpop.xlane.xlu0 %11170
  %v11172 = vsel %vm433, %v11113, 0.0
  %11173 = vadd.xlane.f32.xlu0 %v11172
  %v11174 = vpop.xlane.xlu0 %11173
  %v11175 = vsel %vm433, %v11115, 0.0
  %11176 = vadd.xlane.f32.xlu0 %v11175
  %v11177 = vpop.xlane.xlu0 %11176
  %v11178 = vsel %vm433, %v11117, 0.0
  %11179 = vadd.xlane.f32.xlu0 %v11178
  %v11180 = vpop.xlane.xlu0 %11179
  %v11181 = vsel %vm433, %v11119, 0.0
  %11182 = vadd.xlane.f32.xlu0 %v11181
  %v11183 = vpop.xlane.xlu0 %11182
  %v11184 = vmul.f32 %v11138, 0.5
  %v11185 = vmul.f32 %v11141, 0.5
  %v11186 = vmul.f32 %v11144, 0.5
  %v11187 = vmul.f32 %v11147, 0.5
  %v11188 = vmul.f32 %v11150, 0.5
  %v11189 = vmul.f32 %v11153, 0.5
  %v11190 = vmul.f32 %v11156, 0.5
  %v11191 = vmul.f32 %v11159, 0.5
  %v11192 = vmul.f32 %v11162, 0.5
  %v11193 = vmul.f32 %v11165, 0.5
  %v11194 = vmul.f32 %v11168, 0.5
  %v11195 = vmul.f32 %v11171, 0.5
  %v11196 = vmul.f32 %v11174, 0.5
  %v11197 = vmul.f32 %v11177, 0.5
  %v11198 = vmul.f32 %v11180, 0.5
  %v11199 = vmul.f32 %v11183, 0.5
  %v11216 = vlaneseq
  %v11217 = vshrl.u32 %v11216, 7
  %v11218 = vsub.s32 %v515, %v11217
  %v11219 = vrot.slane %v11184, %v11218
  %v11220 = vlaneseq
  %v11221 = vshrl.u32 %v11220, 7
  %v11222 = vsub.s32 %v515, %v11221
  %v11223 = vrot.slane %v11185, %v11222
  %v11224 = vlaneseq
  %v11225 = vshrl.u32 %v11224, 7
  %v11226 = vsub.s32 %v515, %v11225
  %v11227 = vrot.slane %v11186, %v11226
  %v11228 = vlaneseq
  %v11229 = vshrl.u32 %v11228, 7
  %v11230 = vsub.s32 %v515, %v11229
  %v11231 = vrot.slane %v11187, %v11230
  %v11232 = vlaneseq
  %v11233 = vshrl.u32 %v11232, 7
  %v11234 = vsub.s32 %v515, %v11233
  %v11235 = vrot.slane %v11188, %v11234
  %v11236 = vlaneseq
  %v11237 = vshrl.u32 %v11236, 7
  %v11238 = vsub.s32 %v515, %v11237
  %v11239 = vrot.slane %v11189, %v11238
  %v11240 = vlaneseq
  %v11241 = vshrl.u32 %v11240, 7
  %v11242 = vsub.s32 %v515, %v11241
  %v11243 = vrot.slane %v11190, %v11242
  %v11244 = vlaneseq
  %v11245 = vshrl.u32 %v11244, 7
  %v11246 = vsub.s32 %v515, %v11245
  %v11247 = vrot.slane %v11191, %v11246
  %v11248 = vlaneseq
  %v11249 = vshrl.u32 %v11248, 7
  %v11250 = vsub.s32 %v515, %v11249
  %v11251 = vrot.slane %v11192, %v11250
  %v11252 = vlaneseq
  %v11253 = vshrl.u32 %v11252, 7
  %v11254 = vsub.s32 %v515, %v11253
  %v11255 = vrot.slane %v11193, %v11254
  %v11256 = vlaneseq
  %v11257 = vshrl.u32 %v11256, 7
  %v11258 = vsub.s32 %v515, %v11257
  %v11259 = vrot.slane %v11194, %v11258
  %v11260 = vlaneseq
  %v11261 = vshrl.u32 %v11260, 7
  %v11262 = vsub.s32 %v515, %v11261
  %v11263 = vrot.slane %v11195, %v11262
  %v11264 = vlaneseq
  %v11265 = vshrl.u32 %v11264, 7
  %v11266 = vsub.s32 %v515, %v11265
  %v11267 = vrot.slane %v11196, %v11266
  %v11268 = vlaneseq
  %v11269 = vshrl.u32 %v11268, 7
  %v11270 = vsub.s32 %v515, %v11269
  %v11271 = vrot.slane %v11197, %v11270
  %v11272 = vlaneseq
  %v11273 = vshrl.u32 %v11272, 7
  %v11274 = vsub.s32 %v515, %v11273
  %v11275 = vrot.slane %v11198, %v11274
  %v11276 = vlaneseq
  %v11277 = vshrl.u32 %v11276, 7
  %v11278 = vsub.s32 %v515, %v11277
  %v11279 = vrot.slane %v11199, %v11278
  %v11280 = vsel %vm580, %v11223, %v11219
  %v11281 = vsel %vm580, %v11231, %v11227
  %v11282 = vsel %vm580, %v11239, %v11235
  %v11283 = vsel %vm580, %v11247, %v11243
  %v11284 = vsel %vm580, %v11255, %v11251
  %v11285 = vsel %vm580, %v11263, %v11259
  %v11286 = vsel %vm580, %v11271, %v11267
  %v11287 = vsel %vm580, %v11279, %v11275
  %v11296 = vsel %vm597, %v11280, -inf
  %11297 = vmax.xlane.f32.xlu0 %v11296
  %v11298 = vpop.xlane.xlu0 %11297
  %v11299 = vsel %vm597, %v11281, -inf
  %11300 = vmax.xlane.f32.xlu0 %v11299
  %v11301 = vpop.xlane.xlu0 %11300
  %v11302 = vsel %vm597, %v11282, -inf
  %11303 = vmax.xlane.f32.xlu0 %v11302
  %v11304 = vpop.xlane.xlu0 %11303
  %v11305 = vsel %vm597, %v11283, -inf
  %11306 = vmax.xlane.f32.xlu0 %v11305
  %v11307 = vpop.xlane.xlu0 %11306
  %v11308 = vsel %vm597, %v11284, -inf
  %11309 = vmax.xlane.f32.xlu0 %v11308
  %v11310 = vpop.xlane.xlu0 %11309
  %v11311 = vsel %vm597, %v11285, -inf
  %11312 = vmax.xlane.f32.xlu0 %v11311
  %v11313 = vpop.xlane.xlu0 %11312
  %v11314 = vsel %vm597, %v11286, -inf
  %11315 = vmax.xlane.f32.xlu0 %v11314
  %v11316 = vpop.xlane.xlu0 %11315
  %v11317 = vsel %vm597, %v11287, -inf
  %11318 = vmax.xlane.f32.xlu0 %v11317
  %v11319 = vpop.xlane.xlu0 %11318
  %v11328 = vlaneseq
  %v11329 = vshrl.u32 %v11328, 7
  %v11330 = vsub.s32 0, %v11329
  %v11331 = vrot.slane %v11298, %v11330
  %v11332 = vlaneseq
  %v11333 = vshrl.u32 %v11332, 7
  %v11334 = vsub.s32 1, %v11333
  %v11335 = vrot.slane %v11298, %v11334
  %v11336 = vlaneseq
  %v11337 = vshrl.u32 %v11336, 7
  %v11338 = vsub.s32 0, %v11337
  %v11339 = vrot.slane %v11301, %v11338
  %v11340 = vlaneseq
  %v11341 = vshrl.u32 %v11340, 7
  %v11342 = vsub.s32 1, %v11341
  %v11343 = vrot.slane %v11301, %v11342
  %v11344 = vlaneseq
  %v11345 = vshrl.u32 %v11344, 7
  %v11346 = vsub.s32 0, %v11345
  %v11347 = vrot.slane %v11304, %v11346
  %v11348 = vlaneseq
  %v11349 = vshrl.u32 %v11348, 7
  %v11350 = vsub.s32 1, %v11349
  %v11351 = vrot.slane %v11304, %v11350
  %v11352 = vlaneseq
  %v11353 = vshrl.u32 %v11352, 7
  %v11354 = vsub.s32 0, %v11353
  %v11355 = vrot.slane %v11307, %v11354
  %v11356 = vlaneseq
  %v11357 = vshrl.u32 %v11356, 7
  %v11358 = vsub.s32 1, %v11357
  %v11359 = vrot.slane %v11307, %v11358
  %v11360 = vlaneseq
  %v11361 = vshrl.u32 %v11360, 7
  %v11362 = vsub.s32 0, %v11361
  %v11363 = vrot.slane %v11310, %v11362
  %v11364 = vlaneseq
  %v11365 = vshrl.u32 %v11364, 7
  %v11366 = vsub.s32 1, %v11365
  %v11367 = vrot.slane %v11310, %v11366
  %v11368 = vlaneseq
  %v11369 = vshrl.u32 %v11368, 7
  %v11370 = vsub.s32 0, %v11369
  %v11371 = vrot.slane %v11313, %v11370
  %v11372 = vlaneseq
  %v11373 = vshrl.u32 %v11372, 7
  %v11374 = vsub.s32 1, %v11373
  %v11375 = vrot.slane %v11313, %v11374
  %v11376 = vlaneseq
  %v11377 = vshrl.u32 %v11376, 7
  %v11378 = vsub.s32 0, %v11377
  %v11379 = vrot.slane %v11316, %v11378
  %v11380 = vlaneseq
  %v11381 = vshrl.u32 %v11380, 7
  %v11382 = vsub.s32 1, %v11381
  %v11383 = vrot.slane %v11316, %v11382
  %v11384 = vlaneseq
  %v11385 = vshrl.u32 %v11384, 7
  %v11386 = vsub.s32 0, %v11385
  %v11387 = vrot.slane %v11319, %v11386
  %v11388 = vlaneseq
  %v11389 = vshrl.u32 %v11388, 7
  %v11390 = vsub.s32 1, %v11389
  %v11391 = vrot.slane %v11319, %v11390
  %v11408 = vsub.f32 %v11184, %v11331
  %v11409 = vsub.f32 %v11185, %v11335
  %v11410 = vsub.f32 %v11186, %v11339
  %v11411 = vsub.f32 %v11187, %v11343
  %v11412 = vsub.f32 %v11188, %v11347
  %v11413 = vsub.f32 %v11189, %v11351
  %v11414 = vsub.f32 %v11190, %v11355
  %v11415 = vsub.f32 %v11191, %v11359
  %v11416 = vsub.f32 %v11192, %v11363
  %v11417 = vsub.f32 %v11193, %v11367
  %v11418 = vsub.f32 %v11194, %v11371
  %v11419 = vsub.f32 %v11195, %v11375
  %v11420 = vsub.f32 %v11196, %v11379
  %v11421 = vsub.f32 %v11197, %v11383
  %v11422 = vsub.f32 %v11198, %v11387
  %v11423 = vsub.f32 %v11199, %v11391
  %v11424 = vmul.f32 %v11408, 1.442695
  %v11425 = vpow.pop %v11424
  %v11426 = vmul.f32 %v11409, 1.442695
  %v11427 = vpow.pop %v11426
  %v11428 = vmul.f32 %v11410, 1.442695
  %v11429 = vpow.pop %v11428
  %v11430 = vmul.f32 %v11411, 1.442695
  %v11431 = vpow.pop %v11430
  %v11432 = vmul.f32 %v11412, 1.442695
  %v11433 = vpow.pop %v11432
  %v11434 = vmul.f32 %v11413, 1.442695
  %v11435 = vpow.pop %v11434
  %v11436 = vmul.f32 %v11414, 1.442695
  %v11437 = vpow.pop %v11436
  %v11438 = vmul.f32 %v11415, 1.442695
  %v11439 = vpow.pop %v11438
  %v11440 = vmul.f32 %v11416, 1.442695
  %v11441 = vpow.pop %v11440
  %v11442 = vmul.f32 %v11417, 1.442695
  %v11443 = vpow.pop %v11442
  %v11444 = vmul.f32 %v11418, 1.442695
  %v11445 = vpow.pop %v11444
  %v11446 = vmul.f32 %v11419, 1.442695
  %v11447 = vpow.pop %v11446
  %v11448 = vmul.f32 %v11420, 1.442695
  %v11449 = vpow.pop %v11448
  %v11450 = vmul.f32 %v11421, 1.442695
  %v11451 = vpow.pop %v11450
  %v11452 = vmul.f32 %v11422, 1.442695
  %v11453 = vpow.pop %v11452
  %v11454 = vmul.f32 %v11423, 1.442695
  %v11455 = vpow.pop %v11454
  %11472 = vset.pattern.permute.xlu0 0
  %11473 = vperm.xlu0 %11472, %v11425
  %v11474 = vpop.permute.xlu0 %11473
  %11475 = vset.pattern.permute.xlu0 0
  %11476 = vperm.xlu0 %11475, %v11427
  %v11477 = vpop.permute.xlu0 %11476
  %11478 = vset.pattern.permute.xlu0 0
  %11479 = vperm.xlu0 %11478, %v11429
  %v11480 = vpop.permute.xlu0 %11479
  %11481 = vset.pattern.permute.xlu0 0
  %11482 = vperm.xlu0 %11481, %v11431
  %v11483 = vpop.permute.xlu0 %11482
  %11484 = vset.pattern.permute.xlu0 0
  %11485 = vperm.xlu0 %11484, %v11433
  %v11486 = vpop.permute.xlu0 %11485
  %11487 = vset.pattern.permute.xlu0 0
  %11488 = vperm.xlu0 %11487, %v11435
  %v11489 = vpop.permute.xlu0 %11488
  %11490 = vset.pattern.permute.xlu0 0
  %11491 = vperm.xlu0 %11490, %v11437
  %v11492 = vpop.permute.xlu0 %11491
  %11493 = vset.pattern.permute.xlu0 0
  %11494 = vperm.xlu0 %11493, %v11439
  %v11495 = vpop.permute.xlu0 %11494
  %11496 = vset.pattern.permute.xlu0 0
  %11497 = vperm.xlu0 %11496, %v11441
  %v11498 = vpop.permute.xlu0 %11497
  %11499 = vset.pattern.permute.xlu0 0
  %11500 = vperm.xlu0 %11499, %v11443
  %v11501 = vpop.permute.xlu0 %11500
  %11502 = vset.pattern.permute.xlu0 0
  %11503 = vperm.xlu0 %11502, %v11445
  %v11504 = vpop.permute.xlu0 %11503
  %11505 = vset.pattern.permute.xlu0 0
  %11506 = vperm.xlu0 %11505, %v11447
  %v11507 = vpop.permute.xlu0 %11506
  %11508 = vset.pattern.permute.xlu0 0
  %11509 = vperm.xlu0 %11508, %v11449
  %v11510 = vpop.permute.xlu0 %11509
  %11511 = vset.pattern.permute.xlu0 0
  %11512 = vperm.xlu0 %11511, %v11451
  %v11513 = vpop.permute.xlu0 %11512
  %11514 = vset.pattern.permute.xlu0 0
  %11515 = vperm.xlu0 %11514, %v11453
  %v11516 = vpop.permute.xlu0 %11515
  %11517 = vset.pattern.permute.xlu0 0
  %11518 = vperm.xlu0 %11517, %v11455
  %v11519 = vpop.permute.xlu0 %11518
  %v11520 = vlaneseq
  %v11521 = vshrl.u32 %v11520, 7
  %v11522 = vsub.s32 %v515, %v11521
  %v11523 = vrot.slane %v11474, %v11522
  %v11524 = vlaneseq
  %v11525 = vshrl.u32 %v11524, 7
  %v11526 = vsub.s32 %v515, %v11525
  %v11527 = vrot.slane %v11477, %v11526
  %v11528 = vlaneseq
  %v11529 = vshrl.u32 %v11528, 7
  %v11530 = vsub.s32 %v515, %v11529
  %v11531 = vrot.slane %v11480, %v11530
  %v11532 = vlaneseq
  %v11533 = vshrl.u32 %v11532, 7
  %v11534 = vsub.s32 %v515, %v11533
  %v11535 = vrot.slane %v11483, %v11534
  %v11536 = vlaneseq
  %v11537 = vshrl.u32 %v11536, 7
  %v11538 = vsub.s32 %v515, %v11537
  %v11539 = vrot.slane %v11486, %v11538
  %v11540 = vlaneseq
  %v11541 = vshrl.u32 %v11540, 7
  %v11542 = vsub.s32 %v515, %v11541
  %v11543 = vrot.slane %v11489, %v11542
  %v11544 = vlaneseq
  %v11545 = vshrl.u32 %v11544, 7
  %v11546 = vsub.s32 %v515, %v11545
  %v11547 = vrot.slane %v11492, %v11546
  %v11548 = vlaneseq
  %v11549 = vshrl.u32 %v11548, 7
  %v11550 = vsub.s32 %v515, %v11549
  %v11551 = vrot.slane %v11495, %v11550
  %v11552 = vlaneseq
  %v11553 = vshrl.u32 %v11552, 7
  %v11554 = vsub.s32 %v515, %v11553
  %v11555 = vrot.slane %v11498, %v11554
  %v11556 = vlaneseq
  %v11557 = vshrl.u32 %v11556, 7
  %v11558 = vsub.s32 %v515, %v11557
  %v11559 = vrot.slane %v11501, %v11558
  %v11560 = vlaneseq
  %v11561 = vshrl.u32 %v11560, 7
  %v11562 = vsub.s32 %v515, %v11561
  %v11563 = vrot.slane %v11504, %v11562
  %v11564 = vlaneseq
  %v11565 = vshrl.u32 %v11564, 7
  %v11566 = vsub.s32 %v515, %v11565
  %v11567 = vrot.slane %v11507, %v11566
  %v11568 = vlaneseq
  %v11569 = vshrl.u32 %v11568, 7
  %v11570 = vsub.s32 %v515, %v11569
  %v11571 = vrot.slane %v11510, %v11570
  %v11572 = vlaneseq
  %v11573 = vshrl.u32 %v11572, 7
  %v11574 = vsub.s32 %v515, %v11573
  %v11575 = vrot.slane %v11513, %v11574
  %v11576 = vlaneseq
  %v11577 = vshrl.u32 %v11576, 7
  %v11578 = vsub.s32 %v515, %v11577
  %v11579 = vrot.slane %v11516, %v11578
  %v11580 = vlaneseq
  %v11581 = vshrl.u32 %v11580, 7
  %v11582 = vsub.s32 %v515, %v11581
  %v11583 = vrot.slane %v11519, %v11582
  %v11584 = vsel %vm580, %v11527, %v11523
  %v11585 = vsel %vm580, %v11535, %v11531
  %v11586 = vsel %vm580, %v11543, %v11539
  %v11587 = vsel %vm580, %v11551, %v11547
  %v11588 = vsel %vm580, %v11559, %v11555
  %v11589 = vsel %vm580, %v11567, %v11563
  %v11590 = vsel %vm580, %v11575, %v11571
  %v11591 = vsel %vm580, %v11583, %v11579
  %v11600 = vsel %vm597, %v11584, 0.0
  %11601 = vadd.xlane.f32.xlu0 %v11600
  %v11602 = vpop.xlane.xlu0 %11601
  %v11603 = vsel %vm597, %v11585, 0.0
  %11604 = vadd.xlane.f32.xlu0 %v11603
  %v11605 = vpop.xlane.xlu0 %11604
  %v11606 = vsel %vm597, %v11586, 0.0
  %11607 = vadd.xlane.f32.xlu0 %v11606
  %v11608 = vpop.xlane.xlu0 %11607
  %v11609 = vsel %vm597, %v11587, 0.0
  %11610 = vadd.xlane.f32.xlu0 %v11609
  %v11611 = vpop.xlane.xlu0 %11610
  %v11612 = vsel %vm597, %v11588, 0.0
  %11613 = vadd.xlane.f32.xlu0 %v11612
  %v11614 = vpop.xlane.xlu0 %11613
  %v11615 = vsel %vm597, %v11589, 0.0
  %11616 = vadd.xlane.f32.xlu0 %v11615
  %v11617 = vpop.xlane.xlu0 %11616
  %v11618 = vsel %vm597, %v11590, 0.0
  %11619 = vadd.xlane.f32.xlu0 %v11618
  %v11620 = vpop.xlane.xlu0 %11619
  %v11621 = vsel %vm597, %v11591, 0.0
  %11622 = vadd.xlane.f32.xlu0 %v11621
  %v11623 = vpop.xlane.xlu0 %11622
  %v11632 = vlaneseq
  %v11633 = vshrl.u32 %v11632, 7
  %v11634 = vsub.s32 0, %v11633
  %v11635 = vrot.slane %v11602, %v11634
  %v11636 = vlaneseq
  %v11637 = vshrl.u32 %v11636, 7
  %v11638 = vsub.s32 1, %v11637
  %v11639 = vrot.slane %v11602, %v11638
  %v11640 = vlaneseq
  %v11641 = vshrl.u32 %v11640, 7
  %v11642 = vsub.s32 0, %v11641
  %v11643 = vrot.slane %v11605, %v11642
  %v11644 = vlaneseq
  %v11645 = vshrl.u32 %v11644, 7
  %v11646 = vsub.s32 1, %v11645
  %v11647 = vrot.slane %v11605, %v11646
  %v11648 = vlaneseq
  %v11649 = vshrl.u32 %v11648, 7
  %v11650 = vsub.s32 0, %v11649
  %v11651 = vrot.slane %v11608, %v11650
  %v11652 = vlaneseq
  %v11653 = vshrl.u32 %v11652, 7
  %v11654 = vsub.s32 1, %v11653
  %v11655 = vrot.slane %v11608, %v11654
  %v11656 = vlaneseq
  %v11657 = vshrl.u32 %v11656, 7
  %v11658 = vsub.s32 0, %v11657
  %v11659 = vrot.slane %v11611, %v11658
  %v11660 = vlaneseq
  %v11661 = vshrl.u32 %v11660, 7
  %v11662 = vsub.s32 1, %v11661
  %v11663 = vrot.slane %v11611, %v11662
  %v11664 = vlaneseq
  %v11665 = vshrl.u32 %v11664, 7
  %v11666 = vsub.s32 0, %v11665
  %v11667 = vrot.slane %v11614, %v11666
  %v11668 = vlaneseq
  %v11669 = vshrl.u32 %v11668, 7
  %v11670 = vsub.s32 1, %v11669
  %v11671 = vrot.slane %v11614, %v11670
  %v11672 = vlaneseq
  %v11673 = vshrl.u32 %v11672, 7
  %v11674 = vsub.s32 0, %v11673
  %v11675 = vrot.slane %v11617, %v11674
  %v11676 = vlaneseq
  %v11677 = vshrl.u32 %v11676, 7
  %v11678 = vsub.s32 1, %v11677
  %v11679 = vrot.slane %v11617, %v11678
  %v11680 = vlaneseq
  %v11681 = vshrl.u32 %v11680, 7
  %v11682 = vsub.s32 0, %v11681
  %v11683 = vrot.slane %v11620, %v11682
  %v11684 = vlaneseq
  %v11685 = vshrl.u32 %v11684, 7
  %v11686 = vsub.s32 1, %v11685
  %v11687 = vrot.slane %v11620, %v11686
  %v11688 = vlaneseq
  %v11689 = vshrl.u32 %v11688, 7
  %v11690 = vsub.s32 0, %v11689
  %v11691 = vrot.slane %v11623, %v11690
  %v11692 = vlaneseq
  %v11693 = vshrl.u32 %v11692, 7
  %v11694 = vsub.s32 1, %v11693
  %v11695 = vrot.slane %v11623, %v11694
  %v11712 = vrcp.pop %v11635
  %v11713 = vmul.f32 %v11425, %v11712
  %v11714 = vrcp.pop %v11639
  %v11715 = vmul.f32 %v11427, %v11714
  %v11716 = vrcp.pop %v11643
  %v11717 = vmul.f32 %v11429, %v11716
  %v11718 = vrcp.pop %v11647
  %v11719 = vmul.f32 %v11431, %v11718
  %v11720 = vrcp.pop %v11651
  %v11721 = vmul.f32 %v11433, %v11720
  %v11722 = vrcp.pop %v11655
  %v11723 = vmul.f32 %v11435, %v11722
  %v11724 = vrcp.pop %v11659
  %v11725 = vmul.f32 %v11437, %v11724
  %v11726 = vrcp.pop %v11663
  %v11727 = vmul.f32 %v11439, %v11726
  %v11728 = vrcp.pop %v11667
  %v11729 = vmul.f32 %v11441, %v11728
  %v11730 = vrcp.pop %v11671
  %v11731 = vmul.f32 %v11443, %v11730
  %v11732 = vrcp.pop %v11675
  %v11733 = vmul.f32 %v11445, %v11732
  %v11734 = vrcp.pop %v11679
  %v11735 = vmul.f32 %v11447, %v11734
  %v11736 = vrcp.pop %v11683
  %v11737 = vmul.f32 %v11449, %v11736
  %v11738 = vrcp.pop %v11687
  %v11739 = vmul.f32 %v11451, %v11738
  %v11740 = vrcp.pop %v11691
  %v11741 = vmul.f32 %v11453, %v11740
  %v11742 = vrcp.pop %v11695
  %v11743 = vmul.f32 %v11455, %v11742
  %11746 = vset.pattern.permute.xlu0 0
  %11747 = vperm.xlu0 %11746, %v11713
  %v11748 = vpop.permute.xlu0 %11747
  %11749 = vset.pattern.permute.xlu0 0
  %11750 = vperm.xlu0 %11749, %v11715
  %v11751 = vpop.permute.xlu0 %11750
  %v11752 = vlaneseq
  %v11753 = vshrl.u32 %v11752, 7
  %v11754 = vsub.s32 %v515, %v11753
  %v11755 = vrot.slane %v11748, %v11754
  %v11756 = vlaneseq
  %v11757 = vshrl.u32 %v11756, 7
  %v11758 = vsub.s32 %v515, %v11757
  %v11759 = vrot.slane %v11751, %v11758
  %v11760 = vsel %vm580, %v11759, %v11755
  %11761 = vrot.lane.b32.xlu0 %v343, 36
  %v11762 = vpop.permute.xlu0 %11761
  %v11763 = vsel %vm1065, %v11760, 0
  %v11765 = vsel %vm1068, %v11762, 0
  %11767 = vmatprep.subr.mxu0 0.0
  %11768 = vmatpush1.msra.mxu0 %v11765
  %11769 = vmatprep.subr.mxu0 0.0
  %11770 = vmatpush1.msra.mxu0 0.0
  %11771 = vmatprep.subr.mxu0 0.0
  %11772 = vmatpush1.msra.mxu0 0.0
  %11773 = vmatprep.subr.mxu0 0.0
  %11774 = vmatpush1.msra.mxu0 0.0
  %11775 = vmatprep.subr.mxu0 0.0
  %11776 = vmatpush1.msra.mxu0 0.0
  %11777 = vmatprep.subr.mxu0 0.0
  %11778 = vmatpush1.msra.mxu0 0.0
  %11779 = vmatprep.subr.mxu0 0.0
  %11780 = vmatpush1.msra.mxu0 0.0
  %11781 = vmatprep.subr.mxu0 0.0
  %11782 = vmatpush1.msra.mxu0 0.0
  %11783 = vmatprep.subr.mxu0 0.0
  %11784 = vmatpush1.msra.mxu0 0.0
  %11785 = vmatprep.subr.mxu0 0.0
  %11786 = vmatpush1.msra.mxu0 0.0
  %11787 = vmatprep.subr.mxu0 0.0
  %11788 = vmatpush1.msra.mxu0 0.0
  %11789 = vmatprep.subr.mxu0 0.0
  %11790 = vmatpush1.msra.mxu0 0.0
  %11791 = vmatprep.subr.mxu0 0.0
  %11792 = vmatpush1.msra.mxu0 0.0
  %11793 = vmatprep.subr.mxu0 0.0
  %11794 = vmatpush1.msra.mxu0 0.0
  %11795 = vmatprep.subr.mxu0 0.0
  %11796 = vmatpush1.msra.mxu0 0.0
  %11797 = vmatprep.subr.mxu0 0.0
  %11798 = vmatpush1.msra.mxu0 0.0
  %11799 = vmatprep.subr.mxu0 0.0
  %11800 = vmatpush1.msra.mxu0 0.0
  %11801 = vmatprep.subr.mxu0 0.0
  %11802 = vmatpush1.msra.mxu0 0.0
  %11803 = vmatprep.subr.mxu0 0.0
  %11804 = vmatpush1.msra.mxu0 0.0
  %11805 = vmatprep.subr.mxu0 0.0
  %11806 = vmatpush1.msra.mxu0 0.0
  %11807 = vmatprep.subr.mxu0 0.0
  %11808 = vmatpush1.msra.mxu0 0.0
  %11809 = vmatprep.subr.mxu0 0.0
  %11810 = vmatpush1.msra.mxu0 0.0
  %11811 = vmatprep.subr.mxu0 0.0
  %11812 = vmatpush1.msra.mxu0 0.0
  %11813 = vmatprep.subr.mxu0 0.0
  %11814 = vmatpush1.msra.mxu0 0.0
  %11815 = vmatprep.subr.mxu0 0.0
  %11816 = vmatpush1.msra.mxu0 0.0
  %11817 = vmatprep.subr.mxu0 0.0
  %11818 = vmatpush1.msra.mxu0 0.0
  %11819 = vmatprep.subr.mxu0 0.0
  %11820 = vmatpush1.msra.mxu0 0.0
  %11821 = vmatprep.subr.mxu0 0.0
  %11822 = vmatpush1.msra.mxu0 0.0
  %11823 = vmatprep.subr.mxu0 0.0
  %11824 = vmatpush1.msra.mxu0 0.0
  %11825 = vmatprep.subr.mxu0 0.0
  %11826 = vmatpush1.msra.mxu0 0.0
  %11827 = vmatprep.subr.mxu0 0.0
  %11828 = vmatpush1.msra.mxu0 0.0
  %11829 = vmatprep.subr.mxu0 0.0
  %11830 = vmatpush1.msra.mxu0 0.0
  %11831 = vmatprep.mubr.f32.mxu0 0.0
  %11832 = vmatmul.mubr.f32.gmra.mrb[0].mxu0 %v11763
  %v11833 = vpop.f32.mrb[0].mxu0
  %v11834 = vadd.f32 0.0, %v11833
  %v11835 = vpop.f32.mrb[0].mxu0
  %11836 = vdwg.mxu0
  %11839 = vset.pattern.permute.xlu0 0
  %11840 = vperm.xlu0 %11839, %v11717
  %v11841 = vpop.permute.xlu0 %11840
  %11842 = vset.pattern.permute.xlu0 0
  %11843 = vperm.xlu0 %11842, %v11719
  %v11844 = vpop.permute.xlu0 %11843
  %v11845 = vlaneseq
  %v11846 = vshrl.u32 %v11845, 7
  %v11847 = vsub.s32 %v515, %v11846
  %v11848 = vrot.slane %v11841, %v11847
  %v11849 = vlaneseq
  %v11850 = vshrl.u32 %v11849, 7
  %v11851 = vsub.s32 %v515, %v11850
  %v11852 = vrot.slane %v11844, %v11851
  %v11853 = vsel %vm580, %v11852, %v11848
  %11854 = vrot.lane.b32.xlu0 %v350, 36
  %v11855 = vpop.permute.xlu0 %11854
  %v11856 = vsel %vm1065, %v11853, 0
  %v11858 = vsel %vm1068, %v11855, 0
  %11860 = vmatprep.subr.mxu0 0.0
  %11861 = vmatpush1.msra.mxu0 %v11858
  %11862 = vmatprep.subr.mxu0 0.0
  %11863 = vmatpush1.msra.mxu0 0.0
  %11864 = vmatprep.subr.mxu0 0.0
  %11865 = vmatpush1.msra.mxu0 0.0
  %11866 = vmatprep.subr.mxu0 0.0
  %11867 = vmatpush1.msra.mxu0 0.0
  %11868 = vmatprep.subr.mxu0 0.0
  %11869 = vmatpush1.msra.mxu0 0.0
  %11870 = vmatprep.subr.mxu0 0.0
  %11871 = vmatpush1.msra.mxu0 0.0
  %11872 = vmatprep.subr.mxu0 0.0
  %11873 = vmatpush1.msra.mxu0 0.0
  %11874 = vmatprep.subr.mxu0 0.0
  %11875 = vmatpush1.msra.mxu0 0.0
  %11876 = vmatprep.subr.mxu0 0.0
  %11877 = vmatpush1.msra.mxu0 0.0
  %11878 = vmatprep.subr.mxu0 0.0
  %11879 = vmatpush1.msra.mxu0 0.0
  %11880 = vmatprep.subr.mxu0 0.0
  %11881 = vmatpush1.msra.mxu0 0.0
  %11882 = vmatprep.subr.mxu0 0.0
  %11883 = vmatpush1.msra.mxu0 0.0
  %11884 = vmatprep.subr.mxu0 0.0
  %11885 = vmatpush1.msra.mxu0 0.0
  %11886 = vmatprep.subr.mxu0 0.0
  %11887 = vmatpush1.msra.mxu0 0.0
  %11888 = vmatprep.subr.mxu0 0.0
  %11889 = vmatpush1.msra.mxu0 0.0
  %11890 = vmatprep.subr.mxu0 0.0
  %11891 = vmatpush1.msra.mxu0 0.0
  %11892 = vmatprep.subr.mxu0 0.0
  %11893 = vmatpush1.msra.mxu0 0.0
  %11894 = vmatprep.subr.mxu0 0.0
  %11895 = vmatpush1.msra.mxu0 0.0
  %11896 = vmatprep.subr.mxu0 0.0
  %11897 = vmatpush1.msra.mxu0 0.0
  %11898 = vmatprep.subr.mxu0 0.0
  %11899 = vmatpush1.msra.mxu0 0.0
  %11900 = vmatprep.subr.mxu0 0.0
  %11901 = vmatpush1.msra.mxu0 0.0
  %11902 = vmatprep.subr.mxu0 0.0
  %11903 = vmatpush1.msra.mxu0 0.0
  %11904 = vmatprep.subr.mxu0 0.0
  %11905 = vmatpush1.msra.mxu0 0.0
  %11906 = vmatprep.subr.mxu0 0.0
  %11907 = vmatpush1.msra.mxu0 0.0
  %11908 = vmatprep.subr.mxu0 0.0
  %11909 = vmatpush1.msra.mxu0 0.0
  %11910 = vmatprep.subr.mxu0 0.0
  %11911 = vmatpush1.msra.mxu0 0.0
  %11912 = vmatprep.subr.mxu0 0.0
  %11913 = vmatpush1.msra.mxu0 0.0
  %11914 = vmatprep.subr.mxu0 0.0
  %11915 = vmatpush1.msra.mxu0 0.0
  %11916 = vmatprep.subr.mxu0 0.0
  %11917 = vmatpush1.msra.mxu0 0.0
  %11918 = vmatprep.subr.mxu0 0.0
  %11919 = vmatpush1.msra.mxu0 0.0
  %11920 = vmatprep.subr.mxu0 0.0
  %11921 = vmatpush1.msra.mxu0 0.0
  %11922 = vmatprep.subr.mxu0 0.0
  %11923 = vmatpush1.msra.mxu0 0.0
  %11924 = vmatprep.mubr.f32.mxu0 0.0
  %11925 = vmatmul.mubr.f32.gmra.mrb[0].mxu0 %v11856
  %v11926 = vpop.f32.mrb[0].mxu0
  %v11927 = vadd.f32 0.0, %v11926
  %v11928 = vpop.f32.mrb[0].mxu0
  %11929 = vdwg.mxu0
  %11932 = vset.pattern.permute.xlu0 0
  %11933 = vperm.xlu0 %11932, %v11721
  %v11934 = vpop.permute.xlu0 %11933
  %11935 = vset.pattern.permute.xlu0 0
  %11936 = vperm.xlu0 %11935, %v11723
  %v11937 = vpop.permute.xlu0 %11936
  %v11938 = vlaneseq
  %v11939 = vshrl.u32 %v11938, 7
  %v11940 = vsub.s32 %v515, %v11939
  %v11941 = vrot.slane %v11934, %v11940
  %v11942 = vlaneseq
  %v11943 = vshrl.u32 %v11942, 7
  %v11944 = vsub.s32 %v515, %v11943
  %v11945 = vrot.slane %v11937, %v11944
  %v11946 = vsel %vm580, %v11945, %v11941
  %11947 = vrot.lane.b32.xlu0 %v357, 36
  %v11948 = vpop.permute.xlu0 %11947
  %v11949 = vsel %vm1065, %v11946, 0
  %v11951 = vsel %vm1068, %v11948, 0
  %11953 = vmatprep.subr.mxu0 0.0
  %11954 = vmatpush1.msra.mxu0 %v11951
  %11955 = vmatprep.subr.mxu0 0.0
  %11956 = vmatpush1.msra.mxu0 0.0
  %11957 = vmatprep.subr.mxu0 0.0
  %11958 = vmatpush1.msra.mxu0 0.0
  %11959 = vmatprep.subr.mxu0 0.0
  %11960 = vmatpush1.msra.mxu0 0.0
  %11961 = vmatprep.subr.mxu0 0.0
  %11962 = vmatpush1.msra.mxu0 0.0
  %11963 = vmatprep.subr.mxu0 0.0
  %11964 = vmatpush1.msra.mxu0 0.0
  %11965 = vmatprep.subr.mxu0 0.0
  %11966 = vmatpush1.msra.mxu0 0.0
  %11967 = vmatprep.subr.mxu0 0.0
  %11968 = vmatpush1.msra.mxu0 0.0
  %11969 = vmatprep.subr.mxu0 0.0
  %11970 = vmatpush1.msra.mxu0 0.0
  %11971 = vmatprep.subr.mxu0 0.0
  %11972 = vmatpush1.msra.mxu0 0.0
  %11973 = vmatprep.subr.mxu0 0.0
  %11974 = vmatpush1.msra.mxu0 0.0
  %11975 = vmatprep.subr.mxu0 0.0
  %11976 = vmatpush1.msra.mxu0 0.0
  %11977 = vmatprep.subr.mxu0 0.0
  %11978 = vmatpush1.msra.mxu0 0.0
  %11979 = vmatprep.subr.mxu0 0.0
  %11980 = vmatpush1.msra.mxu0 0.0
  %11981 = vmatprep.subr.mxu0 0.0
  %11982 = vmatpush1.msra.mxu0 0.0
  %11983 = vmatprep.subr.mxu0 0.0
  %11984 = vmatpush1.msra.mxu0 0.0
  %11985 = vmatprep.subr.mxu0 0.0
  %11986 = vmatpush1.msra.mxu0 0.0
  %11987 = vmatprep.subr.mxu0 0.0
  %11988 = vmatpush1.msra.mxu0 0.0
  %11989 = vmatprep.subr.mxu0 0.0
  %11990 = vmatpush1.msra.mxu0 0.0
  %11991 = vmatprep.subr.mxu0 0.0
  %11992 = vmatpush1.msra.mxu0 0.0
  %11993 = vmatprep.subr.mxu0 0.0
  %11994 = vmatpush1.msra.mxu0 0.0
  %11995 = vmatprep.subr.mxu0 0.0
  %11996 = vmatpush1.msra.mxu0 0.0
  %11997 = vmatprep.subr.mxu0 0.0
  %11998 = vmatpush1.msra.mxu0 0.0
  %11999 = vmatprep.subr.mxu0 0.0
  %12000 = vmatpush1.msra.mxu0 0.0
  %12001 = vmatprep.subr.mxu0 0.0
  %12002 = vmatpush1.msra.mxu0 0.0
  %12003 = vmatprep.subr.mxu0 0.0
  %12004 = vmatpush1.msra.mxu0 0.0
  %12005 = vmatprep.subr.mxu0 0.0
  %12006 = vmatpush1.msra.mxu0 0.0
  %12007 = vmatprep.subr.mxu0 0.0
  %12008 = vmatpush1.msra.mxu0 0.0
  %12009 = vmatprep.subr.mxu0 0.0
  %12010 = vmatpush1.msra.mxu0 0.0
  %12011 = vmatprep.subr.mxu0 0.0
  %12012 = vmatpush1.msra.mxu0 0.0
  %12013 = vmatprep.subr.mxu0 0.0
  %12014 = vmatpush1.msra.mxu0 0.0
  %12015 = vmatprep.subr.mxu0 0.0
  %12016 = vmatpush1.msra.mxu0 0.0
  %12017 = vmatprep.mubr.f32.mxu0 0.0
  %12018 = vmatmul.mubr.f32.gmra.mrb[0].mxu0 %v11949
  %v12019 = vpop.f32.mrb[0].mxu0
  %v12020 = vadd.f32 0.0, %v12019
  %v12021 = vpop.f32.mrb[0].mxu0
  %12022 = vdwg.mxu0
  %12025 = vset.pattern.permute.xlu0 0
  %12026 = vperm.xlu0 %12025, %v11725
  %v12027 = vpop.permute.xlu0 %12026
  %12028 = vset.pattern.permute.xlu0 0
  %12029 = vperm.xlu0 %12028, %v11727
  %v12030 = vpop.permute.xlu0 %12029
  %v12031 = vlaneseq
  %v12032 = vshrl.u32 %v12031, 7
  %v12033 = vsub.s32 %v515, %v12032
  %v12034 = vrot.slane %v12027, %v12033
  %v12035 = vlaneseq
  %v12036 = vshrl.u32 %v12035, 7
  %v12037 = vsub.s32 %v515, %v12036
  %v12038 = vrot.slane %v12030, %v12037
  %v12039 = vsel %vm580, %v12038, %v12034
  %12040 = vrot.lane.b32.xlu0 %v364, 36
  %v12041 = vpop.permute.xlu0 %12040
  %v12042 = vsel %vm1065, %v12039, 0
  %v12044 = vsel %vm1068, %v12041, 0
  %12046 = vmatprep.subr.mxu0 0.0
  %12047 = vmatpush1.msra.mxu0 %v12044
  %12048 = vmatprep.subr.mxu0 0.0
  %12049 = vmatpush1.msra.mxu0 0.0
  %12050 = vmatprep.subr.mxu0 0.0
  %12051 = vmatpush1.msra.mxu0 0.0
  %12052 = vmatprep.subr.mxu0 0.0
  %12053 = vmatpush1.msra.mxu0 0.0
  %12054 = vmatprep.subr.mxu0 0.0
  %12055 = vmatpush1.msra.mxu0 0.0
  %12056 = vmatprep.subr.mxu0 0.0
  %12057 = vmatpush1.msra.mxu0 0.0
  %12058 = vmatprep.subr.mxu0 0.0
  %12059 = vmatpush1.msra.mxu0 0.0
  %12060 = vmatprep.subr.mxu0 0.0
  %12061 = vmatpush1.msra.mxu0 0.0
  %12062 = vmatprep.subr.mxu0 0.0
  %12063 = vmatpush1.msra.mxu0 0.0
  %12064 = vmatprep.subr.mxu0 0.0
  %12065 = vmatpush1.msra.mxu0 0.0
  %12066 = vmatprep.subr.mxu0 0.0
  %12067 = vmatpush1.msra.mxu0 0.0
  %12068 = vmatprep.subr.mxu0 0.0
  %12069 = vmatpush1.msra.mxu0 0.0
  %12070 = vmatprep.subr.mxu0 0.0
  %12071 = vmatpush1.msra.mxu0 0.0
  %12072 = vmatprep.subr.mxu0 0.0
  %12073 = vmatpush1.msra.mxu0 0.0
  %12074 = vmatprep.subr.mxu0 0.0
  %12075 = vmatpush1.msra.mxu0 0.0
  %12076 = vmatprep.subr.mxu0 0.0
  %12077 = vmatpush1.msra.mxu0 0.0
  %12078 = vmatprep.subr.mxu0 0.0
  %12079 = vmatpush1.msra.mxu0 0.0
  %12080 = vmatprep.subr.mxu0 0.0
  %12081 = vmatpush1.msra.mxu0 0.0
  %12082 = vmatprep.subr.mxu0 0.0
  %12083 = vmatpush1.msra.mxu0 0.0
  %12084 = vmatprep.subr.mxu0 0.0
  %12085 = vmatpush1.msra.mxu0 0.0
  %12086 = vmatprep.subr.mxu0 0.0
  %12087 = vmatpush1.msra.mxu0 0.0
  %12088 = vmatprep.subr.mxu0 0.0
  %12089 = vmatpush1.msra.mxu0 0.0
  %12090 = vmatprep.subr.mxu0 0.0
  %12091 = vmatpush1.msra.mxu0 0.0
  %12092 = vmatprep.subr.mxu0 0.0
  %12093 = vmatpush1.msra.mxu0 0.0
  %12094 = vmatprep.subr.mxu0 0.0
  %12095 = vmatpush1.msra.mxu0 0.0
  %12096 = vmatprep.subr.mxu0 0.0
  %12097 = vmatpush1.msra.mxu0 0.0
  %12098 = vmatprep.subr.mxu0 0.0
  %12099 = vmatpush1.msra.mxu0 0.0
  %12100 = vmatprep.subr.mxu0 0.0
  %12101 = vmatpush1.msra.mxu0 0.0
  %12102 = vmatprep.subr.mxu0 0.0
  %12103 = vmatpush1.msra.mxu0 0.0
  %12104 = vmatprep.subr.mxu0 0.0
  %12105 = vmatpush1.msra.mxu0 0.0
  %12106 = vmatprep.subr.mxu0 0.0
  %12107 = vmatpush1.msra.mxu0 0.0
  %12108 = vmatprep.subr.mxu0 0.0
  %12109 = vmatpush1.msra.mxu0 0.0
  %12110 = vmatprep.mubr.f32.mxu0 0.0
  %12111 = vmatmul.mubr.f32.gmra.mrb[0].mxu0 %v12042
  %v12112 = vpop.f32.mrb[0].mxu0
  %v12113 = vadd.f32 0.0, %v12112
  %v12114 = vpop.f32.mrb[0].mxu0
  %12115 = vdwg.mxu0
  %12118 = vset.pattern.permute.xlu0 0
  %12119 = vperm.xlu0 %12118, %v11729
  %v12120 = vpop.permute.xlu0 %12119
  %12121 = vset.pattern.permute.xlu0 0
  %12122 = vperm.xlu0 %12121, %v11731
  %v12123 = vpop.permute.xlu0 %12122
  %v12124 = vlaneseq
  %v12125 = vshrl.u32 %v12124, 7
  %v12126 = vsub.s32 %v515, %v12125
  %v12127 = vrot.slane %v12120, %v12126
  %v12128 = vlaneseq
  %v12129 = vshrl.u32 %v12128, 7
  %v12130 = vsub.s32 %v515, %v12129
  %v12131 = vrot.slane %v12123, %v12130
  %v12132 = vsel %vm580, %v12131, %v12127
  %12133 = vrot.lane.b32.xlu0 %v371, 36
  %v12134 = vpop.permute.xlu0 %12133
  %v12135 = vsel %vm1065, %v12132, 0
  %v12137 = vsel %vm1068, %v12134, 0
  %12139 = vmatprep.subr.mxu0 0.0
  %12140 = vmatpush1.msra.mxu0 %v12137
  %12141 = vmatprep.subr.mxu0 0.0
  %12142 = vmatpush1.msra.mxu0 0.0
  %12143 = vmatprep.subr.mxu0 0.0
  %12144 = vmatpush1.msra.mxu0 0.0
  %12145 = vmatprep.subr.mxu0 0.0
  %12146 = vmatpush1.msra.mxu0 0.0
  %12147 = vmatprep.subr.mxu0 0.0
  %12148 = vmatpush1.msra.mxu0 0.0
  %12149 = vmatprep.subr.mxu0 0.0
  %12150 = vmatpush1.msra.mxu0 0.0
  %12151 = vmatprep.subr.mxu0 0.0
  %12152 = vmatpush1.msra.mxu0 0.0
  %12153 = vmatprep.subr.mxu0 0.0
  %12154 = vmatpush1.msra.mxu0 0.0
  %12155 = vmatprep.subr.mxu0 0.0
  %12156 = vmatpush1.msra.mxu0 0.0
  %12157 = vmatprep.subr.mxu0 0.0
  %12158 = vmatpush1.msra.mxu0 0.0
  %12159 = vmatprep.subr.mxu0 0.0
  %12160 = vmatpush1.msra.mxu0 0.0
  %12161 = vmatprep.subr.mxu0 0.0
  %12162 = vmatpush1.msra.mxu0 0.0
  %12163 = vmatprep.subr.mxu0 0.0
  %12164 = vmatpush1.msra.mxu0 0.0
  %12165 = vmatprep.subr.mxu0 0.0
  %12166 = vmatpush1.msra.mxu0 0.0
  %12167 = vmatprep.subr.mxu0 0.0
  %12168 = vmatpush1.msra.mxu0 0.0
  %12169 = vmatprep.subr.mxu0 0.0
  %12170 = vmatpush1.msra.mxu0 0.0
  %12171 = vmatprep.subr.mxu0 0.0
  %12172 = vmatpush1.msra.mxu0 0.0
  %12173 = vmatprep.subr.mxu0 0.0
  %12174 = vmatpush1.msra.mxu0 0.0
  %12175 = vmatprep.subr.mxu0 0.0
  %12176 = vmatpush1.msra.mxu0 0.0
  %12177 = vmatprep.subr.mxu0 0.0
  %12178 = vmatpush1.msra.mxu0 0.0
  %12179 = vmatprep.subr.mxu0 0.0
  %12180 = vmatpush1.msra.mxu0 0.0
  %12181 = vmatprep.subr.mxu0 0.0
  %12182 = vmatpush1.msra.mxu0 0.0
  %12183 = vmatprep.subr.mxu0 0.0
  %12184 = vmatpush1.msra.mxu0 0.0
  %12185 = vmatprep.subr.mxu0 0.0
  %12186 = vmatpush1.msra.mxu0 0.0
  %12187 = vmatprep.subr.mxu0 0.0
  %12188 = vmatpush1.msra.mxu0 0.0
  %12189 = vmatprep.subr.mxu0 0.0
  %12190 = vmatpush1.msra.mxu0 0.0
  %12191 = vmatprep.subr.mxu0 0.0
  %12192 = vmatpush1.msra.mxu0 0.0
  %12193 = vmatprep.subr.mxu0 0.0
  %12194 = vmatpush1.msra.mxu0 0.0
  %12195 = vmatprep.subr.mxu0 0.0
  %12196 = vmatpush1.msra.mxu0 0.0
  %12197 = vmatprep.subr.mxu0 0.0
  %12198 = vmatpush1.msra.mxu0 0.0
  %12199 = vmatprep.subr.mxu0 0.0
  %12200 = vmatpush1.msra.mxu0 0.0
  %12201 = vmatprep.subr.mxu0 0.0
  %12202 = vmatpush1.msra.mxu0 0.0
  %12203 = vmatprep.mubr.f32.mxu0 0.0
  %12204 = vmatmul.mubr.f32.gmra.mrb[0].mxu0 %v12135
  %v12205 = vpop.f32.mrb[0].mxu0
  %v12206 = vadd.f32 0.0, %v12205
  %v12207 = vpop.f32.mrb[0].mxu0
  %12208 = vdwg.mxu0
  %12211 = vset.pattern.permute.xlu0 0
  %12212 = vperm.xlu0 %12211, %v11733
  %v12213 = vpop.permute.xlu0 %12212
  %12214 = vset.pattern.permute.xlu0 0
  %12215 = vperm.xlu0 %12214, %v11735
  %v12216 = vpop.permute.xlu0 %12215
  %v12217 = vlaneseq
  %v12218 = vshrl.u32 %v12217, 7
  %v12219 = vsub.s32 %v515, %v12218
  %v12220 = vrot.slane %v12213, %v12219
  %v12221 = vlaneseq
  %v12222 = vshrl.u32 %v12221, 7
  %v12223 = vsub.s32 %v515, %v12222
  %v12224 = vrot.slane %v12216, %v12223
  %v12225 = vsel %vm580, %v12224, %v12220
  %12226 = vrot.lane.b32.xlu0 %v378, 36
  %v12227 = vpop.permute.xlu0 %12226
  %v12228 = vsel %vm1065, %v12225, 0
  %v12230 = vsel %vm1068, %v12227, 0
  %12232 = vmatprep.subr.mxu0 0.0
  %12233 = vmatpush1.msra.mxu0 %v12230
  %12234 = vmatprep.subr.mxu0 0.0
  %12235 = vmatpush1.msra.mxu0 0.0
  %12236 = vmatprep.subr.mxu0 0.0
  %12237 = vmatpush1.msra.mxu0 0.0
  %12238 = vmatprep.subr.mxu0 0.0
  %12239 = vmatpush1.msra.mxu0 0.0
  %12240 = vmatprep.subr.mxu0 0.0
  %12241 = vmatpush1.msra.mxu0 0.0
  %12242 = vmatprep.subr.mxu0 0.0
  %12243 = vmatpush1.msra.mxu0 0.0
  %12244 = vmatprep.subr.mxu0 0.0
  %12245 = vmatpush1.msra.mxu0 0.0
  %12246 = vmatprep.subr.mxu0 0.0
  %12247 = vmatpush1.msra.mxu0 0.0
  %12248 = vmatprep.subr.mxu0 0.0
  %12249 = vmatpush1.msra.mxu0 0.0
  %12250 = vmatprep.subr.mxu0 0.0
  %12251 = vmatpush1.msra.mxu0 0.0
  %12252 = vmatprep.subr.mxu0 0.0
  %12253 = vmatpush1.msra.mxu0 0.0
  %12254 = vmatprep.subr.mxu0 0.0
  %12255 = vmatpush1.msra.mxu0 0.0
  %12256 = vmatprep.subr.mxu0 0.0
  %12257 = vmatpush1.msra.mxu0 0.0
  %12258 = vmatprep.subr.mxu0 0.0
  %12259 = vmatpush1.msra.mxu0 0.0
  %12260 = vmatprep.subr.mxu0 0.0
  %12261 = vmatpush1.msra.mxu0 0.0
  %12262 = vmatprep.subr.mxu0 0.0
  %12263 = vmatpush1.msra.mxu0 0.0
  %12264 = vmatprep.subr.mxu0 0.0
  %12265 = vmatpush1.msra.mxu0 0.0
  %12266 = vmatprep.subr.mxu0 0.0
  %12267 = vmatpush1.msra.mxu0 0.0
  %12268 = vmatprep.subr.mxu0 0.0
  %12269 = vmatpush1.msra.mxu0 0.0
  %12270 = vmatprep.subr.mxu0 0.0
  %12271 = vmatpush1.msra.mxu0 0.0
  %12272 = vmatprep.subr.mxu0 0.0
  %12273 = vmatpush1.msra.mxu0 0.0
  %12274 = vmatprep.subr.mxu0 0.0
  %12275 = vmatpush1.msra.mxu0 0.0
  %12276 = vmatprep.subr.mxu0 0.0
  %12277 = vmatpush1.msra.mxu0 0.0
  %12278 = vmatprep.subr.mxu0 0.0
  %12279 = vmatpush1.msra.mxu0 0.0
  %12280 = vmatprep.subr.mxu0 0.0
  %12281 = vmatpush1.msra.mxu0 0.0
  %12282 = vmatprep.subr.mxu0 0.0
  %12283 = vmatpush1.msra.mxu0 0.0
  %12284 = vmatprep.subr.mxu0 0.0
  %12285 = vmatpush1.msra.mxu0 0.0
  %12286 = vmatprep.subr.mxu0 0.0
  %12287 = vmatpush1.msra.mxu0 0.0
  %12288 = vmatprep.subr.mxu0 0.0
  %12289 = vmatpush1.msra.mxu0 0.0
  %12290 = vmatprep.subr.mxu0 0.0
  %12291 = vmatpush1.msra.mxu0 0.0
  %12292 = vmatprep.subr.mxu0 0.0
  %12293 = vmatpush1.msra.mxu0 0.0
  %12294 = vmatprep.subr.mxu0 0.0
  %12295 = vmatpush1.msra.mxu0 0.0
  %12296 = vmatprep.mubr.f32.mxu0 0.0
  %12297 = vmatmul.mubr.f32.gmra.mrb[0].mxu0 %v12228
  %v12298 = vpop.f32.mrb[0].mxu0
  %v12299 = vadd.f32 0.0, %v12298
  %v12300 = vpop.f32.mrb[0].mxu0
  %12301 = vdwg.mxu0
  %12304 = vset.pattern.permute.xlu0 0
  %12305 = vperm.xlu0 %12304, %v11737
  %v12306 = vpop.permute.xlu0 %12305
  %12307 = vset.pattern.permute.xlu0 0
  %12308 = vperm.xlu0 %12307, %v11739
  %v12309 = vpop.permute.xlu0 %12308
  %v12310 = vlaneseq
  %v12311 = vshrl.u32 %v12310, 7
  %v12312 = vsub.s32 %v515, %v12311
  %v12313 = vrot.slane %v12306, %v12312
  %v12314 = vlaneseq
  %v12315 = vshrl.u32 %v12314, 7
  %v12316 = vsub.s32 %v515, %v12315
  %v12317 = vrot.slane %v12309, %v12316
  %v12318 = vsel %vm580, %v12317, %v12313
  %12319 = vrot.lane.b32.xlu0 %v385, 36
  %v12320 = vpop.permute.xlu0 %12319
  %v12321 = vsel %vm1065, %v12318, 0
  %v12323 = vsel %vm1068, %v12320, 0
  %12325 = vmatprep.subr.mxu0 0.0
  %12326 = vmatpush1.msra.mxu0 %v12323
  %12327 = vmatprep.subr.mxu0 0.0
  %12328 = vmatpush1.msra.mxu0 0.0
  %12329 = vmatprep.subr.mxu0 0.0
  %12330 = vmatpush1.msra.mxu0 0.0
  %12331 = vmatprep.subr.mxu0 0.0
  %12332 = vmatpush1.msra.mxu0 0.0
  %12333 = vmatprep.subr.mxu0 0.0
  %12334 = vmatpush1.msra.mxu0 0.0
  %12335 = vmatprep.subr.mxu0 0.0
  %12336 = vmatpush1.msra.mxu0 0.0
  %12337 = vmatprep.subr.mxu0 0.0
  %12338 = vmatpush1.msra.mxu0 0.0
  %12339 = vmatprep.subr.mxu0 0.0
  %12340 = vmatpush1.msra.mxu0 0.0
  %12341 = vmatprep.subr.mxu0 0.0
  %12342 = vmatpush1.msra.mxu0 0.0
  %12343 = vmatprep.subr.mxu0 0.0
  %12344 = vmatpush1.msra.mxu0 0.0
  %12345 = vmatprep.subr.mxu0 0.0
  %12346 = vmatpush1.msra.mxu0 0.0
  %12347 = vmatprep.subr.mxu0 0.0
  %12348 = vmatpush1.msra.mxu0 0.0
  %12349 = vmatprep.subr.mxu0 0.0
  %12350 = vmatpush1.msra.mxu0 0.0
  %12351 = vmatprep.subr.mxu0 0.0
  %12352 = vmatpush1.msra.mxu0 0.0
  %12353 = vmatprep.subr.mxu0 0.0
  %12354 = vmatpush1.msra.mxu0 0.0
  %12355 = vmatprep.subr.mxu0 0.0
  %12356 = vmatpush1.msra.mxu0 0.0
  %12357 = vmatprep.subr.mxu0 0.0
  %12358 = vmatpush1.msra.mxu0 0.0
  %12359 = vmatprep.subr.mxu0 0.0
  %12360 = vmatpush1.msra.mxu0 0.0
  %12361 = vmatprep.subr.mxu0 0.0
  %12362 = vmatpush1.msra.mxu0 0.0
  %12363 = vmatprep.subr.mxu0 0.0
  %12364 = vmatpush1.msra.mxu0 0.0
  %12365 = vmatprep.subr.mxu0 0.0
  %12366 = vmatpush1.msra.mxu0 0.0
  %12367 = vmatprep.subr.mxu0 0.0
  %12368 = vmatpush1.msra.mxu0 0.0
  %12369 = vmatprep.subr.mxu0 0.0
  %12370 = vmatpush1.msra.mxu0 0.0
  %12371 = vmatprep.subr.mxu0 0.0
  %12372 = vmatpush1.msra.mxu0 0.0
  %12373 = vmatprep.subr.mxu0 0.0
  %12374 = vmatpush1.msra.mxu0 0.0
  %12375 = vmatprep.subr.mxu0 0.0
  %12376 = vmatpush1.msra.mxu0 0.0
  %12377 = vmatprep.subr.mxu0 0.0
  %12378 = vmatpush1.msra.mxu0 0.0
  %12379 = vmatprep.subr.mxu0 0.0
  %12380 = vmatpush1.msra.mxu0 0.0
  %12381 = vmatprep.subr.mxu0 0.0
  %12382 = vmatpush1.msra.mxu0 0.0
  %12383 = vmatprep.subr.mxu0 0.0
  %12384 = vmatpush1.msra.mxu0 0.0
  %12385 = vmatprep.subr.mxu0 0.0
  %12386 = vmatpush1.msra.mxu0 0.0
  %12387 = vmatprep.subr.mxu0 0.0
  %12388 = vmatpush1.msra.mxu0 0.0
  %12389 = vmatprep.mubr.f32.mxu0 0.0
  %12390 = vmatmul.mubr.f32.gmra.mrb[0].mxu0 %v12321
  %v12391 = vpop.f32.mrb[0].mxu0
  %v12392 = vadd.f32 0.0, %v12391
  %v12393 = vpop.f32.mrb[0].mxu0
  %12394 = vdwg.mxu0
  %12397 = vset.pattern.permute.xlu0 0
  %12398 = vperm.xlu0 %12397, %v11741
  %v12399 = vpop.permute.xlu0 %12398
  %12400 = vset.pattern.permute.xlu0 0
  %12401 = vperm.xlu0 %12400, %v11743
  %v12402 = vpop.permute.xlu0 %12401
  %v12403 = vlaneseq
  %v12404 = vshrl.u32 %v12403, 7
  %v12405 = vsub.s32 %v515, %v12404
  %v12406 = vrot.slane %v12399, %v12405
  %v12407 = vlaneseq
  %v12408 = vshrl.u32 %v12407, 7
  %v12409 = vsub.s32 %v515, %v12408
  %v12410 = vrot.slane %v12402, %v12409
  %v12411 = vsel %vm580, %v12410, %v12406
  %12412 = vrot.lane.b32.xlu0 %v392, 36
  %v12413 = vpop.permute.xlu0 %12412
  %v12414 = vsel %vm1065, %v12411, 0
  %v12416 = vsel %vm1068, %v12413, 0
  %12418 = vmatprep.subr.mxu0 0.0
  %12419 = vmatpush1.msra.mxu0 %v12416
  %12420 = vmatprep.subr.mxu0 0.0
  %12421 = vmatpush1.msra.mxu0 0.0
  %12422 = vmatprep.subr.mxu0 0.0
  %12423 = vmatpush1.msra.mxu0 0.0
  %12424 = vmatprep.subr.mxu0 0.0
  %12425 = vmatpush1.msra.mxu0 0.0
  %12426 = vmatprep.subr.mxu0 0.0
  %12427 = vmatpush1.msra.mxu0 0.0
  %12428 = vmatprep.subr.mxu0 0.0
  %12429 = vmatpush1.msra.mxu0 0.0
  %12430 = vmatprep.subr.mxu0 0.0
  %12431 = vmatpush1.msra.mxu0 0.0
  %12432 = vmatprep.subr.mxu0 0.0
  %12433 = vmatpush1.msra.mxu0 0.0
  %12434 = vmatprep.subr.mxu0 0.0
  %12435 = vmatpush1.msra.mxu0 0.0
  %12436 = vmatprep.subr.mxu0 0.0
  %12437 = vmatpush1.msra.mxu0 0.0
  %12438 = vmatprep.subr.mxu0 0.0
  %12439 = vmatpush1.msra.mxu0 0.0
  %12440 = vmatprep.subr.mxu0 0.0
  %12441 = vmatpush1.msra.mxu0 0.0
  %12442 = vmatprep.subr.mxu0 0.0
  %12443 = vmatpush1.msra.mxu0 0.0
  %12444 = vmatprep.subr.mxu0 0.0
  %12445 = vmatpush1.msra.mxu0 0.0
  %12446 = vmatprep.subr.mxu0 0.0
  %12447 = vmatpush1.msra.mxu0 0.0
  %12448 = vmatprep.subr.mxu0 0.0
  %12449 = vmatpush1.msra.mxu0 0.0
  %12450 = vmatprep.subr.mxu0 0.0
  %12451 = vmatpush1.msra.mxu0 0.0
  %12452 = vmatprep.subr.mxu0 0.0
  %12453 = vmatpush1.msra.mxu0 0.0
  %12454 = vmatprep.subr.mxu0 0.0
  %12455 = vmatpush1.msra.mxu0 0.0
  %12456 = vmatprep.subr.mxu0 0.0
  %12457 = vmatpush1.msra.mxu0 0.0
  %12458 = vmatprep.subr.mxu0 0.0
  %12459 = vmatpush1.msra.mxu0 0.0
  %12460 = vmatprep.subr.mxu0 0.0
  %12461 = vmatpush1.msra.mxu0 0.0
  %12462 = vmatprep.subr.mxu0 0.0
  %12463 = vmatpush1.msra.mxu0 0.0
  %12464 = vmatprep.subr.mxu0 0.0
  %12465 = vmatpush1.msra.mxu0 0.0
  %12466 = vmatprep.subr.mxu0 0.0
  %12467 = vmatpush1.msra.mxu0 0.0
  %12468 = vmatprep.subr.mxu0 0.0
  %12469 = vmatpush1.msra.mxu0 0.0
  %12470 = vmatprep.subr.mxu0 0.0
  %12471 = vmatpush1.msra.mxu0 0.0
  %12472 = vmatprep.subr.mxu0 0.0
  %12473 = vmatpush1.msra.mxu0 0.0
  %12474 = vmatprep.subr.mxu0 0.0
  %12475 = vmatpush1.msra.mxu0 0.0
  %12476 = vmatprep.subr.mxu0 0.0
  %12477 = vmatpush1.msra.mxu0 0.0
  %12478 = vmatprep.subr.mxu0 0.0
  %12479 = vmatpush1.msra.mxu0 0.0
  %12480 = vmatprep.subr.mxu0 0.0
  %12481 = vmatpush1.msra.mxu0 0.0
  %12482 = vmatprep.mubr.f32.mxu0 0.0
  %12483 = vmatmul.mubr.f32.gmra.mrb[0].mxu0 %v12414
  %v12484 = vpop.f32.mrb[0].mxu0
  %v12485 = vadd.f32 0.0, %v12484
  %v12486 = vpop.f32.mrb[0].mxu0
  %12487 = vdwg.mxu0
  %v12496 = vcombine.low %v11834, %v11927
  %v12497 = vcombine.low %v12020, %v12113
  %v12499 = vunpack.c.l.s4 1983009808
  %v12500 = vunpack.c.0.s8 %v12499
  %v12501 = vlaneseq
  %v12502 = vshrl.u32 %v12501, 7
  %v12503 = vsub.s32 %v12500, %v12502
  %v12504 = vrot.slane %v12496, %v12503
  %v12506 = vunpack.c.l.s4 1983009808
  %v12507 = vunpack.c.0.s8 %v12506
  %v12508 = vlaneseq
  %v12509 = vshrl.u32 %v12508, 7
  %v12510 = vsub.s32 %v12507, %v12509
  %v12511 = vrot.slane %v12497, %v12510
  %v12512 = vcombine.low %v12504, %v12511
  %v12513 = vcombine.low %v12206, %v12299
  %v12514 = vcombine.low %v12392, %v12485
  %v12516 = vunpack.c.l.s4 1983009808
  %v12517 = vunpack.c.0.s8 %v12516
  %v12518 = vlaneseq
  %v12519 = vshrl.u32 %v12518, 7
  %v12520 = vsub.s32 %v12517, %v12519
  %v12521 = vrot.slane %v12513, %v12520
  %v12523 = vunpack.c.l.s4 1983009808
  %v12524 = vunpack.c.0.s8 %v12523
  %v12525 = vlaneseq
  %v12526 = vshrl.u32 %v12525, 7
  %v12527 = vsub.s32 %v12524, %v12526
  %v12528 = vrot.slane %v12514, %v12527
  %v12529 = vcombine.low %v12521, %v12528
  %v12530 = vrot.slane %v124, 4
  %v12531 = vsel %vm3252, %v12512, 0
  %v12533 = vsel %vm3252, %v12529, 0
  %v12535 = vsel %vm3257, %v12530, 0
  %12537 = vmatprep.subr.mxu0 0.0
  %12538 = vmatpush1.msra.mxu0 %v12535
  %12539 = vmatprep.subr.mxu0 0.0
  %12540 = vmatpush1.msra.mxu0 0.0
  %12541 = vmatprep.subr.mxu0 0.0
  %12542 = vmatpush1.msra.mxu0 0.0
  %12543 = vmatprep.subr.mxu0 0.0
  %12544 = vmatpush1.msra.mxu0 0.0
  %12545 = vmatprep.subr.mxu0 0.0
  %12546 = vmatpush1.msra.mxu0 0.0
  %12547 = vmatprep.subr.mxu0 0.0
  %12548 = vmatpush1.msra.mxu0 0.0
  %12549 = vmatprep.subr.mxu0 0.0
  %12550 = vmatpush1.msra.mxu0 0.0
  %12551 = vmatprep.subr.mxu0 0.0
  %12552 = vmatpush1.msra.mxu0 0.0
  %12553 = vmatprep.subr.mxu0 0.0
  %12554 = vmatpush1.msra.mxu0 0.0
  %12555 = vmatprep.subr.mxu0 0.0
  %12556 = vmatpush1.msra.mxu0 0.0
  %12557 = vmatprep.subr.mxu0 0.0
  %12558 = vmatpush1.msra.mxu0 0.0
  %12559 = vmatprep.subr.mxu0 0.0
  %12560 = vmatpush1.msra.mxu0 0.0
  %12561 = vmatprep.subr.mxu0 0.0
  %12562 = vmatpush1.msra.mxu0 0.0
  %12563 = vmatprep.subr.mxu0 0.0
  %12564 = vmatpush1.msra.mxu0 0.0
  %12565 = vmatprep.subr.mxu0 0.0
  %12566 = vmatpush1.msra.mxu0 0.0
  %12567 = vmatprep.subr.mxu0 0.0
  %12568 = vmatpush1.msra.mxu0 0.0
  %12569 = vmatprep.subr.mxu0 0.0
  %12570 = vmatpush1.msra.mxu0 0.0
  %12571 = vmatprep.subr.mxu0 0.0
  %12572 = vmatpush1.msra.mxu0 0.0
  %12573 = vmatprep.subr.mxu0 0.0
  %12574 = vmatpush1.msra.mxu0 0.0
  %12575 = vmatprep.subr.mxu0 0.0
  %12576 = vmatpush1.msra.mxu0 0.0
  %12577 = vmatprep.subr.mxu0 0.0
  %12578 = vmatpush1.msra.mxu0 0.0
  %12579 = vmatprep.subr.mxu0 0.0
  %12580 = vmatpush1.msra.mxu0 0.0
  %12581 = vmatprep.subr.mxu0 0.0
  %12582 = vmatpush1.msra.mxu0 0.0
  %12583 = vmatprep.subr.mxu0 0.0
  %12584 = vmatpush1.msra.mxu0 0.0
  %12585 = vmatprep.subr.mxu0 0.0
  %12586 = vmatpush1.msra.mxu0 0.0
  %12587 = vmatprep.subr.mxu0 0.0
  %12588 = vmatpush1.msra.mxu0 0.0
  %12589 = vmatprep.subr.mxu0 0.0
  %12590 = vmatpush1.msra.mxu0 0.0
  %12591 = vmatprep.subr.mxu0 0.0
  %12592 = vmatpush1.msra.mxu0 0.0
  %12593 = vmatprep.subr.mxu0 0.0
  %12594 = vmatpush1.msra.mxu0 0.0
  %12595 = vmatprep.subr.mxu0 0.0
  %12596 = vmatpush1.msra.mxu0 0.0
  %12597 = vmatprep.subr.mxu0 0.0
  %12598 = vmatpush1.msra.mxu0 0.0
  %12599 = vmatprep.subr.mxu0 0.0
  %12600 = vmatpush1.msra.mxu0 0.0
  %12601 = vmatprep.mubr.f32.mxu0 0.0
  %12602 = vmatmul.mubr.f32.gmra.mrb[0].mxu0 %v12531
  %v12603 = vpop.f32.mrb[0].mxu0
  %v12604 = vadd.f32 0.0, %v12603
  %v12605 = vpop.f32.mrb[0].mxu0
  %12606 = vmatprep.mubr.f32.mxu0 0.0
  %12607 = vmatmul.mubr.f32.gmra.mrb[0].mxu0 %v12533
  %v12608 = vpop.f32.mrb[0].mxu0
  %v12609 = vadd.f32 0.0, %v12608
  %v12610 = vpop.f32.mrb[0].mxu0
  %12611 = vdwg.mxu0
  %v12612 = vadd.f32 %v11086, %v12604
  %v12613 = vadd.f32 %v11087, %v12609
  %v12614 = vld [vmem:[%s4] sm:$0x1]
  %v12616 = vlaneseq
  %v12617 = vshrl.u32 %v12616, 7
  %v12618 = vsub.s32 0, %v12617
  %v12619 = vrot.slane %v12614, %v12618
  %v12621 = vadd.f32 %v12612, %v12619
  %v12622 = vadd.f32 %v12613, %v12619
  %v12623 = vadd.f32 %v26, %v12621
  %v12624 = vadd.f32 %v27, %v12622
  %v12625 = vld [vmem:[%s5] sm:$0x1]
  %v12626 = vld [vmem:[%s6] sm:$0x1]
  %v12627 = vsel %vm39, %v12623, 0.0
  %12628 = vadd.xlane.f32.xlu0 %v12627
  %v12629 = vpop.xlane.xlu0 %12628
  %v12630 = vsel %vm39, %v12624, 0.0
  %12631 = vadd.xlane.f32.xlu0 %v12630
  %v12632 = vpop.xlane.xlu0 %12631
  %v12633 = vrcp.pop 32.0
  %v12634 = vmul.f32 %v12629, %v12633
  %v12635 = vmul.f32 %v12632, %v12633
  %v12636 = vsub.f32 %v12623, %v12634
  %v12637 = vsub.f32 %v12624, %v12635
  %v12638 = vmul.f32 %v12636, %v12636
  %v12639 = vmul.f32 %v12637, %v12637
  %v12640 = vsel %vm39, %v12638, 0.0
  %12641 = vadd.xlane.f32.xlu0 %v12640
  %v12642 = vpop.xlane.xlu0 %12641
  %v12643 = vsel %vm39, %v12639, 0.0
  %12644 = vadd.xlane.f32.xlu0 %v12643
  %v12645 = vpop.xlane.xlu0 %12644
  %v12646 = vmul.f32 %v12642, %v12633
  %v12647 = vmul.f32 %v12645, %v12633
  %v12648 = vadd.f32 %v12646, 1e-05
  %v12649 = vadd.f32 %v12647, 1e-05
  %v12650 = vrsqrt.pop %v12648
  %v12651 = vrsqrt.pop %v12649
  %v12652 = vmul.f32 %v12636, %v12650
  %v12653 = vmul.f32 %v12637, %v12651
  %v12655 = vlaneseq
  %v12656 = vshrl.u32 %v12655, 7
  %v12657 = vsub.s32 0, %v12656
  %v12658 = vrot.slane %v12625, %v12657
  %v12660 = vmul.f32 %v12652, %v12658
  %v12661 = vmul.f32 %v12653, %v12658
  %v12663 = vlaneseq
  %v12664 = vshrl.u32 %v12663, 7
  %v12665 = vsub.s32 0, %v12664
  %v12666 = vrot.slane %v12626, %v12665
  %v12668 = vadd.f32 %v12660, %v12666
  %v12669 = vadd.f32 %v12661, %v12666
  %12670 = vst.msk [vmem:[%s7] sm:$0xff] %vm39, %v12668
  %12671 = vst.msk [vmem:[%s7 + $0x8] sm:$0xff] %vm39, %v12669
  // Predicated region
  $region30: #{transformer_forward.6} parent=0 // pred_check
    _
  $region31: #{transformer_forward.6} parent=0 // pred_check_branch
    %12673 = sbr.rel (0) target = $region33
  $region32: #{transformer_forward.6} parent=0 // pred_region
    _
  $region33: #{transformer_forward.6} parent=0 // pred_fallthru
    _
  // Predicated region
  $region34: #{transformer_forward.6} parent=0 // pred_check
    _
  $region35: #{transformer_forward.6} parent=0 // pred_check_branch
    %12675 = sbr.rel (0) target = $region37
  $region36: #{transformer_forward.6} parent=0 // pred_region
    _
  $region37: #{transformer_forward.6} parent=0 // pred_fallthru
    _

</llo_original>
